<compile_context>
chip_gen: v6e
topology: v6e:2x2x1
jax: 0.10.0
libtpu: 0.0.40
codegen_flags: <defaults>
</compile_context>

<pallas_src>
import functools

import jax
import jax.numpy as jnp
import numpy as np
from jax.experimental import pallas as pl
from jax.experimental.pallas import tpu as pltpu

BN_EPS = 1e-5


def _round_up(x, m):
    return (x + m - 1) // m * m


def _vmem_limit_bytes():
    try:
        cap = int(pltpu.get_tpu_info().vmem_capacity_bytes)
    except Exception:  # pragma: no cover - defensive fallback
        cap = 64 * 1024 * 1024
    return int(min(cap // 2, 64 * 1024 * 1024))


# ------------------------------ Pallas kernels -------------------------------
def _conv3x3_kernel(*refs, width, fuse_bn_relu):
    """One image per grid step.

    refs (fuse_bn_relu=False): x, mask_l, w, y_out, stats_out
    refs (fuse_bn_relu=True):  y_prev, mask_l, ss_prev, w, y_out, stats_out

    Computes the padded 3x3 / stride-1 conv as 9 row-shifted MXU matmuls with
    f32 accumulation, plus per-image BN partials (sum + centered 2nd moment).
    With fuse_bn_relu=True the previous stage's BN + ReLU is applied to the
    input tile in-register before the taps (a1 never hits HBM).
    """
    if fuse_bn_relu:
        x_ref, ml_ref, ss_ref, w_ref, y_ref, st_ref = refs
    else:
        x_ref, ml_ref, w_ref, y_ref, st_ref = refs

    mxu_dt = x_ref.dtype
    a = x_ref[0].astype(jnp.float32)                       # (HW, Cin) f32
    if fuse_bn_relu:
        a = jnp.maximum(a * ss_ref[0:1, :] + ss_ref[1:2, :], 0.0)

    hw, _ = a.shape
    cout = w_ref.shape[2]
    # 1.0 unless the pixel sits in image column 0 (left-edge validity).
    m_l = ml_ref[...].astype(jnp.float32)

    def shift_rows(v, d):
        """out[r] = v[r + d] with zero fill outside [0, HW)."""
        if d == 0:
            return v
        c = v.shape[1]
        if d > 0:
            return jnp.concatenate(
                [v[d:, :], jnp.zeros((d, c), v.dtype)], axis=0)
        return jnp.concatenate(
            [jnp.zeros((-d, c), v.dtype), v[:v.shape[0] + d, :]], axis=0)

    # 1.0 unless the pixel sits in image column W-1 (right-edge validity).
    m_r = shift_rows(m_l, 1)

    acc = jnp.zeros((hw, cout), jnp.float32)
    for kh in range(3):
        for kw in range(3):
            d = (kh - 1) * width + (kw - 1)
            s = shift_rows(a, d)
            if kw == 0:                       # tap reaches into column w-1
                s = s * m_l
            elif kw == 2:                     # tap reaches into column w+1
                s = s * m_r
            acc = acc + jnp.dot(s.astype(mxu_dt), w_ref[kh * 3 + kw],
                                preferred_element_type=jnp.float32)

    y_ref[0] = acc.astype(y_ref.dtype)

    # Per-image BN partials (safe under "parallel"): sum and centered M2.
    ssum = jnp.sum(acc, axis=0, keepdims=True)                 # (1, Cout)
    mu = ssum * (1.0 / hw)
    m2 = jnp.sum(jnp.square(acc - mu), axis=0, keepdims=True)  # (1, Cout)
    st_ref[0] = jnp.concatenate(
        [ssum, m2, jnp.zeros((6, cout), jnp.float32)], axis=0)


def _bn_add_relu_kernel(y_ref, ss_ref, res_ref, out_ref):
    """out = relu(y * scale + shift + residual), all math in f32."""
    out = (y_ref[0].astype(jnp.float32) * ss_ref[0:1, :] + ss_ref[1:2, :]
           + res_ref[0].astype(jnp.float32))
    out_ref[0] = jnp.maximum(out, 0.0).astype(out_ref.dtype)


# --------------------------- pallas_call wrappers -----------------------------
def _conv3x3_call(act, mask_l, w_packed, ss, *, width, store_dtype,
                  fuse_bn_relu, vmem_limit):
    n, hw, c_in = act.shape
    c_out = w_packed.shape[2]

    kernel = functools.partial(_conv3x3_kernel, width=width,
                               fuse_bn_relu=fuse_bn_relu)

    act_spec = pl.BlockSpec((1, hw, c_in), lambda i: (i, 0, 0))
    mask_spec = pl.BlockSpec((hw, c_in), lambda i: (0, 0))
    ss_spec = pl.BlockSpec((8, c_in), lambda i: (0, 0))
    w_spec = pl.BlockSpec((9, c_in, c_out), lambda i: (0, 0, 0))
    y_spec = pl.BlockSpec((1, hw, c_out), lambda i: (i, 0, 0))
    st_spec = pl.BlockSpec((1, 8, c_out), lambda i: (i, 0, 0))

    if fuse_bn_relu:
        in_specs = [act_spec, mask_spec, ss_spec, w_spec]
        operands = (act, mask_l, ss, w_packed)
    else:
        in_specs = [act_spec, mask_spec, w_spec]
        operands = (act, mask_l, w_packed)

    itemsize = jnp.dtype(store_dtype).itemsize
    bytes_accessed = (act.size * act.dtype.itemsize
                      + mask_l.size * mask_l.dtype.itemsize
                      + w_packed.size * w_packed.dtype.itemsize
                      + n * hw * c_out * itemsize + n * 8 * c_out * 4)
    flops = 2 * n * hw * 9 * c_in * c_out

    return pl.pallas_call(
        kernel,
        out_shape=(jax.ShapeDtypeStruct((n, hw, c_out), store_dtype),
                   jax.ShapeDtypeStruct((n, 8, c_out), jnp.float32)),
        grid_spec=pltpu.PrefetchScalarGridSpec(
            num_scalar_prefetch=0, grid=(n,),
            in_specs=in_specs, out_specs=(y_spec, st_spec)),
        compiler_params=pltpu.CompilerParams(
            dimension_semantics=("parallel",),
            vmem_limit_bytes=vmem_limit),
        cost_estimate=pl.CostEstimate(flops=flops, transcendentals=0,
                                      bytes_accessed=bytes_accessed),
    )(*operands)


def _bn_add_relu_call(y, ss, res, *, vmem_limit):
    n, hw, c = y.shape
    tile = pl.BlockSpec((1, hw, c), lambda i: (i, 0, 0))
    ss_spec = pl.BlockSpec((8, c), lambda i: (0, 0))
    return pl.pallas_call(
        _bn_add_relu_kernel,
        out_shape=jax.ShapeDtypeStruct((n, hw, c), jnp.float32),
        grid_spec=pltpu.PrefetchScalarGridSpec(
            num_scalar_prefetch=0, grid=(n,),
            in_specs=[tile, ss_spec, tile], out_specs=tile),
        compiler_params=pltpu.CompilerParams(
            dimension_semantics=("parallel",),
            vmem_limit_bytes=vmem_limit),
    )(y, ss, res)


# ----------------------------- host-side helpers ------------------------------
def _pack_weight(w_oihw, c_pad, dtype):
    """(Cout, Cin, 3, 3) -> (9, C_pad, C_pad), tap-major, zero-padded channels."""
    co, ci, kh, kw = w_oihw.shape
    wp = jnp.transpose(w_oihw, (2, 3, 1, 0)).reshape(kh * kw, ci, co)
    wp = jnp.pad(wp, ((0, 0), (0, c_pad - ci), (0, c_pad - co)))
    return wp.astype(dtype)


def _fold_bn(stats, gamma, beta, hw, c_pad):
    """Combine per-image partials (sum, centered M2) into BN scale/shift (f32)."""
    n = stats.shape[0]
    total = float(n * hw)
    sums = stats[:, 0, :]                       # (N, C)
    m2s = stats[:, 1, :]                        # (N, C)
    means = sums / float(hw)
    mean = jnp.sum(sums, axis=0) / total
    m2 = (jnp.sum(m2s, axis=0)
          + float(hw) * jnp.sum(jnp.square(means - mean[None, :]), axis=0))
    var = m2 / total                            # biased, as in BN training
    inv = jax.lax.rsqrt(var + BN_EPS)
    scale = jnp.pad(gamma, (0, c_pad - gamma.shape[0])) * inv
    shift = jnp.pad(beta, (0, c_pad - beta.shape[0])) - mean * scale
    return jnp.concatenate([scale[None], shift[None],
                            jnp.zeros((6, c_pad), jnp.float32)], axis=0)


# --------------------------------- forward ------------------------------------
def basic_block_forward(x_nchw, params, *, compute_dtype=jnp.bfloat16):
    """BasicBlock forward: relu(bn2(conv2(relu(bn1(conv1(x))))) + x)."""
    x_nchw = x_nchw.astype(jnp.float32)
    n, cin, h, w = x_nchw.shape
    planes = params["w1"].shape[0]
    assert params["w1"].shape == (planes, cin, 3, 3)
    assert cin == planes, "identity residual requires inplanes == planes"

    hw = h * w
    c_pad = _round_up(planes, 128)
    vmem_limit = _vmem_limit_bytes()

    # Channel-last, flattened spatial rows, lane-dense padded channels.
    # (If the surrounding model is already channel-last these two transposes
    # at entry/exit can be dropped.)
    xs = jnp.transpose(x_nchw, (0, 2, 3, 1)).reshape(n, hw, cin)
    xs = jnp.pad(xs, ((0, 0), (0, 0), (0, c_pad - cin))).astype(compute_dtype)

    # Left-edge validity mask: 1.0 unless the pixel is in image column 0.
    col_valid = (jnp.arange(w, dtype=jnp.int32) > 0).astype(compute_dtype)
    mask_l = jnp.broadcast_to(jnp.tile(col_valid, h)[:, None], (hw, c_pad))
    mask_l = mask_l.astype(compute_dtype)

    w1p = _pack_weight(params["w1"], c_pad, compute_dtype)
    w2p = _pack_weight(params["w2"], c_pad, compute_dtype)

    # ---- stage 1: conv1 + BN partials -------------------------------------
    y1, st1 = _conv3x3_call(xs, mask_l, w1p, None, width=w,
                            store_dtype=compute_dtype, fuse_bn_relu=False,
                            vmem_limit=vmem_limit)
    ss1 = _fold_bn(st1, params["g1"], params["b1"], hw, c_pad)

    # ---- stage 2: conv2 with bn1+relu fused into its prologue --------------
    y2, st2 = _conv3x3_call(y1, mask_l, w2p, ss1, width=w,
                            store_dtype=compute_dtype, fuse_bn_relu=True,
                            vmem_limit=vmem_limit)
    ss2 = _fold_bn(st2, params["g2"], params["b2"], hw, c_pad)

    # ---- bn2 + residual add + relu -----------------------------------------
    out = _bn_add_relu_call(y2, ss2, xs, vmem_limit=vmem_limit)

    out = out[:, :, :planes].reshape(n, h, w, planes)
    return jnp.transpose(out, (0, 3, 1, 2))           # back to NCHW, f32


basic_block_forward_jit = jax.jit(basic_block_forward,
                                  static_argnames=("compute_dtype",))


# ----------------------------- reference (pure JAX) ----------------------------
def _ref_forward(x, params):
    def conv(inp, w):
        return jax.lax.conv_general_dilated(
            inp, w, window_strides=(1, 1), padding=((1, 1), (1, 1)),
            dimension_numbers=("NCHW", "OIHW", "NCHW"))

    def bn(inp, g, b):
        mean = jnp.mean(inp, axis=(0, 2, 3), keepdims=True)
        var = jnp.mean(jnp.square(inp - mean), axis=(0, 2, 3), keepdims=True)
        return ((inp - mean) * jax.lax.rsqrt(var + BN_EPS)
                ) * g.reshape(1, -1, 1, 1) + b.reshape(1, -1, 1, 1)

    out = jnp.maximum(bn(conv(x, params["w1"]), params["g1"], params["b1"]), 0.0)
    out = bn(conv(out, params["w2"]), params["g2"], params["b2"]) + x
    return jnp.maximum(out, 0.0)


if __name__ == "__main__":
    inplanes = planes = 4
    N, H, W = 2, 16, 16

    key = jax.random.PRNGKey(0)
    k1, k2, k3, k4, k5, k6, k7 = jax.random.split(key, 7)
    params = {
        "w1": 0.1 * jax.random.normal(k1, (planes, inplanes, 3, 3), jnp.float32),
        "w2": 0.1 * jax.random.normal(k2, (planes, planes, 3, 3), jnp.float32),
        "g1": 1.0 + 0.1 * jax.random.normal(k3, (planes,), jnp.float32),
        "b1": 0.1 * jax.random.normal(k4, (planes,), jnp.float32),
        "g2": 1.0 + 0.1 * jax.random.normal(k5, (planes,), jnp.float32),
        "b2": 0.1 * jax.random.normal(k6, (planes,), jnp.float32),
    }
    x = jax.random.normal(k7, (N, inplanes, H, W), jnp.float32)   # NCHW input

    ref = jax.block_until_ready(_ref_forward(x, params))

    # Exact path: f32 MXU inputs / f32 intermediates.
    out_f32 = jax.block_until_ready(
        basic_block_forward_jit(x, params, compute_dtype=jnp.float32))
    assert out_f32.shape == (N, planes, H, W)
    np.testing.assert_allclose(np.asarray(out_f32), np.asarray(ref),
                               rtol=1e-3, atol=1e-4)

    # Fast path (default): bf16 MXU inputs and bf16 intermediates,
    # f32 accumulation / BN statistics.
    out_bf16 = jax.block_until_ready(
        basic_block_forward_jit(x, params, compute_dtype=jnp.bfloat16))
    assert out_bf16.shape == (N, planes, H, W)
    np.testing.assert_allclose(np.asarray(out_bf16), np.asarray(ref),
                               rtol=5e-2, atol=5e-2)

    print("KERNEL_OK")
</pallas_src>

<mosaic_0001>
module attributes {stable_mosaic.version = 11 : i64} {
  func.func @_bn_add_relu_kernel(%arg0: i32, %arg1: memref<1x256x128xf32, #tpu.memory_space<vmem>>, %arg2: memref<8x128xf32, #tpu.memory_space<vmem>>, %arg3: memref<1x256x128xf32, #tpu.memory_space<vmem>>, %arg4: memref<1x256x128xf32, #tpu.memory_space<vmem>>) attributes {dimension_semantics = [#tpu.dimension_semantics<parallel>], iteration_bounds = array<i64: 2>, scalar_prefetch = 0 : i64, scratch_operands = 0 : i64, tpu.core_type = #tpu.core_type<tc>, window_params = [{transform_indices = @transform_0, window_bounds = array<i64: 1, 256, 128>}, {pipeline_mode = #tpu.pipeline_mode<synchronous>, transform_indices = @transform_1, window_bounds = array<i64: 8, 128>}, {transform_indices = @transform_2, window_bounds = array<i64: 1, 256, 128>}, {transform_indices = @transform_3, window_bounds = array<i64: 1, 256, 128>}]} {
    %c0 = arith.constant 0 : index
    %c0_0 = arith.constant 0 : index
    %c0_1 = arith.constant 0 : index
    %0 = vector.load %arg1[%c0, %c0_0, %c0_1] : memref<1x256x128xf32, #tpu.memory_space<vmem>>, vector<1x256x128xf32>
    %1 = vector.shape_cast %0 : vector<1x256x128xf32> to vector<256x128xf32>
    %c0_2 = arith.constant 0 : index
    %c0_3 = arith.constant 0 : index
    %2 = vector.load %arg2[%c0_2, %c0_3] : memref<8x128xf32, #tpu.memory_space<vmem>>, vector<1x128xf32>
    %3 = vector.broadcast %2 : vector<1x128xf32> to vector<256x128xf32>
    %4 = arith.mulf %1, %3 : vector<256x128xf32>
    %c1 = arith.constant 1 : index
    %c0_4 = arith.constant 0 : index
    %5 = vector.load %arg2[%c1, %c0_4] : memref<8x128xf32, #tpu.memory_space<vmem>>, vector<1x128xf32>
    %6 = vector.broadcast %5 : vector<1x128xf32> to vector<256x128xf32>
    %7 = arith.addf %4, %6 : vector<256x128xf32>
    %c0_5 = arith.constant 0 : index
    %c0_6 = arith.constant 0 : index
    %c0_7 = arith.constant 0 : index
    %8 = vector.load %arg3[%c0_5, %c0_6, %c0_7] : memref<1x256x128xf32, #tpu.memory_space<vmem>>, vector<1x256x128xf32>
    %9 = vector.shape_cast %8 : vector<1x256x128xf32> to vector<256x128xf32>
    %10 = arith.addf %7, %9 : vector<256x128xf32>
    %cst = arith.constant 0.000000e+00 : f32
    %11 = vector.broadcast %cst : f32 to vector<256x128xf32>
    %12 = arith.maximumf %10, %11 : vector<256x128xf32>
    %c0_8 = arith.constant 0 : index
    %c0_9 = arith.constant 0 : index
    %c0_10 = arith.constant 0 : index
    %13 = vector.load %arg4[%c0_8, %c0_9, %c0_10] : memref<1x256x128xf32, #tpu.memory_space<vmem>>, vector<1x256x128xf32>
    %14 = vector.shape_cast %13 : vector<1x256x128xf32> to vector<256x128xf32>
    %15 = vector.shape_cast %12 : vector<256x128xf32> to vector<1x256x128xf32>
    tpu.vector_store %arg4[%c0_8, %c0_9, %c0_10], %15 {strides = array<i32>} : memref<1x256x128xf32, #tpu.memory_space<vmem>>, vector<1x256x128xf32>,
    return
  }
  func.func @transform_0(%arg0: i32) -> (i32, i32, i32) {
    %c0_i32 = arith.constant 0 : i32
    %c0_i32_0 = arith.constant 0 : i32
    %c0_i32_1 = arith.constant 0 : i32
    return %arg0, %c0_i32, %c0_i32_0 : i32, i32, i32
  }
  func.func @transform_1(%arg0: i32) -> (i32, i32) {
    %c0_i32 = arith.constant 0 : i32
    %c0_i32_0 = arith.constant 0 : i32
    %c0_i32_1 = arith.constant 0 : i32
    return %c0_i32, %c0_i32_0 : i32, i32
  }
  func.func @transform_2(%arg0: i32) -> (i32, i32, i32) {
    %c0_i32 = arith.constant 0 : i32
    %c0_i32_0 = arith.constant 0 : i32
    %c0_i32_1 = arith.constant 0 : i32
    return %arg0, %c0_i32, %c0_i32_0 : i32, i32, i32
  }
  func.func @transform_3(%arg0: i32) -> (i32, i32, i32) {
    %c0_i32 = arith.constant 0 : i32
    %c0_i32_0 = arith.constant 0 : i32
    %c0_i32_1 = arith.constant 0 : i32
    return %arg0, %c0_i32, %c0_i32_0 : i32, i32, i32
  }
}

module attributes {stable_mosaic.version = 11 : i64} {
  func.func @_conv3x3_kernel(%arg0: i32, %arg1: memref<1x256x128xf32, #tpu.memory_space<vmem>>, %arg2: memref<256x128xf32, #tpu.memory_space<vmem>>, %arg3: memref<9x128x128xf32, #tpu.memory_space<vmem>>, %arg4: memref<1x256x128xf32, #tpu.memory_space<vmem>>, %arg5: memref<1x8x128xf32, #tpu.memory_space<vmem>>) attributes {dimension_semantics = [#tpu.dimension_semantics<parallel>], iteration_bounds = array<i64: 2>, scalar_prefetch = 0 : i64, scratch_operands = 0 : i64, tpu.core_type = #tpu.core_type<tc>, window_params = [{transform_indices = @transform_0, window_bounds = array<i64: 1, 256, 128>}, {pipeline_mode = #tpu.pipeline_mode<synchronous>, transform_indices = @transform_1, window_bounds = array<i64: 256, 128>}, {pipeline_mode = #tpu.pipeline_mode<synchronous>, transform_indices = @transform_2, window_bounds = array<i64: 9, 128, 128>}, {transform_indices = @transform_3, window_bounds = array<i64: 1, 256, 128>}, {transform_indices = @transform_4, window_bounds = array<i64: 1, 8, 128>}]} {
    %c0 = arith.constant 0 : index
    %c0_0 = arith.constant 0 : index
    %c0_1 = arith.constant 0 : index
    %0 = vector.load %arg1[%c0, %c0_0, %c0_1] : memref<1x256x128xf32, #tpu.memory_space<vmem>>, vector<1x256x128xf32>
    %1 = vector.shape_cast %0 : vector<1x256x128xf32> to vector<256x128xf32>
    %c0_2 = arith.constant 0 : index
    %c0_3 = arith.constant 0 : index
    %2 = vector.load %arg2[%c0_2, %c0_3] : memref<256x128xf32, #tpu.memory_space<vmem>>, vector<256x128xf32>
    %3 = vector.extract_strided_slice %2 {offsets = [1, 0], sizes = [255, 128], strides = [1, 1]} : vector<256x128xf32> to vector<255x128xf32>
    %cst = arith.constant 0.000000e+00 : f32
    %4 = vector.broadcast %cst : f32 to vector<1x128xf32>
    %5 = tpu.concatenate %3, %4 in 0 : vector<255x128xf32>, vector<1x128xf32> -> vector<256x128xf32>
    %cst_4 = arith.constant 0.000000e+00 : f32
    %6 = vector.broadcast %cst_4 : f32 to vector<256x128xf32>
    %cst_5 = arith.constant 0.000000e+00 : f32
    %7 = vector.broadcast %cst_5 : f32 to vector<17x128xf32>
    %8 = vector.extract_strided_slice %1 {offsets = [0, 0], sizes = [239, 128], strides = [1, 1]} : vector<256x128xf32> to vector<239x128xf32>
    %9 = tpu.concatenate %7, %8 in 0 : vector<17x128xf32>, vector<239x128xf32> -> vector<256x128xf32>
    %10 = arith.mulf %9, %2 : vector<256x128xf32>
    %c0_6 = arith.constant 0 : index
    %c0_7 = arith.constant 0 : index
    %c0_8 = arith.constant 0 : index
    %11 = vector.load %arg3[%c0_6, %c0_7, %c0_8] : memref<9x128x128xf32, #tpu.memory_space<vmem>>, vector<1x128x128xf32>
    %12 = vector.shape_cast %11 : vector<1x128x128xf32> to vector<128x128xf32>
    %cst_9 = arith.constant dense<0.000000e+00> : vector<256x128xf32>
    %13 = tpu.matmul %10, %12, %cst_9 {dimension_numbers = #tpu.dot_dimension_numbers<[1], [0], [0], [1], [0, 0, 1, 1], [], []>} : vector<256x128xf32>, vector<128x128xf32>, vector<256x128xf32> -> vector<256x128xf32>
    %14 = arith.addf %6, %13 : vector<256x128xf32>
    %cst_10 = arith.constant 0.000000e+00 : f32
    %15 = vector.broadcast %cst_10 : f32 to vector<16x128xf32>
    %16 = vector.extract_strided_slice %1 {offsets = [0, 0], sizes = [240, 128], strides = [1, 1]} : vector<256x128xf32> to vector<240x128xf32>
    %17 = tpu.concatenate %15, %16 in 0 : vector<16x128xf32>, vector<240x128xf32> -> vector<256x128xf32>
    %c1 = arith.constant 1 : index
    %c0_11 = arith.constant 0 : index
    %c0_12 = arith.constant 0 : index
    %18 = vector.load %arg3[%c1, %c0_11, %c0_12] : memref<9x128x128xf32, #tpu.memory_space<vmem>>, vector<1x128x128xf32>
    %19 = vector.shape_cast %18 : vector<1x128x128xf32> to vector<128x128xf32>
    %cst_13 = arith.constant dense<0.000000e+00> : vector<256x128xf32>
    %20 = tpu.matmul %17, %19, %cst_13 {dimension_numbers = #tpu.dot_dimension_numbers<[1], [0], [0], [1], [0, 0, 1, 1], [], []>} : vector<256x128xf32>, vector<128x128xf32>, vector<256x128xf32> -> vector<256x128xf32>
    %21 = arith.addf %14, %20 : vector<256x128xf32>
    %cst_14 = arith.constant 0.000000e+00 : f32
    %22 = vector.broadcast %cst_14 : f32 to vector<15x128xf32>
    %23 = vector.extract_strided_slice %1 {offsets = [0, 0], sizes = [241, 128], strides = [1, 1]} : vector<256x128xf32> to vector<241x128xf32>
    %24 = tpu.concatenate %22, %23 in 0 : vector<15x128xf32>, vector<241x128xf32> -> vector<256x128xf32>
    %25 = arith.mulf %24, %5 : vector<256x128xf32>
    %c2 = arith.constant 2 : index
    %c0_15 = arith.constant 0 : index
    %c0_16 = arith.constant 0 : index
    %26 = vector.load %arg3[%c2, %c0_15, %c0_16] : memref<9x128x128xf32, #tpu.memory_space<vmem>>, vector<1x128x128xf32>
    %27 = vector.shape_cast %26 : vector<1x128x128xf32> to vector<128x128xf32>
    %cst_17 = arith.constant dense<0.000000e+00> : vector<256x128xf32>
    %28 = tpu.matmul %25, %27, %cst_17 {dimension_numbers = #tpu.dot_dimension_numbers<[1], [0], [0], [1], [0, 0, 1, 1], [], []>} : vector<256x128xf32>, vector<128x128xf32>, vector<256x128xf32> -> vector<256x128xf32>
    %29 = arith.addf %21, %28 : vector<256x128xf32>
    %cst_18 = arith.constant 0.000000e+00 : f32
    %30 = vector.broadcast %cst_18 : f32 to vector<1x128xf32>
    %31 = vector.extract_strided_slice %1 {offsets = [0, 0], sizes = [255, 128], strides = [1, 1]} : vector<256x128xf32> to vector<255x128xf32>
    %32 = tpu.concatenate %30, %31 in 0 : vector<1x128xf32>, vector<255x128xf32> -> vector<256x128xf32>
    %33 = arith.mulf %32, %2 : vector<256x128xf32>
    %c3 = arith.constant 3 : index
    %c0_19 = arith.constant 0 : index
    %c0_20 = arith.constant 0 : index
    %34 = vector.load %arg3[%c3, %c0_19, %c0_20] : memref<9x128x128xf32, #tpu.memory_space<vmem>>, vector<1x128x128xf32>
    %35 = vector.shape_cast %34 : vector<1x128x128xf32> to vector<128x128xf32>
    %cst_21 = arith.constant dense<0.000000e+00> : vector<256x128xf32>
    %36 = tpu.matmul %33, %35, %cst_21 {dimension_numbers = #tpu.dot_dimension_numbers<[1], [0], [0], [1], [0, 0, 1, 1], [], []>} : vector<256x128xf32>, vector<128x128xf32>, vector<256x128xf32> -> vector<256x128xf32>
    %37 = arith.addf %29, %36 : vector<256x128xf32>
    %c4 = arith.constant 4 : index
    %c0_22 = arith.constant 0 : index
    %c0_23 = arith.constant 0 : index
    %38 = vector.load %arg3[%c4, %c0_22, %c0_23] : memref<9x128x128xf32, #tpu.memory_space<vmem>>, vector<1x128x128xf32>
    %39 = vector.shape_cast %38 : vector<1x128x128xf32> to vector<128x128xf32>
    %cst_24 = arith.constant dense<0.000000e+00> : vector<256x128xf32>
    %40 = tpu.matmul %1, %39, %cst_24 {dimension_numbers = #tpu.dot_dimension_numbers<[1], [0], [0], [1], [0, 0, 1, 1], [], []>} : vector<256x128xf32>, vector<128x128xf32>, vector<256x128xf32> -> vector<256x128xf32>
    %41 = arith.addf %37, %40 : vector<256x128xf32>
    %42 = vector.extract_strided_slice %1 {offsets = [1, 0], sizes = [255, 128], strides = [1, 1]} : vector<256x128xf32> to vector<255x128xf32>
    %cst_25 = arith.constant 0.000000e+00 : f32
    %43 = vector.broadcast %cst_25 : f32 to vector<1x128xf32>
    %44 = tpu.concatenate %42, %43 in 0 : vector<255x128xf32>, vector<1x128xf32> -> vector<256x128xf32>
    %45 = arith.mulf %44, %5 : vector<256x128xf32>
    %c5 = arith.constant 5 : index
    %c0_26 = arith.constant 0 : index
    %c0_27 = arith.constant 0 : index
    %46 = vector.load %arg3[%c5, %c0_26, %c0_27] : memref<9x128x128xf32, #tpu.memory_space<vmem>>, vector<1x128x128xf32>
    %47 = vector.shape_cast %46 : vector<1x128x128xf32> to vector<128x128xf32>
    %cst_28 = arith.constant dense<0.000000e+00> : vector<256x128xf32>
    %48 = tpu.matmul %45, %47, %cst_28 {dimension_numbers = #tpu.dot_dimension_numbers<[1], [0], [0], [1], [0, 0, 1, 1], [], []>} : vector<256x128xf32>, vector<128x128xf32>, vector<256x128xf32> -> vector<256x128xf32>
    %49 = arith.addf %41, %48 : vector<256x128xf32>
    %50 = vector.extract_strided_slice %1 {offsets = [15, 0], sizes = [241, 128], strides = [1, 1]} : vector<256x128xf32> to vector<241x128xf32>
    %cst_29 = arith.constant 0.000000e+00 : f32
    %51 = vector.broadcast %cst_29 : f32 to vector<15x128xf32>
    %52 = tpu.concatenate %50, %51 in 0 : vector<241x128xf32>, vector<15x128xf32> -> vector<256x128xf32>
    %53 = arith.mulf %52, %2 : vector<256x128xf32>
    %c6 = arith.constant 6 : index
    %c0_30 = arith.constant 0 : index
    %c0_31 = arith.constant 0 : index
    %54 = vector.load %arg3[%c6, %c0_30, %c0_31] : memref<9x128x128xf32, #tpu.memory_space<vmem>>, vector<1x128x128xf32>
    %55 = vector.shape_cast %54 : vector<1x128x128xf32> to vector<128x128xf32>
    %cst_32 = arith.constant dense<0.000000e+00> : vector<256x128xf32>
    %56 = tpu.matmul %53, %55, %cst_32 {dimension_numbers = #tpu.dot_dimension_numbers<[1], [0], [0], [1], [0, 0, 1, 1], [], []>} : vector<256x128xf32>, vector<128x128xf32>, vector<256x128xf32> -> vector<256x128xf32>
    %57 = arith.addf %49, %56 : vector<256x128xf32>
    %58 = vector.extract_strided_slice %1 {offsets = [16, 0], sizes = [240, 128], strides = [1, 1]} : vector<256x128xf32> to vector<240x128xf32>
    %cst_33 = arith.constant 0.000000e+00 : f32
    %59 = vector.broadcast %cst_33 : f32 to vector<16x128xf32>
    %60 = tpu.concatenate %58, %59 in 0 : vector<240x128xf32>, vector<16x128xf32> -> vector<256x128xf32>
    %c7 = arith.constant 7 : index
    %c0_34 = arith.constant 0 : index
    %c0_35 = arith.constant 0 : index
    %61 = vector.load %arg3[%c7, %c0_34, %c0_35] : memref<9x128x128xf32, #tpu.memory_space<vmem>>, vector<1x128x128xf32>
    %62 = vector.shape_cast %61 : vector<1x128x128xf32> to vector<128x128xf32>
    %cst_36 = arith.constant dense<0.000000e+00> : vector<256x128xf32>
    %63 = tpu.matmul %60, %62, %cst_36 {dimension_numbers = #tpu.dot_dimension_numbers<[1], [0], [0], [1], [0, 0, 1, 1], [], []>} : vector<256x128xf32>, vector<128x128xf32>, vector<256x128xf32> -> vector<256x128xf32>
    %64 = arith.addf %57, %63 : vector<256x128xf32>
    %65 = vector.extract_strided_slice %1 {offsets = [17, 0], sizes = [239, 128], strides = [1, 1]} : vector<256x128xf32> to vector<239x128xf32>
    %cst_37 = arith.constant 0.000000e+00 : f32
    %66 = vector.broadcast %cst_37 : f32 to vector<17x128xf32>
    %67 = tpu.concatenate %65, %66 in 0 : vector<239x128xf32>, vector<17x128xf32> -> vector<256x128xf32>
    %68 = arith.mulf %67, %5 : vector<256x128xf32>
    %c8 = arith.constant 8 : index
    %c0_38 = arith.constant 0 : index
    %c0_39 = arith.constant 0 : index
    %69 = vector.load %arg3[%c8, %c0_38, %c0_39] : memref<9x128x128xf32, #tpu.memory_space<vmem>>, vector<1x128x128xf32>
    %70 = vector.shape_cast %69 : vector<1x128x128xf32> to vector<128x128xf32>
    %cst_40 = arith.constant dense<0.000000e+00> : vector<256x128xf32>
    %71 = tpu.matmul %68, %70, %cst_40 {dimension_numbers = #tpu.dot_dimension_numbers<[1], [0], [0], [1], [0, 0, 1, 1], [], []>} : vector<256x128xf32>, vector<128x128xf32>, vector<256x128xf32> -> vector<256x128xf32>
    %72 = arith.addf %64, %71 : vector<256x128xf32>
    %c0_41 = arith.constant 0 : index
    %c0_42 = arith.constant 0 : index
    %c0_43 = arith.constant 0 : index
    %73 = vector.load %arg4[%c0_41, %c0_42, %c0_43] : memref<1x256x128xf32, #tpu.memory_space<vmem>>, vector<1x256x128xf32>
    %74 = vector.shape_cast %73 : vector<1x256x128xf32> to vector<256x128xf32>
    %75 = vector.shape_cast %72 : vector<256x128xf32> to vector<1x256x128xf32>
    tpu.vector_store %arg4[%c0_41, %c0_42, %c0_43], %75 {strides = array<i32>} : memref<1x256x128xf32, #tpu.memory_space<vmem>>, vector<1x256x128xf32>,
    %cst_44 = arith.constant dense<0.000000e+00> : vector<128xf32>
    %76 = vector.multi_reduction <add>, %72, %cst_44 [0] : vector<256x128xf32> to vector<128xf32>
    %77 = vector.shape_cast %76 : vector<128xf32> to vector<1x128xf32>
    %cst_45 = arith.constant 3.906250e-03 : f32
    %78 = vector.broadcast %cst_45 : f32 to vector<1x128xf32>
    %79 = arith.mulf %77, %78 : vector<1x128xf32>
    %80 = vector.broadcast %79 : vector<1x128xf32> to vector<256x128xf32>
    %81 = arith.subf %72, %80 : vector<256x128xf32>
    %82 = arith.mulf %81, %81 : vector<256x128xf32>
    %cst_46 = arith.constant dense<0.000000e+00> : vector<128xf32>
    %83 = vector.multi_reduction <add>, %82, %cst_46 [0] : vector<256x128xf32> to vector<128xf32>
    %84 = vector.shape_cast %83 : vector<128xf32> to vector<1x128xf32>
    %cst_47 = arith.constant 0.000000e+00 : f32
    %85 = vector.broadcast %cst_47 : f32 to vector<6x128xf32>
    %86 = tpu.concatenate %77, %84, %85 in 0 : vector<1x128xf32>, vector<1x128xf32>, vector<6x128xf32> -> vector<8x128xf32>
    %c0_48 = arith.constant 0 : index
    %c0_49 = arith.constant 0 : index
    %c0_50 = arith.constant 0 : index
    %87 = vector.load %arg5[%c0_48, %c0_49, %c0_50] : memref<1x8x128xf32, #tpu.memory_space<vmem>>, vector<1x8x128xf32>
    %88 = vector.shape_cast %87 : vector<1x8x128xf32> to vector<8x128xf32>
    %89 = vector.shape_cast %86 : vector<8x128xf32> to vector<1x8x128xf32>
    tpu.vector_store %arg5[%c0_48, %c0_49, %c0_50], %89 {strides = array<i32>} : memref<1x8x128xf32, #tpu.memory_space<vmem>>, vector<1x8x128xf32>,
    return
  }
  func.func @transform_0(%arg0: i32) -> (i32, i32, i32) {
    %c0_i32 = arith.constant 0 : i32
    %c0_i32_0 = arith.constant 0 : i32
    %c0_i32_1 = arith.constant 0 : i32
    return %arg0, %c0_i32, %c0_i32_0 : i32, i32, i32
  }
  func.func @transform_1(%arg0: i32) -> (i32, i32) {
    %c0_i32 = arith.constant 0 : i32
    %c0_i32_0 = arith.constant 0 : i32
    %c0_i32_1 = arith.constant 0 : i32
    return %c0_i32, %c0_i32_0 : i32, i32
  }
  func.func @transform_2(%arg0: i32) -> (i32, i32, i32) {
    %c0_i32 = arith.constant 0 : i32
    %c0_i32_0 = arith.constant 0 : i32
    %c0_i32_1 = arith.constant 0 : i32
    %c0_i32_2 = arith.constant 0 : i32
    return %c0_i32, %c0_i32_0, %c0_i32_1 : i32, i32, i32
  }
  func.func @transform_3(%arg0: i32) -> (i32, i32, i32) {
    %c0_i32 = arith.constant 0 : i32
    %c0_i32_0 = arith.constant 0 : i32
    %c0_i32_1 = arith.constant 0 : i32
    return %arg0, %c0_i32, %c0_i32_0 : i32, i32, i32
  }
  func.func @transform_4(%arg0: i32) -> (i32, i32, i32) {
    %c0_i32 = arith.constant 0 : i32
    %c0_i32_0 = arith.constant 0 : i32
    %c0_i32_1 = arith.constant 0 : i32
    return %arg0, %c0_i32, %c0_i32_0 : i32, i32, i32
  }
}

module attributes {stable_mosaic.version = 11 : i64} {
  func.func @_conv3x3_kernel(%arg0: i32, %arg1: memref<1x256x128xf32, #tpu.memory_space<vmem>>, %arg2: memref<256x128xf32, #tpu.memory_space<vmem>>, %arg3: memref<8x128xf32, #tpu.memory_space<vmem>>, %arg4: memref<9x128x128xf32, #tpu.memory_space<vmem>>, %arg5: memref<1x256x128xf32, #tpu.memory_space<vmem>>, %arg6: memref<1x8x128xf32, #tpu.memory_space<vmem>>) attributes {dimension_semantics = [#tpu.dimension_semantics<parallel>], iteration_bounds = array<i64: 2>, scalar_prefetch = 0 : i64, scratch_operands = 0 : i64, tpu.core_type = #tpu.core_type<tc>, window_params = [{transform_indices = @transform_0, window_bounds = array<i64: 1, 256, 128>}, {pipeline_mode = #tpu.pipeline_mode<synchronous>, transform_indices = @transform_1, window_bounds = array<i64: 256, 128>}, {pipeline_mode = #tpu.pipeline_mode<synchronous>, transform_indices = @transform_2, window_bounds = array<i64: 8, 128>}, {pipeline_mode = #tpu.pipeline_mode<synchronous>, transform_indices = @transform_3, window_bounds = array<i64: 9, 128, 128>}, {transform_indices = @transform_4, window_bounds = array<i64: 1, 256, 128>}, {transform_indices = @transform_5, window_bounds = array<i64: 1, 8, 128>}]} {
    %c0 = arith.constant 0 : index
    %c0_0 = arith.constant 0 : index
    %c0_1 = arith.constant 0 : index
    %0 = vector.load %arg1[%c0, %c0_0, %c0_1] : memref<1x256x128xf32, #tpu.memory_space<vmem>>, vector<1x256x128xf32>
    %1 = vector.shape_cast %0 : vector<1x256x128xf32> to vector<256x128xf32>
    %c0_2 = arith.constant 0 : index
    %c0_3 = arith.constant 0 : index
    %2 = vector.load %arg3[%c0_2, %c0_3] : memref<8x128xf32, #tpu.memory_space<vmem>>, vector<1x128xf32>
    %3 = vector.broadcast %2 : vector<1x128xf32> to vector<256x128xf32>
    %4 = arith.mulf %1, %3 : vector<256x128xf32>
    %c1 = arith.constant 1 : index
    %c0_4 = arith.constant 0 : index
    %5 = vector.load %arg3[%c1, %c0_4] : memref<8x128xf32, #tpu.memory_space<vmem>>, vector<1x128xf32>
    %6 = vector.broadcast %5 : vector<1x128xf32> to vector<256x128xf32>
    %7 = arith.addf %4, %6 : vector<256x128xf32>
    %cst = arith.constant 0.000000e+00 : f32
    %8 = vector.broadcast %cst : f32 to vector<256x128xf32>
    %9 = arith.maximumf %7, %8 : vector<256x128xf32>
    %c0_5 = arith.constant 0 : index
    %c0_6 = arith.constant 0 : index
    %10 = vector.load %arg2[%c0_5, %c0_6] : memref<256x128xf32, #tpu.memory_space<vmem>>, vector<256x128xf32>
    %11 = vector.extract_strided_slice %10 {offsets = [1, 0], sizes = [255, 128], strides = [1, 1]} : vector<256x128xf32> to vector<255x128xf32>
    %cst_7 = arith.constant 0.000000e+00 : f32
    %12 = vector.broadcast %cst_7 : f32 to vector<1x128xf32>
    %13 = tpu.concatenate %11, %12 in 0 : vector<255x128xf32>, vector<1x128xf32> -> vector<256x128xf32>
    %cst_8 = arith.constant 0.000000e+00 : f32
    %14 = vector.broadcast %cst_8 : f32 to vector<256x128xf32>
    %cst_9 = arith.constant 0.000000e+00 : f32
    %15 = vector.broadcast %cst_9 : f32 to vector<17x128xf32>
    %16 = vector.extract_strided_slice %9 {offsets = [0, 0], sizes = [239, 128], strides = [1, 1]} : vector<256x128xf32> to vector<239x128xf32>
    %17 = tpu.concatenate %15, %16 in 0 : vector<17x128xf32>, vector<239x128xf32> -> vector<256x128xf32>
    %18 = arith.mulf %17, %10 : vector<256x128xf32>
    %c0_10 = arith.constant 0 : index
    %c0_11 = arith.constant 0 : index
    %c0_12 = arith.constant 0 : index
    %19 = vector.load %arg4[%c0_10, %c0_11, %c0_12] : memref<9x128x128xf32, #tpu.memory_space<vmem>>, vector<1x128x128xf32>
    %20 = vector.shape_cast %19 : vector<1x128x128xf32> to vector<128x128xf32>
    %cst_13 = arith.constant dense<0.000000e+00> : vector<256x128xf32>
    %21 = tpu.matmul %18, %20, %cst_13 {dimension_numbers = #tpu.dot_dimension_numbers<[1], [0], [0], [1], [0, 0, 1, 1], [], []>} : vector<256x128xf32>, vector<128x128xf32>, vector<256x128xf32> -> vector<256x128xf32>
    %22 = arith.addf %14, %21 : vector<256x128xf32>
    %cst_14 = arith.constant 0.000000e+00 : f32
    %23 = vector.broadcast %cst_14 : f32 to vector<16x128xf32>
    %24 = vector.extract_strided_slice %9 {offsets = [0, 0], sizes = [240, 128], strides = [1, 1]} : vector<256x128xf32> to vector<240x128xf32>
    %25 = tpu.concatenate %23, %24 in 0 : vector<16x128xf32>, vector<240x128xf32> -> vector<256x128xf32>
    %c1_15 = arith.constant 1 : index
    %c0_16 = arith.constant 0 : index
    %c0_17 = arith.constant 0 : index
    %26 = vector.load %arg4[%c1_15, %c0_16, %c0_17] : memref<9x128x128xf32, #tpu.memory_space<vmem>>, vector<1x128x128xf32>
    %27 = vector.shape_cast %26 : vector<1x128x128xf32> to vector<128x128xf32>
    %cst_18 = arith.constant dense<0.000000e+00> : vector<256x128xf32>
    %28 = tpu.matmul %25, %27, %cst_18 {dimension_numbers = #tpu.dot_dimension_numbers<[1], [0], [0], [1], [0, 0, 1, 1], [], []>} : vector<256x128xf32>, vector<128x128xf32>, vector<256x128xf32> -> vector<256x128xf32>
    %29 = arith.addf %22, %28 : vector<256x128xf32>
    %cst_19 = arith.constant 0.000000e+00 : f32
    %30 = vector.broadcast %cst_19 : f32 to vector<15x128xf32>
    %31 = vector.extract_strided_slice %9 {offsets = [0, 0], sizes = [241, 128], strides = [1, 1]} : vector<256x128xf32> to vector<241x128xf32>
    %32 = tpu.concatenate %30, %31 in 0 : vector<15x128xf32>, vector<241x128xf32> -> vector<256x128xf32>
    %33 = arith.mulf %32, %13 : vector<256x128xf32>
    %c2 = arith.constant 2 : index
    %c0_20 = arith.constant 0 : index
    %c0_21 = arith.constant 0 : index
    %34 = vector.load %arg4[%c2, %c0_20, %c0_21] : memref<9x128x128xf32, #tpu.memory_space<vmem>>, vector<1x128x128xf32>
    %35 = vector.shape_cast %34 : vector<1x128x128xf32> to vector<128x128xf32>
    %cst_22 = arith.constant dense<0.000000e+00> : vector<256x128xf32>
    %36 = tpu.matmul %33, %35, %cst_22 {dimension_numbers = #tpu.dot_dimension_numbers<[1], [0], [0], [1], [0, 0, 1, 1], [], []>} : vector<256x128xf32>, vector<128x128xf32>, vector<256x128xf32> -> vector<256x128xf32>
    %37 = arith.addf %29, %36 : vector<256x128xf32>
    %cst_23 = arith.constant 0.000000e+00 : f32
    %38 = vector.broadcast %cst_23 : f32 to vector<1x128xf32>
    %39 = vector.extract_strided_slice %9 {offsets = [0, 0], sizes = [255, 128], strides = [1, 1]} : vector<256x128xf32> to vector<255x128xf32>
    %40 = tpu.concatenate %38, %39 in 0 : vector<1x128xf32>, vector<255x128xf32> -> vector<256x128xf32>
    %41 = arith.mulf %40, %10 : vector<256x128xf32>
    %c3 = arith.constant 3 : index
    %c0_24 = arith.constant 0 : index
    %c0_25 = arith.constant 0 : index
    %42 = vector.load %arg4[%c3, %c0_24, %c0_25] : memref<9x128x128xf32, #tpu.memory_space<vmem>>, vector<1x128x128xf32>
    %43 = vector.shape_cast %42 : vector<1x128x128xf32> to vector<128x128xf32>
    %cst_26 = arith.constant dense<0.000000e+00> : vector<256x128xf32>
    %44 = tpu.matmul %41, %43, %cst_26 {dimension_numbers = #tpu.dot_dimension_numbers<[1], [0], [0], [1], [0, 0, 1, 1], [], []>} : vector<256x128xf32>, vector<128x128xf32>, vector<256x128xf32> -> vector<256x128xf32>
    %45 = arith.addf %37, %44 : vector<256x128xf32>
    %c4 = arith.constant 4 : index
    %c0_27 = arith.constant 0 : index
    %c0_28 = arith.constant 0 : index
    %46 = vector.load %arg4[%c4, %c0_27, %c0_28] : memref<9x128x128xf32, #tpu.memory_space<vmem>>, vector<1x128x128xf32>
    %47 = vector.shape_cast %46 : vector<1x128x128xf32> to vector<128x128xf32>
    %cst_29 = arith.constant dense<0.000000e+00> : vector<256x128xf32>
    %48 = tpu.matmul %9, %47, %cst_29 {dimension_numbers = #tpu.dot_dimension_numbers<[1], [0], [0], [1], [0, 0, 1, 1], [], []>} : vector<256x128xf32>, vector<128x128xf32>, vector<256x128xf32> -> vector<256x128xf32>
    %49 = arith.addf %45, %48 : vector<256x128xf32>
    %50 = vector.extract_strided_slice %9 {offsets = [1, 0], sizes = [255, 128], strides = [1, 1]} : vector<256x128xf32> to vector<255x128xf32>
    %cst_30 = arith.constant 0.000000e+00 : f32
    %51 = vector.broadcast %cst_30 : f32 to vector<1x128xf32>
    %52 = tpu.concatenate %50, %51 in 0 : vector<255x128xf32>, vector<1x128xf32> -> vector<256x128xf32>
    %53 = arith.mulf %52, %13 : vector<256x128xf32>
    %c5 = arith.constant 5 : index
    %c0_31 = arith.constant 0 : index
    %c0_32 = arith.constant 0 : index
    %54 = vector.load %arg4[%c5, %c0_31, %c0_32] : memref<9x128x128xf32, #tpu.memory_space<vmem>>, vector<1x128x128xf32>
    %55 = vector.shape_cast %54 : vector<1x128x128xf32> to vector<128x128xf32>
    %cst_33 = arith.constant dense<0.000000e+00> : vector<256x128xf32>
    %56 = tpu.matmul %53, %55, %cst_33 {dimension_numbers = #tpu.dot_dimension_numbers<[1], [0], [0], [1], [0, 0, 1, 1], [], []>} : vector<256x128xf32>, vector<128x128xf32>, vector<256x128xf32> -> vector<256x128xf32>
    %57 = arith.addf %49, %56 : vector<256x128xf32>
    %58 = vector.extract_strided_slice %9 {offsets = [15, 0], sizes = [241, 128], strides = [1, 1]} : vector<256x128xf32> to vector<241x128xf32>
    %cst_34 = arith.constant 0.000000e+00 : f32
    %59 = vector.broadcast %cst_34 : f32 to vector<15x128xf32>
    %60 = tpu.concatenate %58, %59 in 0 : vector<241x128xf32>, vector<15x128xf32> -> vector<256x128xf32>
    %61 = arith.mulf %60, %10 : vector<256x128xf32>
    %c6 = arith.constant 6 : index
    %c0_35 = arith.constant 0 : index
    %c0_36 = arith.constant 0 : index
    %62 = vector.load %arg4[%c6, %c0_35, %c0_36] : memref<9x128x128xf32, #tpu.memory_space<vmem>>, vector<1x128x128xf32>
    %63 = vector.shape_cast %62 : vector<1x128x128xf32> to vector<128x128xf32>
    %cst_37 = arith.constant dense<0.000000e+00> : vector<256x128xf32>
    %64 = tpu.matmul %61, %63, %cst_37 {dimension_numbers = #tpu.dot_dimension_numbers<[1], [0], [0], [1], [0, 0, 1, 1], [], []>} : vector<256x128xf32>, vector<128x128xf32>, vector<256x128xf32> -> vector<256x128xf32>
    %65 = arith.addf %57, %64 : vector<256x128xf32>
    %66 = vector.extract_strided_slice %9 {offsets = [16, 0], sizes = [240, 128], strides = [1, 1]} : vector<256x128xf32> to vector<240x128xf32>
    %cst_38 = arith.constant 0.000000e+00 : f32
    %67 = vector.broadcast %cst_38 : f32 to vector<16x128xf32>
    %68 = tpu.concatenate %66, %67 in 0 : vector<240x128xf32>, vector<16x128xf32> -> vector<256x128xf32>
    %c7 = arith.constant 7 : index
    %c0_39 = arith.constant 0 : index
    %c0_40 = arith.constant 0 : index
    %69 = vector.load %arg4[%c7, %c0_39, %c0_40] : memref<9x128x128xf32, #tpu.memory_space<vmem>>, vector<1x128x128xf32>
    %70 = vector.shape_cast %69 : vector<1x128x128xf32> to vector<128x128xf32>
    %cst_41 = arith.constant dense<0.000000e+00> : vector<256x128xf32>
    %71 = tpu.matmul %68, %70, %cst_41 {dimension_numbers = #tpu.dot_dimension_numbers<[1], [0], [0], [1], [0, 0, 1, 1], [], []>} : vector<256x128xf32>, vector<128x128xf32>, vector<256x128xf32> -> vector<256x128xf32>
    %72 = arith.addf %65, %71 : vector<256x128xf32>
    %73 = vector.extract_strided_slice %9 {offsets = [17, 0], sizes = [239, 128], strides = [1, 1]} : vector<256x128xf32> to vector<239x128xf32>
    %cst_42 = arith.constant 0.000000e+00 : f32
    %74 = vector.broadcast %cst_42 : f32 to vector<17x128xf32>
    %75 = tpu.concatenate %73, %74 in 0 : vector<239x128xf32>, vector<17x128xf32> -> vector<256x128xf32>
    %76 = arith.mulf %75, %13 : vector<256x128xf32>
    %c8 = arith.constant 8 : index
    %c0_43 = arith.constant 0 : index
    %c0_44 = arith.constant 0 : index
    %77 = vector.load %arg4[%c8, %c0_43, %c0_44] : memref<9x128x128xf32, #tpu.memory_space<vmem>>, vector<1x128x128xf32>
    %78 = vector.shape_cast %77 : vector<1x128x128xf32> to vector<128x128xf32>
    %cst_45 = arith.constant dense<0.000000e+00> : vector<256x128xf32>
    %79 = tpu.matmul %76, %78, %cst_45 {dimension_numbers = #tpu.dot_dimension_numbers<[1], [0], [0], [1], [0, 0, 1, 1], [], []>} : vector<256x128xf32>, vector<128x128xf32>, vector<256x128xf32> -> vector<256x128xf32>
    %80 = arith.addf %72, %79 : vector<256x128xf32>
    %c0_46 = arith.constant 0 : index
    %c0_47 = arith.constant 0 : index
    %c0_48 = arith.constant 0 : index
    %81 = vector.load %arg5[%c0_46, %c0_47, %c0_48] : memref<1x256x128xf32, #tpu.memory_space<vmem>>, vector<1x256x128xf32>
    %82 = vector.shape_cast %81 : vector<1x256x128xf32> to vector<256x128xf32>
    %83 = vector.shape_cast %80 : vector<256x128xf32> to vector<1x256x128xf32>
    tpu.vector_store %arg5[%c0_46, %c0_47, %c0_48], %83 {strides = array<i32>} : memref<1x256x128xf32, #tpu.memory_space<vmem>>, vector<1x256x128xf32>,
    %cst_49 = arith.constant dense<0.000000e+00> : vector<128xf32>
    %84 = vector.multi_reduction <add>, %80, %cst_49 [0] : vector<256x128xf32> to vector<128xf32>
    %85 = vector.shape_cast %84 : vector<128xf32> to vector<1x128xf32>
    %cst_50 = arith.constant 3.906250e-03 : f32
    %86 = vector.broadcast %cst_50 : f32 to vector<1x128xf32>
    %87 = arith.mulf %85, %86 : vector<1x128xf32>
    %88 = vector.broadcast %87 : vector<1x128xf32> to vector<256x128xf32>
    %89 = arith.subf %80, %88 : vector<256x128xf32>
    %90 = arith.mulf %89, %89 : vector<256x128xf32>
    %cst_51 = arith.constant dense<0.000000e+00> : vector<128xf32>
    %91 = vector.multi_reduction <add>, %90, %cst_51 [0] : vector<256x128xf32> to vector<128xf32>
    %92 = vector.shape_cast %91 : vector<128xf32> to vector<1x128xf32>
    %cst_52 = arith.constant 0.000000e+00 : f32
    %93 = vector.broadcast %cst_52 : f32 to vector<6x128xf32>
    %94 = tpu.concatenate %85, %92, %93 in 0 : vector<1x128xf32>, vector<1x128xf32>, vector<6x128xf32> -> vector<8x128xf32>
    %c0_53 = arith.constant 0 : index
    %c0_54 = arith.constant 0 : index
    %c0_55 = arith.constant 0 : index
    %95 = vector.load %arg6[%c0_53, %c0_54, %c0_55] : memref<1x8x128xf32, #tpu.memory_space<vmem>>, vector<1x8x128xf32>
    %96 = vector.shape_cast %95 : vector<1x8x128xf32> to vector<8x128xf32>
    %97 = vector.shape_cast %94 : vector<8x128xf32> to vector<1x8x128xf32>
    tpu.vector_store %arg6[%c0_53, %c0_54, %c0_55], %97 {strides = array<i32>} : memref<1x8x128xf32, #tpu.memory_space<vmem>>, vector<1x8x128xf32>,
    return
  }
  func.func @transform_0(%arg0: i32) -> (i32, i32, i32) {
    %c0_i32 = arith.constant 0 : i32
    %c0_i32_0 = arith.constant 0 : i32
    %c0_i32_1 = arith.constant 0 : i32
    return %arg0, %c0_i32, %c0_i32_0 : i32, i32, i32
  }
  func.func @transform_1(%arg0: i32) -> (i32, i32) {
    %c0_i32 = arith.constant 0 : i32
    %c0_i32_0 = arith.constant 0 : i32
    %c0_i32_1 = arith.constant 0 : i32
    return %c0_i32, %c0_i32_0 : i32, i32
  }
  func.func @transform_2(%arg0: i32) -> (i32, i32) {
    %c0_i32 = arith.constant 0 : i32
    %c0_i32_0 = arith.constant 0 : i32
    %c0_i32_1 = arith.constant 0 : i32
    return %c0_i32, %c0_i32_0 : i32, i32
  }
  func.func @transform_3(%arg0: i32) -> (i32, i32, i32) {
    %c0_i32 = arith.constant 0 : i32
    %c0_i32_0 = arith.constant 0 : i32
    %c0_i32_1 = arith.constant 0 : i32
    %c0_i32_2 = arith.constant 0 : i32
    return %c0_i32, %c0_i32_0, %c0_i32_1 : i32, i32, i32
  }
  func.func @transform_4(%arg0: i32) -> (i32, i32, i32) {
    %c0_i32 = arith.constant 0 : i32
    %c0_i32_0 = arith.constant 0 : i32
    %c0_i32_1 = arith.constant 0 : i32
    return %arg0, %c0_i32, %c0_i32_0 : i32, i32, i32
  }
  func.func @transform_5(%arg0: i32) -> (i32, i32, i32) {
    %c0_i32 = arith.constant 0 : i32
    %c0_i32_0 = arith.constant 0 : i32
    %c0_i32_1 = arith.constant 0 : i32
    return %arg0, %c0_i32, %c0_i32_0 : i32, i32, i32
  }
}

</mosaic_0001>

<llo_original>
// kernel: tile.8
$region0: #{tile.8}
  #allocation0 [shape = 's32[1]{0}', space=sflag, size = 0x4, scoped, tag = 'scoped memory for tile.8']
  %s0 = inlined_call_operand.vmem [shape: f32[16], index: 0, kind: input, shape index: {}]
  %s1 = inlined_call_operand.vmem [shape: f32[16,16], index: 1, kind: output, shape index: {}]
  // Predicated region
  $region2: #{tile.8} parent=0 // pred_check
    _
  $region3: #{tile.8} parent=0 // pred_check_branch
    %3 = sbr.rel (0) target = $region5
  $region4: #{tile.8} parent=0 // pred_region
    _
  $region5: #{tile.8} parent=0 // pred_fallthru
    _
  %v4 = vld [vmem:[%s0] ss:$0 sm:$0xff]
  %5 = vst [vmem:[%s1] sm:$0xff] %v4
  %s6 = scalar_lea.vmem %s1, 8
  %7 = vst [vmem:[%s6] sm:$0xff] %v4

// kernel: basic_block_forward.5
$region0: #{basic_block_forward.5}
  #allocation0 [shape = 'u32[]', space=smem, size = 0x4, offset = 0x4, fixed_abs, tag = 'smem constant byte address 0x4 - core index']
  #allocation1 [shape = 'u32[144,128]{1,0:T(1,128)}', space=vmem, size = 0x12000, scoped, tag = 'internal scratch']
  %s0 = inlined_call_operand.vmem [shape: f32[2,256,128], index: 0, kind: input, shape index: {}]
  %s1 = inlined_call_operand.vmem [shape: f32[8,128], index: 1, kind: input, shape index: {}]
  %s2 = inlined_call_operand.vmem [shape: f32[2,256,128], index: 2, kind: input, shape index: {}]
  %s3 = inlined_call_operand.vmem [shape: f32[2,256,128], index: 3, kind: output, shape index: {}]
  %s4 = sld [smem:[#allocation0]]
  $region45: #{basic_block_forward.5} parent=0
    _
  %s6 = ssub.s32 1, %s4
  %s7 = scalar_select 0, %s6, %s4
  loop: start=0, step=1, limit=4
  $region2: #{basic_block_forward.5} parent=0 // loop_pre_header
    _
  $region3: #{basic_block_forward.5} parent=0 // loop_header
    %s9 = sphi 0, %s13
    %p10 = scmp.ge.s32.totalorder %s9, 4
    %s19 = sphi 0, %s21
    %s22 = sphi 0, %s19
    %s23 = sphi 0, %s22
    %s39 = sphi 0, %s23
    %s43 = sphi 0, %s43
    %s45 = sphi 0, %s43
    %s46 = sphi 0, %s45
    %s60 = sphi 0, %s46
    %s66 = sphi 0, %s68
    %s69 = sphi 0, %s66
    %s70 = sphi 0, %s69
    %s86 = sphi 0, %s70
    %s92 = sphi 0, %s94
    %s95 = sphi 0, %s92
    %s96 = sphi 0, %s95
    %s112 = sphi 0, %s96
  $region4: #{basic_block_forward.5} parent=0 // loop_header_branch
    %12 = sbr.rel (%p10) target = $region8
  $region5: #{basic_block_forward.5} parent=0 // loop_body
    %s14 = ssub.s32 %s9, 1
    %s15 = ssub.s32 %s9, 2
    %s16 = sadd.s32 %s9, 1
    %s17 = ssub.s32 %s9, %s16
    %p18 = scmp.eq.s32.totalorder %s17, 0
    %s20 = sadd.s32 %s19, 1
    %s21 = scalar_select %p18, %s19, %s20
    %p24 = pneg %p18
    %p25 = scmp.eq.s32.totalorder %s9, 1
    %p26 = por %p24, %p25
    %p27 = scmp.ne.s32.totalorder %s19, %s22
    %p28 = scmp.eq.s32.totalorder %s9, 0
    %p29 = por %p27, %p28
    %p30 = scmp.ne.s32.totalorder %s19, %s22
    %p31 = scmp.eq.s32.totalorder %s14, 1
    %p32 = por %p30, %p31
    %p33 = scmp.ne.s32.totalorder %s22, %s23
    %p34 = scmp.eq.s32.totalorder %s14, 0
    %p35 = por %p33, %p34
    %p36 = scmp.ne.s32.totalorder %s22, %s23
    %p37 = scmp.eq.s32.totalorder %s15, 1
    %p38 = por %p36, %p37
    %p40 = scmp.ne.s32.totalorder %s23, %s39
    %p41 = scmp.eq.s32.totalorder %s15, 0
    %p42 = por %p40, %p41
    %s44 = sadd.s32 %s43, 1
    %p47 = scmp.eq.s32.totalorder %s9, 1
    %p48 = scmp.ne.s32.totalorder %s43, %s45
    %p49 = scmp.eq.s32.totalorder %s9, 0
    %p50 = por %p48, %p49
    %p51 = scmp.ne.s32.totalorder %s43, %s45
    %p52 = scmp.eq.s32.totalorder %s14, 1
    %p53 = por %p51, %p52
    %p54 = scmp.ne.s32.totalorder %s45, %s46
    %p55 = scmp.eq.s32.totalorder %s14, 0
    %p56 = por %p54, %p55
    %p57 = scmp.ne.s32.totalorder %s45, %s46
    %p58 = scmp.eq.s32.totalorder %s15, 1
    %p59 = por %p57, %p58
    %p61 = scmp.ne.s32.totalorder %s46, %s60
    %p62 = scmp.eq.s32.totalorder %s15, 0
    %p63 = por %p61, %p62
    %s64 = ssub.s32 %s9, %s16
    %p65 = scmp.eq.s32.totalorder %s64, 0
    %s67 = sadd.s32 %s66, 1
    %s68 = scalar_select %p65, %s66, %s67
    %p71 = pneg %p65
    %p72 = scmp.eq.s32.totalorder %s9, 1
    %p73 = por %p71, %p72
    %p74 = scmp.ne.s32.totalorder %s66, %s69
    %p75 = scmp.eq.s32.totalorder %s9, 0
    %p76 = por %p74, %p75
    %p77 = scmp.ne.s32.totalorder %s66, %s69
    %p78 = scmp.eq.s32.totalorder %s14, 1
    %p79 = por %p77, %p78
    %p80 = scmp.ne.s32.totalorder %s69, %s70
    %p81 = scmp.eq.s32.totalorder %s14, 0
    %p82 = por %p80, %p81
    %p83 = scmp.ne.s32.totalorder %s69, %s70
    %p84 = scmp.eq.s32.totalorder %s15, 1
    %p85 = por %p83, %p84
    %p87 = scmp.ne.s32.totalorder %s70, %s86
    %p88 = scmp.eq.s32.totalorder %s15, 0
    %p89 = por %p87, %p88
    %s90 = ssub.s32 %s9, %s16
    %p91 = scmp.eq.s32.totalorder %s90, 0
    %s93 = sadd.s32 %s92, 1
    %s94 = scalar_select %p91, %s92, %s93
    %p97 = pneg %p91
    %p98 = scmp.eq.s32.totalorder %s9, 1
    %p99 = por %p97, %p98
    %p100 = scmp.ne.s32.totalorder %s92, %s95
    %p101 = scmp.eq.s32.totalorder %s9, 0
    %p102 = por %p100, %p101
    %p103 = scmp.ne.s32.totalorder %s92, %s95
    %p104 = scmp.eq.s32.totalorder %s14, 1
    %p105 = por %p103, %p104
    %p106 = scmp.ne.s32.totalorder %s95, %s96
    %p107 = scmp.eq.s32.totalorder %s14, 0
    %p108 = por %p106, %p107
    %p109 = scmp.ne.s32.totalorder %s95, %s96
    %p110 = scmp.eq.s32.totalorder %s15, 1
    %p111 = por %p109, %p110
    %p113 = scmp.ne.s32.totalorder %s96, %s112
    %p114 = scmp.eq.s32.totalorder %s15, 0
    %p115 = por %p113, %p114
    %p116 = scmp.le.s32.totalorder 1, %s9
    %p117 = scmp.lt.s32.totalorder %s9, 3
    %p118 = pnand %p116, %p117
    %p119 = pneg %p118
    // Predicated region
    $region9: #{basic_block_forward.5} parent=5 // pred_check
      _
    $region10: #{basic_block_forward.5} parent=5 // pred_check_branch
      %121 = sbr.rel (%p118) target = $region12
    $region11: #{basic_block_forward.5} parent=5 // pred_region
      %s122 = ssub.s32 %s9, 1
      // Predicated region
      $region13: #{basic_block_forward.5} parent=11 // pred_check
        %p123 = pneg %p56
      $region14: #{basic_block_forward.5} parent=11 // pred_check_branch
        %125 = sbr.rel (%p123) target = $region16
      $region15: #{basic_block_forward.5} parent=11 // pred_region
        _
      $region16: #{basic_block_forward.5} parent=11 // pred_fallthru
        _
    $region12: #{basic_block_forward.5} parent=5 // pred_fallthru
      _
    %p126 = scmp.lt.s32.totalorder %s9, 2
    // Predicated region
    $region17: #{basic_block_forward.5} parent=5 // pred_check
      %p127 = pneg %p126
    $region18: #{basic_block_forward.5} parent=5 // pred_check_branch
      %129 = sbr.rel (%p127) target = $region20
    $region19: #{basic_block_forward.5} parent=5 // pred_region
      // Predicated region
      $region21: #{basic_block_forward.5} parent=19 // pred_check
        %p130 = pneg %p29
      $region22: #{basic_block_forward.5} parent=19 // pred_check_branch
        %132 = sbr.rel (%p130) target = $region24
      $region23: #{basic_block_forward.5} parent=19 // pred_region
        %p133 = scmp.lt.s32.totalorder %s9, 1
        %s134 = scalar_select %p133, %s9, 1
        %s135 = smul.addr %s134, 32
        %s136 = smul.addr %s135, 8
        %s137 = scalar_lea.vmem %s0, %s136
      $region24: #{basic_block_forward.5} parent=19 // pred_fallthru
        _
      // Predicated region
      $region25: #{basic_block_forward.5} parent=19 // pred_check
        %p138 = pneg %p76
      $region26: #{basic_block_forward.5} parent=19 // pred_check_branch
        %140 = sbr.rel (%p138) target = $region28
      $region27: #{basic_block_forward.5} parent=19 // pred_region
        %p141 = scmp.lt.s32.totalorder %s9, 1
        %s142 = scalar_select %p141, %s9, 1
        %s143 = smul.addr %s142, 32
        %s144 = smul.addr %s143, 8
        %s145 = scalar_lea.vmem %s2, %s144
      $region28: #{basic_block_forward.5} parent=19 // pred_fallthru
        _
    $region20: #{basic_block_forward.5} parent=5 // pred_fallthru
      _
    %p146 = scmp.le.s32.totalorder 1, %s9
    %p147 = scmp.lt.s32.totalorder %s9, 3
    %p148 = pnand %p146, %p147
    %p149 = pneg %p148
    // Predicated region
    $region29: #{basic_block_forward.5} parent=5 // pred_check
      _
    $region30: #{basic_block_forward.5} parent=5 // pred_check_branch
      %151 = sbr.rel (%p148) target = $region32
    $region31: #{basic_block_forward.5} parent=5 // pred_region
      %s152 = ssub.s32 %s9, 1
      %p153 = scmp.lt.s32.totalorder %s14, 1
      %s154 = scalar_select %p153, %s14, 1
      %s155 = smul.addr %s154, 32
      %s156 = smul.addr %s155, 8
      %s157 = scalar_lea.vmem %s0, %s156
      %p158 = pneg %p35
      %p159 = pneg %p32
      %p160 = pneg %p56
      %p161 = pneg %p53
      %p162 = scmp.lt.s32.totalorder %s14, 1
      %s163 = scalar_select %p162, %s14, 1
      %s164 = smul.addr %s163, 32
      %s165 = smul.addr %s164, 8
      %s166 = scalar_lea.vmem %s2, %s165
      %p167 = pneg %p82
      %p168 = pneg %p79
      %p169 = pneg %p108
      %p170 = pneg %p105
      %p171 = scmp.lt.s32.totalorder %s14, 1
      %s172 = scalar_select %p171, %s14, 1
      %s173 = smul.addr %s172, 32
      %s174 = smul.addr %s173, 8
      %s175 = scalar_lea.vmem %s3, %s174
      %p176 = scmp.lt.s32.totalorder %s14, 1
      %s177 = scalar_select %p176, %s14, 1
      %s178 = smul.addr %s177, 32
      %s179 = smul.addr %s178, 8
      %s180 = scalar_lea.vmem %s0, %s179
      %p181 = scmp.lt.s32.totalorder %s14, 1
      %s182 = scalar_select %p181, %s14, 1
      %s183 = smul.addr %s182, 32
      %s184 = smul.addr %s183, 8
      %s185 = scalar_lea.vmem %s2, %s184
      %p186 = scmp.lt.s32.totalorder %s14, 1
      %s187 = scalar_select %p186, %s14, 1
      %s188 = smul.addr %s187, 32
      %s189 = smul.addr %s188, 8
      %s190 = scalar_lea.vmem %s3, %s189
      %v191 = vld [vmem:[%s180] sm:$0xff]
      %v192 = vld [vmem:[%s180 + $0x8] sm:$0xff]
      %v193 = vld [vmem:[%s180 + $0x10] sm:$0xff]
      %v194 = vld [vmem:[%s180 + $0x18] sm:$0xff]
      %v195 = vld [vmem:[%s180 + $0x20] sm:$0xff]
      %v196 = vld [vmem:[%s180 + $0x28] sm:$0xff]
      %v197 = vld [vmem:[%s180 + $0x30] sm:$0xff]
      %v198 = vld [vmem:[%s180 + $0x38] sm:$0xff]
      %v199 = vld [vmem:[%s180 + $0x40] sm:$0xff]
      %v200 = vld [vmem:[%s180 + $0x48] sm:$0xff]
      %v201 = vld [vmem:[%s180 + $0x50] sm:$0xff]
      %v202 = vld [vmem:[%s180 + $0x58] sm:$0xff]
      %v203 = vld [vmem:[%s180 + $0x60] sm:$0xff]
      %v204 = vld [vmem:[%s180 + $0x68] sm:$0xff]
      %v205 = vld [vmem:[%s180 + $0x70] sm:$0xff]
      %v206 = vld [vmem:[%s180 + $0x78] sm:$0xff]
      %v207 = vld [vmem:[%s180 + $0x80] sm:$0xff]
      %v208 = vld [vmem:[%s180 + $0x88] sm:$0xff]
      %v209 = vld [vmem:[%s180 + $0x90] sm:$0xff]
      %v210 = vld [vmem:[%s180 + $0x98] sm:$0xff]
      %v211 = vld [vmem:[%s180 + $0xa0] sm:$0xff]
      %v212 = vld [vmem:[%s180 + $0xa8] sm:$0xff]
      %v213 = vld [vmem:[%s180 + $0xb0] sm:$0xff]
      %v214 = vld [vmem:[%s180 + $0xb8] sm:$0xff]
      %v215 = vld [vmem:[%s180 + $0xc0] sm:$0xff]
      %v216 = vld [vmem:[%s180 + $0xc8] sm:$0xff]
      %v217 = vld [vmem:[%s180 + $0xd0] sm:$0xff]
      %v218 = vld [vmem:[%s180 + $0xd8] sm:$0xff]
      %v219 = vld [vmem:[%s180 + $0xe0] sm:$0xff]
      %v220 = vld [vmem:[%s180 + $0xe8] sm:$0xff]
      %v221 = vld [vmem:[%s180 + $0xf0] sm:$0xff]
      %v222 = vld [vmem:[%s180 + $0xf8] sm:$0xff]
      %v223 = vld [vmem:[%s1] sm:$0x1]
      %v224 = vlaneseq
      %v225 = vshrl.u32 %v224, 7
      %v226 = vsub.s32 0, %v225
      %v227 = vrot.slane %v223, %v226
      %v228 = vmul.f32 %v191, %v227
      %v229 = vmul.f32 %v192, %v227
      %v230 = vmul.f32 %v193, %v227
      %v231 = vmul.f32 %v194, %v227
      %v232 = vmul.f32 %v195, %v227
      %v233 = vmul.f32 %v196, %v227
      %v234 = vmul.f32 %v197, %v227
      %v235 = vmul.f32 %v198, %v227
      %v236 = vmul.f32 %v199, %v227
      %v237 = vmul.f32 %v200, %v227
      %v238 = vmul.f32 %v201, %v227
      %v239 = vmul.f32 %v202, %v227
      %v240 = vmul.f32 %v203, %v227
      %v241 = vmul.f32 %v204, %v227
      %v242 = vmul.f32 %v205, %v227
      %v243 = vmul.f32 %v206, %v227
      %v244 = vmul.f32 %v207, %v227
      %v245 = vmul.f32 %v208, %v227
      %v246 = vmul.f32 %v209, %v227
      %v247 = vmul.f32 %v210, %v227
      %v248 = vmul.f32 %v211, %v227
      %v249 = vmul.f32 %v212, %v227
      %v250 = vmul.f32 %v213, %v227
      %v251 = vmul.f32 %v214, %v227
      %v252 = vmul.f32 %v215, %v227
      %v253 = vmul.f32 %v216, %v227
      %v254 = vmul.f32 %v217, %v227
      %v255 = vmul.f32 %v218, %v227
      %v256 = vmul.f32 %v219, %v227
      %v257 = vmul.f32 %v220, %v227
      %v258 = vmul.f32 %v221, %v227
      %v259 = vmul.f32 %v222, %v227
      %v260 = vld [vmem:[%s1 + $0x1] sm:$0x1]
      %v261 = vlaneseq
      %v262 = vshrl.u32 %v261, 7
      %v263 = vsub.s32 0, %v262
      %v264 = vrot.slane %v260, %v263
      %v265 = vadd.f32 %v228, %v264
      %v266 = vadd.f32 %v229, %v264
      %v267 = vadd.f32 %v230, %v264
      %v268 = vadd.f32 %v231, %v264
      %v269 = vadd.f32 %v232, %v264
      %v270 = vadd.f32 %v233, %v264
      %v271 = vadd.f32 %v234, %v264
      %v272 = vadd.f32 %v235, %v264
      %v273 = vadd.f32 %v236, %v264
      %v274 = vadd.f32 %v237, %v264
      %v275 = vadd.f32 %v238, %v264
      %v276 = vadd.f32 %v239, %v264
      %v277 = vadd.f32 %v240, %v264
      %v278 = vadd.f32 %v241, %v264
      %v279 = vadd.f32 %v242, %v264
      %v280 = vadd.f32 %v243, %v264
      %v281 = vadd.f32 %v244, %v264
      %v282 = vadd.f32 %v245, %v264
      %v283 = vadd.f32 %v246, %v264
      %v284 = vadd.f32 %v247, %v264
      %v285 = vadd.f32 %v248, %v264
      %v286 = vadd.f32 %v249, %v264
      %v287 = vadd.f32 %v250, %v264
      %v288 = vadd.f32 %v251, %v264
      %v289 = vadd.f32 %v252, %v264
      %v290 = vadd.f32 %v253, %v264
      %v291 = vadd.f32 %v254, %v264
      %v292 = vadd.f32 %v255, %v264
      %v293 = vadd.f32 %v256, %v264
      %v294 = vadd.f32 %v257, %v264
      %v295 = vadd.f32 %v258, %v264
      %v296 = vadd.f32 %v259, %v264
      %v297 = vld [vmem:[%s185] sm:$0xff]
      %v298 = vld [vmem:[%s185 + $0x8] sm:$0xff]
      %v299 = vld [vmem:[%s185 + $0x10] sm:$0xff]
      %v300 = vld [vmem:[%s185 + $0x18] sm:$0xff]
      %v301 = vld [vmem:[%s185 + $0x20] sm:$0xff]
      %v302 = vld [vmem:[%s185 + $0x28] sm:$0xff]
      %v303 = vld [vmem:[%s185 + $0x30] sm:$0xff]
      %v304 = vld [vmem:[%s185 + $0x38] sm:$0xff]
      %v305 = vld [vmem:[%s185 + $0x40] sm:$0xff]
      %v306 = vld [vmem:[%s185 + $0x48] sm:$0xff]
      %v307 = vld [vmem:[%s185 + $0x50] sm:$0xff]
      %v308 = vld [vmem:[%s185 + $0x58] sm:$0xff]
      %v309 = vld [vmem:[%s185 + $0x60] sm:$0xff]
      %v310 = vld [vmem:[%s185 + $0x68] sm:$0xff]
      %v311 = vld [vmem:[%s185 + $0x70] sm:$0xff]
      %v312 = vld [vmem:[%s185 + $0x78] sm:$0xff]
      %v313 = vld [vmem:[%s185 + $0x80] sm:$0xff]
      %v314 = vld [vmem:[%s185 + $0x88] sm:$0xff]
      %v315 = vld [vmem:[%s185 + $0x90] sm:$0xff]
      %v316 = vld [vmem:[%s185 + $0x98] sm:$0xff]
      %v317 = vld [vmem:[%s185 + $0xa0] sm:$0xff]
      %v318 = vld [vmem:[%s185 + $0xa8] sm:$0xff]
      %v319 = vld [vmem:[%s185 + $0xb0] sm:$0xff]
      %v320 = vld [vmem:[%s185 + $0xb8] sm:$0xff]
      %v321 = vld [vmem:[%s185 + $0xc0] sm:$0xff]
      %v322 = vld [vmem:[%s185 + $0xc8] sm:$0xff]
      %v323 = vld [vmem:[%s185 + $0xd0] sm:$0xff]
      %v324 = vld [vmem:[%s185 + $0xd8] sm:$0xff]
      %v325 = vld [vmem:[%s185 + $0xe0] sm:$0xff]
      %v326 = vld [vmem:[%s185 + $0xe8] sm:$0xff]
      %v327 = vld [vmem:[%s185 + $0xf0] sm:$0xff]
      %v328 = vld [vmem:[%s185 + $0xf8] sm:$0xff]
      %v329 = vadd.f32 %v265, %v297
      %v330 = vadd.f32 %v266, %v298
      %v331 = vadd.f32 %v267, %v299
      %v332 = vadd.f32 %v268, %v300
      %v333 = vadd.f32 %v269, %v301
      %v334 = vadd.f32 %v270, %v302
      %v335 = vadd.f32 %v271, %v303
      %v336 = vadd.f32 %v272, %v304
      %v337 = vadd.f32 %v273, %v305
      %v338 = vadd.f32 %v274, %v306
      %v339 = vadd.f32 %v275, %v307
      %v340 = vadd.f32 %v276, %v308
      %v341 = vadd.f32 %v277, %v309
      %v342 = vadd.f32 %v278, %v310
      %v343 = vadd.f32 %v279, %v311
      %v344 = vadd.f32 %v280, %v312
      %v345 = vadd.f32 %v281, %v313
      %v346 = vadd.f32 %v282, %v314
      %v347 = vadd.f32 %v283, %v315
      %v348 = vadd.f32 %v284, %v316
      %v349 = vadd.f32 %v285, %v317
      %v350 = vadd.f32 %v286, %v318
      %v351 = vadd.f32 %v287, %v319
      %v352 = vadd.f32 %v288, %v320
      %v353 = vadd.f32 %v289, %v321
      %v354 = vadd.f32 %v290, %v322
      %v355 = vadd.f32 %v291, %v323
      %v356 = vadd.f32 %v292, %v324
      %v357 = vadd.f32 %v293, %v325
      %v358 = vadd.f32 %v294, %v326
      %v359 = vadd.f32 %v295, %v327
      %v360 = vadd.f32 %v296, %v328
      %v361 = vmax.f32 %v329, 0.0
      %v362 = vmax.f32 %v330, 0.0
      %v363 = vmax.f32 %v331, 0.0
      %v364 = vmax.f32 %v332, 0.0
      %v365 = vmax.f32 %v333, 0.0
      %v366 = vmax.f32 %v334, 0.0
      %v367 = vmax.f32 %v335, 0.0
      %v368 = vmax.f32 %v336, 0.0
      %v369 = vmax.f32 %v337, 0.0
      %v370 = vmax.f32 %v338, 0.0
      %v371 = vmax.f32 %v339, 0.0
      %v372 = vmax.f32 %v340, 0.0
      %v373 = vmax.f32 %v341, 0.0
      %v374 = vmax.f32 %v342, 0.0
      %v375 = vmax.f32 %v343, 0.0
      %v376 = vmax.f32 %v344, 0.0
      %v377 = vmax.f32 %v345, 0.0
      %v378 = vmax.f32 %v346, 0.0
      %v379 = vmax.f32 %v347, 0.0
      %v380 = vmax.f32 %v348, 0.0
      %v381 = vmax.f32 %v349, 0.0
      %v382 = vmax.f32 %v350, 0.0
      %v383 = vmax.f32 %v351, 0.0
      %v384 = vmax.f32 %v352, 0.0
      %v385 = vmax.f32 %v353, 0.0
      %v386 = vmax.f32 %v354, 0.0
      %v387 = vmax.f32 %v355, 0.0
      %v388 = vmax.f32 %v356, 0.0
      %v389 = vmax.f32 %v357, 0.0
      %v390 = vmax.f32 %v358, 0.0
      %v391 = vmax.f32 %v359, 0.0
      %v392 = vmax.f32 %v360, 0.0
      %393 = vst [vmem:[%s190] sm:$0xff] %v361
      %394 = vst [vmem:[%s190 + $0x8] sm:$0xff] %v362
      %395 = vst [vmem:[%s190 + $0x10] sm:$0xff] %v363
      %396 = vst [vmem:[%s190 + $0x18] sm:$0xff] %v364
      %397 = vst [vmem:[%s190 + $0x20] sm:$0xff] %v365
      %398 = vst [vmem:[%s190 + $0x28] sm:$0xff] %v366
      %399 = vst [vmem:[%s190 + $0x30] sm:$0xff] %v367
      %400 = vst [vmem:[%s190 + $0x38] sm:$0xff] %v368
      %401 = vst [vmem:[%s190 + $0x40] sm:$0xff] %v369
      %402 = vst [vmem:[%s190 + $0x48] sm:$0xff] %v370
      %403 = vst [vmem:[%s190 + $0x50] sm:$0xff] %v371
      %404 = vst [vmem:[%s190 + $0x58] sm:$0xff] %v372
      %405 = vst [vmem:[%s190 + $0x60] sm:$0xff] %v373
      %406 = vst [vmem:[%s190 + $0x68] sm:$0xff] %v374
      %407 = vst [vmem:[%s190 + $0x70] sm:$0xff] %v375
      %408 = vst [vmem:[%s190 + $0x78] sm:$0xff] %v376
      %409 = vst [vmem:[%s190 + $0x80] sm:$0xff] %v377
      %410 = vst [vmem:[%s190 + $0x88] sm:$0xff] %v378
      %411 = vst [vmem:[%s190 + $0x90] sm:$0xff] %v379
      %412 = vst [vmem:[%s190 + $0x98] sm:$0xff] %v380
      %413 = vst [vmem:[%s190 + $0xa0] sm:$0xff] %v381
      %414 = vst [vmem:[%s190 + $0xa8] sm:$0xff] %v382
      %415 = vst [vmem:[%s190 + $0xb0] sm:$0xff] %v383
      %416 = vst [vmem:[%s190 + $0xb8] sm:$0xff] %v384
      %417 = vst [vmem:[%s190 + $0xc0] sm:$0xff] %v385
      %418 = vst [vmem:[%s190 + $0xc8] sm:$0xff] %v386
      %419 = vst [vmem:[%s190 + $0xd0] sm:$0xff] %v387
      %420 = vst [vmem:[%s190 + $0xd8] sm:$0xff] %v388
      %421 = vst [vmem:[%s190 + $0xe0] sm:$0xff] %v389
      %422 = vst [vmem:[%s190 + $0xe8] sm:$0xff] %v390
      %423 = vst [vmem:[%s190 + $0xf0] sm:$0xff] %v391
      %424 = vst [vmem:[%s190 + $0xf8] sm:$0xff] %v392
      %p425 = scmp.lt.s32.totalorder %s14, 1
      %s426 = scalar_select %p425, %s14, 1
      %s427 = smul.addr %s426, 32
      %s428 = smul.addr %s427, 8
      %s429 = scalar_lea.vmem %s3, %s428
      // Predicated region
      $region33: #{basic_block_forward.5} parent=31 // pred_check
        %p430 = pneg %p105
      $region34: #{basic_block_forward.5} parent=31 // pred_check_branch
        %432 = sbr.rel (%p430) target = $region36
      $region35: #{basic_block_forward.5} parent=31 // pred_region
        _
      $region36: #{basic_block_forward.5} parent=31 // pred_fallthru
        _
    $region32: #{basic_block_forward.5} parent=5 // pred_fallthru
      _
    %p433 = scmp.le.s32.totalorder 2, %s9
    // Predicated region
    $region37: #{basic_block_forward.5} parent=5 // pred_check
      %p434 = pneg %p433
    $region38: #{basic_block_forward.5} parent=5 // pred_check_branch
      %436 = sbr.rel (%p434) target = $region40
    $region39: #{basic_block_forward.5} parent=5 // pred_region
      %s437 = ssub.s32 %s9, 2
      // Predicated region
      $region41: #{basic_block_forward.5} parent=39 // pred_check
        %p438 = pneg %p111
      $region42: #{basic_block_forward.5} parent=39 // pred_check_branch
        %440 = sbr.rel (%p438) target = $region44
      $region43: #{basic_block_forward.5} parent=39 // pred_region
        %p441 = scmp.lt.s32.totalorder %s15, 1
        %s442 = scalar_select %p441, %s15, 1
        %s443 = smul.addr %s442, 32
        %s444 = smul.addr %s443, 8
        %s445 = scalar_lea.vmem %s3, %s444
      $region44: #{basic_block_forward.5} parent=39 // pred_fallthru
        _
    $region40: #{basic_block_forward.5} parent=5 // pred_fallthru
      _
  $region6: #{basic_block_forward.5} parent=0 // loop_footer
    %s13 = sadd.s32 1, %s9
  $region7: #{basic_block_forward.5} parent=0 // loop_footer_branch
    %8 = sbr.rel target = $region3
  $region8: #{basic_block_forward.5} parent=0 // loop_exit
    _

// kernel: basic_block_forward.3
$region0: #{basic_block_forward.3}
  #allocation0 [shape = 'u32[]', space=smem, size = 0x4, offset = 0x4, fixed_abs, tag = 'smem constant byte address 0x4 - core index']
  #allocation1 [shape = 'u32[144,128]{1,0:T(1,128)}', space=vmem, size = 0x12000, scoped, tag = 'internal scratch']
  %s0 = inlined_call_operand.vmem [shape: f32[2,256,128], index: 0, kind: input, shape index: {}]
  %s1 = inlined_call_operand.vmem [shape: f32[256,128], index: 1, kind: input, shape index: {}]
  %s2 = inlined_call_operand.vmem [shape: f32[9,128,128], index: 2, kind: input, shape index: {}]
  %s3 = inlined_call_operand.vmem [shape: f32[2,256,128], index: 3, kind: output, shape index: {0}]
  %s4 = inlined_call_operand.vmem [shape: f32[2,8,128], index: 4, kind: output, shape index: {1}]
  %5 = xla_tuple %s3, %s4
  %s6 = sld [smem:[#allocation0]]
  $region53: #{basic_block_forward.3} parent=0
    _
  %s8 = ssub.s32 1, %s6
  %s9 = scalar_select 0, %s8, %s6
  loop: start=0, step=1, limit=4
  $region2: #{basic_block_forward.3} parent=0 // loop_pre_header
    _
  $region3: #{basic_block_forward.3} parent=0 // loop_header
    %s11 = sphi 0, %s15
    %p12 = scmp.ge.s32.totalorder %s11, 4
    %s21 = sphi 0, %s23
    %s24 = sphi 0, %s21
    %s25 = sphi 0, %s24
    %s41 = sphi 0, %s25
    %s45 = sphi 0, %s45
    %s47 = sphi 0, %s45
    %s48 = sphi 0, %s47
    %s62 = sphi 0, %s48
    %s66 = sphi 0, %s66
    %s68 = sphi 0, %s66
    %s69 = sphi 0, %s68
    %s83 = sphi 0, %s69
    %s89 = sphi 0, %s91
    %s92 = sphi 0, %s89
    %s93 = sphi 0, %s92
    %s109 = sphi 0, %s93
    %s115 = sphi 0, %s117
    %s118 = sphi 0, %s115
    %s119 = sphi 0, %s118
    %s135 = sphi 0, %s119
  $region4: #{basic_block_forward.3} parent=0 // loop_header_branch
    %14 = sbr.rel (%p12) target = $region8
  $region5: #{basic_block_forward.3} parent=0 // loop_body
    %s16 = ssub.s32 %s11, 1
    %s17 = ssub.s32 %s11, 2
    %s18 = sadd.s32 %s11, 1
    %s19 = ssub.s32 %s11, %s18
    %p20 = scmp.eq.s32.totalorder %s19, 0
    %s22 = sadd.s32 %s21, 1
    %s23 = scalar_select %p20, %s21, %s22
    %p26 = pneg %p20
    %p27 = scmp.eq.s32.totalorder %s11, 1
    %p28 = por %p26, %p27
    %p29 = scmp.ne.s32.totalorder %s21, %s24
    %p30 = scmp.eq.s32.totalorder %s11, 0
    %p31 = por %p29, %p30
    %p32 = scmp.ne.s32.totalorder %s21, %s24
    %p33 = scmp.eq.s32.totalorder %s16, 1
    %p34 = por %p32, %p33
    %p35 = scmp.ne.s32.totalorder %s24, %s25
    %p36 = scmp.eq.s32.totalorder %s16, 0
    %p37 = por %p35, %p36
    %p38 = scmp.ne.s32.totalorder %s24, %s25
    %p39 = scmp.eq.s32.totalorder %s17, 1
    %p40 = por %p38, %p39
    %p42 = scmp.ne.s32.totalorder %s25, %s41
    %p43 = scmp.eq.s32.totalorder %s17, 0
    %p44 = por %p42, %p43
    %s46 = sadd.s32 %s45, 1
    %p49 = scmp.eq.s32.totalorder %s11, 1
    %p50 = scmp.ne.s32.totalorder %s45, %s47
    %p51 = scmp.eq.s32.totalorder %s11, 0
    %p52 = por %p50, %p51
    %p53 = scmp.ne.s32.totalorder %s45, %s47
    %p54 = scmp.eq.s32.totalorder %s16, 1
    %p55 = por %p53, %p54
    %p56 = scmp.ne.s32.totalorder %s47, %s48
    %p57 = scmp.eq.s32.totalorder %s16, 0
    %p58 = por %p56, %p57
    %p59 = scmp.ne.s32.totalorder %s47, %s48
    %p60 = scmp.eq.s32.totalorder %s17, 1
    %p61 = por %p59, %p60
    %p63 = scmp.ne.s32.totalorder %s48, %s62
    %p64 = scmp.eq.s32.totalorder %s17, 0
    %p65 = por %p63, %p64
    %s67 = sadd.s32 %s66, 1
    %p70 = scmp.eq.s32.totalorder %s11, 1
    %p71 = scmp.ne.s32.totalorder %s66, %s68
    %p72 = scmp.eq.s32.totalorder %s11, 0
    %p73 = por %p71, %p72
    %p74 = scmp.ne.s32.totalorder %s66, %s68
    %p75 = scmp.eq.s32.totalorder %s16, 1
    %p76 = por %p74, %p75
    %p77 = scmp.ne.s32.totalorder %s68, %s69
    %p78 = scmp.eq.s32.totalorder %s16, 0
    %p79 = por %p77, %p78
    %p80 = scmp.ne.s32.totalorder %s68, %s69
    %p81 = scmp.eq.s32.totalorder %s17, 1
    %p82 = por %p80, %p81
    %p84 = scmp.ne.s32.totalorder %s69, %s83
    %p85 = scmp.eq.s32.totalorder %s17, 0
    %p86 = por %p84, %p85
    %s87 = ssub.s32 %s11, %s18
    %p88 = scmp.eq.s32.totalorder %s87, 0
    %s90 = sadd.s32 %s89, 1
    %s91 = scalar_select %p88, %s89, %s90
    %p94 = pneg %p88
    %p95 = scmp.eq.s32.totalorder %s11, 1
    %p96 = por %p94, %p95
    %p97 = scmp.ne.s32.totalorder %s89, %s92
    %p98 = scmp.eq.s32.totalorder %s11, 0
    %p99 = por %p97, %p98
    %p100 = scmp.ne.s32.totalorder %s89, %s92
    %p101 = scmp.eq.s32.totalorder %s16, 1
    %p102 = por %p100, %p101
    %p103 = scmp.ne.s32.totalorder %s92, %s93
    %p104 = scmp.eq.s32.totalorder %s16, 0
    %p105 = por %p103, %p104
    %p106 = scmp.ne.s32.totalorder %s92, %s93
    %p107 = scmp.eq.s32.totalorder %s17, 1
    %p108 = por %p106, %p107
    %p110 = scmp.ne.s32.totalorder %s93, %s109
    %p111 = scmp.eq.s32.totalorder %s17, 0
    %p112 = por %p110, %p111
    %s113 = ssub.s32 %s11, %s18
    %p114 = scmp.eq.s32.totalorder %s113, 0
    %s116 = sadd.s32 %s115, 1
    %s117 = scalar_select %p114, %s115, %s116
    %p120 = pneg %p114
    %p121 = scmp.eq.s32.totalorder %s11, 1
    %p122 = por %p120, %p121
    %p123 = scmp.ne.s32.totalorder %s115, %s118
    %p124 = scmp.eq.s32.totalorder %s11, 0
    %p125 = por %p123, %p124
    %p126 = scmp.ne.s32.totalorder %s115, %s118
    %p127 = scmp.eq.s32.totalorder %s16, 1
    %p128 = por %p126, %p127
    %p129 = scmp.ne.s32.totalorder %s118, %s119
    %p130 = scmp.eq.s32.totalorder %s16, 0
    %p131 = por %p129, %p130
    %p132 = scmp.ne.s32.totalorder %s118, %s119
    %p133 = scmp.eq.s32.totalorder %s17, 1
    %p134 = por %p132, %p133
    %p136 = scmp.ne.s32.totalorder %s119, %s135
    %p137 = scmp.eq.s32.totalorder %s17, 0
    %p138 = por %p136, %p137
    %p139 = scmp.le.s32.totalorder 1, %s11
    %p140 = scmp.lt.s32.totalorder %s11, 3
    %p141 = pnand %p139, %p140
    %p142 = pneg %p141
    // Predicated region
    $region9: #{basic_block_forward.3} parent=5 // pred_check
      _
    $region10: #{basic_block_forward.3} parent=5 // pred_check_branch
      %144 = sbr.rel (%p141) target = $region12
    $region11: #{basic_block_forward.3} parent=5 // pred_region
      %s145 = ssub.s32 %s11, 1
      // Predicated region
      $region13: #{basic_block_forward.3} parent=11 // pred_check
        %p146 = pneg %p58
      $region14: #{basic_block_forward.3} parent=11 // pred_check_branch
        %148 = sbr.rel (%p146) target = $region16
      $region15: #{basic_block_forward.3} parent=11 // pred_region
        _
      $region16: #{basic_block_forward.3} parent=11 // pred_fallthru
        _
      // Predicated region
      $region17: #{basic_block_forward.3} parent=11 // pred_check
        %p149 = pneg %p79
      $region18: #{basic_block_forward.3} parent=11 // pred_check_branch
        %151 = sbr.rel (%p149) target = $region20
      $region19: #{basic_block_forward.3} parent=11 // pred_region
        _
      $region20: #{basic_block_forward.3} parent=11 // pred_fallthru
        _
    $region12: #{basic_block_forward.3} parent=5 // pred_fallthru
      _
    %p152 = scmp.lt.s32.totalorder %s11, 2
    // Predicated region
    $region21: #{basic_block_forward.3} parent=5 // pred_check
      %p153 = pneg %p152
    $region22: #{basic_block_forward.3} parent=5 // pred_check_branch
      %155 = sbr.rel (%p153) target = $region24
    $region23: #{basic_block_forward.3} parent=5 // pred_region
      // Predicated region
      $region25: #{basic_block_forward.3} parent=23 // pred_check
        %p156 = pneg %p31
      $region26: #{basic_block_forward.3} parent=23 // pred_check_branch
        %158 = sbr.rel (%p156) target = $region28
      $region27: #{basic_block_forward.3} parent=23 // pred_region
        %p159 = scmp.lt.s32.totalorder %s11, 1
        %s160 = scalar_select %p159, %s11, 1
        %s161 = smul.addr %s160, 32
        %s162 = smul.addr %s161, 8
        %s163 = scalar_lea.vmem %s0, %s162
      $region28: #{basic_block_forward.3} parent=23 // pred_fallthru
        _
    $region24: #{basic_block_forward.3} parent=5 // pred_fallthru
      _
    %p164 = scmp.le.s32.totalorder 1, %s11
    %p165 = scmp.lt.s32.totalorder %s11, 3
    %p166 = pnand %p164, %p165
    %p167 = pneg %p166
    // Predicated region
    $region29: #{basic_block_forward.3} parent=5 // pred_check
      _
    $region30: #{basic_block_forward.3} parent=5 // pred_check_branch
      %169 = sbr.rel (%p166) target = $region32
    $region31: #{basic_block_forward.3} parent=5 // pred_region
      %s170 = ssub.s32 %s11, 1
      %p171 = scmp.lt.s32.totalorder %s16, 1
      %s172 = scalar_select %p171, %s16, 1
      %s173 = smul.addr %s172, 32
      %s174 = smul.addr %s173, 8
      %s175 = scalar_lea.vmem %s0, %s174
      %p176 = pneg %p37
      %p177 = pneg %p34
      %p178 = pneg %p58
      %p179 = pneg %p55
      %p180 = pneg %p79
      %p181 = pneg %p76
      %p182 = pneg %p105
      %p183 = pneg %p102
      %p184 = scmp.lt.s32.totalorder %s16, 1
      %s185 = scalar_select %p184, %s16, 1
      %s186 = smul.addr %s185, 32
      %s187 = smul.addr %s186, 8
      %s188 = scalar_lea.vmem %s3, %s187
      %p189 = pneg %p131
      %p190 = pneg %p128
      %p191 = scmp.lt.s32.totalorder %s16, 1
      %s192 = scalar_select %p191, %s16, 1
      %s193 = smul.addr %s192, 8
      %s194 = scalar_lea.vmem %s4, %s193
      %p195 = scmp.lt.s32.totalorder %s16, 1
      %s196 = scalar_select %p195, %s16, 1
      %s197 = smul.addr %s196, 32
      %s198 = smul.addr %s197, 8
      %s199 = scalar_lea.vmem %s0, %s198
      %p200 = scmp.lt.s32.totalorder %s16, 1
      %s201 = scalar_select %p200, %s16, 1
      %s202 = smul.addr %s201, 32
      %s203 = smul.addr %s202, 8
      %s204 = scalar_lea.vmem %s3, %s203
      %p205 = scmp.lt.s32.totalorder %s16, 1
      %s206 = scalar_select %p205, %s16, 1
      %s207 = smul.addr %s206, 8
      %s208 = scalar_lea.vmem %s4, %s207
      %v209 = vld [vmem:[%s199] sm:$0xff]
      %v210 = vld [vmem:[%s199 + $0x8] sm:$0xff]
      %v211 = vld [vmem:[%s199 + $0x10] sm:$0xff]
      %v212 = vld [vmem:[%s199 + $0x18] sm:$0xff]
      %v213 = vld [vmem:[%s199 + $0x20] sm:$0xff]
      %v214 = vld [vmem:[%s199 + $0x28] sm:$0xff]
      %v215 = vld [vmem:[%s199 + $0x30] sm:$0xff]
      %v216 = vld [vmem:[%s199 + $0x38] sm:$0xff]
      %v217 = vld [vmem:[%s199 + $0x40] sm:$0xff]
      %v218 = vld [vmem:[%s199 + $0x48] sm:$0xff]
      %v219 = vld [vmem:[%s199 + $0x50] sm:$0xff]
      %v220 = vld [vmem:[%s199 + $0x58] sm:$0xff]
      %v221 = vld [vmem:[%s199 + $0x60] sm:$0xff]
      %v222 = vld [vmem:[%s199 + $0x68] sm:$0xff]
      %v223 = vld [vmem:[%s199 + $0x70] sm:$0xff]
      %v224 = vld [vmem:[%s199 + $0x78] sm:$0xff]
      %v225 = vld [vmem:[%s199 + $0x80] sm:$0xff]
      %v226 = vld [vmem:[%s199 + $0x88] sm:$0xff]
      %v227 = vld [vmem:[%s199 + $0x90] sm:$0xff]
      %v228 = vld [vmem:[%s199 + $0x98] sm:$0xff]
      %v229 = vld [vmem:[%s199 + $0xa0] sm:$0xff]
      %v230 = vld [vmem:[%s199 + $0xa8] sm:$0xff]
      %v231 = vld [vmem:[%s199 + $0xb0] sm:$0xff]
      %v232 = vld [vmem:[%s199 + $0xb8] sm:$0xff]
      %v233 = vld [vmem:[%s199 + $0xc0] sm:$0xff]
      %v234 = vld [vmem:[%s199 + $0xc8] sm:$0xff]
      %v235 = vld [vmem:[%s199 + $0xd0] sm:$0xff]
      %v236 = vld [vmem:[%s199 + $0xd8] sm:$0xff]
      %v237 = vld [vmem:[%s199 + $0xe0] sm:$0xff]
      %v238 = vld [vmem:[%s199 + $0xe8] sm:$0xff]
      %v239 = vld [vmem:[%s199 + $0xf0] sm:$0xff]
      %v240 = vld [vmem:[%s199 + $0xf8] sm:$0xff]
      %v241 = vld [vmem:[%s1] sm:$0xff]
      %v242 = vld [vmem:[%s1 + $0x8] sm:$0xff]
      %v243 = vld [vmem:[%s1 + $0x10] sm:$0xff]
      %v244 = vld [vmem:[%s1 + $0x18] sm:$0xff]
      %v245 = vld [vmem:[%s1 + $0x20] sm:$0xff]
      %v246 = vld [vmem:[%s1 + $0x28] sm:$0xff]
      %v247 = vld [vmem:[%s1 + $0x30] sm:$0xff]
      %v248 = vld [vmem:[%s1 + $0x38] sm:$0xff]
      %v249 = vld [vmem:[%s1 + $0x40] sm:$0xff]
      %v250 = vld [vmem:[%s1 + $0x48] sm:$0xff]
      %v251 = vld [vmem:[%s1 + $0x50] sm:$0xff]
      %v252 = vld [vmem:[%s1 + $0x58] sm:$0xff]
      %v253 = vld [vmem:[%s1 + $0x60] sm:$0xff]
      %v254 = vld [vmem:[%s1 + $0x68] sm:$0xff]
      %v255 = vld [vmem:[%s1 + $0x70] sm:$0xff]
      %v256 = vld [vmem:[%s1 + $0x78] sm:$0xff]
      %v257 = vld [vmem:[%s1 + $0x80] sm:$0xff]
      %v258 = vld [vmem:[%s1 + $0x88] sm:$0xff]
      %v259 = vld [vmem:[%s1 + $0x90] sm:$0xff]
      %v260 = vld [vmem:[%s1 + $0x98] sm:$0xff]
      %v261 = vld [vmem:[%s1 + $0xa0] sm:$0xff]
      %v262 = vld [vmem:[%s1 + $0xa8] sm:$0xff]
      %v263 = vld [vmem:[%s1 + $0xb0] sm:$0xff]
      %v264 = vld [vmem:[%s1 + $0xb8] sm:$0xff]
      %v265 = vld [vmem:[%s1 + $0xc0] sm:$0xff]
      %v266 = vld [vmem:[%s1 + $0xc8] sm:$0xff]
      %v267 = vld [vmem:[%s1 + $0xd0] sm:$0xff]
      %v268 = vld [vmem:[%s1 + $0xd8] sm:$0xff]
      %v269 = vld [vmem:[%s1 + $0xe0] sm:$0xff]
      %v270 = vld [vmem:[%s1 + $0xe8] sm:$0xff]
      %v271 = vld [vmem:[%s1 + $0xf0] sm:$0xff]
      %v272 = vld [vmem:[%s1 + $0xf8] sm:$0xff]
      %vm305 = vcmask 1046528
      %v306 = vrot.slane %v241, 1
      %v307 = vrot.slane %v242, 1
      %v308 = vsel %vm305, %v306, %v307
      %v309 = vrot.slane %v243, 1
      %v310 = vsel %vm305, %v307, %v309
      %v311 = vrot.slane %v244, 1
      %v312 = vsel %vm305, %v309, %v311
      %v313 = vrot.slane %v245, 1
      %v314 = vsel %vm305, %v311, %v313
      %v315 = vrot.slane %v246, 1
      %v316 = vsel %vm305, %v313, %v315
      %v317 = vrot.slane %v247, 1
      %v318 = vsel %vm305, %v315, %v317
      %v319 = vrot.slane %v248, 1
      %v320 = vsel %vm305, %v317, %v319
      %v321 = vrot.slane %v249, 1
      %v322 = vsel %vm305, %v319, %v321
      %v323 = vrot.slane %v250, 1
      %v324 = vsel %vm305, %v321, %v323
      %v325 = vrot.slane %v251, 1
      %v326 = vsel %vm305, %v323, %v325
      %v327 = vrot.slane %v252, 1
      %v328 = vsel %vm305, %v325, %v327
      %v329 = vrot.slane %v253, 1
      %v330 = vsel %vm305, %v327, %v329
      %v331 = vrot.slane %v254, 1
      %v332 = vsel %vm305, %v329, %v331
      %v333 = vrot.slane %v255, 1
      %v334 = vsel %vm305, %v331, %v333
      %v335 = vrot.slane %v256, 1
      %v336 = vsel %vm305, %v333, %v335
      %v337 = vrot.slane %v257, 1
      %v338 = vsel %vm305, %v335, %v337
      %v339 = vrot.slane %v258, 1
      %v340 = vsel %vm305, %v337, %v339
      %v341 = vrot.slane %v259, 1
      %v342 = vsel %vm305, %v339, %v341
      %v343 = vrot.slane %v260, 1
      %v344 = vsel %vm305, %v341, %v343
      %v345 = vrot.slane %v261, 1
      %v346 = vsel %vm305, %v343, %v345
      %v347 = vrot.slane %v262, 1
      %v348 = vsel %vm305, %v345, %v347
      %v349 = vrot.slane %v263, 1
      %v350 = vsel %vm305, %v347, %v349
      %v351 = vrot.slane %v264, 1
      %v352 = vsel %vm305, %v349, %v351
      %v353 = vrot.slane %v265, 1
      %v354 = vsel %vm305, %v351, %v353
      %v355 = vrot.slane %v266, 1
      %v356 = vsel %vm305, %v353, %v355
      %v357 = vrot.slane %v267, 1
      %v358 = vsel %vm305, %v355, %v357
      %v359 = vrot.slane %v268, 1
      %v360 = vsel %vm305, %v357, %v359
      %v361 = vrot.slane %v269, 1
      %v362 = vsel %vm305, %v359, %v361
      %v363 = vrot.slane %v270, 1
      %v364 = vsel %vm305, %v361, %v363
      %v365 = vrot.slane %v271, 1
      %v366 = vsel %vm305, %v363, %v365
      %v367 = vrot.slane %v272, 1
      %v368 = vsel %vm305, %v365, %v367
      %v401 = vsel %vm305, %v367, 0.0
      %vm432 = vcmask 1040384
      %v433 = vrot.slane %v209, 7
      %v434 = vrot.slane %v210, 7
      %v435 = vsel %vm432, %v433, %v434
      %v436 = vrot.slane %v211, 7
      %v437 = vsel %vm432, %v434, %v436
      %v438 = vrot.slane %v212, 7
      %v439 = vsel %vm432, %v436, %v438
      %v440 = vrot.slane %v213, 7
      %v441 = vsel %vm432, %v438, %v440
      %v442 = vrot.slane %v214, 7
      %v443 = vsel %vm432, %v440, %v442
      %v444 = vrot.slane %v215, 7
      %v445 = vsel %vm432, %v442, %v444
      %v446 = vrot.slane %v216, 7
      %v447 = vsel %vm432, %v444, %v446
      %v448 = vrot.slane %v217, 7
      %v449 = vsel %vm432, %v446, %v448
      %v450 = vrot.slane %v218, 7
      %v451 = vsel %vm432, %v448, %v450
      %v452 = vrot.slane %v219, 7
      %v453 = vsel %vm432, %v450, %v452
      %v454 = vrot.slane %v220, 7
      %v455 = vsel %vm432, %v452, %v454
      %v456 = vrot.slane %v221, 7
      %v457 = vsel %vm432, %v454, %v456
      %v458 = vrot.slane %v222, 7
      %v459 = vsel %vm432, %v456, %v458
      %v460 = vrot.slane %v223, 7
      %v461 = vsel %vm432, %v458, %v460
      %v462 = vrot.slane %v224, 7
      %v463 = vsel %vm432, %v460, %v462
      %v464 = vrot.slane %v225, 7
      %v465 = vsel %vm432, %v462, %v464
      %v466 = vrot.slane %v226, 7
      %v467 = vsel %vm432, %v464, %v466
      %v468 = vrot.slane %v227, 7
      %v469 = vsel %vm432, %v466, %v468
      %v470 = vrot.slane %v228, 7
      %v471 = vsel %vm432, %v468, %v470
      %v472 = vrot.slane %v229, 7
      %v473 = vsel %vm432, %v470, %v472
      %v474 = vrot.slane %v230, 7
      %v475 = vsel %vm432, %v472, %v474
      %v476 = vrot.slane %v231, 7
      %v477 = vsel %vm432, %v474, %v476
      %v478 = vrot.slane %v232, 7
      %v479 = vsel %vm432, %v476, %v478
      %v480 = vrot.slane %v233, 7
      %v481 = vsel %vm432, %v478, %v480
      %v482 = vrot.slane %v234, 7
      %v483 = vsel %vm432, %v480, %v482
      %v484 = vrot.slane %v235, 7
      %v485 = vsel %vm432, %v482, %v484
      %v486 = vrot.slane %v236, 7
      %v487 = vsel %vm432, %v484, %v486
      %v488 = vrot.slane %v237, 7
      %v489 = vsel %vm432, %v486, %v488
      %v490 = vrot.slane %v238, 7
      %v491 = vsel %vm432, %v488, %v490
      %v522 = vsel %vm432, 0.0, %v433
      %v523 = vmul.f32 %v241, 0.0
      %v524 = vmul.f32 %v242, 0.0
      %v525 = vmul.f32 %v522, %v243
      %v526 = vmul.f32 %v435, %v244
      %v527 = vmul.f32 %v437, %v245
      %v528 = vmul.f32 %v439, %v246
      %v529 = vmul.f32 %v441, %v247
      %v530 = vmul.f32 %v443, %v248
      %v531 = vmul.f32 %v445, %v249
      %v532 = vmul.f32 %v447, %v250
      %v533 = vmul.f32 %v449, %v251
      %v534 = vmul.f32 %v451, %v252
      %v535 = vmul.f32 %v453, %v253
      %v536 = vmul.f32 %v455, %v254
      %v537 = vmul.f32 %v457, %v255
      %v538 = vmul.f32 %v459, %v256
      %v539 = vmul.f32 %v461, %v257
      %v540 = vmul.f32 %v463, %v258
      %v541 = vmul.f32 %v465, %v259
      %v542 = vmul.f32 %v467, %v260
      %v543 = vmul.f32 %v469, %v261
      %v544 = vmul.f32 %v471, %v262
      %v545 = vmul.f32 %v473, %v263
      %v546 = vmul.f32 %v475, %v264
      %v547 = vmul.f32 %v477, %v265
      %v548 = vmul.f32 %v479, %v266
      %v549 = vmul.f32 %v481, %v267
      %v550 = vmul.f32 %v483, %v268
      %v551 = vmul.f32 %v485, %v269
      %v552 = vmul.f32 %v487, %v270
      %v553 = vmul.f32 %v489, %v271
      %v554 = vmul.f32 %v491, %v272
      %v555 = vld [vmem:[%s2] sm:$0xff]
      %v556 = vld [vmem:[%s2 + $0x8] sm:$0xff]
      %v557 = vld [vmem:[%s2 + $0x10] sm:$0xff]
      %v558 = vld [vmem:[%s2 + $0x18] sm:$0xff]
      %v559 = vld [vmem:[%s2 + $0x20] sm:$0xff]
      %v560 = vld [vmem:[%s2 + $0x28] sm:$0xff]
      %v561 = vld [vmem:[%s2 + $0x30] sm:$0xff]
      %v562 = vld [vmem:[%s2 + $0x38] sm:$0xff]
      %v563 = vld [vmem:[%s2 + $0x40] sm:$0xff]
      %v564 = vld [vmem:[%s2 + $0x48] sm:$0xff]
      %v565 = vld [vmem:[%s2 + $0x50] sm:$0xff]
      %v566 = vld [vmem:[%s2 + $0x58] sm:$0xff]
      %v567 = vld [vmem:[%s2 + $0x60] sm:$0xff]
      %v568 = vld [vmem:[%s2 + $0x68] sm:$0xff]
      %v569 = vld [vmem:[%s2 + $0x70] sm:$0xff]
      %v570 = vld [vmem:[%s2 + $0x78] sm:$0xff]
      %s571 = scalar_lea.vmem %s2, 128
      %v572 = vld [vmem:[%s571] sm:$0xff]
      %v573 = vld [vmem:[%s571 + $0x8] sm:$0xff]
      %v574 = vld [vmem:[%s571 + $0x10] sm:$0xff]
      %v575 = vld [vmem:[%s571 + $0x18] sm:$0xff]
      %v576 = vld [vmem:[%s571 + $0x20] sm:$0xff]
      %v577 = vld [vmem:[%s571 + $0x28] sm:$0xff]
      %v578 = vld [vmem:[%s571 + $0x30] sm:$0xff]
      %v579 = vld [vmem:[%s571 + $0x38] sm:$0xff]
      %v580 = vld [vmem:[%s571 + $0x40] sm:$0xff]
      %v581 = vld [vmem:[%s571 + $0x48] sm:$0xff]
      %v582 = vld [vmem:[%s571 + $0x50] sm:$0xff]
      %v583 = vld [vmem:[%s571 + $0x58] sm:$0xff]
      %v584 = vld [vmem:[%s571 + $0x60] sm:$0xff]
      %v585 = vld [vmem:[%s571 + $0x68] sm:$0xff]
      %v586 = vld [vmem:[%s571 + $0x70] sm:$0xff]
      %v587 = vld [vmem:[%s571 + $0x78] sm:$0xff]
      %588 = vmatprep.subr.mxu0 0.0
      %589 = vmatpush1.msra.mxu0 %v587
      %590 = vmatprep.subr.mxu0 0.0
      %591 = vmatpush1.msra.mxu0 %v586
      %592 = vmatprep.subr.mxu0 0.0
      %593 = vmatpush1.msra.mxu0 %v585
      %594 = vmatprep.subr.mxu0 0.0
      %595 = vmatpush1.msra.mxu0 %v584
      %596 = vmatprep.subr.mxu0 0.0
      %597 = vmatpush1.msra.mxu0 %v583
      %598 = vmatprep.subr.mxu0 0.0
      %599 = vmatpush1.msra.mxu0 %v582
      %600 = vmatprep.subr.mxu0 0.0
      %601 = vmatpush1.msra.mxu0 %v581
      %602 = vmatprep.subr.mxu0 0.0
      %603 = vmatpush1.msra.mxu0 %v580
      %604 = vmatprep.subr.mxu0 0.0
      %605 = vmatpush1.msra.mxu0 %v579
      %606 = vmatprep.subr.mxu0 0.0
      %607 = vmatpush1.msra.mxu0 %v578
      %608 = vmatprep.subr.mxu0 0.0
      %609 = vmatpush1.msra.mxu0 %v577
      %610 = vmatprep.subr.mxu0 0.0
      %611 = vmatpush1.msra.mxu0 %v576
      %612 = vmatprep.subr.mxu0 0.0
      %613 = vmatpush1.msra.mxu0 %v575
      %614 = vmatprep.subr.mxu0 0.0
      %615 = vmatpush1.msra.mxu0 %v574
      %616 = vmatprep.subr.mxu0 0.0
      %617 = vmatpush1.msra.mxu0 %v573
      %618 = vmatprep.subr.mxu0 0.0
      %619 = vmatpush1.msra.mxu0 %v572
      %620 = vmatprep.subr.mxu0 0.0
      %621 = vmatpush2.msra.mxu0 0.0
      %622 = vmatprep.subr.mxu0 0.0
      %623 = vmatpush2.msra.mxu0 0.0
      %624 = vmatprep.subr.mxu0 0.0
      %625 = vmatpush2.msra.mxu0 0.0
      %626 = vmatprep.subr.mxu0 0.0
      %627 = vmatpush2.msra.mxu0 0.0
      %628 = vmatprep.subr.mxu0 0.0
      %629 = vmatpush2.msra.mxu0 0.0
      %630 = vmatprep.subr.mxu0 0.0
      %631 = vmatpush2.msra.mxu0 0.0
      %632 = vmatprep.subr.mxu0 0.0
      %633 = vmatpush2.msra.mxu0 0.0
      %634 = vmatprep.subr.mxu0 0.0
      %635 = vmatpush2.msra.mxu0 0.0
      %636 = vmatprep.subr.mxu0 0.0
      %637 = vmatpush2.msra.mxu0 0.0
      %638 = vmatprep.subr.mxu0 0.0
      %639 = vmatpush2.msra.mxu0 0.0
      %640 = vmatprep.subr.mxu0 0.0
      %641 = vmatpush2.msra.mxu0 0.0
      %642 = vmatprep.subr.mxu0 0.0
      %643 = vmatpush2.msra.mxu0 0.0
      %644 = vmatprep.subr.mxu0 0.0
      %645 = vmatpush2.msra.mxu0 0.0
      %646 = vmatprep.subr.mxu0 0.0
      %647 = vmatpush2.msra.mxu0 0.0
      %648 = vmatprep.subr.mxu0 0.0
      %649 = vmatpush2.msra.mxu0 0.0
      %650 = vmatprep.subr.mxu0 0.0
      %651 = vmatpush2.msra.mxu0 0.0
      %652 = vmatprep.mubr.f32.mxu0 0.0
      %653 = vmatmul.mubr.f32.gmra.mxu0 0.0
      %v654 = vpop.f32.mrf.mxu0
      %v655 = vadd.f32 0.0, %v654
      %v656 = vpop.f32.mrf.mxu0
      %657 = vmatprep.mubr.f32.mxu0 0.0
      %658 = vmatmul.mubr.f32.gmra.mxu0 0.0
      %v659 = vpop.f32.mrf.mxu0
      %v660 = vadd.f32 0.0, %v659
      %v661 = vpop.f32.mrf.mxu0
      %662 = vmatprep.mubr.f32.mxu0 0.0
      %663 = vmatmul.mubr.f32.gmra.mxu0 %v209
      %v664 = vpop.f32.mrf.mxu0
      %v665 = vadd.f32 0.0, %v664
      %v666 = vpop.f32.mrf.mxu0
      %667 = vmatprep.mubr.f32.mxu0 0.0
      %668 = vmatmul.mubr.f32.gmra.mxu0 %v210
      %v669 = vpop.f32.mrf.mxu0
      %v670 = vadd.f32 0.0, %v669
      %v671 = vpop.f32.mrf.mxu0
      %672 = vmatprep.mubr.f32.mxu0 0.0
      %673 = vmatmul.mubr.f32.gmra.mxu0 %v211
      %v674 = vpop.f32.mrf.mxu0
      %v675 = vadd.f32 0.0, %v674
      %v676 = vpop.f32.mrf.mxu0
      %677 = vmatprep.mubr.f32.mxu0 0.0
      %678 = vmatmul.mubr.f32.gmra.mxu0 %v212
      %v679 = vpop.f32.mrf.mxu0
      %v680 = vadd.f32 0.0, %v679
      %v681 = vpop.f32.mrf.mxu0
      %682 = vmatprep.mubr.f32.mxu0 0.0
      %683 = vmatmul.mubr.f32.gmra.mxu0 %v213
      %v684 = vpop.f32.mrf.mxu0
      %v685 = vadd.f32 0.0, %v684
      %v686 = vpop.f32.mrf.mxu0
      %687 = vmatprep.mubr.f32.mxu0 0.0
      %688 = vmatmul.mubr.f32.gmra.mxu0 %v214
      %v689 = vpop.f32.mrf.mxu0
      %v690 = vadd.f32 0.0, %v689
      %v691 = vpop.f32.mrf.mxu0
      %692 = vmatprep.mubr.f32.mxu0 0.0
      %693 = vmatmul.mubr.f32.gmra.mxu0 %v215
      %v694 = vpop.f32.mrf.mxu0
      %v695 = vadd.f32 0.0, %v694
      %v696 = vpop.f32.mrf.mxu0
      %697 = vmatprep.mubr.f32.mxu0 0.0
      %698 = vmatmul.mubr.f32.gmra.mxu0 %v216
      %v699 = vpop.f32.mrf.mxu0
      %v700 = vadd.f32 0.0, %v699
      %v701 = vpop.f32.mrf.mxu0
      %702 = vmatprep.mubr.f32.mxu0 0.0
      %703 = vmatmul.mubr.f32.gmra.mxu0 %v217
      %v704 = vpop.f32.mrf.mxu0
      %v705 = vadd.f32 0.0, %v704
      %v706 = vpop.f32.mrf.mxu0
      %707 = vmatprep.mubr.f32.mxu0 0.0
      %708 = vmatmul.mubr.f32.gmra.mxu0 %v218
      %v709 = vpop.f32.mrf.mxu0
      %v710 = vadd.f32 0.0, %v709
      %v711 = vpop.f32.mrf.mxu0
      %712 = vmatprep.mubr.f32.mxu0 0.0
      %713 = vmatmul.mubr.f32.gmra.mxu0 %v219
      %v714 = vpop.f32.mrf.mxu0
      %v715 = vadd.f32 0.0, %v714
      %v716 = vpop.f32.mrf.mxu0
      %717 = vmatprep.mubr.f32.mxu0 0.0
      %718 = vmatmul.mubr.f32.gmra.mxu0 %v220
      %v719 = vpop.f32.mrf.mxu0
      %v720 = vadd.f32 0.0, %v719
      %v721 = vpop.f32.mrf.mxu0
      %722 = vmatprep.mubr.f32.mxu0 0.0
      %723 = vmatmul.mubr.f32.gmra.mxu0 %v221
      %v724 = vpop.f32.mrf.mxu0
      %v725 = vadd.f32 0.0, %v724
      %v726 = vpop.f32.mrf.mxu0
      %727 = vmatprep.mubr.f32.mxu0 0.0
      %728 = vmatmul.mubr.f32.gmra.mxu0 %v222
      %v729 = vpop.f32.mrf.mxu0
      %v730 = vadd.f32 0.0, %v729
      %v731 = vpop.f32.mrf.mxu0
      %732 = vmatprep.mubr.f32.mxu0 0.0
      %733 = vmatmul.mubr.f32.gmra.mxu0 %v223
      %v734 = vpop.f32.mrf.mxu0
      %v735 = vadd.f32 0.0, %v734
      %v736 = vpop.f32.mrf.mxu0
      %737 = vmatprep.mubr.f32.mxu0 0.0
      %738 = vmatmul.mubr.f32.gmra.mxu0 %v224
      %v739 = vpop.f32.mrf.mxu0
      %v740 = vadd.f32 0.0, %v739
      %v741 = vpop.f32.mrf.mxu0
      %742 = vmatprep.mubr.f32.mxu0 0.0
      %743 = vmatmul.mubr.f32.gmra.mxu0 %v225
      %v744 = vpop.f32.mrf.mxu0
      %v745 = vadd.f32 0.0, %v744
      %v746 = vpop.f32.mrf.mxu0
      %747 = vmatprep.mubr.f32.mxu0 0.0
      %748 = vmatmul.mubr.f32.gmra.mxu0 %v226
      %v749 = vpop.f32.mrf.mxu0
      %v750 = vadd.f32 0.0, %v749
      %v751 = vpop.f32.mrf.mxu0
      %752 = vmatprep.mubr.f32.mxu0 0.0
      %753 = vmatmul.mubr.f32.gmra.mxu0 %v227
      %v754 = vpop.f32.mrf.mxu0
      %v755 = vadd.f32 0.0, %v754
      %v756 = vpop.f32.mrf.mxu0
      %757 = vmatprep.mubr.f32.mxu0 0.0
      %758 = vmatmul.mubr.f32.gmra.mxu0 %v228
      %v759 = vpop.f32.mrf.mxu0
      %v760 = vadd.f32 0.0, %v759
      %v761 = vpop.f32.mrf.mxu0
      %762 = vmatprep.mubr.f32.mxu0 0.0
      %763 = vmatmul.mubr.f32.gmra.mxu0 %v229
      %v764 = vpop.f32.mrf.mxu0
      %v765 = vadd.f32 0.0, %v764
      %v766 = vpop.f32.mrf.mxu0
      %767 = vmatprep.mubr.f32.mxu0 0.0
      %768 = vmatmul.mubr.f32.gmra.mxu0 %v230
      %v769 = vpop.f32.mrf.mxu0
      %v770 = vadd.f32 0.0, %v769
      %v771 = vpop.f32.mrf.mxu0
      %772 = vmatprep.mubr.f32.mxu0 0.0
      %773 = vmatmul.mubr.f32.gmra.mxu0 %v231
      %v774 = vpop.f32.mrf.mxu0
      %v775 = vadd.f32 0.0, %v774
      %v776 = vpop.f32.mrf.mxu0
      %777 = vmatprep.mubr.f32.mxu0 0.0
      %778 = vmatmul.mubr.f32.gmra.mxu0 %v232
      %v779 = vpop.f32.mrf.mxu0
      %v780 = vadd.f32 0.0, %v779
      %v781 = vpop.f32.mrf.mxu0
      %782 = vmatprep.mubr.f32.mxu0 0.0
      %783 = vmatmul.mubr.f32.gmra.mxu0 %v233
      %v784 = vpop.f32.mrf.mxu0
      %v785 = vadd.f32 0.0, %v784
      %v786 = vpop.f32.mrf.mxu0
      %787 = vmatprep.mubr.f32.mxu0 0.0
      %788 = vmatmul.mubr.f32.gmra.mxu0 %v234
      %v789 = vpop.f32.mrf.mxu0
      %v790 = vadd.f32 0.0, %v789
      %v791 = vpop.f32.mrf.mxu0
      %792 = vmatprep.mubr.f32.mxu0 0.0
      %793 = vmatmul.mubr.f32.gmra.mxu0 %v235
      %v794 = vpop.f32.mrf.mxu0
      %v795 = vadd.f32 0.0, %v794
      %v796 = vpop.f32.mrf.mxu0
      %797 = vmatprep.mubr.f32.mxu0 0.0
      %798 = vmatmul.mubr.f32.gmra.mxu0 %v236
      %v799 = vpop.f32.mrf.mxu0
      %v800 = vadd.f32 0.0, %v799
      %v801 = vpop.f32.mrf.mxu0
      %802 = vmatprep.mubr.f32.mxu0 0.0
      %803 = vmatmul.mubr.f32.gmra.mxu0 %v237
      %v804 = vpop.f32.mrf.mxu0
      %v805 = vadd.f32 0.0, %v804
      %v806 = vpop.f32.mrf.mxu0
      %807 = vmatprep.mubr.f32.mxu0 0.0
      %808 = vmatmul.mubr.f32.gmra.mxu0 %v238
      %v809 = vpop.f32.mrf.mxu0
      %v810 = vadd.f32 0.0, %v809
      %v811 = vpop.f32.mrf.mxu0
      %812 = vdwg.mxu0
      %813 = vmatprep.subr.mxu0 0.0
      %814 = vmatpush1.msra.mxu0 %v570
      %815 = vmatprep.subr.mxu0 0.0
      %816 = vmatpush1.msra.mxu0 %v569
      %817 = vmatprep.subr.mxu0 0.0
      %818 = vmatpush1.msra.mxu0 %v568
      %819 = vmatprep.subr.mxu0 0.0
      %820 = vmatpush1.msra.mxu0 %v567
      %821 = vmatprep.subr.mxu0 0.0
      %822 = vmatpush1.msra.mxu0 %v566
      %823 = vmatprep.subr.mxu0 0.0
      %824 = vmatpush1.msra.mxu0 %v565
      %825 = vmatprep.subr.mxu0 0.0
      %826 = vmatpush1.msra.mxu0 %v564
      %827 = vmatprep.subr.mxu0 0.0
      %828 = vmatpush1.msra.mxu0 %v563
      %829 = vmatprep.subr.mxu0 0.0
      %830 = vmatpush1.msra.mxu0 %v562
      %831 = vmatprep.subr.mxu0 0.0
      %832 = vmatpush1.msra.mxu0 %v561
      %833 = vmatprep.subr.mxu0 0.0
      %834 = vmatpush1.msra.mxu0 %v560
      %835 = vmatprep.subr.mxu0 0.0
      %836 = vmatpush1.msra.mxu0 %v559
      %837 = vmatprep.subr.mxu0 0.0
      %838 = vmatpush1.msra.mxu0 %v558
      %839 = vmatprep.subr.mxu0 0.0
      %840 = vmatpush1.msra.mxu0 %v557
      %841 = vmatprep.subr.mxu0 0.0
      %842 = vmatpush1.msra.mxu0 %v556
      %843 = vmatprep.subr.mxu0 0.0
      %844 = vmatpush1.msra.mxu0 %v555
      %845 = vmatprep.subr.mxu0 0.0
      %846 = vmatpush2.msra.mxu0 0.0
      %847 = vmatprep.subr.mxu0 0.0
      %848 = vmatpush2.msra.mxu0 0.0
      %849 = vmatprep.subr.mxu0 0.0
      %850 = vmatpush2.msra.mxu0 0.0
      %851 = vmatprep.subr.mxu0 0.0
      %852 = vmatpush2.msra.mxu0 0.0
      %853 = vmatprep.subr.mxu0 0.0
      %854 = vmatpush2.msra.mxu0 0.0
      %855 = vmatprep.subr.mxu0 0.0
      %856 = vmatpush2.msra.mxu0 0.0
      %857 = vmatprep.subr.mxu0 0.0
      %858 = vmatpush2.msra.mxu0 0.0
      %859 = vmatprep.subr.mxu0 0.0
      %860 = vmatpush2.msra.mxu0 0.0
      %861 = vmatprep.subr.mxu0 0.0
      %862 = vmatpush2.msra.mxu0 0.0
      %863 = vmatprep.subr.mxu0 0.0
      %864 = vmatpush2.msra.mxu0 0.0
      %865 = vmatprep.subr.mxu0 0.0
      %866 = vmatpush2.msra.mxu0 0.0
      %867 = vmatprep.subr.mxu0 0.0
      %868 = vmatpush2.msra.mxu0 0.0
      %869 = vmatprep.subr.mxu0 0.0
      %870 = vmatpush2.msra.mxu0 0.0
      %871 = vmatprep.subr.mxu0 0.0
      %872 = vmatpush2.msra.mxu0 0.0
      %873 = vmatprep.subr.mxu0 0.0
      %874 = vmatpush2.msra.mxu0 0.0
      %875 = vmatprep.subr.mxu0 0.0
      %876 = vmatpush2.msra.mxu0 0.0
      %877 = vmatprep.mubr.f32.mxu0 0.0
      %878 = vmatmul.mubr.f32.gmra.mxu0 %v523
      %v879 = vpop.f32.mrf.mxu0
      %v880 = vadd.f32 %v655, %v879
      %v881 = vpop.f32.mrf.mxu0
      %882 = vmatprep.mubr.f32.mxu0 0.0
      %883 = vmatmul.mubr.f32.gmra.mxu0 %v524
      %v884 = vpop.f32.mrf.mxu0
      %v885 = vadd.f32 %v660, %v884
      %v886 = vpop.f32.mrf.mxu0
      %887 = vmatprep.mubr.f32.mxu0 0.0
      %888 = vmatmul.mubr.f32.gmra.mxu0 %v525
      %v889 = vpop.f32.mrf.mxu0
      %v890 = vadd.f32 %v665, %v889
      %v891 = vpop.f32.mrf.mxu0
      %892 = vmatprep.mubr.f32.mxu0 0.0
      %893 = vmatmul.mubr.f32.gmra.mxu0 %v526
      %v894 = vpop.f32.mrf.mxu0
      %v895 = vadd.f32 %v670, %v894
      %v896 = vpop.f32.mrf.mxu0
      %897 = vmatprep.mubr.f32.mxu0 0.0
      %898 = vmatmul.mubr.f32.gmra.mxu0 %v527
      %v899 = vpop.f32.mrf.mxu0
      %v900 = vadd.f32 %v675, %v899
      %v901 = vpop.f32.mrf.mxu0
      %902 = vmatprep.mubr.f32.mxu0 0.0
      %903 = vmatmul.mubr.f32.gmra.mxu0 %v528
      %v904 = vpop.f32.mrf.mxu0
      %v905 = vadd.f32 %v680, %v904
      %v906 = vpop.f32.mrf.mxu0
      %907 = vmatprep.mubr.f32.mxu0 0.0
      %908 = vmatmul.mubr.f32.gmra.mxu0 %v529
      %v909 = vpop.f32.mrf.mxu0
      %v910 = vadd.f32 %v685, %v909
      %v911 = vpop.f32.mrf.mxu0
      %912 = vmatprep.mubr.f32.mxu0 0.0
      %913 = vmatmul.mubr.f32.gmra.mxu0 %v530
      %v914 = vpop.f32.mrf.mxu0
      %v915 = vadd.f32 %v690, %v914
      %v916 = vpop.f32.mrf.mxu0
      %917 = vmatprep.mubr.f32.mxu0 0.0
      %918 = vmatmul.mubr.f32.gmra.mxu0 %v531
      %v919 = vpop.f32.mrf.mxu0
      %v920 = vadd.f32 %v695, %v919
      %v921 = vpop.f32.mrf.mxu0
      %922 = vmatprep.mubr.f32.mxu0 0.0
      %923 = vmatmul.mubr.f32.gmra.mxu0 %v532
      %v924 = vpop.f32.mrf.mxu0
      %v925 = vadd.f32 %v700, %v924
      %v926 = vpop.f32.mrf.mxu0
      %927 = vmatprep.mubr.f32.mxu0 0.0
      %928 = vmatmul.mubr.f32.gmra.mxu0 %v533
      %v929 = vpop.f32.mrf.mxu0
      %v930 = vadd.f32 %v705, %v929
      %v931 = vpop.f32.mrf.mxu0
      %932 = vmatprep.mubr.f32.mxu0 0.0
      %933 = vmatmul.mubr.f32.gmra.mxu0 %v534
      %v934 = vpop.f32.mrf.mxu0
      %v935 = vadd.f32 %v710, %v934
      %v936 = vpop.f32.mrf.mxu0
      %937 = vmatprep.mubr.f32.mxu0 0.0
      %938 = vmatmul.mubr.f32.gmra.mxu0 %v535
      %v939 = vpop.f32.mrf.mxu0
      %v940 = vadd.f32 %v715, %v939
      %v941 = vpop.f32.mrf.mxu0
      %942 = vmatprep.mubr.f32.mxu0 0.0
      %943 = vmatmul.mubr.f32.gmra.mxu0 %v536
      %v944 = vpop.f32.mrf.mxu0
      %v945 = vadd.f32 %v720, %v944
      %v946 = vpop.f32.mrf.mxu0
      %947 = vmatprep.mubr.f32.mxu0 0.0
      %948 = vmatmul.mubr.f32.gmra.mxu0 %v537
      %v949 = vpop.f32.mrf.mxu0
      %v950 = vadd.f32 %v725, %v949
      %v951 = vpop.f32.mrf.mxu0
      %952 = vmatprep.mubr.f32.mxu0 0.0
      %953 = vmatmul.mubr.f32.gmra.mxu0 %v538
      %v954 = vpop.f32.mrf.mxu0
      %v955 = vadd.f32 %v730, %v954
      %v956 = vpop.f32.mrf.mxu0
      %957 = vmatprep.mubr.f32.mxu0 0.0
      %958 = vmatmul.mubr.f32.gmra.mxu0 %v539
      %v959 = vpop.f32.mrf.mxu0
      %v960 = vadd.f32 %v735, %v959
      %v961 = vpop.f32.mrf.mxu0
      %962 = vmatprep.mubr.f32.mxu0 0.0
      %963 = vmatmul.mubr.f32.gmra.mxu0 %v540
      %v964 = vpop.f32.mrf.mxu0
      %v965 = vadd.f32 %v740, %v964
      %v966 = vpop.f32.mrf.mxu0
      %967 = vmatprep.mubr.f32.mxu0 0.0
      %968 = vmatmul.mubr.f32.gmra.mxu0 %v541
      %v969 = vpop.f32.mrf.mxu0
      %v970 = vadd.f32 %v745, %v969
      %v971 = vpop.f32.mrf.mxu0
      %972 = vmatprep.mubr.f32.mxu0 0.0
      %973 = vmatmul.mubr.f32.gmra.mxu0 %v542
      %v974 = vpop.f32.mrf.mxu0
      %v975 = vadd.f32 %v750, %v974
      %v976 = vpop.f32.mrf.mxu0
      %977 = vmatprep.mubr.f32.mxu0 0.0
      %978 = vmatmul.mubr.f32.gmra.mxu0 %v543
      %v979 = vpop.f32.mrf.mxu0
      %v980 = vadd.f32 %v755, %v979
      %v981 = vpop.f32.mrf.mxu0
      %982 = vmatprep.mubr.f32.mxu0 0.0
      %983 = vmatmul.mubr.f32.gmra.mxu0 %v544
      %v984 = vpop.f32.mrf.mxu0
      %v985 = vadd.f32 %v760, %v984
      %v986 = vpop.f32.mrf.mxu0
      %987 = vmatprep.mubr.f32.mxu0 0.0
      %988 = vmatmul.mubr.f32.gmra.mxu0 %v545
      %v989 = vpop.f32.mrf.mxu0
      %v990 = vadd.f32 %v765, %v989
      %v991 = vpop.f32.mrf.mxu0
      %992 = vmatprep.mubr.f32.mxu0 0.0
      %993 = vmatmul.mubr.f32.gmra.mxu0 %v546
      %v994 = vpop.f32.mrf.mxu0
      %v995 = vadd.f32 %v770, %v994
      %v996 = vpop.f32.mrf.mxu0
      %997 = vmatprep.mubr.f32.mxu0 0.0
      %998 = vmatmul.mubr.f32.gmra.mxu0 %v547
      %v999 = vpop.f32.mrf.mxu0
      %v1000 = vadd.f32 %v775, %v999
      %v1001 = vpop.f32.mrf.mxu0
      %1002 = vmatprep.mubr.f32.mxu0 0.0
      %1003 = vmatmul.mubr.f32.gmra.mxu0 %v548
      %v1004 = vpop.f32.mrf.mxu0
      %v1005 = vadd.f32 %v780, %v1004
      %v1006 = vpop.f32.mrf.mxu0
      %1007 = vmatprep.mubr.f32.mxu0 0.0
      %1008 = vmatmul.mubr.f32.gmra.mxu0 %v549
      %v1009 = vpop.f32.mrf.mxu0
      %v1010 = vadd.f32 %v785, %v1009
      %v1011 = vpop.f32.mrf.mxu0
      %1012 = vmatprep.mubr.f32.mxu0 0.0
      %1013 = vmatmul.mubr.f32.gmra.mxu0 %v550
      %v1014 = vpop.f32.mrf.mxu0
      %v1015 = vadd.f32 %v790, %v1014
      %v1016 = vpop.f32.mrf.mxu0
      %1017 = vmatprep.mubr.f32.mxu0 0.0
      %1018 = vmatmul.mubr.f32.gmra.mxu0 %v551
      %v1019 = vpop.f32.mrf.mxu0
      %v1020 = vadd.f32 %v795, %v1019
      %v1021 = vpop.f32.mrf.mxu0
      %1022 = vmatprep.mubr.f32.mxu0 0.0
      %1023 = vmatmul.mubr.f32.gmra.mxu0 %v552
      %v1024 = vpop.f32.mrf.mxu0
      %v1025 = vadd.f32 %v800, %v1024
      %v1026 = vpop.f32.mrf.mxu0
      %1027 = vmatprep.mubr.f32.mxu0 0.0
      %1028 = vmatmul.mubr.f32.gmra.mxu0 %v553
      %v1029 = vpop.f32.mrf.mxu0
      %v1030 = vadd.f32 %v805, %v1029
      %v1031 = vpop.f32.mrf.mxu0
      %1032 = vmatprep.mubr.f32.mxu0 0.0
      %1033 = vmatmul.mubr.f32.gmra.mxu0 %v554
      %v1034 = vpop.f32.mrf.mxu0
      %v1035 = vadd.f32 %v810, %v1034
      %v1036 = vpop.f32.mrf.mxu0
      %1037 = vdwg.mxu0
      %v1039 = vrot.slane %v209, 1
      %v1040 = vrot.slane %v210, 1
      %v1041 = vsel %vm305, %v1039, %v1040
      %v1042 = vrot.slane %v211, 1
      %v1043 = vsel %vm305, %v1040, %v1042
      %v1044 = vrot.slane %v212, 1
      %v1045 = vsel %vm305, %v1042, %v1044
      %v1046 = vrot.slane %v213, 1
      %v1047 = vsel %vm305, %v1044, %v1046
      %v1048 = vrot.slane %v214, 1
      %v1049 = vsel %vm305, %v1046, %v1048
      %v1050 = vrot.slane %v215, 1
      %v1051 = vsel %vm305, %v1048, %v1050
      %v1052 = vrot.slane %v216, 1
      %v1053 = vsel %vm305, %v1050, %v1052
      %v1054 = vrot.slane %v217, 1
      %v1055 = vsel %vm305, %v1052, %v1054
      %v1056 = vrot.slane %v218, 1
      %v1057 = vsel %vm305, %v1054, %v1056
      %v1058 = vrot.slane %v219, 1
      %v1059 = vsel %vm305, %v1056, %v1058
      %v1060 = vrot.slane %v220, 1
      %v1061 = vsel %vm305, %v1058, %v1060
      %v1062 = vrot.slane %v221, 1
      %v1063 = vsel %vm305, %v1060, %v1062
      %v1064 = vrot.slane %v222, 1
      %v1065 = vsel %vm305, %v1062, %v1064
      %v1066 = vrot.slane %v223, 1
      %v1067 = vsel %vm305, %v1064, %v1066
      %v1068 = vrot.slane %v224, 1
      %v1069 = vsel %vm305, %v1066, %v1068
      %v1070 = vrot.slane %v225, 1
      %v1071 = vsel %vm305, %v1068, %v1070
      %v1072 = vrot.slane %v226, 1
      %v1073 = vsel %vm305, %v1070, %v1072
      %v1074 = vrot.slane %v227, 1
      %v1075 = vsel %vm305, %v1072, %v1074
      %v1076 = vrot.slane %v228, 1
      %v1077 = vsel %vm305, %v1074, %v1076
      %v1078 = vrot.slane %v229, 1
      %v1079 = vsel %vm305, %v1076, %v1078
      %v1080 = vrot.slane %v230, 1
      %v1081 = vsel %vm305, %v1078, %v1080
      %v1082 = vrot.slane %v231, 1
      %v1083 = vsel %vm305, %v1080, %v1082
      %v1084 = vrot.slane %v232, 1
      %v1085 = vsel %vm305, %v1082, %v1084
      %v1086 = vrot.slane %v233, 1
      %v1087 = vsel %vm305, %v1084, %v1086
      %v1088 = vrot.slane %v234, 1
      %v1089 = vsel %vm305, %v1086, %v1088
      %v1090 = vrot.slane %v235, 1
      %v1091 = vsel %vm305, %v1088, %v1090
      %v1092 = vrot.slane %v236, 1
      %v1093 = vsel %vm305, %v1090, %v1092
      %v1094 = vrot.slane %v237, 1
      %v1095 = vsel %vm305, %v1092, %v1094
      %v1096 = vrot.slane %v238, 1
      %v1097 = vsel %vm305, %v1094, %v1096
      %v1098 = vrot.slane %v239, 1
      %v1099 = vsel %vm305, %v1096, %v1098
      %v1131 = vsel %vm305, 0.0, %v1039
      %v1132 = vmul.f32 %v308, 0.0
      %v1133 = vmul.f32 %v1131, %v310
      %v1134 = vmul.f32 %v1041, %v312
      %v1135 = vmul.f32 %v1043, %v314
      %v1136 = vmul.f32 %v1045, %v316
      %v1137 = vmul.f32 %v1047, %v318
      %v1138 = vmul.f32 %v1049, %v320
      %v1139 = vmul.f32 %v1051, %v322
      %v1140 = vmul.f32 %v1053, %v324
      %v1141 = vmul.f32 %v1055, %v326
      %v1142 = vmul.f32 %v1057, %v328
      %v1143 = vmul.f32 %v1059, %v330
      %v1144 = vmul.f32 %v1061, %v332
      %v1145 = vmul.f32 %v1063, %v334
      %v1146 = vmul.f32 %v1065, %v336
      %v1147 = vmul.f32 %v1067, %v338
      %v1148 = vmul.f32 %v1069, %v340
      %v1149 = vmul.f32 %v1071, %v342
      %v1150 = vmul.f32 %v1073, %v344
      %v1151 = vmul.f32 %v1075, %v346
      %v1152 = vmul.f32 %v1077, %v348
      %v1153 = vmul.f32 %v1079, %v350
      %v1154 = vmul.f32 %v1081, %v352
      %v1155 = vmul.f32 %v1083, %v354
      %v1156 = vmul.f32 %v1085, %v356
      %v1157 = vmul.f32 %v1087, %v358
      %v1158 = vmul.f32 %v1089, %v360
      %v1159 = vmul.f32 %v1091, %v362
      %v1160 = vmul.f32 %v1093, %v364
      %v1161 = vmul.f32 %v1095, %v366
      %v1162 = vmul.f32 %v1097, %v368
      %v1163 = vmul.f32 %v1099, %v401
      %s1164 = scalar_lea.vmem %s2, 256
      %v1165 = vld [vmem:[%s1164] sm:$0xff]
      %v1166 = vld [vmem:[%s1164 + $0x8] sm:$0xff]
      %v1167 = vld [vmem:[%s1164 + $0x10] sm:$0xff]
      %v1168 = vld [vmem:[%s1164 + $0x18] sm:$0xff]
      %v1169 = vld [vmem:[%s1164 + $0x20] sm:$0xff]
      %v1170 = vld [vmem:[%s1164 + $0x28] sm:$0xff]
      %v1171 = vld [vmem:[%s1164 + $0x30] sm:$0xff]
      %v1172 = vld [vmem:[%s1164 + $0x38] sm:$0xff]
      %v1173 = vld [vmem:[%s1164 + $0x40] sm:$0xff]
      %v1174 = vld [vmem:[%s1164 + $0x48] sm:$0xff]
      %v1175 = vld [vmem:[%s1164 + $0x50] sm:$0xff]
      %v1176 = vld [vmem:[%s1164 + $0x58] sm:$0xff]
      %v1177 = vld [vmem:[%s1164 + $0x60] sm:$0xff]
      %v1178 = vld [vmem:[%s1164 + $0x68] sm:$0xff]
      %v1179 = vld [vmem:[%s1164 + $0x70] sm:$0xff]
      %v1180 = vld [vmem:[%s1164 + $0x78] sm:$0xff]
      %1181 = vmatprep.subr.mxu0 0.0
      %1182 = vmatpush1.msra.mxu0 %v1180
      %1183 = vmatprep.subr.mxu0 0.0
      %1184 = vmatpush1.msra.mxu0 %v1179
      %1185 = vmatprep.subr.mxu0 0.0
      %1186 = vmatpush1.msra.mxu0 %v1178
      %1187 = vmatprep.subr.mxu0 0.0
      %1188 = vmatpush1.msra.mxu0 %v1177
      %1189 = vmatprep.subr.mxu0 0.0
      %1190 = vmatpush1.msra.mxu0 %v1176
      %1191 = vmatprep.subr.mxu0 0.0
      %1192 = vmatpush1.msra.mxu0 %v1175
      %1193 = vmatprep.subr.mxu0 0.0
      %1194 = vmatpush1.msra.mxu0 %v1174
      %1195 = vmatprep.subr.mxu0 0.0
      %1196 = vmatpush1.msra.mxu0 %v1173
      %1197 = vmatprep.subr.mxu0 0.0
      %1198 = vmatpush1.msra.mxu0 %v1172
      %1199 = vmatprep.subr.mxu0 0.0
      %1200 = vmatpush1.msra.mxu0 %v1171
      %1201 = vmatprep.subr.mxu0 0.0
      %1202 = vmatpush1.msra.mxu0 %v1170
      %1203 = vmatprep.subr.mxu0 0.0
      %1204 = vmatpush1.msra.mxu0 %v1169
      %1205 = vmatprep.subr.mxu0 0.0
      %1206 = vmatpush1.msra.mxu0 %v1168
      %1207 = vmatprep.subr.mxu0 0.0
      %1208 = vmatpush1.msra.mxu0 %v1167
      %1209 = vmatprep.subr.mxu0 0.0
      %1210 = vmatpush1.msra.mxu0 %v1166
      %1211 = vmatprep.subr.mxu0 0.0
      %1212 = vmatpush1.msra.mxu0 %v1165
      %1213 = vmatprep.subr.mxu0 0.0
      %1214 = vmatpush2.msra.mxu0 0.0
      %1215 = vmatprep.subr.mxu0 0.0
      %1216 = vmatpush2.msra.mxu0 0.0
      %1217 = vmatprep.subr.mxu0 0.0
      %1218 = vmatpush2.msra.mxu0 0.0
      %1219 = vmatprep.subr.mxu0 0.0
      %1220 = vmatpush2.msra.mxu0 0.0
      %1221 = vmatprep.subr.mxu0 0.0
      %1222 = vmatpush2.msra.mxu0 0.0
      %1223 = vmatprep.subr.mxu0 0.0
      %1224 = vmatpush2.msra.mxu0 0.0
      %1225 = vmatprep.subr.mxu0 0.0
      %1226 = vmatpush2.msra.mxu0 0.0
      %1227 = vmatprep.subr.mxu0 0.0
      %1228 = vmatpush2.msra.mxu0 0.0
      %1229 = vmatprep.subr.mxu0 0.0
      %1230 = vmatpush2.msra.mxu0 0.0
      %1231 = vmatprep.subr.mxu0 0.0
      %1232 = vmatpush2.msra.mxu0 0.0
      %1233 = vmatprep.subr.mxu0 0.0
      %1234 = vmatpush2.msra.mxu0 0.0
      %1235 = vmatprep.subr.mxu0 0.0
      %1236 = vmatpush2.msra.mxu0 0.0
      %1237 = vmatprep.subr.mxu0 0.0
      %1238 = vmatpush2.msra.mxu0 0.0
      %1239 = vmatprep.subr.mxu0 0.0
      %1240 = vmatpush2.msra.mxu0 0.0
      %1241 = vmatprep.subr.mxu0 0.0
      %1242 = vmatpush2.msra.mxu0 0.0
      %1243 = vmatprep.subr.mxu0 0.0
      %1244 = vmatpush2.msra.mxu0 0.0
      %1245 = vmatprep.mubr.f32.mxu0 0.0
      %1246 = vmatmul.mubr.f32.gmra.mxu0 %v1132
      %v1247 = vpop.f32.mrf.mxu0
      %v1248 = vadd.f32 0.0, %v1247
      %v1249 = vpop.f32.mrf.mxu0
      %1250 = vmatprep.mubr.f32.mxu0 0.0
      %1251 = vmatmul.mubr.f32.gmra.mxu0 %v1133
      %v1252 = vpop.f32.mrf.mxu0
      %v1253 = vadd.f32 0.0, %v1252
      %v1254 = vpop.f32.mrf.mxu0
      %1255 = vmatprep.mubr.f32.mxu0 0.0
      %1256 = vmatmul.mubr.f32.gmra.mxu0 %v1134
      %v1257 = vpop.f32.mrf.mxu0
      %v1258 = vadd.f32 0.0, %v1257
      %v1259 = vpop.f32.mrf.mxu0
      %1260 = vmatprep.mubr.f32.mxu0 0.0
      %1261 = vmatmul.mubr.f32.gmra.mxu0 %v1135
      %v1262 = vpop.f32.mrf.mxu0
      %v1263 = vadd.f32 0.0, %v1262
      %v1264 = vpop.f32.mrf.mxu0
      %1265 = vmatprep.mubr.f32.mxu0 0.0
      %1266 = vmatmul.mubr.f32.gmra.mxu0 %v1136
      %v1267 = vpop.f32.mrf.mxu0
      %v1268 = vadd.f32 0.0, %v1267
      %v1269 = vpop.f32.mrf.mxu0
      %1270 = vmatprep.mubr.f32.mxu0 0.0
      %1271 = vmatmul.mubr.f32.gmra.mxu0 %v1137
      %v1272 = vpop.f32.mrf.mxu0
      %v1273 = vadd.f32 0.0, %v1272
      %v1274 = vpop.f32.mrf.mxu0
      %1275 = vmatprep.mubr.f32.mxu0 0.0
      %1276 = vmatmul.mubr.f32.gmra.mxu0 %v1138
      %v1277 = vpop.f32.mrf.mxu0
      %v1278 = vadd.f32 0.0, %v1277
      %v1279 = vpop.f32.mrf.mxu0
      %1280 = vmatprep.mubr.f32.mxu0 0.0
      %1281 = vmatmul.mubr.f32.gmra.mxu0 %v1139
      %v1282 = vpop.f32.mrf.mxu0
      %v1283 = vadd.f32 0.0, %v1282
      %v1284 = vpop.f32.mrf.mxu0
      %1285 = vmatprep.mubr.f32.mxu0 0.0
      %1286 = vmatmul.mubr.f32.gmra.mxu0 %v1140
      %v1287 = vpop.f32.mrf.mxu0
      %v1288 = vadd.f32 0.0, %v1287
      %v1289 = vpop.f32.mrf.mxu0
      %1290 = vmatprep.mubr.f32.mxu0 0.0
      %1291 = vmatmul.mubr.f32.gmra.mxu0 %v1141
      %v1292 = vpop.f32.mrf.mxu0
      %v1293 = vadd.f32 0.0, %v1292
      %v1294 = vpop.f32.mrf.mxu0
      %1295 = vmatprep.mubr.f32.mxu0 0.0
      %1296 = vmatmul.mubr.f32.gmra.mxu0 %v1142
      %v1297 = vpop.f32.mrf.mxu0
      %v1298 = vadd.f32 0.0, %v1297
      %v1299 = vpop.f32.mrf.mxu0
      %1300 = vmatprep.mubr.f32.mxu0 0.0
      %1301 = vmatmul.mubr.f32.gmra.mxu0 %v1143
      %v1302 = vpop.f32.mrf.mxu0
      %v1303 = vadd.f32 0.0, %v1302
      %v1304 = vpop.f32.mrf.mxu0
      %1305 = vmatprep.mubr.f32.mxu0 0.0
      %1306 = vmatmul.mubr.f32.gmra.mxu0 %v1144
      %v1307 = vpop.f32.mrf.mxu0
      %v1308 = vadd.f32 0.0, %v1307
      %v1309 = vpop.f32.mrf.mxu0
      %1310 = vmatprep.mubr.f32.mxu0 0.0
      %1311 = vmatmul.mubr.f32.gmra.mxu0 %v1145
      %v1312 = vpop.f32.mrf.mxu0
      %v1313 = vadd.f32 0.0, %v1312
      %v1314 = vpop.f32.mrf.mxu0
      %1315 = vmatprep.mubr.f32.mxu0 0.0
      %1316 = vmatmul.mubr.f32.gmra.mxu0 %v1146
      %v1317 = vpop.f32.mrf.mxu0
      %v1318 = vadd.f32 0.0, %v1317
      %v1319 = vpop.f32.mrf.mxu0
      %1320 = vmatprep.mubr.f32.mxu0 0.0
      %1321 = vmatmul.mubr.f32.gmra.mxu0 %v1147
      %v1322 = vpop.f32.mrf.mxu0
      %v1323 = vadd.f32 0.0, %v1322
      %v1324 = vpop.f32.mrf.mxu0
      %1325 = vmatprep.mubr.f32.mxu0 0.0
      %1326 = vmatmul.mubr.f32.gmra.mxu0 %v1148
      %v1327 = vpop.f32.mrf.mxu0
      %v1328 = vadd.f32 0.0, %v1327
      %v1329 = vpop.f32.mrf.mxu0
      %1330 = vmatprep.mubr.f32.mxu0 0.0
      %1331 = vmatmul.mubr.f32.gmra.mxu0 %v1149
      %v1332 = vpop.f32.mrf.mxu0
      %v1333 = vadd.f32 0.0, %v1332
      %v1334 = vpop.f32.mrf.mxu0
      %1335 = vmatprep.mubr.f32.mxu0 0.0
      %1336 = vmatmul.mubr.f32.gmra.mxu0 %v1150
      %v1337 = vpop.f32.mrf.mxu0
      %v1338 = vadd.f32 0.0, %v1337
      %v1339 = vpop.f32.mrf.mxu0
      %1340 = vmatprep.mubr.f32.mxu0 0.0
      %1341 = vmatmul.mubr.f32.gmra.mxu0 %v1151
      %v1342 = vpop.f32.mrf.mxu0
      %v1343 = vadd.f32 0.0, %v1342
      %v1344 = vpop.f32.mrf.mxu0
      %1345 = vmatprep.mubr.f32.mxu0 0.0
      %1346 = vmatmul.mubr.f32.gmra.mxu0 %v1152
      %v1347 = vpop.f32.mrf.mxu0
      %v1348 = vadd.f32 0.0, %v1347
      %v1349 = vpop.f32.mrf.mxu0
      %1350 = vmatprep.mubr.f32.mxu0 0.0
      %1351 = vmatmul.mubr.f32.gmra.mxu0 %v1153
      %v1352 = vpop.f32.mrf.mxu0
      %v1353 = vadd.f32 0.0, %v1352
      %v1354 = vpop.f32.mrf.mxu0
      %1355 = vmatprep.mubr.f32.mxu0 0.0
      %1356 = vmatmul.mubr.f32.gmra.mxu0 %v1154
      %v1357 = vpop.f32.mrf.mxu0
      %v1358 = vadd.f32 0.0, %v1357
      %v1359 = vpop.f32.mrf.mxu0
      %1360 = vmatprep.mubr.f32.mxu0 0.0
      %1361 = vmatmul.mubr.f32.gmra.mxu0 %v1155
      %v1362 = vpop.f32.mrf.mxu0
      %v1363 = vadd.f32 0.0, %v1362
      %v1364 = vpop.f32.mrf.mxu0
      %1365 = vmatprep.mubr.f32.mxu0 0.0
      %1366 = vmatmul.mubr.f32.gmra.mxu0 %v1156
      %v1367 = vpop.f32.mrf.mxu0
      %v1368 = vadd.f32 0.0, %v1367
      %v1369 = vpop.f32.mrf.mxu0
      %1370 = vmatprep.mubr.f32.mxu0 0.0
      %1371 = vmatmul.mubr.f32.gmra.mxu0 %v1157
      %v1372 = vpop.f32.mrf.mxu0
      %v1373 = vadd.f32 0.0, %v1372
      %v1374 = vpop.f32.mrf.mxu0
      %1375 = vmatprep.mubr.f32.mxu0 0.0
      %1376 = vmatmul.mubr.f32.gmra.mxu0 %v1158
      %v1377 = vpop.f32.mrf.mxu0
      %v1378 = vadd.f32 0.0, %v1377
      %v1379 = vpop.f32.mrf.mxu0
      %1380 = vmatprep.mubr.f32.mxu0 0.0
      %1381 = vmatmul.mubr.f32.gmra.mxu0 %v1159
      %v1382 = vpop.f32.mrf.mxu0
      %v1383 = vadd.f32 0.0, %v1382
      %v1384 = vpop.f32.mrf.mxu0
      %1385 = vmatprep.mubr.f32.mxu0 0.0
      %1386 = vmatmul.mubr.f32.gmra.mxu0 %v1160
      %v1387 = vpop.f32.mrf.mxu0
      %v1388 = vadd.f32 0.0, %v1387
      %v1389 = vpop.f32.mrf.mxu0
      %1390 = vmatprep.mubr.f32.mxu0 0.0
      %1391 = vmatmul.mubr.f32.gmra.mxu0 %v1161
      %v1392 = vpop.f32.mrf.mxu0
      %v1393 = vadd.f32 0.0, %v1392
      %v1394 = vpop.f32.mrf.mxu0
      %1395 = vmatprep.mubr.f32.mxu0 0.0
      %1396 = vmatmul.mubr.f32.gmra.mxu0 %v1162
      %v1397 = vpop.f32.mrf.mxu0
      %v1398 = vadd.f32 0.0, %v1397
      %v1399 = vpop.f32.mrf.mxu0
      %1400 = vmatprep.mubr.f32.mxu0 0.0
      %1401 = vmatmul.mubr.f32.gmra.mxu0 %v1163
      %v1402 = vpop.f32.mrf.mxu0
      %v1403 = vadd.f32 0.0, %v1402
      %v1404 = vpop.f32.mrf.mxu0
      %1405 = vdwg.mxu0
      %v1406 = vadd.f32 %v880, %v1248
      %v1407 = vadd.f32 %v885, %v1253
      %v1408 = vadd.f32 %v890, %v1258
      %v1409 = vadd.f32 %v895, %v1263
      %v1410 = vadd.f32 %v900, %v1268
      %v1411 = vadd.f32 %v905, %v1273
      %v1412 = vadd.f32 %v910, %v1278
      %v1413 = vadd.f32 %v915, %v1283
      %v1414 = vadd.f32 %v920, %v1288
      %v1415 = vadd.f32 %v925, %v1293
      %v1416 = vadd.f32 %v930, %v1298
      %v1417 = vadd.f32 %v935, %v1303
      %v1418 = vadd.f32 %v940, %v1308
      %v1419 = vadd.f32 %v945, %v1313
      %v1420 = vadd.f32 %v950, %v1318
      %v1421 = vadd.f32 %v955, %v1323
      %v1422 = vadd.f32 %v960, %v1328
      %v1423 = vadd.f32 %v965, %v1333
      %v1424 = vadd.f32 %v970, %v1338
      %v1425 = vadd.f32 %v975, %v1343
      %v1426 = vadd.f32 %v980, %v1348
      %v1427 = vadd.f32 %v985, %v1353
      %v1428 = vadd.f32 %v990, %v1358
      %v1429 = vadd.f32 %v995, %v1363
      %v1430 = vadd.f32 %v1000, %v1368
      %v1431 = vadd.f32 %v1005, %v1373
      %v1432 = vadd.f32 %v1010, %v1378
      %v1433 = vadd.f32 %v1015, %v1383
      %v1434 = vadd.f32 %v1020, %v1388
      %v1435 = vadd.f32 %v1025, %v1393
      %v1436 = vadd.f32 %v1030, %v1398
      %v1437 = vadd.f32 %v1035, %v1403
      %v1439 = vrot.slane %v239, 7
      %v1440 = vsel %vm432, %v490, %v1439
      %v1441 = vrot.slane %v240, 7
      %v1442 = vsel %vm432, %v1439, %v1441
      %v1445 = vmul.f32 %v522, %v241
      %v1446 = vmul.f32 %v435, %v242
      %v1447 = vmul.f32 %v437, %v243
      %v1448 = vmul.f32 %v439, %v244
      %v1449 = vmul.f32 %v441, %v245
      %v1450 = vmul.f32 %v443, %v246
      %v1451 = vmul.f32 %v445, %v247
      %v1452 = vmul.f32 %v447, %v248
      %v1453 = vmul.f32 %v449, %v249
      %v1454 = vmul.f32 %v451, %v250
      %v1455 = vmul.f32 %v453, %v251
      %v1456 = vmul.f32 %v455, %v252
      %v1457 = vmul.f32 %v457, %v253
      %v1458 = vmul.f32 %v459, %v254
      %v1459 = vmul.f32 %v461, %v255
      %v1460 = vmul.f32 %v463, %v256
      %v1461 = vmul.f32 %v465, %v257
      %v1462 = vmul.f32 %v467, %v258
      %v1463 = vmul.f32 %v469, %v259
      %v1464 = vmul.f32 %v471, %v260
      %v1465 = vmul.f32 %v473, %v261
      %v1466 = vmul.f32 %v475, %v262
      %v1467 = vmul.f32 %v477, %v263
      %v1468 = vmul.f32 %v479, %v264
      %v1469 = vmul.f32 %v481, %v265
      %v1470 = vmul.f32 %v483, %v266
      %v1471 = vmul.f32 %v485, %v267
      %v1472 = vmul.f32 %v487, %v268
      %v1473 = vmul.f32 %v489, %v269
      %v1474 = vmul.f32 %v491, %v270
      %v1475 = vmul.f32 %v1440, %v271
      %v1476 = vmul.f32 %v1442, %v272
      %s1477 = scalar_lea.vmem %s2, 384
      %v1478 = vld [vmem:[%s1477] sm:$0xff]
      %v1479 = vld [vmem:[%s1477 + $0x8] sm:$0xff]
      %v1480 = vld [vmem:[%s1477 + $0x10] sm:$0xff]
      %v1481 = vld [vmem:[%s1477 + $0x18] sm:$0xff]
      %v1482 = vld [vmem:[%s1477 + $0x20] sm:$0xff]
      %v1483 = vld [vmem:[%s1477 + $0x28] sm:$0xff]
      %v1484 = vld [vmem:[%s1477 + $0x30] sm:$0xff]
      %v1485 = vld [vmem:[%s1477 + $0x38] sm:$0xff]
      %v1486 = vld [vmem:[%s1477 + $0x40] sm:$0xff]
      %v1487 = vld [vmem:[%s1477 + $0x48] sm:$0xff]
      %v1488 = vld [vmem:[%s1477 + $0x50] sm:$0xff]
      %v1489 = vld [vmem:[%s1477 + $0x58] sm:$0xff]
      %v1490 = vld [vmem:[%s1477 + $0x60] sm:$0xff]
      %v1491 = vld [vmem:[%s1477 + $0x68] sm:$0xff]
      %v1492 = vld [vmem:[%s1477 + $0x70] sm:$0xff]
      %v1493 = vld [vmem:[%s1477 + $0x78] sm:$0xff]
      %1494 = vmatprep.subr.mxu0 0.0
      %1495 = vmatpush1.msra.mxu0 %v1493
      %1496 = vmatprep.subr.mxu0 0.0
      %1497 = vmatpush1.msra.mxu0 %v1492
      %1498 = vmatprep.subr.mxu0 0.0
      %1499 = vmatpush1.msra.mxu0 %v1491
      %1500 = vmatprep.subr.mxu0 0.0
      %1501 = vmatpush1.msra.mxu0 %v1490
      %1502 = vmatprep.subr.mxu0 0.0
      %1503 = vmatpush1.msra.mxu0 %v1489
      %1504 = vmatprep.subr.mxu0 0.0
      %1505 = vmatpush1.msra.mxu0 %v1488
      %1506 = vmatprep.subr.mxu0 0.0
      %1507 = vmatpush1.msra.mxu0 %v1487
      %1508 = vmatprep.subr.mxu0 0.0
      %1509 = vmatpush1.msra.mxu0 %v1486
      %1510 = vmatprep.subr.mxu0 0.0
      %1511 = vmatpush1.msra.mxu0 %v1485
      %1512 = vmatprep.subr.mxu0 0.0
      %1513 = vmatpush1.msra.mxu0 %v1484
      %1514 = vmatprep.subr.mxu0 0.0
      %1515 = vmatpush1.msra.mxu0 %v1483
      %1516 = vmatprep.subr.mxu0 0.0
      %1517 = vmatpush1.msra.mxu0 %v1482
      %1518 = vmatprep.subr.mxu0 0.0
      %1519 = vmatpush1.msra.mxu0 %v1481
      %1520 = vmatprep.subr.mxu0 0.0
      %1521 = vmatpush1.msra.mxu0 %v1480
      %1522 = vmatprep.subr.mxu0 0.0
      %1523 = vmatpush1.msra.mxu0 %v1479
      %1524 = vmatprep.subr.mxu0 0.0
      %1525 = vmatpush1.msra.mxu0 %v1478
      %1526 = vmatprep.subr.mxu0 0.0
      %1527 = vmatpush2.msra.mxu0 0.0
      %1528 = vmatprep.subr.mxu0 0.0
      %1529 = vmatpush2.msra.mxu0 0.0
      %1530 = vmatprep.subr.mxu0 0.0
      %1531 = vmatpush2.msra.mxu0 0.0
      %1532 = vmatprep.subr.mxu0 0.0
      %1533 = vmatpush2.msra.mxu0 0.0
      %1534 = vmatprep.subr.mxu0 0.0
      %1535 = vmatpush2.msra.mxu0 0.0
      %1536 = vmatprep.subr.mxu0 0.0
      %1537 = vmatpush2.msra.mxu0 0.0
      %1538 = vmatprep.subr.mxu0 0.0
      %1539 = vmatpush2.msra.mxu0 0.0
      %1540 = vmatprep.subr.mxu0 0.0
      %1541 = vmatpush2.msra.mxu0 0.0
      %1542 = vmatprep.subr.mxu0 0.0
      %1543 = vmatpush2.msra.mxu0 0.0
      %1544 = vmatprep.subr.mxu0 0.0
      %1545 = vmatpush2.msra.mxu0 0.0
      %1546 = vmatprep.subr.mxu0 0.0
      %1547 = vmatpush2.msra.mxu0 0.0
      %1548 = vmatprep.subr.mxu0 0.0
      %1549 = vmatpush2.msra.mxu0 0.0
      %1550 = vmatprep.subr.mxu0 0.0
      %1551 = vmatpush2.msra.mxu0 0.0
      %1552 = vmatprep.subr.mxu0 0.0
      %1553 = vmatpush2.msra.mxu0 0.0
      %1554 = vmatprep.subr.mxu0 0.0
      %1555 = vmatpush2.msra.mxu0 0.0
      %1556 = vmatprep.subr.mxu0 0.0
      %1557 = vmatpush2.msra.mxu0 0.0
      %1558 = vmatprep.mubr.f32.mxu0 0.0
      %1559 = vmatmul.mubr.f32.gmra.mxu0 %v1445
      %v1560 = vpop.f32.mrf.mxu0
      %v1561 = vadd.f32 0.0, %v1560
      %v1562 = vpop.f32.mrf.mxu0
      %1563 = vmatprep.mubr.f32.mxu0 0.0
      %1564 = vmatmul.mubr.f32.gmra.mxu0 %v1446
      %v1565 = vpop.f32.mrf.mxu0
      %v1566 = vadd.f32 0.0, %v1565
      %v1567 = vpop.f32.mrf.mxu0
      %1568 = vmatprep.mubr.f32.mxu0 0.0
      %1569 = vmatmul.mubr.f32.gmra.mxu0 %v1447
      %v1570 = vpop.f32.mrf.mxu0
      %v1571 = vadd.f32 0.0, %v1570
      %v1572 = vpop.f32.mrf.mxu0
      %1573 = vmatprep.mubr.f32.mxu0 0.0
      %1574 = vmatmul.mubr.f32.gmra.mxu0 %v1448
      %v1575 = vpop.f32.mrf.mxu0
      %v1576 = vadd.f32 0.0, %v1575
      %v1577 = vpop.f32.mrf.mxu0
      %1578 = vmatprep.mubr.f32.mxu0 0.0
      %1579 = vmatmul.mubr.f32.gmra.mxu0 %v1449
      %v1580 = vpop.f32.mrf.mxu0
      %v1581 = vadd.f32 0.0, %v1580
      %v1582 = vpop.f32.mrf.mxu0
      %1583 = vmatprep.mubr.f32.mxu0 0.0
      %1584 = vmatmul.mubr.f32.gmra.mxu0 %v1450
      %v1585 = vpop.f32.mrf.mxu0
      %v1586 = vadd.f32 0.0, %v1585
      %v1587 = vpop.f32.mrf.mxu0
      %1588 = vmatprep.mubr.f32.mxu0 0.0
      %1589 = vmatmul.mubr.f32.gmra.mxu0 %v1451
      %v1590 = vpop.f32.mrf.mxu0
      %v1591 = vadd.f32 0.0, %v1590
      %v1592 = vpop.f32.mrf.mxu0
      %1593 = vmatprep.mubr.f32.mxu0 0.0
      %1594 = vmatmul.mubr.f32.gmra.mxu0 %v1452
      %v1595 = vpop.f32.mrf.mxu0
      %v1596 = vadd.f32 0.0, %v1595
      %v1597 = vpop.f32.mrf.mxu0
      %1598 = vmatprep.mubr.f32.mxu0 0.0
      %1599 = vmatmul.mubr.f32.gmra.mxu0 %v1453
      %v1600 = vpop.f32.mrf.mxu0
      %v1601 = vadd.f32 0.0, %v1600
      %v1602 = vpop.f32.mrf.mxu0
      %1603 = vmatprep.mubr.f32.mxu0 0.0
      %1604 = vmatmul.mubr.f32.gmra.mxu0 %v1454
      %v1605 = vpop.f32.mrf.mxu0
      %v1606 = vadd.f32 0.0, %v1605
      %v1607 = vpop.f32.mrf.mxu0
      %1608 = vmatprep.mubr.f32.mxu0 0.0
      %1609 = vmatmul.mubr.f32.gmra.mxu0 %v1455
      %v1610 = vpop.f32.mrf.mxu0
      %v1611 = vadd.f32 0.0, %v1610
      %v1612 = vpop.f32.mrf.mxu0
      %1613 = vmatprep.mubr.f32.mxu0 0.0
      %1614 = vmatmul.mubr.f32.gmra.mxu0 %v1456
      %v1615 = vpop.f32.mrf.mxu0
      %v1616 = vadd.f32 0.0, %v1615
      %v1617 = vpop.f32.mrf.mxu0
      %1618 = vmatprep.mubr.f32.mxu0 0.0
      %1619 = vmatmul.mubr.f32.gmra.mxu0 %v1457
      %v1620 = vpop.f32.mrf.mxu0
      %v1621 = vadd.f32 0.0, %v1620
      %v1622 = vpop.f32.mrf.mxu0
      %1623 = vmatprep.mubr.f32.mxu0 0.0
      %1624 = vmatmul.mubr.f32.gmra.mxu0 %v1458
      %v1625 = vpop.f32.mrf.mxu0
      %v1626 = vadd.f32 0.0, %v1625
      %v1627 = vpop.f32.mrf.mxu0
      %1628 = vmatprep.mubr.f32.mxu0 0.0
      %1629 = vmatmul.mubr.f32.gmra.mxu0 %v1459
      %v1630 = vpop.f32.mrf.mxu0
      %v1631 = vadd.f32 0.0, %v1630
      %v1632 = vpop.f32.mrf.mxu0
      %1633 = vmatprep.mubr.f32.mxu0 0.0
      %1634 = vmatmul.mubr.f32.gmra.mxu0 %v1460
      %v1635 = vpop.f32.mrf.mxu0
      %v1636 = vadd.f32 0.0, %v1635
      %v1637 = vpop.f32.mrf.mxu0
      %1638 = vmatprep.mubr.f32.mxu0 0.0
      %1639 = vmatmul.mubr.f32.gmra.mxu0 %v1461
      %v1640 = vpop.f32.mrf.mxu0
      %v1641 = vadd.f32 0.0, %v1640
      %v1642 = vpop.f32.mrf.mxu0
      %1643 = vmatprep.mubr.f32.mxu0 0.0
      %1644 = vmatmul.mubr.f32.gmra.mxu0 %v1462
      %v1645 = vpop.f32.mrf.mxu0
      %v1646 = vadd.f32 0.0, %v1645
      %v1647 = vpop.f32.mrf.mxu0
      %1648 = vmatprep.mubr.f32.mxu0 0.0
      %1649 = vmatmul.mubr.f32.gmra.mxu0 %v1463
      %v1650 = vpop.f32.mrf.mxu0
      %v1651 = vadd.f32 0.0, %v1650
      %v1652 = vpop.f32.mrf.mxu0
      %1653 = vmatprep.mubr.f32.mxu0 0.0
      %1654 = vmatmul.mubr.f32.gmra.mxu0 %v1464
      %v1655 = vpop.f32.mrf.mxu0
      %v1656 = vadd.f32 0.0, %v1655
      %v1657 = vpop.f32.mrf.mxu0
      %1658 = vmatprep.mubr.f32.mxu0 0.0
      %1659 = vmatmul.mubr.f32.gmra.mxu0 %v1465
      %v1660 = vpop.f32.mrf.mxu0
      %v1661 = vadd.f32 0.0, %v1660
      %v1662 = vpop.f32.mrf.mxu0
      %1663 = vmatprep.mubr.f32.mxu0 0.0
      %1664 = vmatmul.mubr.f32.gmra.mxu0 %v1466
      %v1665 = vpop.f32.mrf.mxu0
      %v1666 = vadd.f32 0.0, %v1665
      %v1667 = vpop.f32.mrf.mxu0
      %1668 = vmatprep.mubr.f32.mxu0 0.0
      %1669 = vmatmul.mubr.f32.gmra.mxu0 %v1467
      %v1670 = vpop.f32.mrf.mxu0
      %v1671 = vadd.f32 0.0, %v1670
      %v1672 = vpop.f32.mrf.mxu0
      %1673 = vmatprep.mubr.f32.mxu0 0.0
      %1674 = vmatmul.mubr.f32.gmra.mxu0 %v1468
      %v1675 = vpop.f32.mrf.mxu0
      %v1676 = vadd.f32 0.0, %v1675
      %v1677 = vpop.f32.mrf.mxu0
      %1678 = vmatprep.mubr.f32.mxu0 0.0
      %1679 = vmatmul.mubr.f32.gmra.mxu0 %v1469
      %v1680 = vpop.f32.mrf.mxu0
      %v1681 = vadd.f32 0.0, %v1680
      %v1682 = vpop.f32.mrf.mxu0
      %1683 = vmatprep.mubr.f32.mxu0 0.0
      %1684 = vmatmul.mubr.f32.gmra.mxu0 %v1470
      %v1685 = vpop.f32.mrf.mxu0
      %v1686 = vadd.f32 0.0, %v1685
      %v1687 = vpop.f32.mrf.mxu0
      %1688 = vmatprep.mubr.f32.mxu0 0.0
      %1689 = vmatmul.mubr.f32.gmra.mxu0 %v1471
      %v1690 = vpop.f32.mrf.mxu0
      %v1691 = vadd.f32 0.0, %v1690
      %v1692 = vpop.f32.mrf.mxu0
      %1693 = vmatprep.mubr.f32.mxu0 0.0
      %1694 = vmatmul.mubr.f32.gmra.mxu0 %v1472
      %v1695 = vpop.f32.mrf.mxu0
      %v1696 = vadd.f32 0.0, %v1695
      %v1697 = vpop.f32.mrf.mxu0
      %1698 = vmatprep.mubr.f32.mxu0 0.0
      %1699 = vmatmul.mubr.f32.gmra.mxu0 %v1473
      %v1700 = vpop.f32.mrf.mxu0
      %v1701 = vadd.f32 0.0, %v1700
      %v1702 = vpop.f32.mrf.mxu0
      %1703 = vmatprep.mubr.f32.mxu0 0.0
      %1704 = vmatmul.mubr.f32.gmra.mxu0 %v1474
      %v1705 = vpop.f32.mrf.mxu0
      %v1706 = vadd.f32 0.0, %v1705
      %v1707 = vpop.f32.mrf.mxu0
      %1708 = vmatprep.mubr.f32.mxu0 0.0
      %1709 = vmatmul.mubr.f32.gmra.mxu0 %v1475
      %v1710 = vpop.f32.mrf.mxu0
      %v1711 = vadd.f32 0.0, %v1710
      %v1712 = vpop.f32.mrf.mxu0
      %1713 = vmatprep.mubr.f32.mxu0 0.0
      %1714 = vmatmul.mubr.f32.gmra.mxu0 %v1476
      %v1715 = vpop.f32.mrf.mxu0
      %v1716 = vadd.f32 0.0, %v1715
      %v1717 = vpop.f32.mrf.mxu0
      %1718 = vdwg.mxu0
      %v1719 = vadd.f32 %v1406, %v1561
      %v1720 = vadd.f32 %v1407, %v1566
      %v1721 = vadd.f32 %v1408, %v1571
      %v1722 = vadd.f32 %v1409, %v1576
      %v1723 = vadd.f32 %v1410, %v1581
      %v1724 = vadd.f32 %v1411, %v1586
      %v1725 = vadd.f32 %v1412, %v1591
      %v1726 = vadd.f32 %v1413, %v1596
      %v1727 = vadd.f32 %v1414, %v1601
      %v1728 = vadd.f32 %v1415, %v1606
      %v1729 = vadd.f32 %v1416, %v1611
      %v1730 = vadd.f32 %v1417, %v1616
      %v1731 = vadd.f32 %v1418, %v1621
      %v1732 = vadd.f32 %v1419, %v1626
      %v1733 = vadd.f32 %v1420, %v1631
      %v1734 = vadd.f32 %v1421, %v1636
      %v1735 = vadd.f32 %v1422, %v1641
      %v1736 = vadd.f32 %v1423, %v1646
      %v1737 = vadd.f32 %v1424, %v1651
      %v1738 = vadd.f32 %v1425, %v1656
      %v1739 = vadd.f32 %v1426, %v1661
      %v1740 = vadd.f32 %v1427, %v1666
      %v1741 = vadd.f32 %v1428, %v1671
      %v1742 = vadd.f32 %v1429, %v1676
      %v1743 = vadd.f32 %v1430, %v1681
      %v1744 = vadd.f32 %v1431, %v1686
      %v1745 = vadd.f32 %v1432, %v1691
      %v1746 = vadd.f32 %v1433, %v1696
      %v1747 = vadd.f32 %v1434, %v1701
      %v1748 = vadd.f32 %v1435, %v1706
      %v1749 = vadd.f32 %v1436, %v1711
      %v1750 = vadd.f32 %v1437, %v1716
      %s1751 = scalar_lea.vmem %s2, 512
      %v1752 = vld [vmem:[%s1751] sm:$0xff]
      %v1753 = vld [vmem:[%s1751 + $0x8] sm:$0xff]
      %v1754 = vld [vmem:[%s1751 + $0x10] sm:$0xff]
      %v1755 = vld [vmem:[%s1751 + $0x18] sm:$0xff]
      %v1756 = vld [vmem:[%s1751 + $0x20] sm:$0xff]
      %v1757 = vld [vmem:[%s1751 + $0x28] sm:$0xff]
      %v1758 = vld [vmem:[%s1751 + $0x30] sm:$0xff]
      %v1759 = vld [vmem:[%s1751 + $0x38] sm:$0xff]
      %v1760 = vld [vmem:[%s1751 + $0x40] sm:$0xff]
      %v1761 = vld [vmem:[%s1751 + $0x48] sm:$0xff]
      %v1762 = vld [vmem:[%s1751 + $0x50] sm:$0xff]
      %v1763 = vld [vmem:[%s1751 + $0x58] sm:$0xff]
      %v1764 = vld [vmem:[%s1751 + $0x60] sm:$0xff]
      %v1765 = vld [vmem:[%s1751 + $0x68] sm:$0xff]
      %v1766 = vld [vmem:[%s1751 + $0x70] sm:$0xff]
      %v1767 = vld [vmem:[%s1751 + $0x78] sm:$0xff]
      %1768 = vmatprep.subr.mxu0 0.0
      %1769 = vmatpush1.msra.mxu0 %v1767
      %1770 = vmatprep.subr.mxu0 0.0
      %1771 = vmatpush1.msra.mxu0 %v1766
      %1772 = vmatprep.subr.mxu0 0.0
      %1773 = vmatpush1.msra.mxu0 %v1765
      %1774 = vmatprep.subr.mxu0 0.0
      %1775 = vmatpush1.msra.mxu0 %v1764
      %1776 = vmatprep.subr.mxu0 0.0
      %1777 = vmatpush1.msra.mxu0 %v1763
      %1778 = vmatprep.subr.mxu0 0.0
      %1779 = vmatpush1.msra.mxu0 %v1762
      %1780 = vmatprep.subr.mxu0 0.0
      %1781 = vmatpush1.msra.mxu0 %v1761
      %1782 = vmatprep.subr.mxu0 0.0
      %1783 = vmatpush1.msra.mxu0 %v1760
      %1784 = vmatprep.subr.mxu0 0.0
      %1785 = vmatpush1.msra.mxu0 %v1759
      %1786 = vmatprep.subr.mxu0 0.0
      %1787 = vmatpush1.msra.mxu0 %v1758
      %1788 = vmatprep.subr.mxu0 0.0
      %1789 = vmatpush1.msra.mxu0 %v1757
      %1790 = vmatprep.subr.mxu0 0.0
      %1791 = vmatpush1.msra.mxu0 %v1756
      %1792 = vmatprep.subr.mxu0 0.0
      %1793 = vmatpush1.msra.mxu0 %v1755
      %1794 = vmatprep.subr.mxu0 0.0
      %1795 = vmatpush1.msra.mxu0 %v1754
      %1796 = vmatprep.subr.mxu0 0.0
      %1797 = vmatpush1.msra.mxu0 %v1753
      %1798 = vmatprep.subr.mxu0 0.0
      %1799 = vmatpush1.msra.mxu0 %v1752
      %1800 = vmatprep.subr.mxu0 0.0
      %1801 = vmatpush2.msra.mxu0 0.0
      %1802 = vmatprep.subr.mxu0 0.0
      %1803 = vmatpush2.msra.mxu0 0.0
      %1804 = vmatprep.subr.mxu0 0.0
      %1805 = vmatpush2.msra.mxu0 0.0
      %1806 = vmatprep.subr.mxu0 0.0
      %1807 = vmatpush2.msra.mxu0 0.0
      %1808 = vmatprep.subr.mxu0 0.0
      %1809 = vmatpush2.msra.mxu0 0.0
      %1810 = vmatprep.subr.mxu0 0.0
      %1811 = vmatpush2.msra.mxu0 0.0
      %1812 = vmatprep.subr.mxu0 0.0
      %1813 = vmatpush2.msra.mxu0 0.0
      %1814 = vmatprep.subr.mxu0 0.0
      %1815 = vmatpush2.msra.mxu0 0.0
      %1816 = vmatprep.subr.mxu0 0.0
      %1817 = vmatpush2.msra.mxu0 0.0
      %1818 = vmatprep.subr.mxu0 0.0
      %1819 = vmatpush2.msra.mxu0 0.0
      %1820 = vmatprep.subr.mxu0 0.0
      %1821 = vmatpush2.msra.mxu0 0.0
      %1822 = vmatprep.subr.mxu0 0.0
      %1823 = vmatpush2.msra.mxu0 0.0
      %1824 = vmatprep.subr.mxu0 0.0
      %1825 = vmatpush2.msra.mxu0 0.0
      %1826 = vmatprep.subr.mxu0 0.0
      %1827 = vmatpush2.msra.mxu0 0.0
      %1828 = vmatprep.subr.mxu0 0.0
      %1829 = vmatpush2.msra.mxu0 0.0
      %1830 = vmatprep.subr.mxu0 0.0
      %1831 = vmatpush2.msra.mxu0 0.0
      %1832 = vmatprep.mubr.f32.mxu0 0.0
      %1833 = vmatmul.mubr.f32.gmra.mxu0 %v209
      %v1834 = vpop.f32.mrf.mxu0
      %v1835 = vadd.f32 0.0, %v1834
      %v1836 = vpop.f32.mrf.mxu0
      %1837 = vmatprep.mubr.f32.mxu0 0.0
      %1838 = vmatmul.mubr.f32.gmra.mxu0 %v210
      %v1839 = vpop.f32.mrf.mxu0
      %v1840 = vadd.f32 0.0, %v1839
      %v1841 = vpop.f32.mrf.mxu0
      %1842 = vmatprep.mubr.f32.mxu0 0.0
      %1843 = vmatmul.mubr.f32.gmra.mxu0 %v211
      %v1844 = vpop.f32.mrf.mxu0
      %v1845 = vadd.f32 0.0, %v1844
      %v1846 = vpop.f32.mrf.mxu0
      %1847 = vmatprep.mubr.f32.mxu0 0.0
      %1848 = vmatmul.mubr.f32.gmra.mxu0 %v212
      %v1849 = vpop.f32.mrf.mxu0
      %v1850 = vadd.f32 0.0, %v1849
      %v1851 = vpop.f32.mrf.mxu0
      %1852 = vmatprep.mubr.f32.mxu0 0.0
      %1853 = vmatmul.mubr.f32.gmra.mxu0 %v213
      %v1854 = vpop.f32.mrf.mxu0
      %v1855 = vadd.f32 0.0, %v1854
      %v1856 = vpop.f32.mrf.mxu0
      %1857 = vmatprep.mubr.f32.mxu0 0.0
      %1858 = vmatmul.mubr.f32.gmra.mxu0 %v214
      %v1859 = vpop.f32.mrf.mxu0
      %v1860 = vadd.f32 0.0, %v1859
      %v1861 = vpop.f32.mrf.mxu0
      %1862 = vmatprep.mubr.f32.mxu0 0.0
      %1863 = vmatmul.mubr.f32.gmra.mxu0 %v215
      %v1864 = vpop.f32.mrf.mxu0
      %v1865 = vadd.f32 0.0, %v1864
      %v1866 = vpop.f32.mrf.mxu0
      %1867 = vmatprep.mubr.f32.mxu0 0.0
      %1868 = vmatmul.mubr.f32.gmra.mxu0 %v216
      %v1869 = vpop.f32.mrf.mxu0
      %v1870 = vadd.f32 0.0, %v1869
      %v1871 = vpop.f32.mrf.mxu0
      %1872 = vmatprep.mubr.f32.mxu0 0.0
      %1873 = vmatmul.mubr.f32.gmra.mxu0 %v217
      %v1874 = vpop.f32.mrf.mxu0
      %v1875 = vadd.f32 0.0, %v1874
      %v1876 = vpop.f32.mrf.mxu0
      %1877 = vmatprep.mubr.f32.mxu0 0.0
      %1878 = vmatmul.mubr.f32.gmra.mxu0 %v218
      %v1879 = vpop.f32.mrf.mxu0
      %v1880 = vadd.f32 0.0, %v1879
      %v1881 = vpop.f32.mrf.mxu0
      %1882 = vmatprep.mubr.f32.mxu0 0.0
      %1883 = vmatmul.mubr.f32.gmra.mxu0 %v219
      %v1884 = vpop.f32.mrf.mxu0
      %v1885 = vadd.f32 0.0, %v1884
      %v1886 = vpop.f32.mrf.mxu0
      %1887 = vmatprep.mubr.f32.mxu0 0.0
      %1888 = vmatmul.mubr.f32.gmra.mxu0 %v220
      %v1889 = vpop.f32.mrf.mxu0
      %v1890 = vadd.f32 0.0, %v1889
      %v1891 = vpop.f32.mrf.mxu0
      %1892 = vmatprep.mubr.f32.mxu0 0.0
      %1893 = vmatmul.mubr.f32.gmra.mxu0 %v221
      %v1894 = vpop.f32.mrf.mxu0
      %v1895 = vadd.f32 0.0, %v1894
      %v1896 = vpop.f32.mrf.mxu0
      %1897 = vmatprep.mubr.f32.mxu0 0.0
      %1898 = vmatmul.mubr.f32.gmra.mxu0 %v222
      %v1899 = vpop.f32.mrf.mxu0
      %v1900 = vadd.f32 0.0, %v1899
      %v1901 = vpop.f32.mrf.mxu0
      %1902 = vmatprep.mubr.f32.mxu0 0.0
      %1903 = vmatmul.mubr.f32.gmra.mxu0 %v223
      %v1904 = vpop.f32.mrf.mxu0
      %v1905 = vadd.f32 0.0, %v1904
      %v1906 = vpop.f32.mrf.mxu0
      %1907 = vmatprep.mubr.f32.mxu0 0.0
      %1908 = vmatmul.mubr.f32.gmra.mxu0 %v224
      %v1909 = vpop.f32.mrf.mxu0
      %v1910 = vadd.f32 0.0, %v1909
      %v1911 = vpop.f32.mrf.mxu0
      %1912 = vmatprep.mubr.f32.mxu0 0.0
      %1913 = vmatmul.mubr.f32.gmra.mxu0 %v225
      %v1914 = vpop.f32.mrf.mxu0
      %v1915 = vadd.f32 0.0, %v1914
      %v1916 = vpop.f32.mrf.mxu0
      %1917 = vmatprep.mubr.f32.mxu0 0.0
      %1918 = vmatmul.mubr.f32.gmra.mxu0 %v226
      %v1919 = vpop.f32.mrf.mxu0
      %v1920 = vadd.f32 0.0, %v1919
      %v1921 = vpop.f32.mrf.mxu0
      %1922 = vmatprep.mubr.f32.mxu0 0.0
      %1923 = vmatmul.mubr.f32.gmra.mxu0 %v227
      %v1924 = vpop.f32.mrf.mxu0
      %v1925 = vadd.f32 0.0, %v1924
      %v1926 = vpop.f32.mrf.mxu0
      %1927 = vmatprep.mubr.f32.mxu0 0.0
      %1928 = vmatmul.mubr.f32.gmra.mxu0 %v228
      %v1929 = vpop.f32.mrf.mxu0
      %v1930 = vadd.f32 0.0, %v1929
      %v1931 = vpop.f32.mrf.mxu0
      %1932 = vmatprep.mubr.f32.mxu0 0.0
      %1933 = vmatmul.mubr.f32.gmra.mxu0 %v229
      %v1934 = vpop.f32.mrf.mxu0
      %v1935 = vadd.f32 0.0, %v1934
      %v1936 = vpop.f32.mrf.mxu0
      %1937 = vmatprep.mubr.f32.mxu0 0.0
      %1938 = vmatmul.mubr.f32.gmra.mxu0 %v230
      %v1939 = vpop.f32.mrf.mxu0
      %v1940 = vadd.f32 0.0, %v1939
      %v1941 = vpop.f32.mrf.mxu0
      %1942 = vmatprep.mubr.f32.mxu0 0.0
      %1943 = vmatmul.mubr.f32.gmra.mxu0 %v231
      %v1944 = vpop.f32.mrf.mxu0
      %v1945 = vadd.f32 0.0, %v1944
      %v1946 = vpop.f32.mrf.mxu0
      %1947 = vmatprep.mubr.f32.mxu0 0.0
      %1948 = vmatmul.mubr.f32.gmra.mxu0 %v232
      %v1949 = vpop.f32.mrf.mxu0
      %v1950 = vadd.f32 0.0, %v1949
      %v1951 = vpop.f32.mrf.mxu0
      %1952 = vmatprep.mubr.f32.mxu0 0.0
      %1953 = vmatmul.mubr.f32.gmra.mxu0 %v233
      %v1954 = vpop.f32.mrf.mxu0
      %v1955 = vadd.f32 0.0, %v1954
      %v1956 = vpop.f32.mrf.mxu0
      %1957 = vmatprep.mubr.f32.mxu0 0.0
      %1958 = vmatmul.mubr.f32.gmra.mxu0 %v234
      %v1959 = vpop.f32.mrf.mxu0
      %v1960 = vadd.f32 0.0, %v1959
      %v1961 = vpop.f32.mrf.mxu0
      %1962 = vmatprep.mubr.f32.mxu0 0.0
      %1963 = vmatmul.mubr.f32.gmra.mxu0 %v235
      %v1964 = vpop.f32.mrf.mxu0
      %v1965 = vadd.f32 0.0, %v1964
      %v1966 = vpop.f32.mrf.mxu0
      %1967 = vmatprep.mubr.f32.mxu0 0.0
      %1968 = vmatmul.mubr.f32.gmra.mxu0 %v236
      %v1969 = vpop.f32.mrf.mxu0
      %v1970 = vadd.f32 0.0, %v1969
      %v1971 = vpop.f32.mrf.mxu0
      %1972 = vmatprep.mubr.f32.mxu0 0.0
      %1973 = vmatmul.mubr.f32.gmra.mxu0 %v237
      %v1974 = vpop.f32.mrf.mxu0
      %v1975 = vadd.f32 0.0, %v1974
      %v1976 = vpop.f32.mrf.mxu0
      %1977 = vmatprep.mubr.f32.mxu0 0.0
      %1978 = vmatmul.mubr.f32.gmra.mxu0 %v238
      %v1979 = vpop.f32.mrf.mxu0
      %v1980 = vadd.f32 0.0, %v1979
      %v1981 = vpop.f32.mrf.mxu0
      %1982 = vmatprep.mubr.f32.mxu0 0.0
      %1983 = vmatmul.mubr.f32.gmra.mxu0 %v239
      %v1984 = vpop.f32.mrf.mxu0
      %v1985 = vadd.f32 0.0, %v1984
      %v1986 = vpop.f32.mrf.mxu0
      %1987 = vmatprep.mubr.f32.mxu0 0.0
      %1988 = vmatmul.mubr.f32.gmra.mxu0 %v240
      %v1989 = vpop.f32.mrf.mxu0
      %v1990 = vadd.f32 0.0, %v1989
      %v1991 = vpop.f32.mrf.mxu0
      %1992 = vdwg.mxu0
      %v1993 = vadd.f32 %v1719, %v1835
      %v1994 = vadd.f32 %v1720, %v1840
      %v1995 = vadd.f32 %v1721, %v1845
      %v1996 = vadd.f32 %v1722, %v1850
      %v1997 = vadd.f32 %v1723, %v1855
      %v1998 = vadd.f32 %v1724, %v1860
      %v1999 = vadd.f32 %v1725, %v1865
      %v2000 = vadd.f32 %v1726, %v1870
      %v2001 = vadd.f32 %v1727, %v1875
      %v2002 = vadd.f32 %v1728, %v1880
      %v2003 = vadd.f32 %v1729, %v1885
      %v2004 = vadd.f32 %v1730, %v1890
      %v2005 = vadd.f32 %v1731, %v1895
      %v2006 = vadd.f32 %v1732, %v1900
      %v2007 = vadd.f32 %v1733, %v1905
      %v2008 = vadd.f32 %v1734, %v1910
      %v2009 = vadd.f32 %v1735, %v1915
      %v2010 = vadd.f32 %v1736, %v1920
      %v2011 = vadd.f32 %v1737, %v1925
      %v2012 = vadd.f32 %v1738, %v1930
      %v2013 = vadd.f32 %v1739, %v1935
      %v2014 = vadd.f32 %v1740, %v1940
      %v2015 = vadd.f32 %v1741, %v1945
      %v2016 = vadd.f32 %v1742, %v1950
      %v2017 = vadd.f32 %v1743, %v1955
      %v2018 = vadd.f32 %v1744, %v1960
      %v2019 = vadd.f32 %v1745, %v1965
      %v2020 = vadd.f32 %v1746, %v1970
      %v2021 = vadd.f32 %v1747, %v1975
      %v2022 = vadd.f32 %v1748, %v1980
      %v2023 = vadd.f32 %v1749, %v1985
      %v2024 = vadd.f32 %v1750, %v1990
      %v2025 = vrot.slane %v240, 1
      %v2026 = vsel %vm305, %v1098, %v2025
      %v2029 = vsel %vm305, %v2025, 0.0
      %v2030 = vmul.f32 %v1041, %v308
      %v2031 = vmul.f32 %v1043, %v310
      %v2032 = vmul.f32 %v1045, %v312
      %v2033 = vmul.f32 %v1047, %v314
      %v2034 = vmul.f32 %v1049, %v316
      %v2035 = vmul.f32 %v1051, %v318
      %v2036 = vmul.f32 %v1053, %v320
      %v2037 = vmul.f32 %v1055, %v322
      %v2038 = vmul.f32 %v1057, %v324
      %v2039 = vmul.f32 %v1059, %v326
      %v2040 = vmul.f32 %v1061, %v328
      %v2041 = vmul.f32 %v1063, %v330
      %v2042 = vmul.f32 %v1065, %v332
      %v2043 = vmul.f32 %v1067, %v334
      %v2044 = vmul.f32 %v1069, %v336
      %v2045 = vmul.f32 %v1071, %v338
      %v2046 = vmul.f32 %v1073, %v340
      %v2047 = vmul.f32 %v1075, %v342
      %v2048 = vmul.f32 %v1077, %v344
      %v2049 = vmul.f32 %v1079, %v346
      %v2050 = vmul.f32 %v1081, %v348
      %v2051 = vmul.f32 %v1083, %v350
      %v2052 = vmul.f32 %v1085, %v352
      %v2053 = vmul.f32 %v1087, %v354
      %v2054 = vmul.f32 %v1089, %v356
      %v2055 = vmul.f32 %v1091, %v358
      %v2056 = vmul.f32 %v1093, %v360
      %v2057 = vmul.f32 %v1095, %v362
      %v2058 = vmul.f32 %v1097, %v364
      %v2059 = vmul.f32 %v1099, %v366
      %v2060 = vmul.f32 %v2026, %v368
      %v2061 = vmul.f32 %v2029, %v401
      %s2062 = scalar_lea.vmem %s2, 640
      %v2063 = vld [vmem:[%s2062] sm:$0xff]
      %v2064 = vld [vmem:[%s2062 + $0x8] sm:$0xff]
      %v2065 = vld [vmem:[%s2062 + $0x10] sm:$0xff]
      %v2066 = vld [vmem:[%s2062 + $0x18] sm:$0xff]
      %v2067 = vld [vmem:[%s2062 + $0x20] sm:$0xff]
      %v2068 = vld [vmem:[%s2062 + $0x28] sm:$0xff]
      %v2069 = vld [vmem:[%s2062 + $0x30] sm:$0xff]
      %v2070 = vld [vmem:[%s2062 + $0x38] sm:$0xff]
      %v2071 = vld [vmem:[%s2062 + $0x40] sm:$0xff]
      %v2072 = vld [vmem:[%s2062 + $0x48] sm:$0xff]
      %v2073 = vld [vmem:[%s2062 + $0x50] sm:$0xff]
      %v2074 = vld [vmem:[%s2062 + $0x58] sm:$0xff]
      %v2075 = vld [vmem:[%s2062 + $0x60] sm:$0xff]
      %v2076 = vld [vmem:[%s2062 + $0x68] sm:$0xff]
      %v2077 = vld [vmem:[%s2062 + $0x70] sm:$0xff]
      %v2078 = vld [vmem:[%s2062 + $0x78] sm:$0xff]
      %2079 = vmatprep.subr.mxu0 0.0
      %2080 = vmatpush1.msra.mxu0 %v2078
      %2081 = vmatprep.subr.mxu0 0.0
      %2082 = vmatpush1.msra.mxu0 %v2077
      %2083 = vmatprep.subr.mxu0 0.0
      %2084 = vmatpush1.msra.mxu0 %v2076
      %2085 = vmatprep.subr.mxu0 0.0
      %2086 = vmatpush1.msra.mxu0 %v2075
      %2087 = vmatprep.subr.mxu0 0.0
      %2088 = vmatpush1.msra.mxu0 %v2074
      %2089 = vmatprep.subr.mxu0 0.0
      %2090 = vmatpush1.msra.mxu0 %v2073
      %2091 = vmatprep.subr.mxu0 0.0
      %2092 = vmatpush1.msra.mxu0 %v2072
      %2093 = vmatprep.subr.mxu0 0.0
      %2094 = vmatpush1.msra.mxu0 %v2071
      %2095 = vmatprep.subr.mxu0 0.0
      %2096 = vmatpush1.msra.mxu0 %v2070
      %2097 = vmatprep.subr.mxu0 0.0
      %2098 = vmatpush1.msra.mxu0 %v2069
      %2099 = vmatprep.subr.mxu0 0.0
      %2100 = vmatpush1.msra.mxu0 %v2068
      %2101 = vmatprep.subr.mxu0 0.0
      %2102 = vmatpush1.msra.mxu0 %v2067
      %2103 = vmatprep.subr.mxu0 0.0
      %2104 = vmatpush1.msra.mxu0 %v2066
      %2105 = vmatprep.subr.mxu0 0.0
      %2106 = vmatpush1.msra.mxu0 %v2065
      %2107 = vmatprep.subr.mxu0 0.0
      %2108 = vmatpush1.msra.mxu0 %v2064
      %2109 = vmatprep.subr.mxu0 0.0
      %2110 = vmatpush1.msra.mxu0 %v2063
      %2111 = vmatprep.subr.mxu0 0.0
      %2112 = vmatpush2.msra.mxu0 0.0
      %2113 = vmatprep.subr.mxu0 0.0
      %2114 = vmatpush2.msra.mxu0 0.0
      %2115 = vmatprep.subr.mxu0 0.0
      %2116 = vmatpush2.msra.mxu0 0.0
      %2117 = vmatprep.subr.mxu0 0.0
      %2118 = vmatpush2.msra.mxu0 0.0
      %2119 = vmatprep.subr.mxu0 0.0
      %2120 = vmatpush2.msra.mxu0 0.0
      %2121 = vmatprep.subr.mxu0 0.0
      %2122 = vmatpush2.msra.mxu0 0.0
      %2123 = vmatprep.subr.mxu0 0.0
      %2124 = vmatpush2.msra.mxu0 0.0
      %2125 = vmatprep.subr.mxu0 0.0
      %2126 = vmatpush2.msra.mxu0 0.0
      %2127 = vmatprep.subr.mxu0 0.0
      %2128 = vmatpush2.msra.mxu0 0.0
      %2129 = vmatprep.subr.mxu0 0.0
      %2130 = vmatpush2.msra.mxu0 0.0
      %2131 = vmatprep.subr.mxu0 0.0
      %2132 = vmatpush2.msra.mxu0 0.0
      %2133 = vmatprep.subr.mxu0 0.0
      %2134 = vmatpush2.msra.mxu0 0.0
      %2135 = vmatprep.subr.mxu0 0.0
      %2136 = vmatpush2.msra.mxu0 0.0
      %2137 = vmatprep.subr.mxu0 0.0
      %2138 = vmatpush2.msra.mxu0 0.0
      %2139 = vmatprep.subr.mxu0 0.0
      %2140 = vmatpush2.msra.mxu0 0.0
      %2141 = vmatprep.subr.mxu0 0.0
      %2142 = vmatpush2.msra.mxu0 0.0
      %2143 = vmatprep.mubr.f32.mxu0 0.0
      %2144 = vmatmul.mubr.f32.gmra.mxu0 %v2030
      %v2145 = vpop.f32.mrf.mxu0
      %v2146 = vadd.f32 0.0, %v2145
      %v2147 = vpop.f32.mrf.mxu0
      %2148 = vmatprep.mubr.f32.mxu0 0.0
      %2149 = vmatmul.mubr.f32.gmra.mxu0 %v2031
      %v2150 = vpop.f32.mrf.mxu0
      %v2151 = vadd.f32 0.0, %v2150
      %v2152 = vpop.f32.mrf.mxu0
      %2153 = vmatprep.mubr.f32.mxu0 0.0
      %2154 = vmatmul.mubr.f32.gmra.mxu0 %v2032
      %v2155 = vpop.f32.mrf.mxu0
      %v2156 = vadd.f32 0.0, %v2155
      %v2157 = vpop.f32.mrf.mxu0
      %2158 = vmatprep.mubr.f32.mxu0 0.0
      %2159 = vmatmul.mubr.f32.gmra.mxu0 %v2033
      %v2160 = vpop.f32.mrf.mxu0
      %v2161 = vadd.f32 0.0, %v2160
      %v2162 = vpop.f32.mrf.mxu0
      %2163 = vmatprep.mubr.f32.mxu0 0.0
      %2164 = vmatmul.mubr.f32.gmra.mxu0 %v2034
      %v2165 = vpop.f32.mrf.mxu0
      %v2166 = vadd.f32 0.0, %v2165
      %v2167 = vpop.f32.mrf.mxu0
      %2168 = vmatprep.mubr.f32.mxu0 0.0
      %2169 = vmatmul.mubr.f32.gmra.mxu0 %v2035
      %v2170 = vpop.f32.mrf.mxu0
      %v2171 = vadd.f32 0.0, %v2170
      %v2172 = vpop.f32.mrf.mxu0
      %2173 = vmatprep.mubr.f32.mxu0 0.0
      %2174 = vmatmul.mubr.f32.gmra.mxu0 %v2036
      %v2175 = vpop.f32.mrf.mxu0
      %v2176 = vadd.f32 0.0, %v2175
      %v2177 = vpop.f32.mrf.mxu0
      %2178 = vmatprep.mubr.f32.mxu0 0.0
      %2179 = vmatmul.mubr.f32.gmra.mxu0 %v2037
      %v2180 = vpop.f32.mrf.mxu0
      %v2181 = vadd.f32 0.0, %v2180
      %v2182 = vpop.f32.mrf.mxu0
      %2183 = vmatprep.mubr.f32.mxu0 0.0
      %2184 = vmatmul.mubr.f32.gmra.mxu0 %v2038
      %v2185 = vpop.f32.mrf.mxu0
      %v2186 = vadd.f32 0.0, %v2185
      %v2187 = vpop.f32.mrf.mxu0
      %2188 = vmatprep.mubr.f32.mxu0 0.0
      %2189 = vmatmul.mubr.f32.gmra.mxu0 %v2039
      %v2190 = vpop.f32.mrf.mxu0
      %v2191 = vadd.f32 0.0, %v2190
      %v2192 = vpop.f32.mrf.mxu0
      %2193 = vmatprep.mubr.f32.mxu0 0.0
      %2194 = vmatmul.mubr.f32.gmra.mxu0 %v2040
      %v2195 = vpop.f32.mrf.mxu0
      %v2196 = vadd.f32 0.0, %v2195
      %v2197 = vpop.f32.mrf.mxu0
      %2198 = vmatprep.mubr.f32.mxu0 0.0
      %2199 = vmatmul.mubr.f32.gmra.mxu0 %v2041
      %v2200 = vpop.f32.mrf.mxu0
      %v2201 = vadd.f32 0.0, %v2200
      %v2202 = vpop.f32.mrf.mxu0
      %2203 = vmatprep.mubr.f32.mxu0 0.0
      %2204 = vmatmul.mubr.f32.gmra.mxu0 %v2042
      %v2205 = vpop.f32.mrf.mxu0
      %v2206 = vadd.f32 0.0, %v2205
      %v2207 = vpop.f32.mrf.mxu0
      %2208 = vmatprep.mubr.f32.mxu0 0.0
      %2209 = vmatmul.mubr.f32.gmra.mxu0 %v2043
      %v2210 = vpop.f32.mrf.mxu0
      %v2211 = vadd.f32 0.0, %v2210
      %v2212 = vpop.f32.mrf.mxu0
      %2213 = vmatprep.mubr.f32.mxu0 0.0
      %2214 = vmatmul.mubr.f32.gmra.mxu0 %v2044
      %v2215 = vpop.f32.mrf.mxu0
      %v2216 = vadd.f32 0.0, %v2215
      %v2217 = vpop.f32.mrf.mxu0
      %2218 = vmatprep.mubr.f32.mxu0 0.0
      %2219 = vmatmul.mubr.f32.gmra.mxu0 %v2045
      %v2220 = vpop.f32.mrf.mxu0
      %v2221 = vadd.f32 0.0, %v2220
      %v2222 = vpop.f32.mrf.mxu0
      %2223 = vmatprep.mubr.f32.mxu0 0.0
      %2224 = vmatmul.mubr.f32.gmra.mxu0 %v2046
      %v2225 = vpop.f32.mrf.mxu0
      %v2226 = vadd.f32 0.0, %v2225
      %v2227 = vpop.f32.mrf.mxu0
      %2228 = vmatprep.mubr.f32.mxu0 0.0
      %2229 = vmatmul.mubr.f32.gmra.mxu0 %v2047
      %v2230 = vpop.f32.mrf.mxu0
      %v2231 = vadd.f32 0.0, %v2230
      %v2232 = vpop.f32.mrf.mxu0
      %2233 = vmatprep.mubr.f32.mxu0 0.0
      %2234 = vmatmul.mubr.f32.gmra.mxu0 %v2048
      %v2235 = vpop.f32.mrf.mxu0
      %v2236 = vadd.f32 0.0, %v2235
      %v2237 = vpop.f32.mrf.mxu0
      %2238 = vmatprep.mubr.f32.mxu0 0.0
      %2239 = vmatmul.mubr.f32.gmra.mxu0 %v2049
      %v2240 = vpop.f32.mrf.mxu0
      %v2241 = vadd.f32 0.0, %v2240
      %v2242 = vpop.f32.mrf.mxu0
      %2243 = vmatprep.mubr.f32.mxu0 0.0
      %2244 = vmatmul.mubr.f32.gmra.mxu0 %v2050
      %v2245 = vpop.f32.mrf.mxu0
      %v2246 = vadd.f32 0.0, %v2245
      %v2247 = vpop.f32.mrf.mxu0
      %2248 = vmatprep.mubr.f32.mxu0 0.0
      %2249 = vmatmul.mubr.f32.gmra.mxu0 %v2051
      %v2250 = vpop.f32.mrf.mxu0
      %v2251 = vadd.f32 0.0, %v2250
      %v2252 = vpop.f32.mrf.mxu0
      %2253 = vmatprep.mubr.f32.mxu0 0.0
      %2254 = vmatmul.mubr.f32.gmra.mxu0 %v2052
      %v2255 = vpop.f32.mrf.mxu0
      %v2256 = vadd.f32 0.0, %v2255
      %v2257 = vpop.f32.mrf.mxu0
      %2258 = vmatprep.mubr.f32.mxu0 0.0
      %2259 = vmatmul.mubr.f32.gmra.mxu0 %v2053
      %v2260 = vpop.f32.mrf.mxu0
      %v2261 = vadd.f32 0.0, %v2260
      %v2262 = vpop.f32.mrf.mxu0
      %2263 = vmatprep.mubr.f32.mxu0 0.0
      %2264 = vmatmul.mubr.f32.gmra.mxu0 %v2054
      %v2265 = vpop.f32.mrf.mxu0
      %v2266 = vadd.f32 0.0, %v2265
      %v2267 = vpop.f32.mrf.mxu0
      %2268 = vmatprep.mubr.f32.mxu0 0.0
      %2269 = vmatmul.mubr.f32.gmra.mxu0 %v2055
      %v2270 = vpop.f32.mrf.mxu0
      %v2271 = vadd.f32 0.0, %v2270
      %v2272 = vpop.f32.mrf.mxu0
      %2273 = vmatprep.mubr.f32.mxu0 0.0
      %2274 = vmatmul.mubr.f32.gmra.mxu0 %v2056
      %v2275 = vpop.f32.mrf.mxu0
      %v2276 = vadd.f32 0.0, %v2275
      %v2277 = vpop.f32.mrf.mxu0
      %2278 = vmatprep.mubr.f32.mxu0 0.0
      %2279 = vmatmul.mubr.f32.gmra.mxu0 %v2057
      %v2280 = vpop.f32.mrf.mxu0
      %v2281 = vadd.f32 0.0, %v2280
      %v2282 = vpop.f32.mrf.mxu0
      %2283 = vmatprep.mubr.f32.mxu0 0.0
      %2284 = vmatmul.mubr.f32.gmra.mxu0 %v2058
      %v2285 = vpop.f32.mrf.mxu0
      %v2286 = vadd.f32 0.0, %v2285
      %v2287 = vpop.f32.mrf.mxu0
      %2288 = vmatprep.mubr.f32.mxu0 0.0
      %2289 = vmatmul.mubr.f32.gmra.mxu0 %v2059
      %v2290 = vpop.f32.mrf.mxu0
      %v2291 = vadd.f32 0.0, %v2290
      %v2292 = vpop.f32.mrf.mxu0
      %2293 = vmatprep.mubr.f32.mxu0 0.0
      %2294 = vmatmul.mubr.f32.gmra.mxu0 %v2060
      %v2295 = vpop.f32.mrf.mxu0
      %v2296 = vadd.f32 0.0, %v2295
      %v2297 = vpop.f32.mrf.mxu0
      %2298 = vmatprep.mubr.f32.mxu0 0.0
      %2299 = vmatmul.mubr.f32.gmra.mxu0 %v2061
      %v2300 = vpop.f32.mrf.mxu0
      %v2301 = vadd.f32 0.0, %v2300
      %v2302 = vpop.f32.mrf.mxu0
      %2303 = vdwg.mxu0
      %v2304 = vadd.f32 %v1993, %v2146
      %v2305 = vadd.f32 %v1994, %v2151
      %v2306 = vadd.f32 %v1995, %v2156
      %v2307 = vadd.f32 %v1996, %v2161
      %v2308 = vadd.f32 %v1997, %v2166
      %v2309 = vadd.f32 %v1998, %v2171
      %v2310 = vadd.f32 %v1999, %v2176
      %v2311 = vadd.f32 %v2000, %v2181
      %v2312 = vadd.f32 %v2001, %v2186
      %v2313 = vadd.f32 %v2002, %v2191
      %v2314 = vadd.f32 %v2003, %v2196
      %v2315 = vadd.f32 %v2004, %v2201
      %v2316 = vadd.f32 %v2005, %v2206
      %v2317 = vadd.f32 %v2006, %v2211
      %v2318 = vadd.f32 %v2007, %v2216
      %v2319 = vadd.f32 %v2008, %v2221
      %v2320 = vadd.f32 %v2009, %v2226
      %v2321 = vadd.f32 %v2010, %v2231
      %v2322 = vadd.f32 %v2011, %v2236
      %v2323 = vadd.f32 %v2012, %v2241
      %v2324 = vadd.f32 %v2013, %v2246
      %v2325 = vadd.f32 %v2014, %v2251
      %v2326 = vadd.f32 %v2015, %v2256
      %v2327 = vadd.f32 %v2016, %v2261
      %v2328 = vadd.f32 %v2017, %v2266
      %v2329 = vadd.f32 %v2018, %v2271
      %v2330 = vadd.f32 %v2019, %v2276
      %v2331 = vadd.f32 %v2020, %v2281
      %v2332 = vadd.f32 %v2021, %v2286
      %v2333 = vadd.f32 %v2022, %v2291
      %v2334 = vadd.f32 %v2023, %v2296
      %v2335 = vadd.f32 %v2024, %v2301
      %v2337 = vsel %vm432, %v1441, 0.0
      %v2338 = vmul.f32 %v437, %v241
      %v2339 = vmul.f32 %v439, %v242
      %v2340 = vmul.f32 %v441, %v243
      %v2341 = vmul.f32 %v443, %v244
      %v2342 = vmul.f32 %v445, %v245
      %v2343 = vmul.f32 %v447, %v246
      %v2344 = vmul.f32 %v449, %v247
      %v2345 = vmul.f32 %v451, %v248
      %v2346 = vmul.f32 %v453, %v249
      %v2347 = vmul.f32 %v455, %v250
      %v2348 = vmul.f32 %v457, %v251
      %v2349 = vmul.f32 %v459, %v252
      %v2350 = vmul.f32 %v461, %v253
      %v2351 = vmul.f32 %v463, %v254
      %v2352 = vmul.f32 %v465, %v255
      %v2353 = vmul.f32 %v467, %v256
      %v2354 = vmul.f32 %v469, %v257
      %v2355 = vmul.f32 %v471, %v258
      %v2356 = vmul.f32 %v473, %v259
      %v2357 = vmul.f32 %v475, %v260
      %v2358 = vmul.f32 %v477, %v261
      %v2359 = vmul.f32 %v479, %v262
      %v2360 = vmul.f32 %v481, %v263
      %v2361 = vmul.f32 %v483, %v264
      %v2362 = vmul.f32 %v485, %v265
      %v2363 = vmul.f32 %v487, %v266
      %v2364 = vmul.f32 %v489, %v267
      %v2365 = vmul.f32 %v491, %v268
      %v2366 = vmul.f32 %v1440, %v269
      %v2367 = vmul.f32 %v1442, %v270
      %v2368 = vmul.f32 %v2337, %v271
      %v2369 = vmul.f32 %v272, 0.0
      %s2370 = scalar_lea.vmem %s2, 768
      %v2371 = vld [vmem:[%s2370] sm:$0xff]
      %v2372 = vld [vmem:[%s2370 + $0x8] sm:$0xff]
      %v2373 = vld [vmem:[%s2370 + $0x10] sm:$0xff]
      %v2374 = vld [vmem:[%s2370 + $0x18] sm:$0xff]
      %v2375 = vld [vmem:[%s2370 + $0x20] sm:$0xff]
      %v2376 = vld [vmem:[%s2370 + $0x28] sm:$0xff]
      %v2377 = vld [vmem:[%s2370 + $0x30] sm:$0xff]
      %v2378 = vld [vmem:[%s2370 + $0x38] sm:$0xff]
      %v2379 = vld [vmem:[%s2370 + $0x40] sm:$0xff]
      %v2380 = vld [vmem:[%s2370 + $0x48] sm:$0xff]
      %v2381 = vld [vmem:[%s2370 + $0x50] sm:$0xff]
      %v2382 = vld [vmem:[%s2370 + $0x58] sm:$0xff]
      %v2383 = vld [vmem:[%s2370 + $0x60] sm:$0xff]
      %v2384 = vld [vmem:[%s2370 + $0x68] sm:$0xff]
      %v2385 = vld [vmem:[%s2370 + $0x70] sm:$0xff]
      %v2386 = vld [vmem:[%s2370 + $0x78] sm:$0xff]
      %2387 = vmatprep.subr.mxu0 0.0
      %2388 = vmatpush1.msra.mxu0 %v2386
      %2389 = vmatprep.subr.mxu0 0.0
      %2390 = vmatpush1.msra.mxu0 %v2385
      %2391 = vmatprep.subr.mxu0 0.0
      %2392 = vmatpush1.msra.mxu0 %v2384
      %2393 = vmatprep.subr.mxu0 0.0
      %2394 = vmatpush1.msra.mxu0 %v2383
      %2395 = vmatprep.subr.mxu0 0.0
      %2396 = vmatpush1.msra.mxu0 %v2382
      %2397 = vmatprep.subr.mxu0 0.0
      %2398 = vmatpush1.msra.mxu0 %v2381
      %2399 = vmatprep.subr.mxu0 0.0
      %2400 = vmatpush1.msra.mxu0 %v2380
      %2401 = vmatprep.subr.mxu0 0.0
      %2402 = vmatpush1.msra.mxu0 %v2379
      %2403 = vmatprep.subr.mxu0 0.0
      %2404 = vmatpush1.msra.mxu0 %v2378
      %2405 = vmatprep.subr.mxu0 0.0
      %2406 = vmatpush1.msra.mxu0 %v2377
      %2407 = vmatprep.subr.mxu0 0.0
      %2408 = vmatpush1.msra.mxu0 %v2376
      %2409 = vmatprep.subr.mxu0 0.0
      %2410 = vmatpush1.msra.mxu0 %v2375
      %2411 = vmatprep.subr.mxu0 0.0
      %2412 = vmatpush1.msra.mxu0 %v2374
      %2413 = vmatprep.subr.mxu0 0.0
      %2414 = vmatpush1.msra.mxu0 %v2373
      %2415 = vmatprep.subr.mxu0 0.0
      %2416 = vmatpush1.msra.mxu0 %v2372
      %2417 = vmatprep.subr.mxu0 0.0
      %2418 = vmatpush1.msra.mxu0 %v2371
      %2419 = vmatprep.subr.mxu0 0.0
      %2420 = vmatpush2.msra.mxu0 0.0
      %2421 = vmatprep.subr.mxu0 0.0
      %2422 = vmatpush2.msra.mxu0 0.0
      %2423 = vmatprep.subr.mxu0 0.0
      %2424 = vmatpush2.msra.mxu0 0.0
      %2425 = vmatprep.subr.mxu0 0.0
      %2426 = vmatpush2.msra.mxu0 0.0
      %2427 = vmatprep.subr.mxu0 0.0
      %2428 = vmatpush2.msra.mxu0 0.0
      %2429 = vmatprep.subr.mxu0 0.0
      %2430 = vmatpush2.msra.mxu0 0.0
      %2431 = vmatprep.subr.mxu0 0.0
      %2432 = vmatpush2.msra.mxu0 0.0
      %2433 = vmatprep.subr.mxu0 0.0
      %2434 = vmatpush2.msra.mxu0 0.0
      %2435 = vmatprep.subr.mxu0 0.0
      %2436 = vmatpush2.msra.mxu0 0.0
      %2437 = vmatprep.subr.mxu0 0.0
      %2438 = vmatpush2.msra.mxu0 0.0
      %2439 = vmatprep.subr.mxu0 0.0
      %2440 = vmatpush2.msra.mxu0 0.0
      %2441 = vmatprep.subr.mxu0 0.0
      %2442 = vmatpush2.msra.mxu0 0.0
      %2443 = vmatprep.subr.mxu0 0.0
      %2444 = vmatpush2.msra.mxu0 0.0
      %2445 = vmatprep.subr.mxu0 0.0
      %2446 = vmatpush2.msra.mxu0 0.0
      %2447 = vmatprep.subr.mxu0 0.0
      %2448 = vmatpush2.msra.mxu0 0.0
      %2449 = vmatprep.subr.mxu0 0.0
      %2450 = vmatpush2.msra.mxu0 0.0
      %2451 = vmatprep.mubr.f32.mxu0 0.0
      %2452 = vmatmul.mubr.f32.gmra.mxu0 %v2338
      %v2453 = vpop.f32.mrf.mxu0
      %v2454 = vadd.f32 0.0, %v2453
      %v2455 = vpop.f32.mrf.mxu0
      %2456 = vmatprep.mubr.f32.mxu0 0.0
      %2457 = vmatmul.mubr.f32.gmra.mxu0 %v2339
      %v2458 = vpop.f32.mrf.mxu0
      %v2459 = vadd.f32 0.0, %v2458
      %v2460 = vpop.f32.mrf.mxu0
      %2461 = vmatprep.mubr.f32.mxu0 0.0
      %2462 = vmatmul.mubr.f32.gmra.mxu0 %v2340
      %v2463 = vpop.f32.mrf.mxu0
      %v2464 = vadd.f32 0.0, %v2463
      %v2465 = vpop.f32.mrf.mxu0
      %2466 = vmatprep.mubr.f32.mxu0 0.0
      %2467 = vmatmul.mubr.f32.gmra.mxu0 %v2341
      %v2468 = vpop.f32.mrf.mxu0
      %v2469 = vadd.f32 0.0, %v2468
      %v2470 = vpop.f32.mrf.mxu0
      %2471 = vmatprep.mubr.f32.mxu0 0.0
      %2472 = vmatmul.mubr.f32.gmra.mxu0 %v2342
      %v2473 = vpop.f32.mrf.mxu0
      %v2474 = vadd.f32 0.0, %v2473
      %v2475 = vpop.f32.mrf.mxu0
      %2476 = vmatprep.mubr.f32.mxu0 0.0
      %2477 = vmatmul.mubr.f32.gmra.mxu0 %v2343
      %v2478 = vpop.f32.mrf.mxu0
      %v2479 = vadd.f32 0.0, %v2478
      %v2480 = vpop.f32.mrf.mxu0
      %2481 = vmatprep.mubr.f32.mxu0 0.0
      %2482 = vmatmul.mubr.f32.gmra.mxu0 %v2344
      %v2483 = vpop.f32.mrf.mxu0
      %v2484 = vadd.f32 0.0, %v2483
      %v2485 = vpop.f32.mrf.mxu0
      %2486 = vmatprep.mubr.f32.mxu0 0.0
      %2487 = vmatmul.mubr.f32.gmra.mxu0 %v2345
      %v2488 = vpop.f32.mrf.mxu0
      %v2489 = vadd.f32 0.0, %v2488
      %v2490 = vpop.f32.mrf.mxu0
      %2491 = vmatprep.mubr.f32.mxu0 0.0
      %2492 = vmatmul.mubr.f32.gmra.mxu0 %v2346
      %v2493 = vpop.f32.mrf.mxu0
      %v2494 = vadd.f32 0.0, %v2493
      %v2495 = vpop.f32.mrf.mxu0
      %2496 = vmatprep.mubr.f32.mxu0 0.0
      %2497 = vmatmul.mubr.f32.gmra.mxu0 %v2347
      %v2498 = vpop.f32.mrf.mxu0
      %v2499 = vadd.f32 0.0, %v2498
      %v2500 = vpop.f32.mrf.mxu0
      %2501 = vmatprep.mubr.f32.mxu0 0.0
      %2502 = vmatmul.mubr.f32.gmra.mxu0 %v2348
      %v2503 = vpop.f32.mrf.mxu0
      %v2504 = vadd.f32 0.0, %v2503
      %v2505 = vpop.f32.mrf.mxu0
      %2506 = vmatprep.mubr.f32.mxu0 0.0
      %2507 = vmatmul.mubr.f32.gmra.mxu0 %v2349
      %v2508 = vpop.f32.mrf.mxu0
      %v2509 = vadd.f32 0.0, %v2508
      %v2510 = vpop.f32.mrf.mxu0
      %2511 = vmatprep.mubr.f32.mxu0 0.0
      %2512 = vmatmul.mubr.f32.gmra.mxu0 %v2350
      %v2513 = vpop.f32.mrf.mxu0
      %v2514 = vadd.f32 0.0, %v2513
      %v2515 = vpop.f32.mrf.mxu0
      %2516 = vmatprep.mubr.f32.mxu0 0.0
      %2517 = vmatmul.mubr.f32.gmra.mxu0 %v2351
      %v2518 = vpop.f32.mrf.mxu0
      %v2519 = vadd.f32 0.0, %v2518
      %v2520 = vpop.f32.mrf.mxu0
      %2521 = vmatprep.mubr.f32.mxu0 0.0
      %2522 = vmatmul.mubr.f32.gmra.mxu0 %v2352
      %v2523 = vpop.f32.mrf.mxu0
      %v2524 = vadd.f32 0.0, %v2523
      %v2525 = vpop.f32.mrf.mxu0
      %2526 = vmatprep.mubr.f32.mxu0 0.0
      %2527 = vmatmul.mubr.f32.gmra.mxu0 %v2353
      %v2528 = vpop.f32.mrf.mxu0
      %v2529 = vadd.f32 0.0, %v2528
      %v2530 = vpop.f32.mrf.mxu0
      %2531 = vmatprep.mubr.f32.mxu0 0.0
      %2532 = vmatmul.mubr.f32.gmra.mxu0 %v2354
      %v2533 = vpop.f32.mrf.mxu0
      %v2534 = vadd.f32 0.0, %v2533
      %v2535 = vpop.f32.mrf.mxu0
      %2536 = vmatprep.mubr.f32.mxu0 0.0
      %2537 = vmatmul.mubr.f32.gmra.mxu0 %v2355
      %v2538 = vpop.f32.mrf.mxu0
      %v2539 = vadd.f32 0.0, %v2538
      %v2540 = vpop.f32.mrf.mxu0
      %2541 = vmatprep.mubr.f32.mxu0 0.0
      %2542 = vmatmul.mubr.f32.gmra.mxu0 %v2356
      %v2543 = vpop.f32.mrf.mxu0
      %v2544 = vadd.f32 0.0, %v2543
      %v2545 = vpop.f32.mrf.mxu0
      %2546 = vmatprep.mubr.f32.mxu0 0.0
      %2547 = vmatmul.mubr.f32.gmra.mxu0 %v2357
      %v2548 = vpop.f32.mrf.mxu0
      %v2549 = vadd.f32 0.0, %v2548
      %v2550 = vpop.f32.mrf.mxu0
      %2551 = vmatprep.mubr.f32.mxu0 0.0
      %2552 = vmatmul.mubr.f32.gmra.mxu0 %v2358
      %v2553 = vpop.f32.mrf.mxu0
      %v2554 = vadd.f32 0.0, %v2553
      %v2555 = vpop.f32.mrf.mxu0
      %2556 = vmatprep.mubr.f32.mxu0 0.0
      %2557 = vmatmul.mubr.f32.gmra.mxu0 %v2359
      %v2558 = vpop.f32.mrf.mxu0
      %v2559 = vadd.f32 0.0, %v2558
      %v2560 = vpop.f32.mrf.mxu0
      %2561 = vmatprep.mubr.f32.mxu0 0.0
      %2562 = vmatmul.mubr.f32.gmra.mxu0 %v2360
      %v2563 = vpop.f32.mrf.mxu0
      %v2564 = vadd.f32 0.0, %v2563
      %v2565 = vpop.f32.mrf.mxu0
      %2566 = vmatprep.mubr.f32.mxu0 0.0
      %2567 = vmatmul.mubr.f32.gmra.mxu0 %v2361
      %v2568 = vpop.f32.mrf.mxu0
      %v2569 = vadd.f32 0.0, %v2568
      %v2570 = vpop.f32.mrf.mxu0
      %2571 = vmatprep.mubr.f32.mxu0 0.0
      %2572 = vmatmul.mubr.f32.gmra.mxu0 %v2362
      %v2573 = vpop.f32.mrf.mxu0
      %v2574 = vadd.f32 0.0, %v2573
      %v2575 = vpop.f32.mrf.mxu0
      %2576 = vmatprep.mubr.f32.mxu0 0.0
      %2577 = vmatmul.mubr.f32.gmra.mxu0 %v2363
      %v2578 = vpop.f32.mrf.mxu0
      %v2579 = vadd.f32 0.0, %v2578
      %v2580 = vpop.f32.mrf.mxu0
      %2581 = vmatprep.mubr.f32.mxu0 0.0
      %2582 = vmatmul.mubr.f32.gmra.mxu0 %v2364
      %v2583 = vpop.f32.mrf.mxu0
      %v2584 = vadd.f32 0.0, %v2583
      %v2585 = vpop.f32.mrf.mxu0
      %2586 = vmatprep.mubr.f32.mxu0 0.0
      %2587 = vmatmul.mubr.f32.gmra.mxu0 %v2365
      %v2588 = vpop.f32.mrf.mxu0
      %v2589 = vadd.f32 0.0, %v2588
      %v2590 = vpop.f32.mrf.mxu0
      %2591 = vmatprep.mubr.f32.mxu0 0.0
      %2592 = vmatmul.mubr.f32.gmra.mxu0 %v2366
      %v2593 = vpop.f32.mrf.mxu0
      %v2594 = vadd.f32 0.0, %v2593
      %v2595 = vpop.f32.mrf.mxu0
      %2596 = vmatprep.mubr.f32.mxu0 0.0
      %2597 = vmatmul.mubr.f32.gmra.mxu0 %v2367
      %v2598 = vpop.f32.mrf.mxu0
      %v2599 = vadd.f32 0.0, %v2598
      %v2600 = vpop.f32.mrf.mxu0
      %2601 = vmatprep.mubr.f32.mxu0 0.0
      %2602 = vmatmul.mubr.f32.gmra.mxu0 %v2368
      %v2603 = vpop.f32.mrf.mxu0
      %v2604 = vadd.f32 0.0, %v2603
      %v2605 = vpop.f32.mrf.mxu0
      %2606 = vmatprep.mubr.f32.mxu0 0.0
      %2607 = vmatmul.mubr.f32.gmra.mxu0 %v2369
      %v2608 = vpop.f32.mrf.mxu0
      %v2609 = vadd.f32 0.0, %v2608
      %v2610 = vpop.f32.mrf.mxu0
      %2611 = vdwg.mxu0
      %v2612 = vadd.f32 %v2304, %v2454
      %v2613 = vadd.f32 %v2305, %v2459
      %v2614 = vadd.f32 %v2306, %v2464
      %v2615 = vadd.f32 %v2307, %v2469
      %v2616 = vadd.f32 %v2308, %v2474
      %v2617 = vadd.f32 %v2309, %v2479
      %v2618 = vadd.f32 %v2310, %v2484
      %v2619 = vadd.f32 %v2311, %v2489
      %v2620 = vadd.f32 %v2312, %v2494
      %v2621 = vadd.f32 %v2313, %v2499
      %v2622 = vadd.f32 %v2314, %v2504
      %v2623 = vadd.f32 %v2315, %v2509
      %v2624 = vadd.f32 %v2316, %v2514
      %v2625 = vadd.f32 %v2317, %v2519
      %v2626 = vadd.f32 %v2318, %v2524
      %v2627 = vadd.f32 %v2319, %v2529
      %v2628 = vadd.f32 %v2320, %v2534
      %v2629 = vadd.f32 %v2321, %v2539
      %v2630 = vadd.f32 %v2322, %v2544
      %v2631 = vadd.f32 %v2323, %v2549
      %v2632 = vadd.f32 %v2324, %v2554
      %v2633 = vadd.f32 %v2325, %v2559
      %v2634 = vadd.f32 %v2326, %v2564
      %v2635 = vadd.f32 %v2327, %v2569
      %v2636 = vadd.f32 %v2328, %v2574
      %v2637 = vadd.f32 %v2329, %v2579
      %v2638 = vadd.f32 %v2330, %v2584
      %v2639 = vadd.f32 %v2331, %v2589
      %v2640 = vadd.f32 %v2332, %v2594
      %v2641 = vadd.f32 %v2333, %v2599
      %v2642 = vadd.f32 %v2334, %v2604
      %v2643 = vadd.f32 %v2335, %v2609
      %s2644 = scalar_lea.vmem %s2, 896
      %v2645 = vld [vmem:[%s2644] sm:$0xff]
      %v2646 = vld [vmem:[%s2644 + $0x8] sm:$0xff]
      %v2647 = vld [vmem:[%s2644 + $0x10] sm:$0xff]
      %v2648 = vld [vmem:[%s2644 + $0x18] sm:$0xff]
      %v2649 = vld [vmem:[%s2644 + $0x20] sm:$0xff]
      %v2650 = vld [vmem:[%s2644 + $0x28] sm:$0xff]
      %v2651 = vld [vmem:[%s2644 + $0x30] sm:$0xff]
      %v2652 = vld [vmem:[%s2644 + $0x38] sm:$0xff]
      %v2653 = vld [vmem:[%s2644 + $0x40] sm:$0xff]
      %v2654 = vld [vmem:[%s2644 + $0x48] sm:$0xff]
      %v2655 = vld [vmem:[%s2644 + $0x50] sm:$0xff]
      %v2656 = vld [vmem:[%s2644 + $0x58] sm:$0xff]
      %v2657 = vld [vmem:[%s2644 + $0x60] sm:$0xff]
      %v2658 = vld [vmem:[%s2644 + $0x68] sm:$0xff]
      %v2659 = vld [vmem:[%s2644 + $0x70] sm:$0xff]
      %v2660 = vld [vmem:[%s2644 + $0x78] sm:$0xff]
      %2661 = vmatprep.subr.mxu0 0.0
      %2662 = vmatpush1.msra.mxu0 %v2660
      %2663 = vmatprep.subr.mxu0 0.0
      %2664 = vmatpush1.msra.mxu0 %v2659
      %2665 = vmatprep.subr.mxu0 0.0
      %2666 = vmatpush1.msra.mxu0 %v2658
      %2667 = vmatprep.subr.mxu0 0.0
      %2668 = vmatpush1.msra.mxu0 %v2657
      %2669 = vmatprep.subr.mxu0 0.0
      %2670 = vmatpush1.msra.mxu0 %v2656
      %2671 = vmatprep.subr.mxu0 0.0
      %2672 = vmatpush1.msra.mxu0 %v2655
      %2673 = vmatprep.subr.mxu0 0.0
      %2674 = vmatpush1.msra.mxu0 %v2654
      %2675 = vmatprep.subr.mxu0 0.0
      %2676 = vmatpush1.msra.mxu0 %v2653
      %2677 = vmatprep.subr.mxu0 0.0
      %2678 = vmatpush1.msra.mxu0 %v2652
      %2679 = vmatprep.subr.mxu0 0.0
      %2680 = vmatpush1.msra.mxu0 %v2651
      %2681 = vmatprep.subr.mxu0 0.0
      %2682 = vmatpush1.msra.mxu0 %v2650
      %2683 = vmatprep.subr.mxu0 0.0
      %2684 = vmatpush1.msra.mxu0 %v2649
      %2685 = vmatprep.subr.mxu0 0.0
      %2686 = vmatpush1.msra.mxu0 %v2648
      %2687 = vmatprep.subr.mxu0 0.0
      %2688 = vmatpush1.msra.mxu0 %v2647
      %2689 = vmatprep.subr.mxu0 0.0
      %2690 = vmatpush1.msra.mxu0 %v2646
      %2691 = vmatprep.subr.mxu0 0.0
      %2692 = vmatpush1.msra.mxu0 %v2645
      %2693 = vmatprep.subr.mxu0 0.0
      %2694 = vmatpush2.msra.mxu0 0.0
      %2695 = vmatprep.subr.mxu0 0.0
      %2696 = vmatpush2.msra.mxu0 0.0
      %2697 = vmatprep.subr.mxu0 0.0
      %2698 = vmatpush2.msra.mxu0 0.0
      %2699 = vmatprep.subr.mxu0 0.0
      %2700 = vmatpush2.msra.mxu0 0.0
      %2701 = vmatprep.subr.mxu0 0.0
      %2702 = vmatpush2.msra.mxu0 0.0
      %2703 = vmatprep.subr.mxu0 0.0
      %2704 = vmatpush2.msra.mxu0 0.0
      %2705 = vmatprep.subr.mxu0 0.0
      %2706 = vmatpush2.msra.mxu0 0.0
      %2707 = vmatprep.subr.mxu0 0.0
      %2708 = vmatpush2.msra.mxu0 0.0
      %2709 = vmatprep.subr.mxu0 0.0
      %2710 = vmatpush2.msra.mxu0 0.0
      %2711 = vmatprep.subr.mxu0 0.0
      %2712 = vmatpush2.msra.mxu0 0.0
      %2713 = vmatprep.subr.mxu0 0.0
      %2714 = vmatpush2.msra.mxu0 0.0
      %2715 = vmatprep.subr.mxu0 0.0
      %2716 = vmatpush2.msra.mxu0 0.0
      %2717 = vmatprep.subr.mxu0 0.0
      %2718 = vmatpush2.msra.mxu0 0.0
      %2719 = vmatprep.subr.mxu0 0.0
      %2720 = vmatpush2.msra.mxu0 0.0
      %2721 = vmatprep.subr.mxu0 0.0
      %2722 = vmatpush2.msra.mxu0 0.0
      %2723 = vmatprep.subr.mxu0 0.0
      %2724 = vmatpush2.msra.mxu0 0.0
      %2725 = vmatprep.mubr.f32.mxu0 0.0
      %2726 = vmatmul.mubr.f32.gmra.mxu0 %v211
      %v2727 = vpop.f32.mrf.mxu0
      %v2728 = vadd.f32 0.0, %v2727
      %v2729 = vpop.f32.mrf.mxu0
      %2730 = vmatprep.mubr.f32.mxu0 0.0
      %2731 = vmatmul.mubr.f32.gmra.mxu0 %v212
      %v2732 = vpop.f32.mrf.mxu0
      %v2733 = vadd.f32 0.0, %v2732
      %v2734 = vpop.f32.mrf.mxu0
      %2735 = vmatprep.mubr.f32.mxu0 0.0
      %2736 = vmatmul.mubr.f32.gmra.mxu0 %v213
      %v2737 = vpop.f32.mrf.mxu0
      %v2738 = vadd.f32 0.0, %v2737
      %v2739 = vpop.f32.mrf.mxu0
      %2740 = vmatprep.mubr.f32.mxu0 0.0
      %2741 = vmatmul.mubr.f32.gmra.mxu0 %v214
      %v2742 = vpop.f32.mrf.mxu0
      %v2743 = vadd.f32 0.0, %v2742
      %v2744 = vpop.f32.mrf.mxu0
      %2745 = vmatprep.mubr.f32.mxu0 0.0
      %2746 = vmatmul.mubr.f32.gmra.mxu0 %v215
      %v2747 = vpop.f32.mrf.mxu0
      %v2748 = vadd.f32 0.0, %v2747
      %v2749 = vpop.f32.mrf.mxu0
      %2750 = vmatprep.mubr.f32.mxu0 0.0
      %2751 = vmatmul.mubr.f32.gmra.mxu0 %v216
      %v2752 = vpop.f32.mrf.mxu0
      %v2753 = vadd.f32 0.0, %v2752
      %v2754 = vpop.f32.mrf.mxu0
      %2755 = vmatprep.mubr.f32.mxu0 0.0
      %2756 = vmatmul.mubr.f32.gmra.mxu0 %v217
      %v2757 = vpop.f32.mrf.mxu0
      %v2758 = vadd.f32 0.0, %v2757
      %v2759 = vpop.f32.mrf.mxu0
      %2760 = vmatprep.mubr.f32.mxu0 0.0
      %2761 = vmatmul.mubr.f32.gmra.mxu0 %v218
      %v2762 = vpop.f32.mrf.mxu0
      %v2763 = vadd.f32 0.0, %v2762
      %v2764 = vpop.f32.mrf.mxu0
      %2765 = vmatprep.mubr.f32.mxu0 0.0
      %2766 = vmatmul.mubr.f32.gmra.mxu0 %v219
      %v2767 = vpop.f32.mrf.mxu0
      %v2768 = vadd.f32 0.0, %v2767
      %v2769 = vpop.f32.mrf.mxu0
      %2770 = vmatprep.mubr.f32.mxu0 0.0
      %2771 = vmatmul.mubr.f32.gmra.mxu0 %v220
      %v2772 = vpop.f32.mrf.mxu0
      %v2773 = vadd.f32 0.0, %v2772
      %v2774 = vpop.f32.mrf.mxu0
      %2775 = vmatprep.mubr.f32.mxu0 0.0
      %2776 = vmatmul.mubr.f32.gmra.mxu0 %v221
      %v2777 = vpop.f32.mrf.mxu0
      %v2778 = vadd.f32 0.0, %v2777
      %v2779 = vpop.f32.mrf.mxu0
      %2780 = vmatprep.mubr.f32.mxu0 0.0
      %2781 = vmatmul.mubr.f32.gmra.mxu0 %v222
      %v2782 = vpop.f32.mrf.mxu0
      %v2783 = vadd.f32 0.0, %v2782
      %v2784 = vpop.f32.mrf.mxu0
      %2785 = vmatprep.mubr.f32.mxu0 0.0
      %2786 = vmatmul.mubr.f32.gmra.mxu0 %v223
      %v2787 = vpop.f32.mrf.mxu0
      %v2788 = vadd.f32 0.0, %v2787
      %v2789 = vpop.f32.mrf.mxu0
      %2790 = vmatprep.mubr.f32.mxu0 0.0
      %2791 = vmatmul.mubr.f32.gmra.mxu0 %v224
      %v2792 = vpop.f32.mrf.mxu0
      %v2793 = vadd.f32 0.0, %v2792
      %v2794 = vpop.f32.mrf.mxu0
      %2795 = vmatprep.mubr.f32.mxu0 0.0
      %2796 = vmatmul.mubr.f32.gmra.mxu0 %v225
      %v2797 = vpop.f32.mrf.mxu0
      %v2798 = vadd.f32 0.0, %v2797
      %v2799 = vpop.f32.mrf.mxu0
      %2800 = vmatprep.mubr.f32.mxu0 0.0
      %2801 = vmatmul.mubr.f32.gmra.mxu0 %v226
      %v2802 = vpop.f32.mrf.mxu0
      %v2803 = vadd.f32 0.0, %v2802
      %v2804 = vpop.f32.mrf.mxu0
      %2805 = vmatprep.mubr.f32.mxu0 0.0
      %2806 = vmatmul.mubr.f32.gmra.mxu0 %v227
      %v2807 = vpop.f32.mrf.mxu0
      %v2808 = vadd.f32 0.0, %v2807
      %v2809 = vpop.f32.mrf.mxu0
      %2810 = vmatprep.mubr.f32.mxu0 0.0
      %2811 = vmatmul.mubr.f32.gmra.mxu0 %v228
      %v2812 = vpop.f32.mrf.mxu0
      %v2813 = vadd.f32 0.0, %v2812
      %v2814 = vpop.f32.mrf.mxu0
      %2815 = vmatprep.mubr.f32.mxu0 0.0
      %2816 = vmatmul.mubr.f32.gmra.mxu0 %v229
      %v2817 = vpop.f32.mrf.mxu0
      %v2818 = vadd.f32 0.0, %v2817
      %v2819 = vpop.f32.mrf.mxu0
      %2820 = vmatprep.mubr.f32.mxu0 0.0
      %2821 = vmatmul.mubr.f32.gmra.mxu0 %v230
      %v2822 = vpop.f32.mrf.mxu0
      %v2823 = vadd.f32 0.0, %v2822
      %v2824 = vpop.f32.mrf.mxu0
      %2825 = vmatprep.mubr.f32.mxu0 0.0
      %2826 = vmatmul.mubr.f32.gmra.mxu0 %v231
      %v2827 = vpop.f32.mrf.mxu0
      %v2828 = vadd.f32 0.0, %v2827
      %v2829 = vpop.f32.mrf.mxu0
      %2830 = vmatprep.mubr.f32.mxu0 0.0
      %2831 = vmatmul.mubr.f32.gmra.mxu0 %v232
      %v2832 = vpop.f32.mrf.mxu0
      %v2833 = vadd.f32 0.0, %v2832
      %v2834 = vpop.f32.mrf.mxu0
      %2835 = vmatprep.mubr.f32.mxu0 0.0
      %2836 = vmatmul.mubr.f32.gmra.mxu0 %v233
      %v2837 = vpop.f32.mrf.mxu0
      %v2838 = vadd.f32 0.0, %v2837
      %v2839 = vpop.f32.mrf.mxu0
      %2840 = vmatprep.mubr.f32.mxu0 0.0
      %2841 = vmatmul.mubr.f32.gmra.mxu0 %v234
      %v2842 = vpop.f32.mrf.mxu0
      %v2843 = vadd.f32 0.0, %v2842
      %v2844 = vpop.f32.mrf.mxu0
      %2845 = vmatprep.mubr.f32.mxu0 0.0
      %2846 = vmatmul.mubr.f32.gmra.mxu0 %v235
      %v2847 = vpop.f32.mrf.mxu0
      %v2848 = vadd.f32 0.0, %v2847
      %v2849 = vpop.f32.mrf.mxu0
      %2850 = vmatprep.mubr.f32.mxu0 0.0
      %2851 = vmatmul.mubr.f32.gmra.mxu0 %v236
      %v2852 = vpop.f32.mrf.mxu0
      %v2853 = vadd.f32 0.0, %v2852
      %v2854 = vpop.f32.mrf.mxu0
      %2855 = vmatprep.mubr.f32.mxu0 0.0
      %2856 = vmatmul.mubr.f32.gmra.mxu0 %v237
      %v2857 = vpop.f32.mrf.mxu0
      %v2858 = vadd.f32 0.0, %v2857
      %v2859 = vpop.f32.mrf.mxu0
      %2860 = vmatprep.mubr.f32.mxu0 0.0
      %2861 = vmatmul.mubr.f32.gmra.mxu0 %v238
      %v2862 = vpop.f32.mrf.mxu0
      %v2863 = vadd.f32 0.0, %v2862
      %v2864 = vpop.f32.mrf.mxu0
      %2865 = vmatprep.mubr.f32.mxu0 0.0
      %2866 = vmatmul.mubr.f32.gmra.mxu0 %v239
      %v2867 = vpop.f32.mrf.mxu0
      %v2868 = vadd.f32 0.0, %v2867
      %v2869 = vpop.f32.mrf.mxu0
      %2870 = vmatprep.mubr.f32.mxu0 0.0
      %2871 = vmatmul.mubr.f32.gmra.mxu0 %v240
      %v2872 = vpop.f32.mrf.mxu0
      %v2873 = vadd.f32 0.0, %v2872
      %v2874 = vpop.f32.mrf.mxu0
      %2875 = vmatprep.mubr.f32.mxu0 0.0
      %2876 = vmatmul.mubr.f32.gmra.mxu0 0.0
      %v2877 = vpop.f32.mrf.mxu0
      %v2878 = vadd.f32 0.0, %v2877
      %v2879 = vpop.f32.mrf.mxu0
      %2880 = vmatprep.mubr.f32.mxu0 0.0
      %2881 = vmatmul.mubr.f32.gmra.mxu0 0.0
      %v2882 = vpop.f32.mrf.mxu0
      %v2883 = vadd.f32 0.0, %v2882
      %v2884 = vpop.f32.mrf.mxu0
      %2885 = vdwg.mxu0
      %v2886 = vadd.f32 %v2612, %v2728
      %v2887 = vadd.f32 %v2613, %v2733
      %v2888 = vadd.f32 %v2614, %v2738
      %v2889 = vadd.f32 %v2615, %v2743
      %v2890 = vadd.f32 %v2616, %v2748
      %v2891 = vadd.f32 %v2617, %v2753
      %v2892 = vadd.f32 %v2618, %v2758
      %v2893 = vadd.f32 %v2619, %v2763
      %v2894 = vadd.f32 %v2620, %v2768
      %v2895 = vadd.f32 %v2621, %v2773
      %v2896 = vadd.f32 %v2622, %v2778
      %v2897 = vadd.f32 %v2623, %v2783
      %v2898 = vadd.f32 %v2624, %v2788
      %v2899 = vadd.f32 %v2625, %v2793
      %v2900 = vadd.f32 %v2626, %v2798
      %v2901 = vadd.f32 %v2627, %v2803
      %v2902 = vadd.f32 %v2628, %v2808
      %v2903 = vadd.f32 %v2629, %v2813
      %v2904 = vadd.f32 %v2630, %v2818
      %v2905 = vadd.f32 %v2631, %v2823
      %v2906 = vadd.f32 %v2632, %v2828
      %v2907 = vadd.f32 %v2633, %v2833
      %v2908 = vadd.f32 %v2634, %v2838
      %v2909 = vadd.f32 %v2635, %v2843
      %v2910 = vadd.f32 %v2636, %v2848
      %v2911 = vadd.f32 %v2637, %v2853
      %v2912 = vadd.f32 %v2638, %v2858
      %v2913 = vadd.f32 %v2639, %v2863
      %v2914 = vadd.f32 %v2640, %v2868
      %v2915 = vadd.f32 %v2641, %v2873
      %v2916 = vadd.f32 %v2642, %v2878
      %v2917 = vadd.f32 %v2643, %v2883
      %v2918 = vmul.f32 %v1045, %v308
      %v2919 = vmul.f32 %v1047, %v310
      %v2920 = vmul.f32 %v1049, %v312
      %v2921 = vmul.f32 %v1051, %v314
      %v2922 = vmul.f32 %v1053, %v316
      %v2923 = vmul.f32 %v1055, %v318
      %v2924 = vmul.f32 %v1057, %v320
      %v2925 = vmul.f32 %v1059, %v322
      %v2926 = vmul.f32 %v1061, %v324
      %v2927 = vmul.f32 %v1063, %v326
      %v2928 = vmul.f32 %v1065, %v328
      %v2929 = vmul.f32 %v1067, %v330
      %v2930 = vmul.f32 %v1069, %v332
      %v2931 = vmul.f32 %v1071, %v334
      %v2932 = vmul.f32 %v1073, %v336
      %v2933 = vmul.f32 %v1075, %v338
      %v2934 = vmul.f32 %v1077, %v340
      %v2935 = vmul.f32 %v1079, %v342
      %v2936 = vmul.f32 %v1081, %v344
      %v2937 = vmul.f32 %v1083, %v346
      %v2938 = vmul.f32 %v1085, %v348
      %v2939 = vmul.f32 %v1087, %v350
      %v2940 = vmul.f32 %v1089, %v352
      %v2941 = vmul.f32 %v1091, %v354
      %v2942 = vmul.f32 %v1093, %v356
      %v2943 = vmul.f32 %v1095, %v358
      %v2944 = vmul.f32 %v1097, %v360
      %v2945 = vmul.f32 %v1099, %v362
      %v2946 = vmul.f32 %v2026, %v364
      %v2947 = vmul.f32 %v2029, %v366
      %v2948 = vmul.f32 %v368, 0.0
      %v2949 = vmul.f32 %v401, 0.0
      %s2950 = scalar_lea.vmem %s2, 1024
      %v2951 = vld [vmem:[%s2950] sm:$0xff]
      %v2952 = vld [vmem:[%s2950 + $0x8] sm:$0xff]
      %v2953 = vld [vmem:[%s2950 + $0x10] sm:$0xff]
      %v2954 = vld [vmem:[%s2950 + $0x18] sm:$0xff]
      %v2955 = vld [vmem:[%s2950 + $0x20] sm:$0xff]
      %v2956 = vld [vmem:[%s2950 + $0x28] sm:$0xff]
      %v2957 = vld [vmem:[%s2950 + $0x30] sm:$0xff]
      %v2958 = vld [vmem:[%s2950 + $0x38] sm:$0xff]
      %v2959 = vld [vmem:[%s2950 + $0x40] sm:$0xff]
      %v2960 = vld [vmem:[%s2950 + $0x48] sm:$0xff]
      %v2961 = vld [vmem:[%s2950 + $0x50] sm:$0xff]
      %v2962 = vld [vmem:[%s2950 + $0x58] sm:$0xff]
      %v2963 = vld [vmem:[%s2950 + $0x60] sm:$0xff]
      %v2964 = vld [vmem:[%s2950 + $0x68] sm:$0xff]
      %v2965 = vld [vmem:[%s2950 + $0x70] sm:$0xff]
      %v2966 = vld [vmem:[%s2950 + $0x78] sm:$0xff]
      %2967 = vmatprep.subr.mxu0 0.0
      %2968 = vmatpush1.msra.mxu0 %v2966
      %2969 = vmatprep.subr.mxu0 0.0
      %2970 = vmatpush1.msra.mxu0 %v2965
      %2971 = vmatprep.subr.mxu0 0.0
      %2972 = vmatpush1.msra.mxu0 %v2964
      %2973 = vmatprep.subr.mxu0 0.0
      %2974 = vmatpush1.msra.mxu0 %v2963
      %2975 = vmatprep.subr.mxu0 0.0
      %2976 = vmatpush1.msra.mxu0 %v2962
      %2977 = vmatprep.subr.mxu0 0.0
      %2978 = vmatpush1.msra.mxu0 %v2961
      %2979 = vmatprep.subr.mxu0 0.0
      %2980 = vmatpush1.msra.mxu0 %v2960
      %2981 = vmatprep.subr.mxu0 0.0
      %2982 = vmatpush1.msra.mxu0 %v2959
      %2983 = vmatprep.subr.mxu0 0.0
      %2984 = vmatpush1.msra.mxu0 %v2958
      %2985 = vmatprep.subr.mxu0 0.0
      %2986 = vmatpush1.msra.mxu0 %v2957
      %2987 = vmatprep.subr.mxu0 0.0
      %2988 = vmatpush1.msra.mxu0 %v2956
      %2989 = vmatprep.subr.mxu0 0.0
      %2990 = vmatpush1.msra.mxu0 %v2955
      %2991 = vmatprep.subr.mxu0 0.0
      %2992 = vmatpush1.msra.mxu0 %v2954
      %2993 = vmatprep.subr.mxu0 0.0
      %2994 = vmatpush1.msra.mxu0 %v2953
      %2995 = vmatprep.subr.mxu0 0.0
      %2996 = vmatpush1.msra.mxu0 %v2952
      %2997 = vmatprep.subr.mxu0 0.0
      %2998 = vmatpush1.msra.mxu0 %v2951
      %2999 = vmatprep.subr.mxu0 0.0
      %3000 = vmatpush2.msra.mxu0 0.0
      %3001 = vmatprep.subr.mxu0 0.0
      %3002 = vmatpush2.msra.mxu0 0.0
      %3003 = vmatprep.subr.mxu0 0.0
      %3004 = vmatpush2.msra.mxu0 0.0
      %3005 = vmatprep.subr.mxu0 0.0
      %3006 = vmatpush2.msra.mxu0 0.0
      %3007 = vmatprep.subr.mxu0 0.0
      %3008 = vmatpush2.msra.mxu0 0.0
      %3009 = vmatprep.subr.mxu0 0.0
      %3010 = vmatpush2.msra.mxu0 0.0
      %3011 = vmatprep.subr.mxu0 0.0
      %3012 = vmatpush2.msra.mxu0 0.0
      %3013 = vmatprep.subr.mxu0 0.0
      %3014 = vmatpush2.msra.mxu0 0.0
      %3015 = vmatprep.subr.mxu0 0.0
      %3016 = vmatpush2.msra.mxu0 0.0
      %3017 = vmatprep.subr.mxu0 0.0
      %3018 = vmatpush2.msra.mxu0 0.0
      %3019 = vmatprep.subr.mxu0 0.0
      %3020 = vmatpush2.msra.mxu0 0.0
      %3021 = vmatprep.subr.mxu0 0.0
      %3022 = vmatpush2.msra.mxu0 0.0
      %3023 = vmatprep.subr.mxu0 0.0
      %3024 = vmatpush2.msra.mxu0 0.0
      %3025 = vmatprep.subr.mxu0 0.0
      %3026 = vmatpush2.msra.mxu0 0.0
      %3027 = vmatprep.subr.mxu0 0.0
      %3028 = vmatpush2.msra.mxu0 0.0
      %3029 = vmatprep.subr.mxu0 0.0
      %3030 = vmatpush2.msra.mxu0 0.0
      %3031 = vmatprep.mubr.f32.mxu0 0.0
      %3032 = vmatmul.mubr.f32.gmra.mxu0 %v2918
      %v3033 = vpop.f32.mrf.mxu0
      %v3034 = vadd.f32 0.0, %v3033
      %v3035 = vpop.f32.mrf.mxu0
      %3036 = vmatprep.mubr.f32.mxu0 0.0
      %3037 = vmatmul.mubr.f32.gmra.mxu0 %v2919
      %v3038 = vpop.f32.mrf.mxu0
      %v3039 = vadd.f32 0.0, %v3038
      %v3040 = vpop.f32.mrf.mxu0
      %3041 = vmatprep.mubr.f32.mxu0 0.0
      %3042 = vmatmul.mubr.f32.gmra.mxu0 %v2920
      %v3043 = vpop.f32.mrf.mxu0
      %v3044 = vadd.f32 0.0, %v3043
      %v3045 = vpop.f32.mrf.mxu0
      %3046 = vmatprep.mubr.f32.mxu0 0.0
      %3047 = vmatmul.mubr.f32.gmra.mxu0 %v2921
      %v3048 = vpop.f32.mrf.mxu0
      %v3049 = vadd.f32 0.0, %v3048
      %v3050 = vpop.f32.mrf.mxu0
      %3051 = vmatprep.mubr.f32.mxu0 0.0
      %3052 = vmatmul.mubr.f32.gmra.mxu0 %v2922
      %v3053 = vpop.f32.mrf.mxu0
      %v3054 = vadd.f32 0.0, %v3053
      %v3055 = vpop.f32.mrf.mxu0
      %3056 = vmatprep.mubr.f32.mxu0 0.0
      %3057 = vmatmul.mubr.f32.gmra.mxu0 %v2923
      %v3058 = vpop.f32.mrf.mxu0
      %v3059 = vadd.f32 0.0, %v3058
      %v3060 = vpop.f32.mrf.mxu0
      %3061 = vmatprep.mubr.f32.mxu0 0.0
      %3062 = vmatmul.mubr.f32.gmra.mxu0 %v2924
      %v3063 = vpop.f32.mrf.mxu0
      %v3064 = vadd.f32 0.0, %v3063
      %v3065 = vpop.f32.mrf.mxu0
      %3066 = vmatprep.mubr.f32.mxu0 0.0
      %3067 = vmatmul.mubr.f32.gmra.mxu0 %v2925
      %v3068 = vpop.f32.mrf.mxu0
      %v3069 = vadd.f32 0.0, %v3068
      %v3070 = vpop.f32.mrf.mxu0
      %3071 = vmatprep.mubr.f32.mxu0 0.0
      %3072 = vmatmul.mubr.f32.gmra.mxu0 %v2926
      %v3073 = vpop.f32.mrf.mxu0
      %v3074 = vadd.f32 0.0, %v3073
      %v3075 = vpop.f32.mrf.mxu0
      %3076 = vmatprep.mubr.f32.mxu0 0.0
      %3077 = vmatmul.mubr.f32.gmra.mxu0 %v2927
      %v3078 = vpop.f32.mrf.mxu0
      %v3079 = vadd.f32 0.0, %v3078
      %v3080 = vpop.f32.mrf.mxu0
      %3081 = vmatprep.mubr.f32.mxu0 0.0
      %3082 = vmatmul.mubr.f32.gmra.mxu0 %v2928
      %v3083 = vpop.f32.mrf.mxu0
      %v3084 = vadd.f32 0.0, %v3083
      %v3085 = vpop.f32.mrf.mxu0
      %3086 = vmatprep.mubr.f32.mxu0 0.0
      %3087 = vmatmul.mubr.f32.gmra.mxu0 %v2929
      %v3088 = vpop.f32.mrf.mxu0
      %v3089 = vadd.f32 0.0, %v3088
      %v3090 = vpop.f32.mrf.mxu0
      %3091 = vmatprep.mubr.f32.mxu0 0.0
      %3092 = vmatmul.mubr.f32.gmra.mxu0 %v2930
      %v3093 = vpop.f32.mrf.mxu0
      %v3094 = vadd.f32 0.0, %v3093
      %v3095 = vpop.f32.mrf.mxu0
      %3096 = vmatprep.mubr.f32.mxu0 0.0
      %3097 = vmatmul.mubr.f32.gmra.mxu0 %v2931
      %v3098 = vpop.f32.mrf.mxu0
      %v3099 = vadd.f32 0.0, %v3098
      %v3100 = vpop.f32.mrf.mxu0
      %3101 = vmatprep.mubr.f32.mxu0 0.0
      %3102 = vmatmul.mubr.f32.gmra.mxu0 %v2932
      %v3103 = vpop.f32.mrf.mxu0
      %v3104 = vadd.f32 0.0, %v3103
      %v3105 = vpop.f32.mrf.mxu0
      %3106 = vmatprep.mubr.f32.mxu0 0.0
      %3107 = vmatmul.mubr.f32.gmra.mxu0 %v2933
      %v3108 = vpop.f32.mrf.mxu0
      %v3109 = vadd.f32 0.0, %v3108
      %v3110 = vpop.f32.mrf.mxu0
      %3111 = vmatprep.mubr.f32.mxu0 0.0
      %3112 = vmatmul.mubr.f32.gmra.mxu0 %v2934
      %v3113 = vpop.f32.mrf.mxu0
      %v3114 = vadd.f32 0.0, %v3113
      %v3115 = vpop.f32.mrf.mxu0
      %3116 = vmatprep.mubr.f32.mxu0 0.0
      %3117 = vmatmul.mubr.f32.gmra.mxu0 %v2935
      %v3118 = vpop.f32.mrf.mxu0
      %v3119 = vadd.f32 0.0, %v3118
      %v3120 = vpop.f32.mrf.mxu0
      %3121 = vmatprep.mubr.f32.mxu0 0.0
      %3122 = vmatmul.mubr.f32.gmra.mxu0 %v2936
      %v3123 = vpop.f32.mrf.mxu0
      %v3124 = vadd.f32 0.0, %v3123
      %v3125 = vpop.f32.mrf.mxu0
      %3126 = vmatprep.mubr.f32.mxu0 0.0
      %3127 = vmatmul.mubr.f32.gmra.mxu0 %v2937
      %v3128 = vpop.f32.mrf.mxu0
      %v3129 = vadd.f32 0.0, %v3128
      %v3130 = vpop.f32.mrf.mxu0
      %3131 = vmatprep.mubr.f32.mxu0 0.0
      %3132 = vmatmul.mubr.f32.gmra.mxu0 %v2938
      %v3133 = vpop.f32.mrf.mxu0
      %v3134 = vadd.f32 0.0, %v3133
      %v3135 = vpop.f32.mrf.mxu0
      %3136 = vmatprep.mubr.f32.mxu0 0.0
      %3137 = vmatmul.mubr.f32.gmra.mxu0 %v2939
      %v3138 = vpop.f32.mrf.mxu0
      %v3139 = vadd.f32 0.0, %v3138
      %v3140 = vpop.f32.mrf.mxu0
      %3141 = vmatprep.mubr.f32.mxu0 0.0
      %3142 = vmatmul.mubr.f32.gmra.mxu0 %v2940
      %v3143 = vpop.f32.mrf.mxu0
      %v3144 = vadd.f32 0.0, %v3143
      %v3145 = vpop.f32.mrf.mxu0
      %3146 = vmatprep.mubr.f32.mxu0 0.0
      %3147 = vmatmul.mubr.f32.gmra.mxu0 %v2941
      %v3148 = vpop.f32.mrf.mxu0
      %v3149 = vadd.f32 0.0, %v3148
      %v3150 = vpop.f32.mrf.mxu0
      %3151 = vmatprep.mubr.f32.mxu0 0.0
      %3152 = vmatmul.mubr.f32.gmra.mxu0 %v2942
      %v3153 = vpop.f32.mrf.mxu0
      %v3154 = vadd.f32 0.0, %v3153
      %v3155 = vpop.f32.mrf.mxu0
      %3156 = vmatprep.mubr.f32.mxu0 0.0
      %3157 = vmatmul.mubr.f32.gmra.mxu0 %v2943
      %v3158 = vpop.f32.mrf.mxu0
      %v3159 = vadd.f32 0.0, %v3158
      %v3160 = vpop.f32.mrf.mxu0
      %3161 = vmatprep.mubr.f32.mxu0 0.0
      %3162 = vmatmul.mubr.f32.gmra.mxu0 %v2944
      %v3163 = vpop.f32.mrf.mxu0
      %v3164 = vadd.f32 0.0, %v3163
      %v3165 = vpop.f32.mrf.mxu0
      %3166 = vmatprep.mubr.f32.mxu0 0.0
      %3167 = vmatmul.mubr.f32.gmra.mxu0 %v2945
      %v3168 = vpop.f32.mrf.mxu0
      %v3169 = vadd.f32 0.0, %v3168
      %v3170 = vpop.f32.mrf.mxu0
      %3171 = vmatprep.mubr.f32.mxu0 0.0
      %3172 = vmatmul.mubr.f32.gmra.mxu0 %v2946
      %v3173 = vpop.f32.mrf.mxu0
      %v3174 = vadd.f32 0.0, %v3173
      %v3175 = vpop.f32.mrf.mxu0
      %3176 = vmatprep.mubr.f32.mxu0 0.0
      %3177 = vmatmul.mubr.f32.gmra.mxu0 %v2947
      %v3178 = vpop.f32.mrf.mxu0
      %v3179 = vadd.f32 0.0, %v3178
      %v3180 = vpop.f32.mrf.mxu0
      %3181 = vmatprep.mubr.f32.mxu0 0.0
      %3182 = vmatmul.mubr.f32.gmra.mxu0 %v2948
      %v3183 = vpop.f32.mrf.mxu0
      %v3184 = vadd.f32 0.0, %v3183
      %v3185 = vpop.f32.mrf.mxu0
      %3186 = vmatprep.mubr.f32.mxu0 0.0
      %3187 = vmatmul.mubr.f32.gmra.mxu0 %v2949
      %v3188 = vpop.f32.mrf.mxu0
      %v3189 = vadd.f32 0.0, %v3188
      %v3190 = vpop.f32.mrf.mxu0
      %3191 = vdwg.mxu0
      %v3192 = vadd.f32 %v2886, %v3034
      %v3193 = vadd.f32 %v2887, %v3039
      %v3194 = vadd.f32 %v2888, %v3044
      %v3195 = vadd.f32 %v2889, %v3049
      %v3196 = vadd.f32 %v2890, %v3054
      %v3197 = vadd.f32 %v2891, %v3059
      %v3198 = vadd.f32 %v2892, %v3064
      %v3199 = vadd.f32 %v2893, %v3069
      %v3200 = vadd.f32 %v2894, %v3074
      %v3201 = vadd.f32 %v2895, %v3079
      %v3202 = vadd.f32 %v2896, %v3084
      %v3203 = vadd.f32 %v2897, %v3089
      %v3204 = vadd.f32 %v2898, %v3094
      %v3205 = vadd.f32 %v2899, %v3099
      %v3206 = vadd.f32 %v2900, %v3104
      %v3207 = vadd.f32 %v2901, %v3109
      %v3208 = vadd.f32 %v2902, %v3114
      %v3209 = vadd.f32 %v2903, %v3119
      %v3210 = vadd.f32 %v2904, %v3124
      %v3211 = vadd.f32 %v2905, %v3129
      %v3212 = vadd.f32 %v2906, %v3134
      %v3213 = vadd.f32 %v2907, %v3139
      %v3214 = vadd.f32 %v2908, %v3144
      %v3215 = vadd.f32 %v2909, %v3149
      %v3216 = vadd.f32 %v2910, %v3154
      %v3217 = vadd.f32 %v2911, %v3159
      %v3218 = vadd.f32 %v2912, %v3164
      %v3219 = vadd.f32 %v2913, %v3169
      %v3220 = vadd.f32 %v2914, %v3174
      %v3221 = vadd.f32 %v2915, %v3179
      %v3222 = vadd.f32 %v2916, %v3184
      %v3223 = vadd.f32 %v2917, %v3189
      %3224 = vst [vmem:[%s204] sm:$0xff] %v3192
      %3225 = vst [vmem:[%s204 + $0x8] sm:$0xff] %v3193
      %3226 = vst [vmem:[%s204 + $0x10] sm:$0xff] %v3194
      %3227 = vst [vmem:[%s204 + $0x18] sm:$0xff] %v3195
      %3228 = vst [vmem:[%s204 + $0x20] sm:$0xff] %v3196
      %3229 = vst [vmem:[%s204 + $0x28] sm:$0xff] %v3197
      %3230 = vst [vmem:[%s204 + $0x30] sm:$0xff] %v3198
      %3231 = vst [vmem:[%s204 + $0x38] sm:$0xff] %v3199
      %3232 = vst [vmem:[%s204 + $0x40] sm:$0xff] %v3200
      %3233 = vst [vmem:[%s204 + $0x48] sm:$0xff] %v3201
      %3234 = vst [vmem:[%s204 + $0x50] sm:$0xff] %v3202
      %3235 = vst [vmem:[%s204 + $0x58] sm:$0xff] %v3203
      %3236 = vst [vmem:[%s204 + $0x60] sm:$0xff] %v3204
      %3237 = vst [vmem:[%s204 + $0x68] sm:$0xff] %v3205
      %3238 = vst [vmem:[%s204 + $0x70] sm:$0xff] %v3206
      %3239 = vst [vmem:[%s204 + $0x78] sm:$0xff] %v3207
      %3240 = vst [vmem:[%s204 + $0x80] sm:$0xff] %v3208
      %3241 = vst [vmem:[%s204 + $0x88] sm:$0xff] %v3209
      %3242 = vst [vmem:[%s204 + $0x90] sm:$0xff] %v3210
      %3243 = vst [vmem:[%s204 + $0x98] sm:$0xff] %v3211
      %3244 = vst [vmem:[%s204 + $0xa0] sm:$0xff] %v3212
      %3245 = vst [vmem:[%s204 + $0xa8] sm:$0xff] %v3213
      %3246 = vst [vmem:[%s204 + $0xb0] sm:$0xff] %v3214
      %3247 = vst [vmem:[%s204 + $0xb8] sm:$0xff] %v3215
      %3248 = vst [vmem:[%s204 + $0xc0] sm:$0xff] %v3216
      %3249 = vst [vmem:[%s204 + $0xc8] sm:$0xff] %v3217
      %3250 = vst [vmem:[%s204 + $0xd0] sm:$0xff] %v3218
      %3251 = vst [vmem:[%s204 + $0xd8] sm:$0xff] %v3219
      %3252 = vst [vmem:[%s204 + $0xe0] sm:$0xff] %v3220
      %3253 = vst [vmem:[%s204 + $0xe8] sm:$0xff] %v3221
      %3254 = vst [vmem:[%s204 + $0xf0] sm:$0xff] %v3222
      %3255 = vst [vmem:[%s204 + $0xf8] sm:$0xff] %v3223
      %v3256 = vadd.f32 %v3192, %v3193
      %v3257 = vadd.f32 %v3256, %v3194
      %v3258 = vadd.f32 %v3257, %v3195
      %v3259 = vadd.f32 %v3258, %v3196
      %v3260 = vadd.f32 %v3259, %v3197
      %v3261 = vadd.f32 %v3260, %v3198
      %v3262 = vadd.f32 %v3261, %v3199
      %v3263 = vadd.f32 %v3262, %v3200
      %v3264 = vadd.f32 %v3263, %v3201
      %v3265 = vadd.f32 %v3264, %v3202
      %v3266 = vadd.f32 %v3265, %v3203
      %v3267 = vadd.f32 %v3266, %v3204
      %v3268 = vadd.f32 %v3267, %v3205
      %v3269 = vadd.f32 %v3268, %v3206
      %v3270 = vadd.f32 %v3269, %v3207
      %v3271 = vadd.f32 %v3270, %v3208
      %v3272 = vadd.f32 %v3271, %v3209
      %v3273 = vadd.f32 %v3272, %v3210
      %v3274 = vadd.f32 %v3273, %v3211
      %v3275 = vadd.f32 %v3274, %v3212
      %v3276 = vadd.f32 %v3275, %v3213
      %v3277 = vadd.f32 %v3276, %v3214
      %v3278 = vadd.f32 %v3277, %v3215
      %v3279 = vadd.f32 %v3278, %v3216
      %v3280 = vadd.f32 %v3279, %v3217
      %v3281 = vadd.f32 %v3280, %v3218
      %v3282 = vadd.f32 %v3281, %v3219
      %v3283 = vadd.f32 %v3282, %v3220
      %v3284 = vadd.f32 %v3283, %v3221
      %v3285 = vadd.f32 %v3284, %v3222
      %v3286 = vadd.f32 %v3285, %v3223
      %v3287 = vrot.slane %v3286, 4
      %v3288 = vadd.f32 %v3286, %v3287
      %v3289 = vrot.slane %v3288, 2
      %v3290 = vadd.f32 %v3288, %v3289
      %v3291 = vrot.slane %v3290, 1
      %v3292 = vadd.f32 %v3290, %v3291
      %v3293 = vmul.f32 %v3292, 0.00390625
      %v3294 = vsub.f32 %v3192, %v3293
      %v3295 = vsub.f32 %v3193, %v3293
      %v3296 = vsub.f32 %v3194, %v3293
      %v3297 = vsub.f32 %v3195, %v3293
      %v3298 = vsub.f32 %v3196, %v3293
      %v3299 = vsub.f32 %v3197, %v3293
      %v3300 = vsub.f32 %v3198, %v3293
      %v3301 = vsub.f32 %v3199, %v3293
      %v3302 = vsub.f32 %v3200, %v3293
      %v3303 = vsub.f32 %v3201, %v3293
      %v3304 = vsub.f32 %v3202, %v3293
      %v3305 = vsub.f32 %v3203, %v3293
      %v3306 = vsub.f32 %v3204, %v3293
      %v3307 = vsub.f32 %v3205, %v3293
      %v3308 = vsub.f32 %v3206, %v3293
      %v3309 = vsub.f32 %v3207, %v3293
      %v3310 = vsub.f32 %v3208, %v3293
      %v3311 = vsub.f32 %v3209, %v3293
      %v3312 = vsub.f32 %v3210, %v3293
      %v3313 = vsub.f32 %v3211, %v3293
      %v3314 = vsub.f32 %v3212, %v3293
      %v3315 = vsub.f32 %v3213, %v3293
      %v3316 = vsub.f32 %v3214, %v3293
      %v3317 = vsub.f32 %v3215, %v3293
      %v3318 = vsub.f32 %v3216, %v3293
      %v3319 = vsub.f32 %v3217, %v3293
      %v3320 = vsub.f32 %v3218, %v3293
      %v3321 = vsub.f32 %v3219, %v3293
      %v3322 = vsub.f32 %v3220, %v3293
      %v3323 = vsub.f32 %v3221, %v3293
      %v3324 = vsub.f32 %v3222, %v3293
      %v3325 = vsub.f32 %v3223, %v3293
      %v3326 = vmul.f32 %v3294, %v3294
      %v3327 = vmul.f32 %v3295, %v3295
      %v3328 = vmul.f32 %v3296, %v3296
      %v3329 = vmul.f32 %v3297, %v3297
      %v3330 = vmul.f32 %v3298, %v3298
      %v3331 = vmul.f32 %v3299, %v3299
      %v3332 = vmul.f32 %v3300, %v3300
      %v3333 = vmul.f32 %v3301, %v3301
      %v3334 = vmul.f32 %v3302, %v3302
      %v3335 = vmul.f32 %v3303, %v3303
      %v3336 = vmul.f32 %v3304, %v3304
      %v3337 = vmul.f32 %v3305, %v3305
      %v3338 = vmul.f32 %v3306, %v3306
      %v3339 = vmul.f32 %v3307, %v3307
      %v3340 = vmul.f32 %v3308, %v3308
      %v3341 = vmul.f32 %v3309, %v3309
      %v3342 = vmul.f32 %v3310, %v3310
      %v3343 = vmul.f32 %v3311, %v3311
      %v3344 = vmul.f32 %v3312, %v3312
      %v3345 = vmul.f32 %v3313, %v3313
      %v3346 = vmul.f32 %v3314, %v3314
      %v3347 = vmul.f32 %v3315, %v3315
      %v3348 = vmul.f32 %v3316, %v3316
      %v3349 = vmul.f32 %v3317, %v3317
      %v3350 = vmul.f32 %v3318, %v3318
      %v3351 = vmul.f32 %v3319, %v3319
      %v3352 = vmul.f32 %v3320, %v3320
      %v3353 = vmul.f32 %v3321, %v3321
      %v3354 = vmul.f32 %v3322, %v3322
      %v3355 = vmul.f32 %v3323, %v3323
      %v3356 = vmul.f32 %v3324, %v3324
      %v3357 = vmul.f32 %v3325, %v3325
      %v3358 = vadd.f32 %v3326, %v3327
      %v3359 = vadd.f32 %v3358, %v3328
      %v3360 = vadd.f32 %v3359, %v3329
      %v3361 = vadd.f32 %v3360, %v3330
      %v3362 = vadd.f32 %v3361, %v3331
      %v3363 = vadd.f32 %v3362, %v3332
      %v3364 = vadd.f32 %v3363, %v3333
      %v3365 = vadd.f32 %v3364, %v3334
      %v3366 = vadd.f32 %v3365, %v3335
      %v3367 = vadd.f32 %v3366, %v3336
      %v3368 = vadd.f32 %v3367, %v3337
      %v3369 = vadd.f32 %v3368, %v3338
      %v3370 = vadd.f32 %v3369, %v3339
      %v3371 = vadd.f32 %v3370, %v3340
      %v3372 = vadd.f32 %v3371, %v3341
      %v3373 = vadd.f32 %v3372, %v3342
      %v3374 = vadd.f32 %v3373, %v3343
      %v3375 = vadd.f32 %v3374, %v3344
      %v3376 = vadd.f32 %v3375, %v3345
      %v3377 = vadd.f32 %v3376, %v3346
      %v3378 = vadd.f32 %v3377, %v3347
      %v3379 = vadd.f32 %v3378, %v3348
      %v3380 = vadd.f32 %v3379, %v3349
      %v3381 = vadd.f32 %v3380, %v3350
      %v3382 = vadd.f32 %v3381, %v3351
      %v3383 = vadd.f32 %v3382, %v3352
      %v3384 = vadd.f32 %v3383, %v3353
      %v3385 = vadd.f32 %v3384, %v3354
      %v3386 = vadd.f32 %v3385, %v3355
      %v3387 = vadd.f32 %v3386, %v3356
      %v3388 = vadd.f32 %v3387, %v3357
      %v3389 = vrot.slane %v3388, 4
      %v3390 = vadd.f32 %v3388, %v3389
      %v3391 = vrot.slane %v3390, 2
      %v3392 = vadd.f32 %v3390, %v3391
      %v3393 = vrot.slane %v3392, 1
      %v3394 = vadd.f32 %v3392, %v3393
      %v3395 = vsel %vm432, %v3292, %v3394
      %vm3396 = vcmask 1041408
      %v3397 = vsel %vm3396, %v3395, 0.0
      %3398 = vst [vmem:[%s208] sm:$0xff] %v3397
      %p3399 = scmp.lt.s32.totalorder %s16, 1
      %s3400 = scalar_select %p3399, %s16, 1
      %s3401 = smul.addr %s3400, 32
      %s3402 = smul.addr %s3401, 8
      %s3403 = scalar_lea.vmem %s3, %s3402
      %p3404 = scmp.lt.s32.totalorder %s16, 1
      %s3405 = scalar_select %p3404, %s16, 1
      %s3406 = smul.addr %s3405, 8
      %s3407 = scalar_lea.vmem %s4, %s3406
      // Predicated region
      $region33: #{basic_block_forward.3} parent=31 // pred_check
        %p3408 = pneg %p102
      $region34: #{basic_block_forward.3} parent=31 // pred_check_branch
        %3410 = sbr.rel (%p3408) target = $region36
      $region35: #{basic_block_forward.3} parent=31 // pred_region
        _
      $region36: #{basic_block_forward.3} parent=31 // pred_fallthru
        _
      // Predicated region
      $region37: #{basic_block_forward.3} parent=31 // pred_check
        %p3411 = pneg %p128
      $region38: #{basic_block_forward.3} parent=31 // pred_check_branch
        %3413 = sbr.rel (%p3411) target = $region40
      $region39: #{basic_block_forward.3} parent=31 // pred_region
        _
      $region40: #{basic_block_forward.3} parent=31 // pred_fallthru
        _
    $region32: #{basic_block_forward.3} parent=5 // pred_fallthru
      _
    %p3414 = scmp.le.s32.totalorder 2, %s11
    // Predicated region
    $region41: #{basic_block_forward.3} parent=5 // pred_check
      %p3415 = pneg %p3414
    $region42: #{basic_block_forward.3} parent=5 // pred_check_branch
      %3417 = sbr.rel (%p3415) target = $region44
    $region43: #{basic_block_forward.3} parent=5 // pred_region
      %s3418 = ssub.s32 %s11, 2
      // Predicated region
      $region45: #{basic_block_forward.3} parent=43 // pred_check
        %p3419 = pneg %p108
      $region46: #{basic_block_forward.3} parent=43 // pred_check_branch
        %3421 = sbr.rel (%p3419) target = $region48
      $region47: #{basic_block_forward.3} parent=43 // pred_region
        %p3422 = scmp.lt.s32.totalorder %s17, 1
        %s3423 = scalar_select %p3422, %s17, 1
        %s3424 = smul.addr %s3423, 32
        %s3425 = smul.addr %s3424, 8
        %s3426 = scalar_lea.vmem %s3, %s3425
      $region48: #{basic_block_forward.3} parent=43 // pred_fallthru
        _
      // Predicated region
      $region49: #{basic_block_forward.3} parent=43 // pred_check
        %p3427 = pneg %p134
      $region50: #{basic_block_forward.3} parent=43 // pred_check_branch
        %3429 = sbr.rel (%p3427) target = $region52
      $region51: #{basic_block_forward.3} parent=43 // pred_region
        %p3430 = scmp.lt.s32.totalorder %s17, 1
        %s3431 = scalar_select %p3430, %s17, 1
        %s3432 = smul.addr %s3431, 8
        %s3433 = scalar_lea.vmem %s4, %s3432
      $region52: #{basic_block_forward.3} parent=43 // pred_fallthru
        _
    $region44: #{basic_block_forward.3} parent=5 // pred_fallthru
      _
  $region6: #{basic_block_forward.3} parent=0 // loop_footer
    %s15 = sadd.s32 1, %s11
  $region7: #{basic_block_forward.3} parent=0 // loop_footer_branch
    %10 = sbr.rel target = $region3
  $region8: #{basic_block_forward.3} parent=0 // loop_exit
    _

// kernel: basic_block_forward.4
$region0: #{basic_block_forward.4}
  #allocation0 [shape = 'u32[]', space=smem, size = 0x4, offset = 0x4, fixed_abs, tag = 'smem constant byte address 0x4 - core index']
  #allocation1 [shape = 'u32[144,128]{1,0:T(1,128)}', space=vmem, size = 0x12000, scoped, tag = 'internal scratch']
  %s0 = inlined_call_operand.vmem [shape: f32[2,256,128], index: 0, kind: input, shape index: {}]
  %s1 = inlined_call_operand.vmem [shape: f32[256,128], index: 1, kind: input, shape index: {}]
  %s2 = inlined_call_operand.vmem [shape: f32[8,128], index: 2, kind: input, shape index: {}]
  %s3 = inlined_call_operand.vmem [shape: f32[9,128,128], index: 3, kind: input, shape index: {}]
  %s4 = inlined_call_operand.vmem [shape: f32[2,256,128], index: 4, kind: output, shape index: {0}]
  %s5 = inlined_call_operand.vmem [shape: f32[2,8,128], index: 5, kind: output, shape index: {1}]
  %6 = xla_tuple %s4, %s5
  %s7 = sld [smem:[#allocation0]]
  $region57: #{basic_block_forward.4} parent=0
    _
  %s9 = ssub.s32 1, %s7
  %s10 = scalar_select 0, %s9, %s7
  loop: start=0, step=1, limit=4
  $region2: #{basic_block_forward.4} parent=0 // loop_pre_header
    _
  $region3: #{basic_block_forward.4} parent=0 // loop_header
    %s12 = sphi 0, %s16
    %p13 = scmp.ge.s32.totalorder %s12, 4
    %s22 = sphi 0, %s24
    %s25 = sphi 0, %s22
    %s26 = sphi 0, %s25
    %s42 = sphi 0, %s26
    %s46 = sphi 0, %s46
    %s48 = sphi 0, %s46
    %s49 = sphi 0, %s48
    %s63 = sphi 0, %s49
    %s67 = sphi 0, %s67
    %s69 = sphi 0, %s67
    %s70 = sphi 0, %s69
    %s84 = sphi 0, %s70
    %s88 = sphi 0, %s88
    %s90 = sphi 0, %s88
    %s91 = sphi 0, %s90
    %s105 = sphi 0, %s91
    %s111 = sphi 0, %s113
    %s114 = sphi 0, %s111
    %s115 = sphi 0, %s114
    %s131 = sphi 0, %s115
    %s137 = sphi 0, %s139
    %s140 = sphi 0, %s137
    %s141 = sphi 0, %s140
    %s157 = sphi 0, %s141
  $region4: #{basic_block_forward.4} parent=0 // loop_header_branch
    %15 = sbr.rel (%p13) target = $region8
  $region5: #{basic_block_forward.4} parent=0 // loop_body
    %s17 = ssub.s32 %s12, 1
    %s18 = ssub.s32 %s12, 2
    %s19 = sadd.s32 %s12, 1
    %s20 = ssub.s32 %s12, %s19
    %p21 = scmp.eq.s32.totalorder %s20, 0
    %s23 = sadd.s32 %s22, 1
    %s24 = scalar_select %p21, %s22, %s23
    %p27 = pneg %p21
    %p28 = scmp.eq.s32.totalorder %s12, 1
    %p29 = por %p27, %p28
    %p30 = scmp.ne.s32.totalorder %s22, %s25
    %p31 = scmp.eq.s32.totalorder %s12, 0
    %p32 = por %p30, %p31
    %p33 = scmp.ne.s32.totalorder %s22, %s25
    %p34 = scmp.eq.s32.totalorder %s17, 1
    %p35 = por %p33, %p34
    %p36 = scmp.ne.s32.totalorder %s25, %s26
    %p37 = scmp.eq.s32.totalorder %s17, 0
    %p38 = por %p36, %p37
    %p39 = scmp.ne.s32.totalorder %s25, %s26
    %p40 = scmp.eq.s32.totalorder %s18, 1
    %p41 = por %p39, %p40
    %p43 = scmp.ne.s32.totalorder %s26, %s42
    %p44 = scmp.eq.s32.totalorder %s18, 0
    %p45 = por %p43, %p44
    %s47 = sadd.s32 %s46, 1
    %p50 = scmp.eq.s32.totalorder %s12, 1
    %p51 = scmp.ne.s32.totalorder %s46, %s48
    %p52 = scmp.eq.s32.totalorder %s12, 0
    %p53 = por %p51, %p52
    %p54 = scmp.ne.s32.totalorder %s46, %s48
    %p55 = scmp.eq.s32.totalorder %s17, 1
    %p56 = por %p54, %p55
    %p57 = scmp.ne.s32.totalorder %s48, %s49
    %p58 = scmp.eq.s32.totalorder %s17, 0
    %p59 = por %p57, %p58
    %p60 = scmp.ne.s32.totalorder %s48, %s49
    %p61 = scmp.eq.s32.totalorder %s18, 1
    %p62 = por %p60, %p61
    %p64 = scmp.ne.s32.totalorder %s49, %s63
    %p65 = scmp.eq.s32.totalorder %s18, 0
    %p66 = por %p64, %p65
    %s68 = sadd.s32 %s67, 1
    %p71 = scmp.eq.s32.totalorder %s12, 1
    %p72 = scmp.ne.s32.totalorder %s67, %s69
    %p73 = scmp.eq.s32.totalorder %s12, 0
    %p74 = por %p72, %p73
    %p75 = scmp.ne.s32.totalorder %s67, %s69
    %p76 = scmp.eq.s32.totalorder %s17, 1
    %p77 = por %p75, %p76
    %p78 = scmp.ne.s32.totalorder %s69, %s70
    %p79 = scmp.eq.s32.totalorder %s17, 0
    %p80 = por %p78, %p79
    %p81 = scmp.ne.s32.totalorder %s69, %s70
    %p82 = scmp.eq.s32.totalorder %s18, 1
    %p83 = por %p81, %p82
    %p85 = scmp.ne.s32.totalorder %s70, %s84
    %p86 = scmp.eq.s32.totalorder %s18, 0
    %p87 = por %p85, %p86
    %s89 = sadd.s32 %s88, 1
    %p92 = scmp.eq.s32.totalorder %s12, 1
    %p93 = scmp.ne.s32.totalorder %s88, %s90
    %p94 = scmp.eq.s32.totalorder %s12, 0
    %p95 = por %p93, %p94
    %p96 = scmp.ne.s32.totalorder %s88, %s90
    %p97 = scmp.eq.s32.totalorder %s17, 1
    %p98 = por %p96, %p97
    %p99 = scmp.ne.s32.totalorder %s90, %s91
    %p100 = scmp.eq.s32.totalorder %s17, 0
    %p101 = por %p99, %p100
    %p102 = scmp.ne.s32.totalorder %s90, %s91
    %p103 = scmp.eq.s32.totalorder %s18, 1
    %p104 = por %p102, %p103
    %p106 = scmp.ne.s32.totalorder %s91, %s105
    %p107 = scmp.eq.s32.totalorder %s18, 0
    %p108 = por %p106, %p107
    %s109 = ssub.s32 %s12, %s19
    %p110 = scmp.eq.s32.totalorder %s109, 0
    %s112 = sadd.s32 %s111, 1
    %s113 = scalar_select %p110, %s111, %s112
    %p116 = pneg %p110
    %p117 = scmp.eq.s32.totalorder %s12, 1
    %p118 = por %p116, %p117
    %p119 = scmp.ne.s32.totalorder %s111, %s114
    %p120 = scmp.eq.s32.totalorder %s12, 0
    %p121 = por %p119, %p120
    %p122 = scmp.ne.s32.totalorder %s111, %s114
    %p123 = scmp.eq.s32.totalorder %s17, 1
    %p124 = por %p122, %p123
    %p125 = scmp.ne.s32.totalorder %s114, %s115
    %p126 = scmp.eq.s32.totalorder %s17, 0
    %p127 = por %p125, %p126
    %p128 = scmp.ne.s32.totalorder %s114, %s115
    %p129 = scmp.eq.s32.totalorder %s18, 1
    %p130 = por %p128, %p129
    %p132 = scmp.ne.s32.totalorder %s115, %s131
    %p133 = scmp.eq.s32.totalorder %s18, 0
    %p134 = por %p132, %p133
    %s135 = ssub.s32 %s12, %s19
    %p136 = scmp.eq.s32.totalorder %s135, 0
    %s138 = sadd.s32 %s137, 1
    %s139 = scalar_select %p136, %s137, %s138
    %p142 = pneg %p136
    %p143 = scmp.eq.s32.totalorder %s12, 1
    %p144 = por %p142, %p143
    %p145 = scmp.ne.s32.totalorder %s137, %s140
    %p146 = scmp.eq.s32.totalorder %s12, 0
    %p147 = por %p145, %p146
    %p148 = scmp.ne.s32.totalorder %s137, %s140
    %p149 = scmp.eq.s32.totalorder %s17, 1
    %p150 = por %p148, %p149
    %p151 = scmp.ne.s32.totalorder %s140, %s141
    %p152 = scmp.eq.s32.totalorder %s17, 0
    %p153 = por %p151, %p152
    %p154 = scmp.ne.s32.totalorder %s140, %s141
    %p155 = scmp.eq.s32.totalorder %s18, 1
    %p156 = por %p154, %p155
    %p158 = scmp.ne.s32.totalorder %s141, %s157
    %p159 = scmp.eq.s32.totalorder %s18, 0
    %p160 = por %p158, %p159
    %p161 = scmp.le.s32.totalorder 1, %s12
    %p162 = scmp.lt.s32.totalorder %s12, 3
    %p163 = pnand %p161, %p162
    %p164 = pneg %p163
    // Predicated region
    $region9: #{basic_block_forward.4} parent=5 // pred_check
      _
    $region10: #{basic_block_forward.4} parent=5 // pred_check_branch
      %166 = sbr.rel (%p163) target = $region12
    $region11: #{basic_block_forward.4} parent=5 // pred_region
      %s167 = ssub.s32 %s12, 1
      // Predicated region
      $region13: #{basic_block_forward.4} parent=11 // pred_check
        %p168 = pneg %p59
      $region14: #{basic_block_forward.4} parent=11 // pred_check_branch
        %170 = sbr.rel (%p168) target = $region16
      $region15: #{basic_block_forward.4} parent=11 // pred_region
        _
      $region16: #{basic_block_forward.4} parent=11 // pred_fallthru
        _
      // Predicated region
      $region17: #{basic_block_forward.4} parent=11 // pred_check
        %p171 = pneg %p80
      $region18: #{basic_block_forward.4} parent=11 // pred_check_branch
        %173 = sbr.rel (%p171) target = $region20
      $region19: #{basic_block_forward.4} parent=11 // pred_region
        _
      $region20: #{basic_block_forward.4} parent=11 // pred_fallthru
        _
      // Predicated region
      $region21: #{basic_block_forward.4} parent=11 // pred_check
        %p174 = pneg %p101
      $region22: #{basic_block_forward.4} parent=11 // pred_check_branch
        %176 = sbr.rel (%p174) target = $region24
      $region23: #{basic_block_forward.4} parent=11 // pred_region
        _
      $region24: #{basic_block_forward.4} parent=11 // pred_fallthru
        _
    $region12: #{basic_block_forward.4} parent=5 // pred_fallthru
      _
    %p177 = scmp.lt.s32.totalorder %s12, 2
    // Predicated region
    $region25: #{basic_block_forward.4} parent=5 // pred_check
      %p178 = pneg %p177
    $region26: #{basic_block_forward.4} parent=5 // pred_check_branch
      %180 = sbr.rel (%p178) target = $region28
    $region27: #{basic_block_forward.4} parent=5 // pred_region
      // Predicated region
      $region29: #{basic_block_forward.4} parent=27 // pred_check
        %p181 = pneg %p32
      $region30: #{basic_block_forward.4} parent=27 // pred_check_branch
        %183 = sbr.rel (%p181) target = $region32
      $region31: #{basic_block_forward.4} parent=27 // pred_region
        %p184 = scmp.lt.s32.totalorder %s12, 1
        %s185 = scalar_select %p184, %s12, 1
        %s186 = smul.addr %s185, 32
        %s187 = smul.addr %s186, 8
        %s188 = scalar_lea.vmem %s0, %s187
      $region32: #{basic_block_forward.4} parent=27 // pred_fallthru
        _
    $region28: #{basic_block_forward.4} parent=5 // pred_fallthru
      _
    %p189 = scmp.le.s32.totalorder 1, %s12
    %p190 = scmp.lt.s32.totalorder %s12, 3
    %p191 = pnand %p189, %p190
    %p192 = pneg %p191
    // Predicated region
    $region33: #{basic_block_forward.4} parent=5 // pred_check
      _
    $region34: #{basic_block_forward.4} parent=5 // pred_check_branch
      %194 = sbr.rel (%p191) target = $region36
    $region35: #{basic_block_forward.4} parent=5 // pred_region
      %s195 = ssub.s32 %s12, 1
      %p196 = scmp.lt.s32.totalorder %s17, 1
      %s197 = scalar_select %p196, %s17, 1
      %s198 = smul.addr %s197, 32
      %s199 = smul.addr %s198, 8
      %s200 = scalar_lea.vmem %s0, %s199
      %p201 = pneg %p38
      %p202 = pneg %p35
      %p203 = pneg %p59
      %p204 = pneg %p56
      %p205 = pneg %p80
      %p206 = pneg %p77
      %p207 = pneg %p101
      %p208 = pneg %p98
      %p209 = pneg %p127
      %p210 = pneg %p124
      %p211 = scmp.lt.s32.totalorder %s17, 1
      %s212 = scalar_select %p211, %s17, 1
      %s213 = smul.addr %s212, 32
      %s214 = smul.addr %s213, 8
      %s215 = scalar_lea.vmem %s4, %s214
      %p216 = pneg %p153
      %p217 = pneg %p150
      %p218 = scmp.lt.s32.totalorder %s17, 1
      %s219 = scalar_select %p218, %s17, 1
      %s220 = smul.addr %s219, 8
      %s221 = scalar_lea.vmem %s5, %s220
      %p222 = scmp.lt.s32.totalorder %s17, 1
      %s223 = scalar_select %p222, %s17, 1
      %s224 = smul.addr %s223, 32
      %s225 = smul.addr %s224, 8
      %s226 = scalar_lea.vmem %s0, %s225
      %p227 = scmp.lt.s32.totalorder %s17, 1
      %s228 = scalar_select %p227, %s17, 1
      %s229 = smul.addr %s228, 32
      %s230 = smul.addr %s229, 8
      %s231 = scalar_lea.vmem %s4, %s230
      %p232 = scmp.lt.s32.totalorder %s17, 1
      %s233 = scalar_select %p232, %s17, 1
      %s234 = smul.addr %s233, 8
      %s235 = scalar_lea.vmem %s5, %s234
      %v236 = vld [vmem:[%s226] sm:$0xff]
      %v237 = vld [vmem:[%s226 + $0x8] sm:$0xff]
      %v238 = vld [vmem:[%s226 + $0x10] sm:$0xff]
      %v239 = vld [vmem:[%s226 + $0x18] sm:$0xff]
      %v240 = vld [vmem:[%s226 + $0x20] sm:$0xff]
      %v241 = vld [vmem:[%s226 + $0x28] sm:$0xff]
      %v242 = vld [vmem:[%s226 + $0x30] sm:$0xff]
      %v243 = vld [vmem:[%s226 + $0x38] sm:$0xff]
      %v244 = vld [vmem:[%s226 + $0x40] sm:$0xff]
      %v245 = vld [vmem:[%s226 + $0x48] sm:$0xff]
      %v246 = vld [vmem:[%s226 + $0x50] sm:$0xff]
      %v247 = vld [vmem:[%s226 + $0x58] sm:$0xff]
      %v248 = vld [vmem:[%s226 + $0x60] sm:$0xff]
      %v249 = vld [vmem:[%s226 + $0x68] sm:$0xff]
      %v250 = vld [vmem:[%s226 + $0x70] sm:$0xff]
      %v251 = vld [vmem:[%s226 + $0x78] sm:$0xff]
      %v252 = vld [vmem:[%s226 + $0x80] sm:$0xff]
      %v253 = vld [vmem:[%s226 + $0x88] sm:$0xff]
      %v254 = vld [vmem:[%s226 + $0x90] sm:$0xff]
      %v255 = vld [vmem:[%s226 + $0x98] sm:$0xff]
      %v256 = vld [vmem:[%s226 + $0xa0] sm:$0xff]
      %v257 = vld [vmem:[%s226 + $0xa8] sm:$0xff]
      %v258 = vld [vmem:[%s226 + $0xb0] sm:$0xff]
      %v259 = vld [vmem:[%s226 + $0xb8] sm:$0xff]
      %v260 = vld [vmem:[%s226 + $0xc0] sm:$0xff]
      %v261 = vld [vmem:[%s226 + $0xc8] sm:$0xff]
      %v262 = vld [vmem:[%s226 + $0xd0] sm:$0xff]
      %v263 = vld [vmem:[%s226 + $0xd8] sm:$0xff]
      %v264 = vld [vmem:[%s226 + $0xe0] sm:$0xff]
      %v265 = vld [vmem:[%s226 + $0xe8] sm:$0xff]
      %v266 = vld [vmem:[%s226 + $0xf0] sm:$0xff]
      %v267 = vld [vmem:[%s226 + $0xf8] sm:$0xff]
      %v268 = vld [vmem:[%s2] sm:$0x1]
      %v269 = vlaneseq
      %v270 = vshrl.u32 %v269, 7
      %v271 = vsub.s32 0, %v270
      %v272 = vrot.slane %v268, %v271
      %v273 = vmul.f32 %v236, %v272
      %v274 = vmul.f32 %v237, %v272
      %v275 = vmul.f32 %v238, %v272
      %v276 = vmul.f32 %v239, %v272
      %v277 = vmul.f32 %v240, %v272
      %v278 = vmul.f32 %v241, %v272
      %v279 = vmul.f32 %v242, %v272
      %v280 = vmul.f32 %v243, %v272
      %v281 = vmul.f32 %v244, %v272
      %v282 = vmul.f32 %v245, %v272
      %v283 = vmul.f32 %v246, %v272
      %v284 = vmul.f32 %v247, %v272
      %v285 = vmul.f32 %v248, %v272
      %v286 = vmul.f32 %v249, %v272
      %v287 = vmul.f32 %v250, %v272
      %v288 = vmul.f32 %v251, %v272
      %v289 = vmul.f32 %v252, %v272
      %v290 = vmul.f32 %v253, %v272
      %v291 = vmul.f32 %v254, %v272
      %v292 = vmul.f32 %v255, %v272
      %v293 = vmul.f32 %v256, %v272
      %v294 = vmul.f32 %v257, %v272
      %v295 = vmul.f32 %v258, %v272
      %v296 = vmul.f32 %v259, %v272
      %v297 = vmul.f32 %v260, %v272
      %v298 = vmul.f32 %v261, %v272
      %v299 = vmul.f32 %v262, %v272
      %v300 = vmul.f32 %v263, %v272
      %v301 = vmul.f32 %v264, %v272
      %v302 = vmul.f32 %v265, %v272
      %v303 = vmul.f32 %v266, %v272
      %v304 = vmul.f32 %v267, %v272
      %v305 = vld [vmem:[%s2 + $0x1] sm:$0x1]
      %v306 = vlaneseq
      %v307 = vshrl.u32 %v306, 7
      %v308 = vsub.s32 0, %v307
      %v309 = vrot.slane %v305, %v308
      %v310 = vadd.f32 %v273, %v309
      %v311 = vadd.f32 %v274, %v309
      %v312 = vadd.f32 %v275, %v309
      %v313 = vadd.f32 %v276, %v309
      %v314 = vadd.f32 %v277, %v309
      %v315 = vadd.f32 %v278, %v309
      %v316 = vadd.f32 %v279, %v309
      %v317 = vadd.f32 %v280, %v309
      %v318 = vadd.f32 %v281, %v309
      %v319 = vadd.f32 %v282, %v309
      %v320 = vadd.f32 %v283, %v309
      %v321 = vadd.f32 %v284, %v309
      %v322 = vadd.f32 %v285, %v309
      %v323 = vadd.f32 %v286, %v309
      %v324 = vadd.f32 %v287, %v309
      %v325 = vadd.f32 %v288, %v309
      %v326 = vadd.f32 %v289, %v309
      %v327 = vadd.f32 %v290, %v309
      %v328 = vadd.f32 %v291, %v309
      %v329 = vadd.f32 %v292, %v309
      %v330 = vadd.f32 %v293, %v309
      %v331 = vadd.f32 %v294, %v309
      %v332 = vadd.f32 %v295, %v309
      %v333 = vadd.f32 %v296, %v309
      %v334 = vadd.f32 %v297, %v309
      %v335 = vadd.f32 %v298, %v309
      %v336 = vadd.f32 %v299, %v309
      %v337 = vadd.f32 %v300, %v309
      %v338 = vadd.f32 %v301, %v309
      %v339 = vadd.f32 %v302, %v309
      %v340 = vadd.f32 %v303, %v309
      %v341 = vadd.f32 %v304, %v309
      %v342 = vmax.f32 %v310, 0.0
      %v343 = vmax.f32 %v311, 0.0
      %v344 = vmax.f32 %v312, 0.0
      %v345 = vmax.f32 %v313, 0.0
      %v346 = vmax.f32 %v314, 0.0
      %v347 = vmax.f32 %v315, 0.0
      %v348 = vmax.f32 %v316, 0.0
      %v349 = vmax.f32 %v317, 0.0
      %v350 = vmax.f32 %v318, 0.0
      %v351 = vmax.f32 %v319, 0.0
      %v352 = vmax.f32 %v320, 0.0
      %v353 = vmax.f32 %v321, 0.0
      %v354 = vmax.f32 %v322, 0.0
      %v355 = vmax.f32 %v323, 0.0
      %v356 = vmax.f32 %v324, 0.0
      %v357 = vmax.f32 %v325, 0.0
      %v358 = vmax.f32 %v326, 0.0
      %v359 = vmax.f32 %v327, 0.0
      %v360 = vmax.f32 %v328, 0.0
      %v361 = vmax.f32 %v329, 0.0
      %v362 = vmax.f32 %v330, 0.0
      %v363 = vmax.f32 %v331, 0.0
      %v364 = vmax.f32 %v332, 0.0
      %v365 = vmax.f32 %v333, 0.0
      %v366 = vmax.f32 %v334, 0.0
      %v367 = vmax.f32 %v335, 0.0
      %v368 = vmax.f32 %v336, 0.0
      %v369 = vmax.f32 %v337, 0.0
      %v370 = vmax.f32 %v338, 0.0
      %v371 = vmax.f32 %v339, 0.0
      %v372 = vmax.f32 %v340, 0.0
      %v373 = vmax.f32 %v341, 0.0
      %v374 = vld [vmem:[%s1] sm:$0xff]
      %v375 = vld [vmem:[%s1 + $0x8] sm:$0xff]
      %v376 = vld [vmem:[%s1 + $0x10] sm:$0xff]
      %v377 = vld [vmem:[%s1 + $0x18] sm:$0xff]
      %v378 = vld [vmem:[%s1 + $0x20] sm:$0xff]
      %v379 = vld [vmem:[%s1 + $0x28] sm:$0xff]
      %v380 = vld [vmem:[%s1 + $0x30] sm:$0xff]
      %v381 = vld [vmem:[%s1 + $0x38] sm:$0xff]
      %v382 = vld [vmem:[%s1 + $0x40] sm:$0xff]
      %v383 = vld [vmem:[%s1 + $0x48] sm:$0xff]
      %v384 = vld [vmem:[%s1 + $0x50] sm:$0xff]
      %v385 = vld [vmem:[%s1 + $0x58] sm:$0xff]
      %v386 = vld [vmem:[%s1 + $0x60] sm:$0xff]
      %v387 = vld [vmem:[%s1 + $0x68] sm:$0xff]
      %v388 = vld [vmem:[%s1 + $0x70] sm:$0xff]
      %v389 = vld [vmem:[%s1 + $0x78] sm:$0xff]
      %v390 = vld [vmem:[%s1 + $0x80] sm:$0xff]
      %v391 = vld [vmem:[%s1 + $0x88] sm:$0xff]
      %v392 = vld [vmem:[%s1 + $0x90] sm:$0xff]
      %v393 = vld [vmem:[%s1 + $0x98] sm:$0xff]
      %v394 = vld [vmem:[%s1 + $0xa0] sm:$0xff]
      %v395 = vld [vmem:[%s1 + $0xa8] sm:$0xff]
      %v396 = vld [vmem:[%s1 + $0xb0] sm:$0xff]
      %v397 = vld [vmem:[%s1 + $0xb8] sm:$0xff]
      %v398 = vld [vmem:[%s1 + $0xc0] sm:$0xff]
      %v399 = vld [vmem:[%s1 + $0xc8] sm:$0xff]
      %v400 = vld [vmem:[%s1 + $0xd0] sm:$0xff]
      %v401 = vld [vmem:[%s1 + $0xd8] sm:$0xff]
      %v402 = vld [vmem:[%s1 + $0xe0] sm:$0xff]
      %v403 = vld [vmem:[%s1 + $0xe8] sm:$0xff]
      %v404 = vld [vmem:[%s1 + $0xf0] sm:$0xff]
      %v405 = vld [vmem:[%s1 + $0xf8] sm:$0xff]
      %vm438 = vcmask 1046528
      %v439 = vrot.slane %v374, 1
      %v440 = vrot.slane %v375, 1
      %v441 = vsel %vm438, %v439, %v440
      %v442 = vrot.slane %v376, 1
      %v443 = vsel %vm438, %v440, %v442
      %v444 = vrot.slane %v377, 1
      %v445 = vsel %vm438, %v442, %v444
      %v446 = vrot.slane %v378, 1
      %v447 = vsel %vm438, %v444, %v446
      %v448 = vrot.slane %v379, 1
      %v449 = vsel %vm438, %v446, %v448
      %v450 = vrot.slane %v380, 1
      %v451 = vsel %vm438, %v448, %v450
      %v452 = vrot.slane %v381, 1
      %v453 = vsel %vm438, %v450, %v452
      %v454 = vrot.slane %v382, 1
      %v455 = vsel %vm438, %v452, %v454
      %v456 = vrot.slane %v383, 1
      %v457 = vsel %vm438, %v454, %v456
      %v458 = vrot.slane %v384, 1
      %v459 = vsel %vm438, %v456, %v458
      %v460 = vrot.slane %v385, 1
      %v461 = vsel %vm438, %v458, %v460
      %v462 = vrot.slane %v386, 1
      %v463 = vsel %vm438, %v460, %v462
      %v464 = vrot.slane %v387, 1
      %v465 = vsel %vm438, %v462, %v464
      %v466 = vrot.slane %v388, 1
      %v467 = vsel %vm438, %v464, %v466
      %v468 = vrot.slane %v389, 1
      %v469 = vsel %vm438, %v466, %v468
      %v470 = vrot.slane %v390, 1
      %v471 = vsel %vm438, %v468, %v470
      %v472 = vrot.slane %v391, 1
      %v473 = vsel %vm438, %v470, %v472
      %v474 = vrot.slane %v392, 1
      %v475 = vsel %vm438, %v472, %v474
      %v476 = vrot.slane %v393, 1
      %v477 = vsel %vm438, %v474, %v476
      %v478 = vrot.slane %v394, 1
      %v479 = vsel %vm438, %v476, %v478
      %v480 = vrot.slane %v395, 1
      %v481 = vsel %vm438, %v478, %v480
      %v482 = vrot.slane %v396, 1
      %v483 = vsel %vm438, %v480, %v482
      %v484 = vrot.slane %v397, 1
      %v485 = vsel %vm438, %v482, %v484
      %v486 = vrot.slane %v398, 1
      %v487 = vsel %vm438, %v484, %v486
      %v488 = vrot.slane %v399, 1
      %v489 = vsel %vm438, %v486, %v488
      %v490 = vrot.slane %v400, 1
      %v491 = vsel %vm438, %v488, %v490
      %v492 = vrot.slane %v401, 1
      %v493 = vsel %vm438, %v490, %v492
      %v494 = vrot.slane %v402, 1
      %v495 = vsel %vm438, %v492, %v494
      %v496 = vrot.slane %v403, 1
      %v497 = vsel %vm438, %v494, %v496
      %v498 = vrot.slane %v404, 1
      %v499 = vsel %vm438, %v496, %v498
      %v500 = vrot.slane %v405, 1
      %v501 = vsel %vm438, %v498, %v500
      %v534 = vsel %vm438, %v500, 0.0
      %vm565 = vcmask 1040384
      %v566 = vrot.slane %v342, 7
      %v567 = vrot.slane %v343, 7
      %v568 = vsel %vm565, %v566, %v567
      %v569 = vrot.slane %v344, 7
      %v570 = vsel %vm565, %v567, %v569
      %v571 = vrot.slane %v345, 7
      %v572 = vsel %vm565, %v569, %v571
      %v573 = vrot.slane %v346, 7
      %v574 = vsel %vm565, %v571, %v573
      %v575 = vrot.slane %v347, 7
      %v576 = vsel %vm565, %v573, %v575
      %v577 = vrot.slane %v348, 7
      %v578 = vsel %vm565, %v575, %v577
      %v579 = vrot.slane %v349, 7
      %v580 = vsel %vm565, %v577, %v579
      %v581 = vrot.slane %v350, 7
      %v582 = vsel %vm565, %v579, %v581
      %v583 = vrot.slane %v351, 7
      %v584 = vsel %vm565, %v581, %v583
      %v585 = vrot.slane %v352, 7
      %v586 = vsel %vm565, %v583, %v585
      %v587 = vrot.slane %v353, 7
      %v588 = vsel %vm565, %v585, %v587
      %v589 = vrot.slane %v354, 7
      %v590 = vsel %vm565, %v587, %v589
      %v591 = vrot.slane %v355, 7
      %v592 = vsel %vm565, %v589, %v591
      %v593 = vrot.slane %v356, 7
      %v594 = vsel %vm565, %v591, %v593
      %v595 = vrot.slane %v357, 7
      %v596 = vsel %vm565, %v593, %v595
      %v597 = vrot.slane %v358, 7
      %v598 = vsel %vm565, %v595, %v597
      %v599 = vrot.slane %v359, 7
      %v600 = vsel %vm565, %v597, %v599
      %v601 = vrot.slane %v360, 7
      %v602 = vsel %vm565, %v599, %v601
      %v603 = vrot.slane %v361, 7
      %v604 = vsel %vm565, %v601, %v603
      %v605 = vrot.slane %v362, 7
      %v606 = vsel %vm565, %v603, %v605
      %v607 = vrot.slane %v363, 7
      %v608 = vsel %vm565, %v605, %v607
      %v609 = vrot.slane %v364, 7
      %v610 = vsel %vm565, %v607, %v609
      %v611 = vrot.slane %v365, 7
      %v612 = vsel %vm565, %v609, %v611
      %v613 = vrot.slane %v366, 7
      %v614 = vsel %vm565, %v611, %v613
      %v615 = vrot.slane %v367, 7
      %v616 = vsel %vm565, %v613, %v615
      %v617 = vrot.slane %v368, 7
      %v618 = vsel %vm565, %v615, %v617
      %v619 = vrot.slane %v369, 7
      %v620 = vsel %vm565, %v617, %v619
      %v621 = vrot.slane %v370, 7
      %v622 = vsel %vm565, %v619, %v621
      %v623 = vrot.slane %v371, 7
      %v624 = vsel %vm565, %v621, %v623
      %v655 = vsel %vm565, 0.0, %v566
      %v656 = vmul.f32 %v374, 0.0
      %v657 = vmul.f32 %v375, 0.0
      %v658 = vmul.f32 %v655, %v376
      %v659 = vmul.f32 %v568, %v377
      %v660 = vmul.f32 %v570, %v378
      %v661 = vmul.f32 %v572, %v379
      %v662 = vmul.f32 %v574, %v380
      %v663 = vmul.f32 %v576, %v381
      %v664 = vmul.f32 %v578, %v382
      %v665 = vmul.f32 %v580, %v383
      %v666 = vmul.f32 %v582, %v384
      %v667 = vmul.f32 %v584, %v385
      %v668 = vmul.f32 %v586, %v386
      %v669 = vmul.f32 %v588, %v387
      %v670 = vmul.f32 %v590, %v388
      %v671 = vmul.f32 %v592, %v389
      %v672 = vmul.f32 %v594, %v390
      %v673 = vmul.f32 %v596, %v391
      %v674 = vmul.f32 %v598, %v392
      %v675 = vmul.f32 %v600, %v393
      %v676 = vmul.f32 %v602, %v394
      %v677 = vmul.f32 %v604, %v395
      %v678 = vmul.f32 %v606, %v396
      %v679 = vmul.f32 %v608, %v397
      %v680 = vmul.f32 %v610, %v398
      %v681 = vmul.f32 %v612, %v399
      %v682 = vmul.f32 %v614, %v400
      %v683 = vmul.f32 %v616, %v401
      %v684 = vmul.f32 %v618, %v402
      %v685 = vmul.f32 %v620, %v403
      %v686 = vmul.f32 %v622, %v404
      %v687 = vmul.f32 %v624, %v405
      %v688 = vld [vmem:[%s3] sm:$0xff]
      %v689 = vld [vmem:[%s3 + $0x8] sm:$0xff]
      %v690 = vld [vmem:[%s3 + $0x10] sm:$0xff]
      %v691 = vld [vmem:[%s3 + $0x18] sm:$0xff]
      %v692 = vld [vmem:[%s3 + $0x20] sm:$0xff]
      %v693 = vld [vmem:[%s3 + $0x28] sm:$0xff]
      %v694 = vld [vmem:[%s3 + $0x30] sm:$0xff]
      %v695 = vld [vmem:[%s3 + $0x38] sm:$0xff]
      %v696 = vld [vmem:[%s3 + $0x40] sm:$0xff]
      %v697 = vld [vmem:[%s3 + $0x48] sm:$0xff]
      %v698 = vld [vmem:[%s3 + $0x50] sm:$0xff]
      %v699 = vld [vmem:[%s3 + $0x58] sm:$0xff]
      %v700 = vld [vmem:[%s3 + $0x60] sm:$0xff]
      %v701 = vld [vmem:[%s3 + $0x68] sm:$0xff]
      %v702 = vld [vmem:[%s3 + $0x70] sm:$0xff]
      %v703 = vld [vmem:[%s3 + $0x78] sm:$0xff]
      %s704 = scalar_lea.vmem %s3, 128
      %v705 = vld [vmem:[%s704] sm:$0xff]
      %v706 = vld [vmem:[%s704 + $0x8] sm:$0xff]
      %v707 = vld [vmem:[%s704 + $0x10] sm:$0xff]
      %v708 = vld [vmem:[%s704 + $0x18] sm:$0xff]
      %v709 = vld [vmem:[%s704 + $0x20] sm:$0xff]
      %v710 = vld [vmem:[%s704 + $0x28] sm:$0xff]
      %v711 = vld [vmem:[%s704 + $0x30] sm:$0xff]
      %v712 = vld [vmem:[%s704 + $0x38] sm:$0xff]
      %v713 = vld [vmem:[%s704 + $0x40] sm:$0xff]
      %v714 = vld [vmem:[%s704 + $0x48] sm:$0xff]
      %v715 = vld [vmem:[%s704 + $0x50] sm:$0xff]
      %v716 = vld [vmem:[%s704 + $0x58] sm:$0xff]
      %v717 = vld [vmem:[%s704 + $0x60] sm:$0xff]
      %v718 = vld [vmem:[%s704 + $0x68] sm:$0xff]
      %v719 = vld [vmem:[%s704 + $0x70] sm:$0xff]
      %v720 = vld [vmem:[%s704 + $0x78] sm:$0xff]
      %721 = vmatprep.subr.mxu0 0.0
      %722 = vmatpush1.msra.mxu0 %v720
      %723 = vmatprep.subr.mxu0 0.0
      %724 = vmatpush1.msra.mxu0 %v719
      %725 = vmatprep.subr.mxu0 0.0
      %726 = vmatpush1.msra.mxu0 %v718
      %727 = vmatprep.subr.mxu0 0.0
      %728 = vmatpush1.msra.mxu0 %v717
      %729 = vmatprep.subr.mxu0 0.0
      %730 = vmatpush1.msra.mxu0 %v716
      %731 = vmatprep.subr.mxu0 0.0
      %732 = vmatpush1.msra.mxu0 %v715
      %733 = vmatprep.subr.mxu0 0.0
      %734 = vmatpush1.msra.mxu0 %v714
      %735 = vmatprep.subr.mxu0 0.0
      %736 = vmatpush1.msra.mxu0 %v713
      %737 = vmatprep.subr.mxu0 0.0
      %738 = vmatpush1.msra.mxu0 %v712
      %739 = vmatprep.subr.mxu0 0.0
      %740 = vmatpush1.msra.mxu0 %v711
      %741 = vmatprep.subr.mxu0 0.0
      %742 = vmatpush1.msra.mxu0 %v710
      %743 = vmatprep.subr.mxu0 0.0
      %744 = vmatpush1.msra.mxu0 %v709
      %745 = vmatprep.subr.mxu0 0.0
      %746 = vmatpush1.msra.mxu0 %v708
      %747 = vmatprep.subr.mxu0 0.0
      %748 = vmatpush1.msra.mxu0 %v707
      %749 = vmatprep.subr.mxu0 0.0
      %750 = vmatpush1.msra.mxu0 %v706
      %751 = vmatprep.subr.mxu0 0.0
      %752 = vmatpush1.msra.mxu0 %v705
      %753 = vmatprep.subr.mxu0 0.0
      %754 = vmatpush2.msra.mxu0 0.0
      %755 = vmatprep.subr.mxu0 0.0
      %756 = vmatpush2.msra.mxu0 0.0
      %757 = vmatprep.subr.mxu0 0.0
      %758 = vmatpush2.msra.mxu0 0.0
      %759 = vmatprep.subr.mxu0 0.0
      %760 = vmatpush2.msra.mxu0 0.0
      %761 = vmatprep.subr.mxu0 0.0
      %762 = vmatpush2.msra.mxu0 0.0
      %763 = vmatprep.subr.mxu0 0.0
      %764 = vmatpush2.msra.mxu0 0.0
      %765 = vmatprep.subr.mxu0 0.0
      %766 = vmatpush2.msra.mxu0 0.0
      %767 = vmatprep.subr.mxu0 0.0
      %768 = vmatpush2.msra.mxu0 0.0
      %769 = vmatprep.subr.mxu0 0.0
      %770 = vmatpush2.msra.mxu0 0.0
      %771 = vmatprep.subr.mxu0 0.0
      %772 = vmatpush2.msra.mxu0 0.0
      %773 = vmatprep.subr.mxu0 0.0
      %774 = vmatpush2.msra.mxu0 0.0
      %775 = vmatprep.subr.mxu0 0.0
      %776 = vmatpush2.msra.mxu0 0.0
      %777 = vmatprep.subr.mxu0 0.0
      %778 = vmatpush2.msra.mxu0 0.0
      %779 = vmatprep.subr.mxu0 0.0
      %780 = vmatpush2.msra.mxu0 0.0
      %781 = vmatprep.subr.mxu0 0.0
      %782 = vmatpush2.msra.mxu0 0.0
      %783 = vmatprep.subr.mxu0 0.0
      %784 = vmatpush2.msra.mxu0 0.0
      %785 = vmatprep.mubr.f32.mxu0 0.0
      %786 = vmatmul.mubr.f32.gmra.mxu0 0.0
      %v787 = vpop.f32.mrf.mxu0
      %v788 = vadd.f32 0.0, %v787
      %v789 = vpop.f32.mrf.mxu0
      %790 = vmatprep.mubr.f32.mxu0 0.0
      %791 = vmatmul.mubr.f32.gmra.mxu0 0.0
      %v792 = vpop.f32.mrf.mxu0
      %v793 = vadd.f32 0.0, %v792
      %v794 = vpop.f32.mrf.mxu0
      %795 = vmatprep.mubr.f32.mxu0 0.0
      %796 = vmatmul.mubr.f32.gmra.mxu0 %v342
      %v797 = vpop.f32.mrf.mxu0
      %v798 = vadd.f32 0.0, %v797
      %v799 = vpop.f32.mrf.mxu0
      %800 = vmatprep.mubr.f32.mxu0 0.0
      %801 = vmatmul.mubr.f32.gmra.mxu0 %v343
      %v802 = vpop.f32.mrf.mxu0
      %v803 = vadd.f32 0.0, %v802
      %v804 = vpop.f32.mrf.mxu0
      %805 = vmatprep.mubr.f32.mxu0 0.0
      %806 = vmatmul.mubr.f32.gmra.mxu0 %v344
      %v807 = vpop.f32.mrf.mxu0
      %v808 = vadd.f32 0.0, %v807
      %v809 = vpop.f32.mrf.mxu0
      %810 = vmatprep.mubr.f32.mxu0 0.0
      %811 = vmatmul.mubr.f32.gmra.mxu0 %v345
      %v812 = vpop.f32.mrf.mxu0
      %v813 = vadd.f32 0.0, %v812
      %v814 = vpop.f32.mrf.mxu0
      %815 = vmatprep.mubr.f32.mxu0 0.0
      %816 = vmatmul.mubr.f32.gmra.mxu0 %v346
      %v817 = vpop.f32.mrf.mxu0
      %v818 = vadd.f32 0.0, %v817
      %v819 = vpop.f32.mrf.mxu0
      %820 = vmatprep.mubr.f32.mxu0 0.0
      %821 = vmatmul.mubr.f32.gmra.mxu0 %v347
      %v822 = vpop.f32.mrf.mxu0
      %v823 = vadd.f32 0.0, %v822
      %v824 = vpop.f32.mrf.mxu0
      %825 = vmatprep.mubr.f32.mxu0 0.0
      %826 = vmatmul.mubr.f32.gmra.mxu0 %v348
      %v827 = vpop.f32.mrf.mxu0
      %v828 = vadd.f32 0.0, %v827
      %v829 = vpop.f32.mrf.mxu0
      %830 = vmatprep.mubr.f32.mxu0 0.0
      %831 = vmatmul.mubr.f32.gmra.mxu0 %v349
      %v832 = vpop.f32.mrf.mxu0
      %v833 = vadd.f32 0.0, %v832
      %v834 = vpop.f32.mrf.mxu0
      %835 = vmatprep.mubr.f32.mxu0 0.0
      %836 = vmatmul.mubr.f32.gmra.mxu0 %v350
      %v837 = vpop.f32.mrf.mxu0
      %v838 = vadd.f32 0.0, %v837
      %v839 = vpop.f32.mrf.mxu0
      %840 = vmatprep.mubr.f32.mxu0 0.0
      %841 = vmatmul.mubr.f32.gmra.mxu0 %v351
      %v842 = vpop.f32.mrf.mxu0
      %v843 = vadd.f32 0.0, %v842
      %v844 = vpop.f32.mrf.mxu0
      %845 = vmatprep.mubr.f32.mxu0 0.0
      %846 = vmatmul.mubr.f32.gmra.mxu0 %v352
      %v847 = vpop.f32.mrf.mxu0
      %v848 = vadd.f32 0.0, %v847
      %v849 = vpop.f32.mrf.mxu0
      %850 = vmatprep.mubr.f32.mxu0 0.0
      %851 = vmatmul.mubr.f32.gmra.mxu0 %v353
      %v852 = vpop.f32.mrf.mxu0
      %v853 = vadd.f32 0.0, %v852
      %v854 = vpop.f32.mrf.mxu0
      %855 = vmatprep.mubr.f32.mxu0 0.0
      %856 = vmatmul.mubr.f32.gmra.mxu0 %v354
      %v857 = vpop.f32.mrf.mxu0
      %v858 = vadd.f32 0.0, %v857
      %v859 = vpop.f32.mrf.mxu0
      %860 = vmatprep.mubr.f32.mxu0 0.0
      %861 = vmatmul.mubr.f32.gmra.mxu0 %v355
      %v862 = vpop.f32.mrf.mxu0
      %v863 = vadd.f32 0.0, %v862
      %v864 = vpop.f32.mrf.mxu0
      %865 = vmatprep.mubr.f32.mxu0 0.0
      %866 = vmatmul.mubr.f32.gmra.mxu0 %v356
      %v867 = vpop.f32.mrf.mxu0
      %v868 = vadd.f32 0.0, %v867
      %v869 = vpop.f32.mrf.mxu0
      %870 = vmatprep.mubr.f32.mxu0 0.0
      %871 = vmatmul.mubr.f32.gmra.mxu0 %v357
      %v872 = vpop.f32.mrf.mxu0
      %v873 = vadd.f32 0.0, %v872
      %v874 = vpop.f32.mrf.mxu0
      %875 = vmatprep.mubr.f32.mxu0 0.0
      %876 = vmatmul.mubr.f32.gmra.mxu0 %v358
      %v877 = vpop.f32.mrf.mxu0
      %v878 = vadd.f32 0.0, %v877
      %v879 = vpop.f32.mrf.mxu0
      %880 = vmatprep.mubr.f32.mxu0 0.0
      %881 = vmatmul.mubr.f32.gmra.mxu0 %v359
      %v882 = vpop.f32.mrf.mxu0
      %v883 = vadd.f32 0.0, %v882
      %v884 = vpop.f32.mrf.mxu0
      %885 = vmatprep.mubr.f32.mxu0 0.0
      %886 = vmatmul.mubr.f32.gmra.mxu0 %v360
      %v887 = vpop.f32.mrf.mxu0
      %v888 = vadd.f32 0.0, %v887
      %v889 = vpop.f32.mrf.mxu0
      %890 = vmatprep.mubr.f32.mxu0 0.0
      %891 = vmatmul.mubr.f32.gmra.mxu0 %v361
      %v892 = vpop.f32.mrf.mxu0
      %v893 = vadd.f32 0.0, %v892
      %v894 = vpop.f32.mrf.mxu0
      %895 = vmatprep.mubr.f32.mxu0 0.0
      %896 = vmatmul.mubr.f32.gmra.mxu0 %v362
      %v897 = vpop.f32.mrf.mxu0
      %v898 = vadd.f32 0.0, %v897
      %v899 = vpop.f32.mrf.mxu0
      %900 = vmatprep.mubr.f32.mxu0 0.0
      %901 = vmatmul.mubr.f32.gmra.mxu0 %v363
      %v902 = vpop.f32.mrf.mxu0
      %v903 = vadd.f32 0.0, %v902
      %v904 = vpop.f32.mrf.mxu0
      %905 = vmatprep.mubr.f32.mxu0 0.0
      %906 = vmatmul.mubr.f32.gmra.mxu0 %v364
      %v907 = vpop.f32.mrf.mxu0
      %v908 = vadd.f32 0.0, %v907
      %v909 = vpop.f32.mrf.mxu0
      %910 = vmatprep.mubr.f32.mxu0 0.0
      %911 = vmatmul.mubr.f32.gmra.mxu0 %v365
      %v912 = vpop.f32.mrf.mxu0
      %v913 = vadd.f32 0.0, %v912
      %v914 = vpop.f32.mrf.mxu0
      %915 = vmatprep.mubr.f32.mxu0 0.0
      %916 = vmatmul.mubr.f32.gmra.mxu0 %v366
      %v917 = vpop.f32.mrf.mxu0
      %v918 = vadd.f32 0.0, %v917
      %v919 = vpop.f32.mrf.mxu0
      %920 = vmatprep.mubr.f32.mxu0 0.0
      %921 = vmatmul.mubr.f32.gmra.mxu0 %v367
      %v922 = vpop.f32.mrf.mxu0
      %v923 = vadd.f32 0.0, %v922
      %v924 = vpop.f32.mrf.mxu0
      %925 = vmatprep.mubr.f32.mxu0 0.0
      %926 = vmatmul.mubr.f32.gmra.mxu0 %v368
      %v927 = vpop.f32.mrf.mxu0
      %v928 = vadd.f32 0.0, %v927
      %v929 = vpop.f32.mrf.mxu0
      %930 = vmatprep.mubr.f32.mxu0 0.0
      %931 = vmatmul.mubr.f32.gmra.mxu0 %v369
      %v932 = vpop.f32.mrf.mxu0
      %v933 = vadd.f32 0.0, %v932
      %v934 = vpop.f32.mrf.mxu0
      %935 = vmatprep.mubr.f32.mxu0 0.0
      %936 = vmatmul.mubr.f32.gmra.mxu0 %v370
      %v937 = vpop.f32.mrf.mxu0
      %v938 = vadd.f32 0.0, %v937
      %v939 = vpop.f32.mrf.mxu0
      %940 = vmatprep.mubr.f32.mxu0 0.0
      %941 = vmatmul.mubr.f32.gmra.mxu0 %v371
      %v942 = vpop.f32.mrf.mxu0
      %v943 = vadd.f32 0.0, %v942
      %v944 = vpop.f32.mrf.mxu0
      %945 = vdwg.mxu0
      %946 = vmatprep.subr.mxu0 0.0
      %947 = vmatpush1.msra.mxu0 %v703
      %948 = vmatprep.subr.mxu0 0.0
      %949 = vmatpush1.msra.mxu0 %v702
      %950 = vmatprep.subr.mxu0 0.0
      %951 = vmatpush1.msra.mxu0 %v701
      %952 = vmatprep.subr.mxu0 0.0
      %953 = vmatpush1.msra.mxu0 %v700
      %954 = vmatprep.subr.mxu0 0.0
      %955 = vmatpush1.msra.mxu0 %v699
      %956 = vmatprep.subr.mxu0 0.0
      %957 = vmatpush1.msra.mxu0 %v698
      %958 = vmatprep.subr.mxu0 0.0
      %959 = vmatpush1.msra.mxu0 %v697
      %960 = vmatprep.subr.mxu0 0.0
      %961 = vmatpush1.msra.mxu0 %v696
      %962 = vmatprep.subr.mxu0 0.0
      %963 = vmatpush1.msra.mxu0 %v695
      %964 = vmatprep.subr.mxu0 0.0
      %965 = vmatpush1.msra.mxu0 %v694
      %966 = vmatprep.subr.mxu0 0.0
      %967 = vmatpush1.msra.mxu0 %v693
      %968 = vmatprep.subr.mxu0 0.0
      %969 = vmatpush1.msra.mxu0 %v692
      %970 = vmatprep.subr.mxu0 0.0
      %971 = vmatpush1.msra.mxu0 %v691
      %972 = vmatprep.subr.mxu0 0.0
      %973 = vmatpush1.msra.mxu0 %v690
      %974 = vmatprep.subr.mxu0 0.0
      %975 = vmatpush1.msra.mxu0 %v689
      %976 = vmatprep.subr.mxu0 0.0
      %977 = vmatpush1.msra.mxu0 %v688
      %978 = vmatprep.subr.mxu0 0.0
      %979 = vmatpush2.msra.mxu0 0.0
      %980 = vmatprep.subr.mxu0 0.0
      %981 = vmatpush2.msra.mxu0 0.0
      %982 = vmatprep.subr.mxu0 0.0
      %983 = vmatpush2.msra.mxu0 0.0
      %984 = vmatprep.subr.mxu0 0.0
      %985 = vmatpush2.msra.mxu0 0.0
      %986 = vmatprep.subr.mxu0 0.0
      %987 = vmatpush2.msra.mxu0 0.0
      %988 = vmatprep.subr.mxu0 0.0
      %989 = vmatpush2.msra.mxu0 0.0
      %990 = vmatprep.subr.mxu0 0.0
      %991 = vmatpush2.msra.mxu0 0.0
      %992 = vmatprep.subr.mxu0 0.0
      %993 = vmatpush2.msra.mxu0 0.0
      %994 = vmatprep.subr.mxu0 0.0
      %995 = vmatpush2.msra.mxu0 0.0
      %996 = vmatprep.subr.mxu0 0.0
      %997 = vmatpush2.msra.mxu0 0.0
      %998 = vmatprep.subr.mxu0 0.0
      %999 = vmatpush2.msra.mxu0 0.0
      %1000 = vmatprep.subr.mxu0 0.0
      %1001 = vmatpush2.msra.mxu0 0.0
      %1002 = vmatprep.subr.mxu0 0.0
      %1003 = vmatpush2.msra.mxu0 0.0
      %1004 = vmatprep.subr.mxu0 0.0
      %1005 = vmatpush2.msra.mxu0 0.0
      %1006 = vmatprep.subr.mxu0 0.0
      %1007 = vmatpush2.msra.mxu0 0.0
      %1008 = vmatprep.subr.mxu0 0.0
      %1009 = vmatpush2.msra.mxu0 0.0
      %1010 = vmatprep.mubr.f32.mxu0 0.0
      %1011 = vmatmul.mubr.f32.gmra.mxu0 %v656
      %v1012 = vpop.f32.mrf.mxu0
      %v1013 = vadd.f32 %v788, %v1012
      %v1014 = vpop.f32.mrf.mxu0
      %1015 = vmatprep.mubr.f32.mxu0 0.0
      %1016 = vmatmul.mubr.f32.gmra.mxu0 %v657
      %v1017 = vpop.f32.mrf.mxu0
      %v1018 = vadd.f32 %v793, %v1017
      %v1019 = vpop.f32.mrf.mxu0
      %1020 = vmatprep.mubr.f32.mxu0 0.0
      %1021 = vmatmul.mubr.f32.gmra.mxu0 %v658
      %v1022 = vpop.f32.mrf.mxu0
      %v1023 = vadd.f32 %v798, %v1022
      %v1024 = vpop.f32.mrf.mxu0
      %1025 = vmatprep.mubr.f32.mxu0 0.0
      %1026 = vmatmul.mubr.f32.gmra.mxu0 %v659
      %v1027 = vpop.f32.mrf.mxu0
      %v1028 = vadd.f32 %v803, %v1027
      %v1029 = vpop.f32.mrf.mxu0
      %1030 = vmatprep.mubr.f32.mxu0 0.0
      %1031 = vmatmul.mubr.f32.gmra.mxu0 %v660
      %v1032 = vpop.f32.mrf.mxu0
      %v1033 = vadd.f32 %v808, %v1032
      %v1034 = vpop.f32.mrf.mxu0
      %1035 = vmatprep.mubr.f32.mxu0 0.0
      %1036 = vmatmul.mubr.f32.gmra.mxu0 %v661
      %v1037 = vpop.f32.mrf.mxu0
      %v1038 = vadd.f32 %v813, %v1037
      %v1039 = vpop.f32.mrf.mxu0
      %1040 = vmatprep.mubr.f32.mxu0 0.0
      %1041 = vmatmul.mubr.f32.gmra.mxu0 %v662
      %v1042 = vpop.f32.mrf.mxu0
      %v1043 = vadd.f32 %v818, %v1042
      %v1044 = vpop.f32.mrf.mxu0
      %1045 = vmatprep.mubr.f32.mxu0 0.0
      %1046 = vmatmul.mubr.f32.gmra.mxu0 %v663
      %v1047 = vpop.f32.mrf.mxu0
      %v1048 = vadd.f32 %v823, %v1047
      %v1049 = vpop.f32.mrf.mxu0
      %1050 = vmatprep.mubr.f32.mxu0 0.0
      %1051 = vmatmul.mubr.f32.gmra.mxu0 %v664
      %v1052 = vpop.f32.mrf.mxu0
      %v1053 = vadd.f32 %v828, %v1052
      %v1054 = vpop.f32.mrf.mxu0
      %1055 = vmatprep.mubr.f32.mxu0 0.0
      %1056 = vmatmul.mubr.f32.gmra.mxu0 %v665
      %v1057 = vpop.f32.mrf.mxu0
      %v1058 = vadd.f32 %v833, %v1057
      %v1059 = vpop.f32.mrf.mxu0
      %1060 = vmatprep.mubr.f32.mxu0 0.0
      %1061 = vmatmul.mubr.f32.gmra.mxu0 %v666
      %v1062 = vpop.f32.mrf.mxu0
      %v1063 = vadd.f32 %v838, %v1062
      %v1064 = vpop.f32.mrf.mxu0
      %1065 = vmatprep.mubr.f32.mxu0 0.0
      %1066 = vmatmul.mubr.f32.gmra.mxu0 %v667
      %v1067 = vpop.f32.mrf.mxu0
      %v1068 = vadd.f32 %v843, %v1067
      %v1069 = vpop.f32.mrf.mxu0
      %1070 = vmatprep.mubr.f32.mxu0 0.0
      %1071 = vmatmul.mubr.f32.gmra.mxu0 %v668
      %v1072 = vpop.f32.mrf.mxu0
      %v1073 = vadd.f32 %v848, %v1072
      %v1074 = vpop.f32.mrf.mxu0
      %1075 = vmatprep.mubr.f32.mxu0 0.0
      %1076 = vmatmul.mubr.f32.gmra.mxu0 %v669
      %v1077 = vpop.f32.mrf.mxu0
      %v1078 = vadd.f32 %v853, %v1077
      %v1079 = vpop.f32.mrf.mxu0
      %1080 = vmatprep.mubr.f32.mxu0 0.0
      %1081 = vmatmul.mubr.f32.gmra.mxu0 %v670
      %v1082 = vpop.f32.mrf.mxu0
      %v1083 = vadd.f32 %v858, %v1082
      %v1084 = vpop.f32.mrf.mxu0
      %1085 = vmatprep.mubr.f32.mxu0 0.0
      %1086 = vmatmul.mubr.f32.gmra.mxu0 %v671
      %v1087 = vpop.f32.mrf.mxu0
      %v1088 = vadd.f32 %v863, %v1087
      %v1089 = vpop.f32.mrf.mxu0
      %1090 = vmatprep.mubr.f32.mxu0 0.0
      %1091 = vmatmul.mubr.f32.gmra.mxu0 %v672
      %v1092 = vpop.f32.mrf.mxu0
      %v1093 = vadd.f32 %v868, %v1092
      %v1094 = vpop.f32.mrf.mxu0
      %1095 = vmatprep.mubr.f32.mxu0 0.0
      %1096 = vmatmul.mubr.f32.gmra.mxu0 %v673
      %v1097 = vpop.f32.mrf.mxu0
      %v1098 = vadd.f32 %v873, %v1097
      %v1099 = vpop.f32.mrf.mxu0
      %1100 = vmatprep.mubr.f32.mxu0 0.0
      %1101 = vmatmul.mubr.f32.gmra.mxu0 %v674
      %v1102 = vpop.f32.mrf.mxu0
      %v1103 = vadd.f32 %v878, %v1102
      %v1104 = vpop.f32.mrf.mxu0
      %1105 = vmatprep.mubr.f32.mxu0 0.0
      %1106 = vmatmul.mubr.f32.gmra.mxu0 %v675
      %v1107 = vpop.f32.mrf.mxu0
      %v1108 = vadd.f32 %v883, %v1107
      %v1109 = vpop.f32.mrf.mxu0
      %1110 = vmatprep.mubr.f32.mxu0 0.0
      %1111 = vmatmul.mubr.f32.gmra.mxu0 %v676
      %v1112 = vpop.f32.mrf.mxu0
      %v1113 = vadd.f32 %v888, %v1112
      %v1114 = vpop.f32.mrf.mxu0
      %1115 = vmatprep.mubr.f32.mxu0 0.0
      %1116 = vmatmul.mubr.f32.gmra.mxu0 %v677
      %v1117 = vpop.f32.mrf.mxu0
      %v1118 = vadd.f32 %v893, %v1117
      %v1119 = vpop.f32.mrf.mxu0
      %1120 = vmatprep.mubr.f32.mxu0 0.0
      %1121 = vmatmul.mubr.f32.gmra.mxu0 %v678
      %v1122 = vpop.f32.mrf.mxu0
      %v1123 = vadd.f32 %v898, %v1122
      %v1124 = vpop.f32.mrf.mxu0
      %1125 = vmatprep.mubr.f32.mxu0 0.0
      %1126 = vmatmul.mubr.f32.gmra.mxu0 %v679
      %v1127 = vpop.f32.mrf.mxu0
      %v1128 = vadd.f32 %v903, %v1127
      %v1129 = vpop.f32.mrf.mxu0
      %1130 = vmatprep.mubr.f32.mxu0 0.0
      %1131 = vmatmul.mubr.f32.gmra.mxu0 %v680
      %v1132 = vpop.f32.mrf.mxu0
      %v1133 = vadd.f32 %v908, %v1132
      %v1134 = vpop.f32.mrf.mxu0
      %1135 = vmatprep.mubr.f32.mxu0 0.0
      %1136 = vmatmul.mubr.f32.gmra.mxu0 %v681
      %v1137 = vpop.f32.mrf.mxu0
      %v1138 = vadd.f32 %v913, %v1137
      %v1139 = vpop.f32.mrf.mxu0
      %1140 = vmatprep.mubr.f32.mxu0 0.0
      %1141 = vmatmul.mubr.f32.gmra.mxu0 %v682
      %v1142 = vpop.f32.mrf.mxu0
      %v1143 = vadd.f32 %v918, %v1142
      %v1144 = vpop.f32.mrf.mxu0
      %1145 = vmatprep.mubr.f32.mxu0 0.0
      %1146 = vmatmul.mubr.f32.gmra.mxu0 %v683
      %v1147 = vpop.f32.mrf.mxu0
      %v1148 = vadd.f32 %v923, %v1147
      %v1149 = vpop.f32.mrf.mxu0
      %1150 = vmatprep.mubr.f32.mxu0 0.0
      %1151 = vmatmul.mubr.f32.gmra.mxu0 %v684
      %v1152 = vpop.f32.mrf.mxu0
      %v1153 = vadd.f32 %v928, %v1152
      %v1154 = vpop.f32.mrf.mxu0
      %1155 = vmatprep.mubr.f32.mxu0 0.0
      %1156 = vmatmul.mubr.f32.gmra.mxu0 %v685
      %v1157 = vpop.f32.mrf.mxu0
      %v1158 = vadd.f32 %v933, %v1157
      %v1159 = vpop.f32.mrf.mxu0
      %1160 = vmatprep.mubr.f32.mxu0 0.0
      %1161 = vmatmul.mubr.f32.gmra.mxu0 %v686
      %v1162 = vpop.f32.mrf.mxu0
      %v1163 = vadd.f32 %v938, %v1162
      %v1164 = vpop.f32.mrf.mxu0
      %1165 = vmatprep.mubr.f32.mxu0 0.0
      %1166 = vmatmul.mubr.f32.gmra.mxu0 %v687
      %v1167 = vpop.f32.mrf.mxu0
      %v1168 = vadd.f32 %v943, %v1167
      %v1169 = vpop.f32.mrf.mxu0
      %1170 = vdwg.mxu0
      %v1172 = vrot.slane %v342, 1
      %v1173 = vrot.slane %v343, 1
      %v1174 = vsel %vm438, %v1172, %v1173
      %v1175 = vrot.slane %v344, 1
      %v1176 = vsel %vm438, %v1173, %v1175
      %v1177 = vrot.slane %v345, 1
      %v1178 = vsel %vm438, %v1175, %v1177
      %v1179 = vrot.slane %v346, 1
      %v1180 = vsel %vm438, %v1177, %v1179
      %v1181 = vrot.slane %v347, 1
      %v1182 = vsel %vm438, %v1179, %v1181
      %v1183 = vrot.slane %v348, 1
      %v1184 = vsel %vm438, %v1181, %v1183
      %v1185 = vrot.slane %v349, 1
      %v1186 = vsel %vm438, %v1183, %v1185
      %v1187 = vrot.slane %v350, 1
      %v1188 = vsel %vm438, %v1185, %v1187
      %v1189 = vrot.slane %v351, 1
      %v1190 = vsel %vm438, %v1187, %v1189
      %v1191 = vrot.slane %v352, 1
      %v1192 = vsel %vm438, %v1189, %v1191
      %v1193 = vrot.slane %v353, 1
      %v1194 = vsel %vm438, %v1191, %v1193
      %v1195 = vrot.slane %v354, 1
      %v1196 = vsel %vm438, %v1193, %v1195
      %v1197 = vrot.slane %v355, 1
      %v1198 = vsel %vm438, %v1195, %v1197
      %v1199 = vrot.slane %v356, 1
      %v1200 = vsel %vm438, %v1197, %v1199
      %v1201 = vrot.slane %v357, 1
      %v1202 = vsel %vm438, %v1199, %v1201
      %v1203 = vrot.slane %v358, 1
      %v1204 = vsel %vm438, %v1201, %v1203
      %v1205 = vrot.slane %v359, 1
      %v1206 = vsel %vm438, %v1203, %v1205
      %v1207 = vrot.slane %v360, 1
      %v1208 = vsel %vm438, %v1205, %v1207
      %v1209 = vrot.slane %v361, 1
      %v1210 = vsel %vm438, %v1207, %v1209
      %v1211 = vrot.slane %v362, 1
      %v1212 = vsel %vm438, %v1209, %v1211
      %v1213 = vrot.slane %v363, 1
      %v1214 = vsel %vm438, %v1211, %v1213
      %v1215 = vrot.slane %v364, 1
      %v1216 = vsel %vm438, %v1213, %v1215
      %v1217 = vrot.slane %v365, 1
      %v1218 = vsel %vm438, %v1215, %v1217
      %v1219 = vrot.slane %v366, 1
      %v1220 = vsel %vm438, %v1217, %v1219
      %v1221 = vrot.slane %v367, 1
      %v1222 = vsel %vm438, %v1219, %v1221
      %v1223 = vrot.slane %v368, 1
      %v1224 = vsel %vm438, %v1221, %v1223
      %v1225 = vrot.slane %v369, 1
      %v1226 = vsel %vm438, %v1223, %v1225
      %v1227 = vrot.slane %v370, 1
      %v1228 = vsel %vm438, %v1225, %v1227
      %v1229 = vrot.slane %v371, 1
      %v1230 = vsel %vm438, %v1227, %v1229
      %v1231 = vrot.slane %v372, 1
      %v1232 = vsel %vm438, %v1229, %v1231
      %v1264 = vsel %vm438, 0.0, %v1172
      %v1265 = vmul.f32 %v441, 0.0
      %v1266 = vmul.f32 %v1264, %v443
      %v1267 = vmul.f32 %v1174, %v445
      %v1268 = vmul.f32 %v1176, %v447
      %v1269 = vmul.f32 %v1178, %v449
      %v1270 = vmul.f32 %v1180, %v451
      %v1271 = vmul.f32 %v1182, %v453
      %v1272 = vmul.f32 %v1184, %v455
      %v1273 = vmul.f32 %v1186, %v457
      %v1274 = vmul.f32 %v1188, %v459
      %v1275 = vmul.f32 %v1190, %v461
      %v1276 = vmul.f32 %v1192, %v463
      %v1277 = vmul.f32 %v1194, %v465
      %v1278 = vmul.f32 %v1196, %v467
      %v1279 = vmul.f32 %v1198, %v469
      %v1280 = vmul.f32 %v1200, %v471
      %v1281 = vmul.f32 %v1202, %v473
      %v1282 = vmul.f32 %v1204, %v475
      %v1283 = vmul.f32 %v1206, %v477
      %v1284 = vmul.f32 %v1208, %v479
      %v1285 = vmul.f32 %v1210, %v481
      %v1286 = vmul.f32 %v1212, %v483
      %v1287 = vmul.f32 %v1214, %v485
      %v1288 = vmul.f32 %v1216, %v487
      %v1289 = vmul.f32 %v1218, %v489
      %v1290 = vmul.f32 %v1220, %v491
      %v1291 = vmul.f32 %v1222, %v493
      %v1292 = vmul.f32 %v1224, %v495
      %v1293 = vmul.f32 %v1226, %v497
      %v1294 = vmul.f32 %v1228, %v499
      %v1295 = vmul.f32 %v1230, %v501
      %v1296 = vmul.f32 %v1232, %v534
      %s1297 = scalar_lea.vmem %s3, 256
      %v1298 = vld [vmem:[%s1297] sm:$0xff]
      %v1299 = vld [vmem:[%s1297 + $0x8] sm:$0xff]
      %v1300 = vld [vmem:[%s1297 + $0x10] sm:$0xff]
      %v1301 = vld [vmem:[%s1297 + $0x18] sm:$0xff]
      %v1302 = vld [vmem:[%s1297 + $0x20] sm:$0xff]
      %v1303 = vld [vmem:[%s1297 + $0x28] sm:$0xff]
      %v1304 = vld [vmem:[%s1297 + $0x30] sm:$0xff]
      %v1305 = vld [vmem:[%s1297 + $0x38] sm:$0xff]
      %v1306 = vld [vmem:[%s1297 + $0x40] sm:$0xff]
      %v1307 = vld [vmem:[%s1297 + $0x48] sm:$0xff]
      %v1308 = vld [vmem:[%s1297 + $0x50] sm:$0xff]
      %v1309 = vld [vmem:[%s1297 + $0x58] sm:$0xff]
      %v1310 = vld [vmem:[%s1297 + $0x60] sm:$0xff]
      %v1311 = vld [vmem:[%s1297 + $0x68] sm:$0xff]
      %v1312 = vld [vmem:[%s1297 + $0x70] sm:$0xff]
      %v1313 = vld [vmem:[%s1297 + $0x78] sm:$0xff]
      %1314 = vmatprep.subr.mxu0 0.0
      %1315 = vmatpush1.msra.mxu0 %v1313
      %1316 = vmatprep.subr.mxu0 0.0
      %1317 = vmatpush1.msra.mxu0 %v1312
      %1318 = vmatprep.subr.mxu0 0.0
      %1319 = vmatpush1.msra.mxu0 %v1311
      %1320 = vmatprep.subr.mxu0 0.0
      %1321 = vmatpush1.msra.mxu0 %v1310
      %1322 = vmatprep.subr.mxu0 0.0
      %1323 = vmatpush1.msra.mxu0 %v1309
      %1324 = vmatprep.subr.mxu0 0.0
      %1325 = vmatpush1.msra.mxu0 %v1308
      %1326 = vmatprep.subr.mxu0 0.0
      %1327 = vmatpush1.msra.mxu0 %v1307
      %1328 = vmatprep.subr.mxu0 0.0
      %1329 = vmatpush1.msra.mxu0 %v1306
      %1330 = vmatprep.subr.mxu0 0.0
      %1331 = vmatpush1.msra.mxu0 %v1305
      %1332 = vmatprep.subr.mxu0 0.0
      %1333 = vmatpush1.msra.mxu0 %v1304
      %1334 = vmatprep.subr.mxu0 0.0
      %1335 = vmatpush1.msra.mxu0 %v1303
      %1336 = vmatprep.subr.mxu0 0.0
      %1337 = vmatpush1.msra.mxu0 %v1302
      %1338 = vmatprep.subr.mxu0 0.0
      %1339 = vmatpush1.msra.mxu0 %v1301
      %1340 = vmatprep.subr.mxu0 0.0
      %1341 = vmatpush1.msra.mxu0 %v1300
      %1342 = vmatprep.subr.mxu0 0.0
      %1343 = vmatpush1.msra.mxu0 %v1299
      %1344 = vmatprep.subr.mxu0 0.0
      %1345 = vmatpush1.msra.mxu0 %v1298
      %1346 = vmatprep.subr.mxu0 0.0
      %1347 = vmatpush2.msra.mxu0 0.0
      %1348 = vmatprep.subr.mxu0 0.0
      %1349 = vmatpush2.msra.mxu0 0.0
      %1350 = vmatprep.subr.mxu0 0.0
      %1351 = vmatpush2.msra.mxu0 0.0
      %1352 = vmatprep.subr.mxu0 0.0
      %1353 = vmatpush2.msra.mxu0 0.0
      %1354 = vmatprep.subr.mxu0 0.0
      %1355 = vmatpush2.msra.mxu0 0.0
      %1356 = vmatprep.subr.mxu0 0.0
      %1357 = vmatpush2.msra.mxu0 0.0
      %1358 = vmatprep.subr.mxu0 0.0
      %1359 = vmatpush2.msra.mxu0 0.0
      %1360 = vmatprep.subr.mxu0 0.0
      %1361 = vmatpush2.msra.mxu0 0.0
      %1362 = vmatprep.subr.mxu0 0.0
      %1363 = vmatpush2.msra.mxu0 0.0
      %1364 = vmatprep.subr.mxu0 0.0
      %1365 = vmatpush2.msra.mxu0 0.0
      %1366 = vmatprep.subr.mxu0 0.0
      %1367 = vmatpush2.msra.mxu0 0.0
      %1368 = vmatprep.subr.mxu0 0.0
      %1369 = vmatpush2.msra.mxu0 0.0
      %1370 = vmatprep.subr.mxu0 0.0
      %1371 = vmatpush2.msra.mxu0 0.0
      %1372 = vmatprep.subr.mxu0 0.0
      %1373 = vmatpush2.msra.mxu0 0.0
      %1374 = vmatprep.subr.mxu0 0.0
      %1375 = vmatpush2.msra.mxu0 0.0
      %1376 = vmatprep.subr.mxu0 0.0
      %1377 = vmatpush2.msra.mxu0 0.0
      %1378 = vmatprep.mubr.f32.mxu0 0.0
      %1379 = vmatmul.mubr.f32.gmra.mxu0 %v1265
      %v1380 = vpop.f32.mrf.mxu0
      %v1381 = vadd.f32 0.0, %v1380
      %v1382 = vpop.f32.mrf.mxu0
      %1383 = vmatprep.mubr.f32.mxu0 0.0
      %1384 = vmatmul.mubr.f32.gmra.mxu0 %v1266
      %v1385 = vpop.f32.mrf.mxu0
      %v1386 = vadd.f32 0.0, %v1385
      %v1387 = vpop.f32.mrf.mxu0
      %1388 = vmatprep.mubr.f32.mxu0 0.0
      %1389 = vmatmul.mubr.f32.gmra.mxu0 %v1267
      %v1390 = vpop.f32.mrf.mxu0
      %v1391 = vadd.f32 0.0, %v1390
      %v1392 = vpop.f32.mrf.mxu0
      %1393 = vmatprep.mubr.f32.mxu0 0.0
      %1394 = vmatmul.mubr.f32.gmra.mxu0 %v1268
      %v1395 = vpop.f32.mrf.mxu0
      %v1396 = vadd.f32 0.0, %v1395
      %v1397 = vpop.f32.mrf.mxu0
      %1398 = vmatprep.mubr.f32.mxu0 0.0
      %1399 = vmatmul.mubr.f32.gmra.mxu0 %v1269
      %v1400 = vpop.f32.mrf.mxu0
      %v1401 = vadd.f32 0.0, %v1400
      %v1402 = vpop.f32.mrf.mxu0
      %1403 = vmatprep.mubr.f32.mxu0 0.0
      %1404 = vmatmul.mubr.f32.gmra.mxu0 %v1270
      %v1405 = vpop.f32.mrf.mxu0
      %v1406 = vadd.f32 0.0, %v1405
      %v1407 = vpop.f32.mrf.mxu0
      %1408 = vmatprep.mubr.f32.mxu0 0.0
      %1409 = vmatmul.mubr.f32.gmra.mxu0 %v1271
      %v1410 = vpop.f32.mrf.mxu0
      %v1411 = vadd.f32 0.0, %v1410
      %v1412 = vpop.f32.mrf.mxu0
      %1413 = vmatprep.mubr.f32.mxu0 0.0
      %1414 = vmatmul.mubr.f32.gmra.mxu0 %v1272
      %v1415 = vpop.f32.mrf.mxu0
      %v1416 = vadd.f32 0.0, %v1415
      %v1417 = vpop.f32.mrf.mxu0
      %1418 = vmatprep.mubr.f32.mxu0 0.0
      %1419 = vmatmul.mubr.f32.gmra.mxu0 %v1273
      %v1420 = vpop.f32.mrf.mxu0
      %v1421 = vadd.f32 0.0, %v1420
      %v1422 = vpop.f32.mrf.mxu0
      %1423 = vmatprep.mubr.f32.mxu0 0.0
      %1424 = vmatmul.mubr.f32.gmra.mxu0 %v1274
      %v1425 = vpop.f32.mrf.mxu0
      %v1426 = vadd.f32 0.0, %v1425
      %v1427 = vpop.f32.mrf.mxu0
      %1428 = vmatprep.mubr.f32.mxu0 0.0
      %1429 = vmatmul.mubr.f32.gmra.mxu0 %v1275
      %v1430 = vpop.f32.mrf.mxu0
      %v1431 = vadd.f32 0.0, %v1430
      %v1432 = vpop.f32.mrf.mxu0
      %1433 = vmatprep.mubr.f32.mxu0 0.0
      %1434 = vmatmul.mubr.f32.gmra.mxu0 %v1276
      %v1435 = vpop.f32.mrf.mxu0
      %v1436 = vadd.f32 0.0, %v1435
      %v1437 = vpop.f32.mrf.mxu0
      %1438 = vmatprep.mubr.f32.mxu0 0.0
      %1439 = vmatmul.mubr.f32.gmra.mxu0 %v1277
      %v1440 = vpop.f32.mrf.mxu0
      %v1441 = vadd.f32 0.0, %v1440
      %v1442 = vpop.f32.mrf.mxu0
      %1443 = vmatprep.mubr.f32.mxu0 0.0
      %1444 = vmatmul.mubr.f32.gmra.mxu0 %v1278
      %v1445 = vpop.f32.mrf.mxu0
      %v1446 = vadd.f32 0.0, %v1445
      %v1447 = vpop.f32.mrf.mxu0
      %1448 = vmatprep.mubr.f32.mxu0 0.0
      %1449 = vmatmul.mubr.f32.gmra.mxu0 %v1279
      %v1450 = vpop.f32.mrf.mxu0
      %v1451 = vadd.f32 0.0, %v1450
      %v1452 = vpop.f32.mrf.mxu0
      %1453 = vmatprep.mubr.f32.mxu0 0.0
      %1454 = vmatmul.mubr.f32.gmra.mxu0 %v1280
      %v1455 = vpop.f32.mrf.mxu0
      %v1456 = vadd.f32 0.0, %v1455
      %v1457 = vpop.f32.mrf.mxu0
      %1458 = vmatprep.mubr.f32.mxu0 0.0
      %1459 = vmatmul.mubr.f32.gmra.mxu0 %v1281
      %v1460 = vpop.f32.mrf.mxu0
      %v1461 = vadd.f32 0.0, %v1460
      %v1462 = vpop.f32.mrf.mxu0
      %1463 = vmatprep.mubr.f32.mxu0 0.0
      %1464 = vmatmul.mubr.f32.gmra.mxu0 %v1282
      %v1465 = vpop.f32.mrf.mxu0
      %v1466 = vadd.f32 0.0, %v1465
      %v1467 = vpop.f32.mrf.mxu0
      %1468 = vmatprep.mubr.f32.mxu0 0.0
      %1469 = vmatmul.mubr.f32.gmra.mxu0 %v1283
      %v1470 = vpop.f32.mrf.mxu0
      %v1471 = vadd.f32 0.0, %v1470
      %v1472 = vpop.f32.mrf.mxu0
      %1473 = vmatprep.mubr.f32.mxu0 0.0
      %1474 = vmatmul.mubr.f32.gmra.mxu0 %v1284
      %v1475 = vpop.f32.mrf.mxu0
      %v1476 = vadd.f32 0.0, %v1475
      %v1477 = vpop.f32.mrf.mxu0
      %1478 = vmatprep.mubr.f32.mxu0 0.0
      %1479 = vmatmul.mubr.f32.gmra.mxu0 %v1285
      %v1480 = vpop.f32.mrf.mxu0
      %v1481 = vadd.f32 0.0, %v1480
      %v1482 = vpop.f32.mrf.mxu0
      %1483 = vmatprep.mubr.f32.mxu0 0.0
      %1484 = vmatmul.mubr.f32.gmra.mxu0 %v1286
      %v1485 = vpop.f32.mrf.mxu0
      %v1486 = vadd.f32 0.0, %v1485
      %v1487 = vpop.f32.mrf.mxu0
      %1488 = vmatprep.mubr.f32.mxu0 0.0
      %1489 = vmatmul.mubr.f32.gmra.mxu0 %v1287
      %v1490 = vpop.f32.mrf.mxu0
      %v1491 = vadd.f32 0.0, %v1490
      %v1492 = vpop.f32.mrf.mxu0
      %1493 = vmatprep.mubr.f32.mxu0 0.0
      %1494 = vmatmul.mubr.f32.gmra.mxu0 %v1288
      %v1495 = vpop.f32.mrf.mxu0
      %v1496 = vadd.f32 0.0, %v1495
      %v1497 = vpop.f32.mrf.mxu0
      %1498 = vmatprep.mubr.f32.mxu0 0.0
      %1499 = vmatmul.mubr.f32.gmra.mxu0 %v1289
      %v1500 = vpop.f32.mrf.mxu0
      %v1501 = vadd.f32 0.0, %v1500
      %v1502 = vpop.f32.mrf.mxu0
      %1503 = vmatprep.mubr.f32.mxu0 0.0
      %1504 = vmatmul.mubr.f32.gmra.mxu0 %v1290
      %v1505 = vpop.f32.mrf.mxu0
      %v1506 = vadd.f32 0.0, %v1505
      %v1507 = vpop.f32.mrf.mxu0
      %1508 = vmatprep.mubr.f32.mxu0 0.0
      %1509 = vmatmul.mubr.f32.gmra.mxu0 %v1291
      %v1510 = vpop.f32.mrf.mxu0
      %v1511 = vadd.f32 0.0, %v1510
      %v1512 = vpop.f32.mrf.mxu0
      %1513 = vmatprep.mubr.f32.mxu0 0.0
      %1514 = vmatmul.mubr.f32.gmra.mxu0 %v1292
      %v1515 = vpop.f32.mrf.mxu0
      %v1516 = vadd.f32 0.0, %v1515
      %v1517 = vpop.f32.mrf.mxu0
      %1518 = vmatprep.mubr.f32.mxu0 0.0
      %1519 = vmatmul.mubr.f32.gmra.mxu0 %v1293
      %v1520 = vpop.f32.mrf.mxu0
      %v1521 = vadd.f32 0.0, %v1520
      %v1522 = vpop.f32.mrf.mxu0
      %1523 = vmatprep.mubr.f32.mxu0 0.0
      %1524 = vmatmul.mubr.f32.gmra.mxu0 %v1294
      %v1525 = vpop.f32.mrf.mxu0
      %v1526 = vadd.f32 0.0, %v1525
      %v1527 = vpop.f32.mrf.mxu0
      %1528 = vmatprep.mubr.f32.mxu0 0.0
      %1529 = vmatmul.mubr.f32.gmra.mxu0 %v1295
      %v1530 = vpop.f32.mrf.mxu0
      %v1531 = vadd.f32 0.0, %v1530
      %v1532 = vpop.f32.mrf.mxu0
      %1533 = vmatprep.mubr.f32.mxu0 0.0
      %1534 = vmatmul.mubr.f32.gmra.mxu0 %v1296
      %v1535 = vpop.f32.mrf.mxu0
      %v1536 = vadd.f32 0.0, %v1535
      %v1537 = vpop.f32.mrf.mxu0
      %1538 = vdwg.mxu0
      %v1539 = vadd.f32 %v1013, %v1381
      %v1540 = vadd.f32 %v1018, %v1386
      %v1541 = vadd.f32 %v1023, %v1391
      %v1542 = vadd.f32 %v1028, %v1396
      %v1543 = vadd.f32 %v1033, %v1401
      %v1544 = vadd.f32 %v1038, %v1406
      %v1545 = vadd.f32 %v1043, %v1411
      %v1546 = vadd.f32 %v1048, %v1416
      %v1547 = vadd.f32 %v1053, %v1421
      %v1548 = vadd.f32 %v1058, %v1426
      %v1549 = vadd.f32 %v1063, %v1431
      %v1550 = vadd.f32 %v1068, %v1436
      %v1551 = vadd.f32 %v1073, %v1441
      %v1552 = vadd.f32 %v1078, %v1446
      %v1553 = vadd.f32 %v1083, %v1451
      %v1554 = vadd.f32 %v1088, %v1456
      %v1555 = vadd.f32 %v1093, %v1461
      %v1556 = vadd.f32 %v1098, %v1466
      %v1557 = vadd.f32 %v1103, %v1471
      %v1558 = vadd.f32 %v1108, %v1476
      %v1559 = vadd.f32 %v1113, %v1481
      %v1560 = vadd.f32 %v1118, %v1486
      %v1561 = vadd.f32 %v1123, %v1491
      %v1562 = vadd.f32 %v1128, %v1496
      %v1563 = vadd.f32 %v1133, %v1501
      %v1564 = vadd.f32 %v1138, %v1506
      %v1565 = vadd.f32 %v1143, %v1511
      %v1566 = vadd.f32 %v1148, %v1516
      %v1567 = vadd.f32 %v1153, %v1521
      %v1568 = vadd.f32 %v1158, %v1526
      %v1569 = vadd.f32 %v1163, %v1531
      %v1570 = vadd.f32 %v1168, %v1536
      %v1572 = vrot.slane %v372, 7
      %v1573 = vsel %vm565, %v623, %v1572
      %v1574 = vrot.slane %v373, 7
      %v1575 = vsel %vm565, %v1572, %v1574
      %v1578 = vmul.f32 %v655, %v374
      %v1579 = vmul.f32 %v568, %v375
      %v1580 = vmul.f32 %v570, %v376
      %v1581 = vmul.f32 %v572, %v377
      %v1582 = vmul.f32 %v574, %v378
      %v1583 = vmul.f32 %v576, %v379
      %v1584 = vmul.f32 %v578, %v380
      %v1585 = vmul.f32 %v580, %v381
      %v1586 = vmul.f32 %v582, %v382
      %v1587 = vmul.f32 %v584, %v383
      %v1588 = vmul.f32 %v586, %v384
      %v1589 = vmul.f32 %v588, %v385
      %v1590 = vmul.f32 %v590, %v386
      %v1591 = vmul.f32 %v592, %v387
      %v1592 = vmul.f32 %v594, %v388
      %v1593 = vmul.f32 %v596, %v389
      %v1594 = vmul.f32 %v598, %v390
      %v1595 = vmul.f32 %v600, %v391
      %v1596 = vmul.f32 %v602, %v392
      %v1597 = vmul.f32 %v604, %v393
      %v1598 = vmul.f32 %v606, %v394
      %v1599 = vmul.f32 %v608, %v395
      %v1600 = vmul.f32 %v610, %v396
      %v1601 = vmul.f32 %v612, %v397
      %v1602 = vmul.f32 %v614, %v398
      %v1603 = vmul.f32 %v616, %v399
      %v1604 = vmul.f32 %v618, %v400
      %v1605 = vmul.f32 %v620, %v401
      %v1606 = vmul.f32 %v622, %v402
      %v1607 = vmul.f32 %v624, %v403
      %v1608 = vmul.f32 %v1573, %v404
      %v1609 = vmul.f32 %v1575, %v405
      %s1610 = scalar_lea.vmem %s3, 384
      %v1611 = vld [vmem:[%s1610] sm:$0xff]
      %v1612 = vld [vmem:[%s1610 + $0x8] sm:$0xff]
      %v1613 = vld [vmem:[%s1610 + $0x10] sm:$0xff]
      %v1614 = vld [vmem:[%s1610 + $0x18] sm:$0xff]
      %v1615 = vld [vmem:[%s1610 + $0x20] sm:$0xff]
      %v1616 = vld [vmem:[%s1610 + $0x28] sm:$0xff]
      %v1617 = vld [vmem:[%s1610 + $0x30] sm:$0xff]
      %v1618 = vld [vmem:[%s1610 + $0x38] sm:$0xff]
      %v1619 = vld [vmem:[%s1610 + $0x40] sm:$0xff]
      %v1620 = vld [vmem:[%s1610 + $0x48] sm:$0xff]
      %v1621 = vld [vmem:[%s1610 + $0x50] sm:$0xff]
      %v1622 = vld [vmem:[%s1610 + $0x58] sm:$0xff]
      %v1623 = vld [vmem:[%s1610 + $0x60] sm:$0xff]
      %v1624 = vld [vmem:[%s1610 + $0x68] sm:$0xff]
      %v1625 = vld [vmem:[%s1610 + $0x70] sm:$0xff]
      %v1626 = vld [vmem:[%s1610 + $0x78] sm:$0xff]
      %1627 = vmatprep.subr.mxu0 0.0
      %1628 = vmatpush1.msra.mxu0 %v1626
      %1629 = vmatprep.subr.mxu0 0.0
      %1630 = vmatpush1.msra.mxu0 %v1625
      %1631 = vmatprep.subr.mxu0 0.0
      %1632 = vmatpush1.msra.mxu0 %v1624
      %1633 = vmatprep.subr.mxu0 0.0
      %1634 = vmatpush1.msra.mxu0 %v1623
      %1635 = vmatprep.subr.mxu0 0.0
      %1636 = vmatpush1.msra.mxu0 %v1622
      %1637 = vmatprep.subr.mxu0 0.0
      %1638 = vmatpush1.msra.mxu0 %v1621
      %1639 = vmatprep.subr.mxu0 0.0
      %1640 = vmatpush1.msra.mxu0 %v1620
      %1641 = vmatprep.subr.mxu0 0.0
      %1642 = vmatpush1.msra.mxu0 %v1619
      %1643 = vmatprep.subr.mxu0 0.0
      %1644 = vmatpush1.msra.mxu0 %v1618
      %1645 = vmatprep.subr.mxu0 0.0
      %1646 = vmatpush1.msra.mxu0 %v1617
      %1647 = vmatprep.subr.mxu0 0.0
      %1648 = vmatpush1.msra.mxu0 %v1616
      %1649 = vmatprep.subr.mxu0 0.0
      %1650 = vmatpush1.msra.mxu0 %v1615
      %1651 = vmatprep.subr.mxu0 0.0
      %1652 = vmatpush1.msra.mxu0 %v1614
      %1653 = vmatprep.subr.mxu0 0.0
      %1654 = vmatpush1.msra.mxu0 %v1613
      %1655 = vmatprep.subr.mxu0 0.0
      %1656 = vmatpush1.msra.mxu0 %v1612
      %1657 = vmatprep.subr.mxu0 0.0
      %1658 = vmatpush1.msra.mxu0 %v1611
      %1659 = vmatprep.subr.mxu0 0.0
      %1660 = vmatpush2.msra.mxu0 0.0
      %1661 = vmatprep.subr.mxu0 0.0
      %1662 = vmatpush2.msra.mxu0 0.0
      %1663 = vmatprep.subr.mxu0 0.0
      %1664 = vmatpush2.msra.mxu0 0.0
      %1665 = vmatprep.subr.mxu0 0.0
      %1666 = vmatpush2.msra.mxu0 0.0
      %1667 = vmatprep.subr.mxu0 0.0
      %1668 = vmatpush2.msra.mxu0 0.0
      %1669 = vmatprep.subr.mxu0 0.0
      %1670 = vmatpush2.msra.mxu0 0.0
      %1671 = vmatprep.subr.mxu0 0.0
      %1672 = vmatpush2.msra.mxu0 0.0
      %1673 = vmatprep.subr.mxu0 0.0
      %1674 = vmatpush2.msra.mxu0 0.0
      %1675 = vmatprep.subr.mxu0 0.0
      %1676 = vmatpush2.msra.mxu0 0.0
      %1677 = vmatprep.subr.mxu0 0.0
      %1678 = vmatpush2.msra.mxu0 0.0
      %1679 = vmatprep.subr.mxu0 0.0
      %1680 = vmatpush2.msra.mxu0 0.0
      %1681 = vmatprep.subr.mxu0 0.0
      %1682 = vmatpush2.msra.mxu0 0.0
      %1683 = vmatprep.subr.mxu0 0.0
      %1684 = vmatpush2.msra.mxu0 0.0
      %1685 = vmatprep.subr.mxu0 0.0
      %1686 = vmatpush2.msra.mxu0 0.0
      %1687 = vmatprep.subr.mxu0 0.0
      %1688 = vmatpush2.msra.mxu0 0.0
      %1689 = vmatprep.subr.mxu0 0.0
      %1690 = vmatpush2.msra.mxu0 0.0
      %1691 = vmatprep.mubr.f32.mxu0 0.0
      %1692 = vmatmul.mubr.f32.gmra.mxu0 %v1578
      %v1693 = vpop.f32.mrf.mxu0
      %v1694 = vadd.f32 0.0, %v1693
      %v1695 = vpop.f32.mrf.mxu0
      %1696 = vmatprep.mubr.f32.mxu0 0.0
      %1697 = vmatmul.mubr.f32.gmra.mxu0 %v1579
      %v1698 = vpop.f32.mrf.mxu0
      %v1699 = vadd.f32 0.0, %v1698
      %v1700 = vpop.f32.mrf.mxu0
      %1701 = vmatprep.mubr.f32.mxu0 0.0
      %1702 = vmatmul.mubr.f32.gmra.mxu0 %v1580
      %v1703 = vpop.f32.mrf.mxu0
      %v1704 = vadd.f32 0.0, %v1703
      %v1705 = vpop.f32.mrf.mxu0
      %1706 = vmatprep.mubr.f32.mxu0 0.0
      %1707 = vmatmul.mubr.f32.gmra.mxu0 %v1581
      %v1708 = vpop.f32.mrf.mxu0
      %v1709 = vadd.f32 0.0, %v1708
      %v1710 = vpop.f32.mrf.mxu0
      %1711 = vmatprep.mubr.f32.mxu0 0.0
      %1712 = vmatmul.mubr.f32.gmra.mxu0 %v1582
      %v1713 = vpop.f32.mrf.mxu0
      %v1714 = vadd.f32 0.0, %v1713
      %v1715 = vpop.f32.mrf.mxu0
      %1716 = vmatprep.mubr.f32.mxu0 0.0
      %1717 = vmatmul.mubr.f32.gmra.mxu0 %v1583
      %v1718 = vpop.f32.mrf.mxu0
      %v1719 = vadd.f32 0.0, %v1718
      %v1720 = vpop.f32.mrf.mxu0
      %1721 = vmatprep.mubr.f32.mxu0 0.0
      %1722 = vmatmul.mubr.f32.gmra.mxu0 %v1584
      %v1723 = vpop.f32.mrf.mxu0
      %v1724 = vadd.f32 0.0, %v1723
      %v1725 = vpop.f32.mrf.mxu0
      %1726 = vmatprep.mubr.f32.mxu0 0.0
      %1727 = vmatmul.mubr.f32.gmra.mxu0 %v1585
      %v1728 = vpop.f32.mrf.mxu0
      %v1729 = vadd.f32 0.0, %v1728
      %v1730 = vpop.f32.mrf.mxu0
      %1731 = vmatprep.mubr.f32.mxu0 0.0
      %1732 = vmatmul.mubr.f32.gmra.mxu0 %v1586
      %v1733 = vpop.f32.mrf.mxu0
      %v1734 = vadd.f32 0.0, %v1733
      %v1735 = vpop.f32.mrf.mxu0
      %1736 = vmatprep.mubr.f32.mxu0 0.0
      %1737 = vmatmul.mubr.f32.gmra.mxu0 %v1587
      %v1738 = vpop.f32.mrf.mxu0
      %v1739 = vadd.f32 0.0, %v1738
      %v1740 = vpop.f32.mrf.mxu0
      %1741 = vmatprep.mubr.f32.mxu0 0.0
      %1742 = vmatmul.mubr.f32.gmra.mxu0 %v1588
      %v1743 = vpop.f32.mrf.mxu0
      %v1744 = vadd.f32 0.0, %v1743
      %v1745 = vpop.f32.mrf.mxu0
      %1746 = vmatprep.mubr.f32.mxu0 0.0
      %1747 = vmatmul.mubr.f32.gmra.mxu0 %v1589
      %v1748 = vpop.f32.mrf.mxu0
      %v1749 = vadd.f32 0.0, %v1748
      %v1750 = vpop.f32.mrf.mxu0
      %1751 = vmatprep.mubr.f32.mxu0 0.0
      %1752 = vmatmul.mubr.f32.gmra.mxu0 %v1590
      %v1753 = vpop.f32.mrf.mxu0
      %v1754 = vadd.f32 0.0, %v1753
      %v1755 = vpop.f32.mrf.mxu0
      %1756 = vmatprep.mubr.f32.mxu0 0.0
      %1757 = vmatmul.mubr.f32.gmra.mxu0 %v1591
      %v1758 = vpop.f32.mrf.mxu0
      %v1759 = vadd.f32 0.0, %v1758
      %v1760 = vpop.f32.mrf.mxu0
      %1761 = vmatprep.mubr.f32.mxu0 0.0
      %1762 = vmatmul.mubr.f32.gmra.mxu0 %v1592
      %v1763 = vpop.f32.mrf.mxu0
      %v1764 = vadd.f32 0.0, %v1763
      %v1765 = vpop.f32.mrf.mxu0
      %1766 = vmatprep.mubr.f32.mxu0 0.0
      %1767 = vmatmul.mubr.f32.gmra.mxu0 %v1593
      %v1768 = vpop.f32.mrf.mxu0
      %v1769 = vadd.f32 0.0, %v1768
      %v1770 = vpop.f32.mrf.mxu0
      %1771 = vmatprep.mubr.f32.mxu0 0.0
      %1772 = vmatmul.mubr.f32.gmra.mxu0 %v1594
      %v1773 = vpop.f32.mrf.mxu0
      %v1774 = vadd.f32 0.0, %v1773
      %v1775 = vpop.f32.mrf.mxu0
      %1776 = vmatprep.mubr.f32.mxu0 0.0
      %1777 = vmatmul.mubr.f32.gmra.mxu0 %v1595
      %v1778 = vpop.f32.mrf.mxu0
      %v1779 = vadd.f32 0.0, %v1778
      %v1780 = vpop.f32.mrf.mxu0
      %1781 = vmatprep.mubr.f32.mxu0 0.0
      %1782 = vmatmul.mubr.f32.gmra.mxu0 %v1596
      %v1783 = vpop.f32.mrf.mxu0
      %v1784 = vadd.f32 0.0, %v1783
      %v1785 = vpop.f32.mrf.mxu0
      %1786 = vmatprep.mubr.f32.mxu0 0.0
      %1787 = vmatmul.mubr.f32.gmra.mxu0 %v1597
      %v1788 = vpop.f32.mrf.mxu0
      %v1789 = vadd.f32 0.0, %v1788
      %v1790 = vpop.f32.mrf.mxu0
      %1791 = vmatprep.mubr.f32.mxu0 0.0
      %1792 = vmatmul.mubr.f32.gmra.mxu0 %v1598
      %v1793 = vpop.f32.mrf.mxu0
      %v1794 = vadd.f32 0.0, %v1793
      %v1795 = vpop.f32.mrf.mxu0
      %1796 = vmatprep.mubr.f32.mxu0 0.0
      %1797 = vmatmul.mubr.f32.gmra.mxu0 %v1599
      %v1798 = vpop.f32.mrf.mxu0
      %v1799 = vadd.f32 0.0, %v1798
      %v1800 = vpop.f32.mrf.mxu0
      %1801 = vmatprep.mubr.f32.mxu0 0.0
      %1802 = vmatmul.mubr.f32.gmra.mxu0 %v1600
      %v1803 = vpop.f32.mrf.mxu0
      %v1804 = vadd.f32 0.0, %v1803
      %v1805 = vpop.f32.mrf.mxu0
      %1806 = vmatprep.mubr.f32.mxu0 0.0
      %1807 = vmatmul.mubr.f32.gmra.mxu0 %v1601
      %v1808 = vpop.f32.mrf.mxu0
      %v1809 = vadd.f32 0.0, %v1808
      %v1810 = vpop.f32.mrf.mxu0
      %1811 = vmatprep.mubr.f32.mxu0 0.0
      %1812 = vmatmul.mubr.f32.gmra.mxu0 %v1602
      %v1813 = vpop.f32.mrf.mxu0
      %v1814 = vadd.f32 0.0, %v1813
      %v1815 = vpop.f32.mrf.mxu0
      %1816 = vmatprep.mubr.f32.mxu0 0.0
      %1817 = vmatmul.mubr.f32.gmra.mxu0 %v1603
      %v1818 = vpop.f32.mrf.mxu0
      %v1819 = vadd.f32 0.0, %v1818
      %v1820 = vpop.f32.mrf.mxu0
      %1821 = vmatprep.mubr.f32.mxu0 0.0
      %1822 = vmatmul.mubr.f32.gmra.mxu0 %v1604
      %v1823 = vpop.f32.mrf.mxu0
      %v1824 = vadd.f32 0.0, %v1823
      %v1825 = vpop.f32.mrf.mxu0
      %1826 = vmatprep.mubr.f32.mxu0 0.0
      %1827 = vmatmul.mubr.f32.gmra.mxu0 %v1605
      %v1828 = vpop.f32.mrf.mxu0
      %v1829 = vadd.f32 0.0, %v1828
      %v1830 = vpop.f32.mrf.mxu0
      %1831 = vmatprep.mubr.f32.mxu0 0.0
      %1832 = vmatmul.mubr.f32.gmra.mxu0 %v1606
      %v1833 = vpop.f32.mrf.mxu0
      %v1834 = vadd.f32 0.0, %v1833
      %v1835 = vpop.f32.mrf.mxu0
      %1836 = vmatprep.mubr.f32.mxu0 0.0
      %1837 = vmatmul.mubr.f32.gmra.mxu0 %v1607
      %v1838 = vpop.f32.mrf.mxu0
      %v1839 = vadd.f32 0.0, %v1838
      %v1840 = vpop.f32.mrf.mxu0
      %1841 = vmatprep.mubr.f32.mxu0 0.0
      %1842 = vmatmul.mubr.f32.gmra.mxu0 %v1608
      %v1843 = vpop.f32.mrf.mxu0
      %v1844 = vadd.f32 0.0, %v1843
      %v1845 = vpop.f32.mrf.mxu0
      %1846 = vmatprep.mubr.f32.mxu0 0.0
      %1847 = vmatmul.mubr.f32.gmra.mxu0 %v1609
      %v1848 = vpop.f32.mrf.mxu0
      %v1849 = vadd.f32 0.0, %v1848
      %v1850 = vpop.f32.mrf.mxu0
      %1851 = vdwg.mxu0
      %v1852 = vadd.f32 %v1539, %v1694
      %v1853 = vadd.f32 %v1540, %v1699
      %v1854 = vadd.f32 %v1541, %v1704
      %v1855 = vadd.f32 %v1542, %v1709
      %v1856 = vadd.f32 %v1543, %v1714
      %v1857 = vadd.f32 %v1544, %v1719
      %v1858 = vadd.f32 %v1545, %v1724
      %v1859 = vadd.f32 %v1546, %v1729
      %v1860 = vadd.f32 %v1547, %v1734
      %v1861 = vadd.f32 %v1548, %v1739
      %v1862 = vadd.f32 %v1549, %v1744
      %v1863 = vadd.f32 %v1550, %v1749
      %v1864 = vadd.f32 %v1551, %v1754
      %v1865 = vadd.f32 %v1552, %v1759
      %v1866 = vadd.f32 %v1553, %v1764
      %v1867 = vadd.f32 %v1554, %v1769
      %v1868 = vadd.f32 %v1555, %v1774
      %v1869 = vadd.f32 %v1556, %v1779
      %v1870 = vadd.f32 %v1557, %v1784
      %v1871 = vadd.f32 %v1558, %v1789
      %v1872 = vadd.f32 %v1559, %v1794
      %v1873 = vadd.f32 %v1560, %v1799
      %v1874 = vadd.f32 %v1561, %v1804
      %v1875 = vadd.f32 %v1562, %v1809
      %v1876 = vadd.f32 %v1563, %v1814
      %v1877 = vadd.f32 %v1564, %v1819
      %v1878 = vadd.f32 %v1565, %v1824
      %v1879 = vadd.f32 %v1566, %v1829
      %v1880 = vadd.f32 %v1567, %v1834
      %v1881 = vadd.f32 %v1568, %v1839
      %v1882 = vadd.f32 %v1569, %v1844
      %v1883 = vadd.f32 %v1570, %v1849
      %s1884 = scalar_lea.vmem %s3, 512
      %v1885 = vld [vmem:[%s1884] sm:$0xff]
      %v1886 = vld [vmem:[%s1884 + $0x8] sm:$0xff]
      %v1887 = vld [vmem:[%s1884 + $0x10] sm:$0xff]
      %v1888 = vld [vmem:[%s1884 + $0x18] sm:$0xff]
      %v1889 = vld [vmem:[%s1884 + $0x20] sm:$0xff]
      %v1890 = vld [vmem:[%s1884 + $0x28] sm:$0xff]
      %v1891 = vld [vmem:[%s1884 + $0x30] sm:$0xff]
      %v1892 = vld [vmem:[%s1884 + $0x38] sm:$0xff]
      %v1893 = vld [vmem:[%s1884 + $0x40] sm:$0xff]
      %v1894 = vld [vmem:[%s1884 + $0x48] sm:$0xff]
      %v1895 = vld [vmem:[%s1884 + $0x50] sm:$0xff]
      %v1896 = vld [vmem:[%s1884 + $0x58] sm:$0xff]
      %v1897 = vld [vmem:[%s1884 + $0x60] sm:$0xff]
      %v1898 = vld [vmem:[%s1884 + $0x68] sm:$0xff]
      %v1899 = vld [vmem:[%s1884 + $0x70] sm:$0xff]
      %v1900 = vld [vmem:[%s1884 + $0x78] sm:$0xff]
      %1901 = vmatprep.subr.mxu0 0.0
      %1902 = vmatpush1.msra.mxu0 %v1900
      %1903 = vmatprep.subr.mxu0 0.0
      %1904 = vmatpush1.msra.mxu0 %v1899
      %1905 = vmatprep.subr.mxu0 0.0
      %1906 = vmatpush1.msra.mxu0 %v1898
      %1907 = vmatprep.subr.mxu0 0.0
      %1908 = vmatpush1.msra.mxu0 %v1897
      %1909 = vmatprep.subr.mxu0 0.0
      %1910 = vmatpush1.msra.mxu0 %v1896
      %1911 = vmatprep.subr.mxu0 0.0
      %1912 = vmatpush1.msra.mxu0 %v1895
      %1913 = vmatprep.subr.mxu0 0.0
      %1914 = vmatpush1.msra.mxu0 %v1894
      %1915 = vmatprep.subr.mxu0 0.0
      %1916 = vmatpush1.msra.mxu0 %v1893
      %1917 = vmatprep.subr.mxu0 0.0
      %1918 = vmatpush1.msra.mxu0 %v1892
      %1919 = vmatprep.subr.mxu0 0.0
      %1920 = vmatpush1.msra.mxu0 %v1891
      %1921 = vmatprep.subr.mxu0 0.0
      %1922 = vmatpush1.msra.mxu0 %v1890
      %1923 = vmatprep.subr.mxu0 0.0
      %1924 = vmatpush1.msra.mxu0 %v1889
      %1925 = vmatprep.subr.mxu0 0.0
      %1926 = vmatpush1.msra.mxu0 %v1888
      %1927 = vmatprep.subr.mxu0 0.0
      %1928 = vmatpush1.msra.mxu0 %v1887
      %1929 = vmatprep.subr.mxu0 0.0
      %1930 = vmatpush1.msra.mxu0 %v1886
      %1931 = vmatprep.subr.mxu0 0.0
      %1932 = vmatpush1.msra.mxu0 %v1885
      %1933 = vmatprep.subr.mxu0 0.0
      %1934 = vmatpush2.msra.mxu0 0.0
      %1935 = vmatprep.subr.mxu0 0.0
      %1936 = vmatpush2.msra.mxu0 0.0
      %1937 = vmatprep.subr.mxu0 0.0
      %1938 = vmatpush2.msra.mxu0 0.0
      %1939 = vmatprep.subr.mxu0 0.0
      %1940 = vmatpush2.msra.mxu0 0.0
      %1941 = vmatprep.subr.mxu0 0.0
      %1942 = vmatpush2.msra.mxu0 0.0
      %1943 = vmatprep.subr.mxu0 0.0
      %1944 = vmatpush2.msra.mxu0 0.0
      %1945 = vmatprep.subr.mxu0 0.0
      %1946 = vmatpush2.msra.mxu0 0.0
      %1947 = vmatprep.subr.mxu0 0.0
      %1948 = vmatpush2.msra.mxu0 0.0
      %1949 = vmatprep.subr.mxu0 0.0
      %1950 = vmatpush2.msra.mxu0 0.0
      %1951 = vmatprep.subr.mxu0 0.0
      %1952 = vmatpush2.msra.mxu0 0.0
      %1953 = vmatprep.subr.mxu0 0.0
      %1954 = vmatpush2.msra.mxu0 0.0
      %1955 = vmatprep.subr.mxu0 0.0
      %1956 = vmatpush2.msra.mxu0 0.0
      %1957 = vmatprep.subr.mxu0 0.0
      %1958 = vmatpush2.msra.mxu0 0.0
      %1959 = vmatprep.subr.mxu0 0.0
      %1960 = vmatpush2.msra.mxu0 0.0
      %1961 = vmatprep.subr.mxu0 0.0
      %1962 = vmatpush2.msra.mxu0 0.0
      %1963 = vmatprep.subr.mxu0 0.0
      %1964 = vmatpush2.msra.mxu0 0.0
      %1965 = vmatprep.mubr.f32.mxu0 0.0
      %1966 = vmatmul.mubr.f32.gmra.mxu0 %v342
      %v1967 = vpop.f32.mrf.mxu0
      %v1968 = vadd.f32 0.0, %v1967
      %v1969 = vpop.f32.mrf.mxu0
      %1970 = vmatprep.mubr.f32.mxu0 0.0
      %1971 = vmatmul.mubr.f32.gmra.mxu0 %v343
      %v1972 = vpop.f32.mrf.mxu0
      %v1973 = vadd.f32 0.0, %v1972
      %v1974 = vpop.f32.mrf.mxu0
      %1975 = vmatprep.mubr.f32.mxu0 0.0
      %1976 = vmatmul.mubr.f32.gmra.mxu0 %v344
      %v1977 = vpop.f32.mrf.mxu0
      %v1978 = vadd.f32 0.0, %v1977
      %v1979 = vpop.f32.mrf.mxu0
      %1980 = vmatprep.mubr.f32.mxu0 0.0
      %1981 = vmatmul.mubr.f32.gmra.mxu0 %v345
      %v1982 = vpop.f32.mrf.mxu0
      %v1983 = vadd.f32 0.0, %v1982
      %v1984 = vpop.f32.mrf.mxu0
      %1985 = vmatprep.mubr.f32.mxu0 0.0
      %1986 = vmatmul.mubr.f32.gmra.mxu0 %v346
      %v1987 = vpop.f32.mrf.mxu0
      %v1988 = vadd.f32 0.0, %v1987
      %v1989 = vpop.f32.mrf.mxu0
      %1990 = vmatprep.mubr.f32.mxu0 0.0
      %1991 = vmatmul.mubr.f32.gmra.mxu0 %v347
      %v1992 = vpop.f32.mrf.mxu0
      %v1993 = vadd.f32 0.0, %v1992
      %v1994 = vpop.f32.mrf.mxu0
      %1995 = vmatprep.mubr.f32.mxu0 0.0
      %1996 = vmatmul.mubr.f32.gmra.mxu0 %v348
      %v1997 = vpop.f32.mrf.mxu0
      %v1998 = vadd.f32 0.0, %v1997
      %v1999 = vpop.f32.mrf.mxu0
      %2000 = vmatprep.mubr.f32.mxu0 0.0
      %2001 = vmatmul.mubr.f32.gmra.mxu0 %v349
      %v2002 = vpop.f32.mrf.mxu0
      %v2003 = vadd.f32 0.0, %v2002
      %v2004 = vpop.f32.mrf.mxu0
      %2005 = vmatprep.mubr.f32.mxu0 0.0
      %2006 = vmatmul.mubr.f32.gmra.mxu0 %v350
      %v2007 = vpop.f32.mrf.mxu0
      %v2008 = vadd.f32 0.0, %v2007
      %v2009 = vpop.f32.mrf.mxu0
      %2010 = vmatprep.mubr.f32.mxu0 0.0
      %2011 = vmatmul.mubr.f32.gmra.mxu0 %v351
      %v2012 = vpop.f32.mrf.mxu0
      %v2013 = vadd.f32 0.0, %v2012
      %v2014 = vpop.f32.mrf.mxu0
      %2015 = vmatprep.mubr.f32.mxu0 0.0
      %2016 = vmatmul.mubr.f32.gmra.mxu0 %v352
      %v2017 = vpop.f32.mrf.mxu0
      %v2018 = vadd.f32 0.0, %v2017
      %v2019 = vpop.f32.mrf.mxu0
      %2020 = vmatprep.mubr.f32.mxu0 0.0
      %2021 = vmatmul.mubr.f32.gmra.mxu0 %v353
      %v2022 = vpop.f32.mrf.mxu0
      %v2023 = vadd.f32 0.0, %v2022
      %v2024 = vpop.f32.mrf.mxu0
      %2025 = vmatprep.mubr.f32.mxu0 0.0
      %2026 = vmatmul.mubr.f32.gmra.mxu0 %v354
      %v2027 = vpop.f32.mrf.mxu0
      %v2028 = vadd.f32 0.0, %v2027
      %v2029 = vpop.f32.mrf.mxu0
      %2030 = vmatprep.mubr.f32.mxu0 0.0
      %2031 = vmatmul.mubr.f32.gmra.mxu0 %v355
      %v2032 = vpop.f32.mrf.mxu0
      %v2033 = vadd.f32 0.0, %v2032
      %v2034 = vpop.f32.mrf.mxu0
      %2035 = vmatprep.mubr.f32.mxu0 0.0
      %2036 = vmatmul.mubr.f32.gmra.mxu0 %v356
      %v2037 = vpop.f32.mrf.mxu0
      %v2038 = vadd.f32 0.0, %v2037
      %v2039 = vpop.f32.mrf.mxu0
      %2040 = vmatprep.mubr.f32.mxu0 0.0
      %2041 = vmatmul.mubr.f32.gmra.mxu0 %v357
      %v2042 = vpop.f32.mrf.mxu0
      %v2043 = vadd.f32 0.0, %v2042
      %v2044 = vpop.f32.mrf.mxu0
      %2045 = vmatprep.mubr.f32.mxu0 0.0
      %2046 = vmatmul.mubr.f32.gmra.mxu0 %v358
      %v2047 = vpop.f32.mrf.mxu0
      %v2048 = vadd.f32 0.0, %v2047
      %v2049 = vpop.f32.mrf.mxu0
      %2050 = vmatprep.mubr.f32.mxu0 0.0
      %2051 = vmatmul.mubr.f32.gmra.mxu0 %v359
      %v2052 = vpop.f32.mrf.mxu0
      %v2053 = vadd.f32 0.0, %v2052
      %v2054 = vpop.f32.mrf.mxu0
      %2055 = vmatprep.mubr.f32.mxu0 0.0
      %2056 = vmatmul.mubr.f32.gmra.mxu0 %v360
      %v2057 = vpop.f32.mrf.mxu0
      %v2058 = vadd.f32 0.0, %v2057
      %v2059 = vpop.f32.mrf.mxu0
      %2060 = vmatprep.mubr.f32.mxu0 0.0
      %2061 = vmatmul.mubr.f32.gmra.mxu0 %v361
      %v2062 = vpop.f32.mrf.mxu0
      %v2063 = vadd.f32 0.0, %v2062
      %v2064 = vpop.f32.mrf.mxu0
      %2065 = vmatprep.mubr.f32.mxu0 0.0
      %2066 = vmatmul.mubr.f32.gmra.mxu0 %v362
      %v2067 = vpop.f32.mrf.mxu0
      %v2068 = vadd.f32 0.0, %v2067
      %v2069 = vpop.f32.mrf.mxu0
      %2070 = vmatprep.mubr.f32.mxu0 0.0
      %2071 = vmatmul.mubr.f32.gmra.mxu0 %v363
      %v2072 = vpop.f32.mrf.mxu0
      %v2073 = vadd.f32 0.0, %v2072
      %v2074 = vpop.f32.mrf.mxu0
      %2075 = vmatprep.mubr.f32.mxu0 0.0
      %2076 = vmatmul.mubr.f32.gmra.mxu0 %v364
      %v2077 = vpop.f32.mrf.mxu0
      %v2078 = vadd.f32 0.0, %v2077
      %v2079 = vpop.f32.mrf.mxu0
      %2080 = vmatprep.mubr.f32.mxu0 0.0
      %2081 = vmatmul.mubr.f32.gmra.mxu0 %v365
      %v2082 = vpop.f32.mrf.mxu0
      %v2083 = vadd.f32 0.0, %v2082
      %v2084 = vpop.f32.mrf.mxu0
      %2085 = vmatprep.mubr.f32.mxu0 0.0
      %2086 = vmatmul.mubr.f32.gmra.mxu0 %v366
      %v2087 = vpop.f32.mrf.mxu0
      %v2088 = vadd.f32 0.0, %v2087
      %v2089 = vpop.f32.mrf.mxu0
      %2090 = vmatprep.mubr.f32.mxu0 0.0
      %2091 = vmatmul.mubr.f32.gmra.mxu0 %v367
      %v2092 = vpop.f32.mrf.mxu0
      %v2093 = vadd.f32 0.0, %v2092
      %v2094 = vpop.f32.mrf.mxu0
      %2095 = vmatprep.mubr.f32.mxu0 0.0
      %2096 = vmatmul.mubr.f32.gmra.mxu0 %v368
      %v2097 = vpop.f32.mrf.mxu0
      %v2098 = vadd.f32 0.0, %v2097
      %v2099 = vpop.f32.mrf.mxu0
      %2100 = vmatprep.mubr.f32.mxu0 0.0
      %2101 = vmatmul.mubr.f32.gmra.mxu0 %v369
      %v2102 = vpop.f32.mrf.mxu0
      %v2103 = vadd.f32 0.0, %v2102
      %v2104 = vpop.f32.mrf.mxu0
      %2105 = vmatprep.mubr.f32.mxu0 0.0
      %2106 = vmatmul.mubr.f32.gmra.mxu0 %v370
      %v2107 = vpop.f32.mrf.mxu0
      %v2108 = vadd.f32 0.0, %v2107
      %v2109 = vpop.f32.mrf.mxu0
      %2110 = vmatprep.mubr.f32.mxu0 0.0
      %2111 = vmatmul.mubr.f32.gmra.mxu0 %v371
      %v2112 = vpop.f32.mrf.mxu0
      %v2113 = vadd.f32 0.0, %v2112
      %v2114 = vpop.f32.mrf.mxu0
      %2115 = vmatprep.mubr.f32.mxu0 0.0
      %2116 = vmatmul.mubr.f32.gmra.mxu0 %v372
      %v2117 = vpop.f32.mrf.mxu0
      %v2118 = vadd.f32 0.0, %v2117
      %v2119 = vpop.f32.mrf.mxu0
      %2120 = vmatprep.mubr.f32.mxu0 0.0
      %2121 = vmatmul.mubr.f32.gmra.mxu0 %v373
      %v2122 = vpop.f32.mrf.mxu0
      %v2123 = vadd.f32 0.0, %v2122
      %v2124 = vpop.f32.mrf.mxu0
      %2125 = vdwg.mxu0
      %v2126 = vadd.f32 %v1852, %v1968
      %v2127 = vadd.f32 %v1853, %v1973
      %v2128 = vadd.f32 %v1854, %v1978
      %v2129 = vadd.f32 %v1855, %v1983
      %v2130 = vadd.f32 %v1856, %v1988
      %v2131 = vadd.f32 %v1857, %v1993
      %v2132 = vadd.f32 %v1858, %v1998
      %v2133 = vadd.f32 %v1859, %v2003
      %v2134 = vadd.f32 %v1860, %v2008
      %v2135 = vadd.f32 %v1861, %v2013
      %v2136 = vadd.f32 %v1862, %v2018
      %v2137 = vadd.f32 %v1863, %v2023
      %v2138 = vadd.f32 %v1864, %v2028
      %v2139 = vadd.f32 %v1865, %v2033
      %v2140 = vadd.f32 %v1866, %v2038
      %v2141 = vadd.f32 %v1867, %v2043
      %v2142 = vadd.f32 %v1868, %v2048
      %v2143 = vadd.f32 %v1869, %v2053
      %v2144 = vadd.f32 %v1870, %v2058
      %v2145 = vadd.f32 %v1871, %v2063
      %v2146 = vadd.f32 %v1872, %v2068
      %v2147 = vadd.f32 %v1873, %v2073
      %v2148 = vadd.f32 %v1874, %v2078
      %v2149 = vadd.f32 %v1875, %v2083
      %v2150 = vadd.f32 %v1876, %v2088
      %v2151 = vadd.f32 %v1877, %v2093
      %v2152 = vadd.f32 %v1878, %v2098
      %v2153 = vadd.f32 %v1879, %v2103
      %v2154 = vadd.f32 %v1880, %v2108
      %v2155 = vadd.f32 %v1881, %v2113
      %v2156 = vadd.f32 %v1882, %v2118
      %v2157 = vadd.f32 %v1883, %v2123
      %v2158 = vrot.slane %v373, 1
      %v2159 = vsel %vm438, %v1231, %v2158
      %v2162 = vsel %vm438, %v2158, 0.0
      %v2163 = vmul.f32 %v1174, %v441
      %v2164 = vmul.f32 %v1176, %v443
      %v2165 = vmul.f32 %v1178, %v445
      %v2166 = vmul.f32 %v1180, %v447
      %v2167 = vmul.f32 %v1182, %v449
      %v2168 = vmul.f32 %v1184, %v451
      %v2169 = vmul.f32 %v1186, %v453
      %v2170 = vmul.f32 %v1188, %v455
      %v2171 = vmul.f32 %v1190, %v457
      %v2172 = vmul.f32 %v1192, %v459
      %v2173 = vmul.f32 %v1194, %v461
      %v2174 = vmul.f32 %v1196, %v463
      %v2175 = vmul.f32 %v1198, %v465
      %v2176 = vmul.f32 %v1200, %v467
      %v2177 = vmul.f32 %v1202, %v469
      %v2178 = vmul.f32 %v1204, %v471
      %v2179 = vmul.f32 %v1206, %v473
      %v2180 = vmul.f32 %v1208, %v475
      %v2181 = vmul.f32 %v1210, %v477
      %v2182 = vmul.f32 %v1212, %v479
      %v2183 = vmul.f32 %v1214, %v481
      %v2184 = vmul.f32 %v1216, %v483
      %v2185 = vmul.f32 %v1218, %v485
      %v2186 = vmul.f32 %v1220, %v487
      %v2187 = vmul.f32 %v1222, %v489
      %v2188 = vmul.f32 %v1224, %v491
      %v2189 = vmul.f32 %v1226, %v493
      %v2190 = vmul.f32 %v1228, %v495
      %v2191 = vmul.f32 %v1230, %v497
      %v2192 = vmul.f32 %v1232, %v499
      %v2193 = vmul.f32 %v2159, %v501
      %v2194 = vmul.f32 %v2162, %v534
      %s2195 = scalar_lea.vmem %s3, 640
      %v2196 = vld [vmem:[%s2195] sm:$0xff]
      %v2197 = vld [vmem:[%s2195 + $0x8] sm:$0xff]
      %v2198 = vld [vmem:[%s2195 + $0x10] sm:$0xff]
      %v2199 = vld [vmem:[%s2195 + $0x18] sm:$0xff]
      %v2200 = vld [vmem:[%s2195 + $0x20] sm:$0xff]
      %v2201 = vld [vmem:[%s2195 + $0x28] sm:$0xff]
      %v2202 = vld [vmem:[%s2195 + $0x30] sm:$0xff]
      %v2203 = vld [vmem:[%s2195 + $0x38] sm:$0xff]
      %v2204 = vld [vmem:[%s2195 + $0x40] sm:$0xff]
      %v2205 = vld [vmem:[%s2195 + $0x48] sm:$0xff]
      %v2206 = vld [vmem:[%s2195 + $0x50] sm:$0xff]
      %v2207 = vld [vmem:[%s2195 + $0x58] sm:$0xff]
      %v2208 = vld [vmem:[%s2195 + $0x60] sm:$0xff]
      %v2209 = vld [vmem:[%s2195 + $0x68] sm:$0xff]
      %v2210 = vld [vmem:[%s2195 + $0x70] sm:$0xff]
      %v2211 = vld [vmem:[%s2195 + $0x78] sm:$0xff]
      %2212 = vmatprep.subr.mxu0 0.0
      %2213 = vmatpush1.msra.mxu0 %v2211
      %2214 = vmatprep.subr.mxu0 0.0
      %2215 = vmatpush1.msra.mxu0 %v2210
      %2216 = vmatprep.subr.mxu0 0.0
      %2217 = vmatpush1.msra.mxu0 %v2209
      %2218 = vmatprep.subr.mxu0 0.0
      %2219 = vmatpush1.msra.mxu0 %v2208
      %2220 = vmatprep.subr.mxu0 0.0
      %2221 = vmatpush1.msra.mxu0 %v2207
      %2222 = vmatprep.subr.mxu0 0.0
      %2223 = vmatpush1.msra.mxu0 %v2206
      %2224 = vmatprep.subr.mxu0 0.0
      %2225 = vmatpush1.msra.mxu0 %v2205
      %2226 = vmatprep.subr.mxu0 0.0
      %2227 = vmatpush1.msra.mxu0 %v2204
      %2228 = vmatprep.subr.mxu0 0.0
      %2229 = vmatpush1.msra.mxu0 %v2203
      %2230 = vmatprep.subr.mxu0 0.0
      %2231 = vmatpush1.msra.mxu0 %v2202
      %2232 = vmatprep.subr.mxu0 0.0
      %2233 = vmatpush1.msra.mxu0 %v2201
      %2234 = vmatprep.subr.mxu0 0.0
      %2235 = vmatpush1.msra.mxu0 %v2200
      %2236 = vmatprep.subr.mxu0 0.0
      %2237 = vmatpush1.msra.mxu0 %v2199
      %2238 = vmatprep.subr.mxu0 0.0
      %2239 = vmatpush1.msra.mxu0 %v2198
      %2240 = vmatprep.subr.mxu0 0.0
      %2241 = vmatpush1.msra.mxu0 %v2197
      %2242 = vmatprep.subr.mxu0 0.0
      %2243 = vmatpush1.msra.mxu0 %v2196
      %2244 = vmatprep.subr.mxu0 0.0
      %2245 = vmatpush2.msra.mxu0 0.0
      %2246 = vmatprep.subr.mxu0 0.0
      %2247 = vmatpush2.msra.mxu0 0.0
      %2248 = vmatprep.subr.mxu0 0.0
      %2249 = vmatpush2.msra.mxu0 0.0
      %2250 = vmatprep.subr.mxu0 0.0
      %2251 = vmatpush2.msra.mxu0 0.0
      %2252 = vmatprep.subr.mxu0 0.0
      %2253 = vmatpush2.msra.mxu0 0.0
      %2254 = vmatprep.subr.mxu0 0.0
      %2255 = vmatpush2.msra.mxu0 0.0
      %2256 = vmatprep.subr.mxu0 0.0
      %2257 = vmatpush2.msra.mxu0 0.0
      %2258 = vmatprep.subr.mxu0 0.0
      %2259 = vmatpush2.msra.mxu0 0.0
      %2260 = vmatprep.subr.mxu0 0.0
      %2261 = vmatpush2.msra.mxu0 0.0
      %2262 = vmatprep.subr.mxu0 0.0
      %2263 = vmatpush2.msra.mxu0 0.0
      %2264 = vmatprep.subr.mxu0 0.0
      %2265 = vmatpush2.msra.mxu0 0.0
      %2266 = vmatprep.subr.mxu0 0.0
      %2267 = vmatpush2.msra.mxu0 0.0
      %2268 = vmatprep.subr.mxu0 0.0
      %2269 = vmatpush2.msra.mxu0 0.0
      %2270 = vmatprep.subr.mxu0 0.0
      %2271 = vmatpush2.msra.mxu0 0.0
      %2272 = vmatprep.subr.mxu0 0.0
      %2273 = vmatpush2.msra.mxu0 0.0
      %2274 = vmatprep.subr.mxu0 0.0
      %2275 = vmatpush2.msra.mxu0 0.0
      %2276 = vmatprep.mubr.f32.mxu0 0.0
      %2277 = vmatmul.mubr.f32.gmra.mxu0 %v2163
      %v2278 = vpop.f32.mrf.mxu0
      %v2279 = vadd.f32 0.0, %v2278
      %v2280 = vpop.f32.mrf.mxu0
      %2281 = vmatprep.mubr.f32.mxu0 0.0
      %2282 = vmatmul.mubr.f32.gmra.mxu0 %v2164
      %v2283 = vpop.f32.mrf.mxu0
      %v2284 = vadd.f32 0.0, %v2283
      %v2285 = vpop.f32.mrf.mxu0
      %2286 = vmatprep.mubr.f32.mxu0 0.0
      %2287 = vmatmul.mubr.f32.gmra.mxu0 %v2165
      %v2288 = vpop.f32.mrf.mxu0
      %v2289 = vadd.f32 0.0, %v2288
      %v2290 = vpop.f32.mrf.mxu0
      %2291 = vmatprep.mubr.f32.mxu0 0.0
      %2292 = vmatmul.mubr.f32.gmra.mxu0 %v2166
      %v2293 = vpop.f32.mrf.mxu0
      %v2294 = vadd.f32 0.0, %v2293
      %v2295 = vpop.f32.mrf.mxu0
      %2296 = vmatprep.mubr.f32.mxu0 0.0
      %2297 = vmatmul.mubr.f32.gmra.mxu0 %v2167
      %v2298 = vpop.f32.mrf.mxu0
      %v2299 = vadd.f32 0.0, %v2298
      %v2300 = vpop.f32.mrf.mxu0
      %2301 = vmatprep.mubr.f32.mxu0 0.0
      %2302 = vmatmul.mubr.f32.gmra.mxu0 %v2168
      %v2303 = vpop.f32.mrf.mxu0
      %v2304 = vadd.f32 0.0, %v2303
      %v2305 = vpop.f32.mrf.mxu0
      %2306 = vmatprep.mubr.f32.mxu0 0.0
      %2307 = vmatmul.mubr.f32.gmra.mxu0 %v2169
      %v2308 = vpop.f32.mrf.mxu0
      %v2309 = vadd.f32 0.0, %v2308
      %v2310 = vpop.f32.mrf.mxu0
      %2311 = vmatprep.mubr.f32.mxu0 0.0
      %2312 = vmatmul.mubr.f32.gmra.mxu0 %v2170
      %v2313 = vpop.f32.mrf.mxu0
      %v2314 = vadd.f32 0.0, %v2313
      %v2315 = vpop.f32.mrf.mxu0
      %2316 = vmatprep.mubr.f32.mxu0 0.0
      %2317 = vmatmul.mubr.f32.gmra.mxu0 %v2171
      %v2318 = vpop.f32.mrf.mxu0
      %v2319 = vadd.f32 0.0, %v2318
      %v2320 = vpop.f32.mrf.mxu0
      %2321 = vmatprep.mubr.f32.mxu0 0.0
      %2322 = vmatmul.mubr.f32.gmra.mxu0 %v2172
      %v2323 = vpop.f32.mrf.mxu0
      %v2324 = vadd.f32 0.0, %v2323
      %v2325 = vpop.f32.mrf.mxu0
      %2326 = vmatprep.mubr.f32.mxu0 0.0
      %2327 = vmatmul.mubr.f32.gmra.mxu0 %v2173
      %v2328 = vpop.f32.mrf.mxu0
      %v2329 = vadd.f32 0.0, %v2328
      %v2330 = vpop.f32.mrf.mxu0
      %2331 = vmatprep.mubr.f32.mxu0 0.0
      %2332 = vmatmul.mubr.f32.gmra.mxu0 %v2174
      %v2333 = vpop.f32.mrf.mxu0
      %v2334 = vadd.f32 0.0, %v2333
      %v2335 = vpop.f32.mrf.mxu0
      %2336 = vmatprep.mubr.f32.mxu0 0.0
      %2337 = vmatmul.mubr.f32.gmra.mxu0 %v2175
      %v2338 = vpop.f32.mrf.mxu0
      %v2339 = vadd.f32 0.0, %v2338
      %v2340 = vpop.f32.mrf.mxu0
      %2341 = vmatprep.mubr.f32.mxu0 0.0
      %2342 = vmatmul.mubr.f32.gmra.mxu0 %v2176
      %v2343 = vpop.f32.mrf.mxu0
      %v2344 = vadd.f32 0.0, %v2343
      %v2345 = vpop.f32.mrf.mxu0
      %2346 = vmatprep.mubr.f32.mxu0 0.0
      %2347 = vmatmul.mubr.f32.gmra.mxu0 %v2177
      %v2348 = vpop.f32.mrf.mxu0
      %v2349 = vadd.f32 0.0, %v2348
      %v2350 = vpop.f32.mrf.mxu0
      %2351 = vmatprep.mubr.f32.mxu0 0.0
      %2352 = vmatmul.mubr.f32.gmra.mxu0 %v2178
      %v2353 = vpop.f32.mrf.mxu0
      %v2354 = vadd.f32 0.0, %v2353
      %v2355 = vpop.f32.mrf.mxu0
      %2356 = vmatprep.mubr.f32.mxu0 0.0
      %2357 = vmatmul.mubr.f32.gmra.mxu0 %v2179
      %v2358 = vpop.f32.mrf.mxu0
      %v2359 = vadd.f32 0.0, %v2358
      %v2360 = vpop.f32.mrf.mxu0
      %2361 = vmatprep.mubr.f32.mxu0 0.0
      %2362 = vmatmul.mubr.f32.gmra.mxu0 %v2180
      %v2363 = vpop.f32.mrf.mxu0
      %v2364 = vadd.f32 0.0, %v2363
      %v2365 = vpop.f32.mrf.mxu0
      %2366 = vmatprep.mubr.f32.mxu0 0.0
      %2367 = vmatmul.mubr.f32.gmra.mxu0 %v2181
      %v2368 = vpop.f32.mrf.mxu0
      %v2369 = vadd.f32 0.0, %v2368
      %v2370 = vpop.f32.mrf.mxu0
      %2371 = vmatprep.mubr.f32.mxu0 0.0
      %2372 = vmatmul.mubr.f32.gmra.mxu0 %v2182
      %v2373 = vpop.f32.mrf.mxu0
      %v2374 = vadd.f32 0.0, %v2373
      %v2375 = vpop.f32.mrf.mxu0
      %2376 = vmatprep.mubr.f32.mxu0 0.0
      %2377 = vmatmul.mubr.f32.gmra.mxu0 %v2183
      %v2378 = vpop.f32.mrf.mxu0
      %v2379 = vadd.f32 0.0, %v2378
      %v2380 = vpop.f32.mrf.mxu0
      %2381 = vmatprep.mubr.f32.mxu0 0.0
      %2382 = vmatmul.mubr.f32.gmra.mxu0 %v2184
      %v2383 = vpop.f32.mrf.mxu0
      %v2384 = vadd.f32 0.0, %v2383
      %v2385 = vpop.f32.mrf.mxu0
      %2386 = vmatprep.mubr.f32.mxu0 0.0
      %2387 = vmatmul.mubr.f32.gmra.mxu0 %v2185
      %v2388 = vpop.f32.mrf.mxu0
      %v2389 = vadd.f32 0.0, %v2388
      %v2390 = vpop.f32.mrf.mxu0
      %2391 = vmatprep.mubr.f32.mxu0 0.0
      %2392 = vmatmul.mubr.f32.gmra.mxu0 %v2186
      %v2393 = vpop.f32.mrf.mxu0
      %v2394 = vadd.f32 0.0, %v2393
      %v2395 = vpop.f32.mrf.mxu0
      %2396 = vmatprep.mubr.f32.mxu0 0.0
      %2397 = vmatmul.mubr.f32.gmra.mxu0 %v2187
      %v2398 = vpop.f32.mrf.mxu0
      %v2399 = vadd.f32 0.0, %v2398
      %v2400 = vpop.f32.mrf.mxu0
      %2401 = vmatprep.mubr.f32.mxu0 0.0
      %2402 = vmatmul.mubr.f32.gmra.mxu0 %v2188
      %v2403 = vpop.f32.mrf.mxu0
      %v2404 = vadd.f32 0.0, %v2403
      %v2405 = vpop.f32.mrf.mxu0
      %2406 = vmatprep.mubr.f32.mxu0 0.0
      %2407 = vmatmul.mubr.f32.gmra.mxu0 %v2189
      %v2408 = vpop.f32.mrf.mxu0
      %v2409 = vadd.f32 0.0, %v2408
      %v2410 = vpop.f32.mrf.mxu0
      %2411 = vmatprep.mubr.f32.mxu0 0.0
      %2412 = vmatmul.mubr.f32.gmra.mxu0 %v2190
      %v2413 = vpop.f32.mrf.mxu0
      %v2414 = vadd.f32 0.0, %v2413
      %v2415 = vpop.f32.mrf.mxu0
      %2416 = vmatprep.mubr.f32.mxu0 0.0
      %2417 = vmatmul.mubr.f32.gmra.mxu0 %v2191
      %v2418 = vpop.f32.mrf.mxu0
      %v2419 = vadd.f32 0.0, %v2418
      %v2420 = vpop.f32.mrf.mxu0
      %2421 = vmatprep.mubr.f32.mxu0 0.0
      %2422 = vmatmul.mubr.f32.gmra.mxu0 %v2192
      %v2423 = vpop.f32.mrf.mxu0
      %v2424 = vadd.f32 0.0, %v2423
      %v2425 = vpop.f32.mrf.mxu0
      %2426 = vmatprep.mubr.f32.mxu0 0.0
      %2427 = vmatmul.mubr.f32.gmra.mxu0 %v2193
      %v2428 = vpop.f32.mrf.mxu0
      %v2429 = vadd.f32 0.0, %v2428
      %v2430 = vpop.f32.mrf.mxu0
      %2431 = vmatprep.mubr.f32.mxu0 0.0
      %2432 = vmatmul.mubr.f32.gmra.mxu0 %v2194
      %v2433 = vpop.f32.mrf.mxu0
      %v2434 = vadd.f32 0.0, %v2433
      %v2435 = vpop.f32.mrf.mxu0
      %2436 = vdwg.mxu0
      %v2437 = vadd.f32 %v2126, %v2279
      %v2438 = vadd.f32 %v2127, %v2284
      %v2439 = vadd.f32 %v2128, %v2289
      %v2440 = vadd.f32 %v2129, %v2294
      %v2441 = vadd.f32 %v2130, %v2299
      %v2442 = vadd.f32 %v2131, %v2304
      %v2443 = vadd.f32 %v2132, %v2309
      %v2444 = vadd.f32 %v2133, %v2314
      %v2445 = vadd.f32 %v2134, %v2319
      %v2446 = vadd.f32 %v2135, %v2324
      %v2447 = vadd.f32 %v2136, %v2329
      %v2448 = vadd.f32 %v2137, %v2334
      %v2449 = vadd.f32 %v2138, %v2339
      %v2450 = vadd.f32 %v2139, %v2344
      %v2451 = vadd.f32 %v2140, %v2349
      %v2452 = vadd.f32 %v2141, %v2354
      %v2453 = vadd.f32 %v2142, %v2359
      %v2454 = vadd.f32 %v2143, %v2364
      %v2455 = vadd.f32 %v2144, %v2369
      %v2456 = vadd.f32 %v2145, %v2374
      %v2457 = vadd.f32 %v2146, %v2379
      %v2458 = vadd.f32 %v2147, %v2384
      %v2459 = vadd.f32 %v2148, %v2389
      %v2460 = vadd.f32 %v2149, %v2394
      %v2461 = vadd.f32 %v2150, %v2399
      %v2462 = vadd.f32 %v2151, %v2404
      %v2463 = vadd.f32 %v2152, %v2409
      %v2464 = vadd.f32 %v2153, %v2414
      %v2465 = vadd.f32 %v2154, %v2419
      %v2466 = vadd.f32 %v2155, %v2424
      %v2467 = vadd.f32 %v2156, %v2429
      %v2468 = vadd.f32 %v2157, %v2434
      %v2470 = vsel %vm565, %v1574, 0.0
      %v2471 = vmul.f32 %v570, %v374
      %v2472 = vmul.f32 %v572, %v375
      %v2473 = vmul.f32 %v574, %v376
      %v2474 = vmul.f32 %v576, %v377
      %v2475 = vmul.f32 %v578, %v378
      %v2476 = vmul.f32 %v580, %v379
      %v2477 = vmul.f32 %v582, %v380
      %v2478 = vmul.f32 %v584, %v381
      %v2479 = vmul.f32 %v586, %v382
      %v2480 = vmul.f32 %v588, %v383
      %v2481 = vmul.f32 %v590, %v384
      %v2482 = vmul.f32 %v592, %v385
      %v2483 = vmul.f32 %v594, %v386
      %v2484 = vmul.f32 %v596, %v387
      %v2485 = vmul.f32 %v598, %v388
      %v2486 = vmul.f32 %v600, %v389
      %v2487 = vmul.f32 %v602, %v390
      %v2488 = vmul.f32 %v604, %v391
      %v2489 = vmul.f32 %v606, %v392
      %v2490 = vmul.f32 %v608, %v393
      %v2491 = vmul.f32 %v610, %v394
      %v2492 = vmul.f32 %v612, %v395
      %v2493 = vmul.f32 %v614, %v396
      %v2494 = vmul.f32 %v616, %v397
      %v2495 = vmul.f32 %v618, %v398
      %v2496 = vmul.f32 %v620, %v399
      %v2497 = vmul.f32 %v622, %v400
      %v2498 = vmul.f32 %v624, %v401
      %v2499 = vmul.f32 %v1573, %v402
      %v2500 = vmul.f32 %v1575, %v403
      %v2501 = vmul.f32 %v2470, %v404
      %v2502 = vmul.f32 %v405, 0.0
      %s2503 = scalar_lea.vmem %s3, 768
      %v2504 = vld [vmem:[%s2503] sm:$0xff]
      %v2505 = vld [vmem:[%s2503 + $0x8] sm:$0xff]
      %v2506 = vld [vmem:[%s2503 + $0x10] sm:$0xff]
      %v2507 = vld [vmem:[%s2503 + $0x18] sm:$0xff]
      %v2508 = vld [vmem:[%s2503 + $0x20] sm:$0xff]
      %v2509 = vld [vmem:[%s2503 + $0x28] sm:$0xff]
      %v2510 = vld [vmem:[%s2503 + $0x30] sm:$0xff]
      %v2511 = vld [vmem:[%s2503 + $0x38] sm:$0xff]
      %v2512 = vld [vmem:[%s2503 + $0x40] sm:$0xff]
      %v2513 = vld [vmem:[%s2503 + $0x48] sm:$0xff]
      %v2514 = vld [vmem:[%s2503 + $0x50] sm:$0xff]
      %v2515 = vld [vmem:[%s2503 + $0x58] sm:$0xff]
      %v2516 = vld [vmem:[%s2503 + $0x60] sm:$0xff]
      %v2517 = vld [vmem:[%s2503 + $0x68] sm:$0xff]
      %v2518 = vld [vmem:[%s2503 + $0x70] sm:$0xff]
      %v2519 = vld [vmem:[%s2503 + $0x78] sm:$0xff]
      %2520 = vmatprep.subr.mxu0 0.0
      %2521 = vmatpush1.msra.mxu0 %v2519
      %2522 = vmatprep.subr.mxu0 0.0
      %2523 = vmatpush1.msra.mxu0 %v2518
      %2524 = vmatprep.subr.mxu0 0.0
      %2525 = vmatpush1.msra.mxu0 %v2517
      %2526 = vmatprep.subr.mxu0 0.0
      %2527 = vmatpush1.msra.mxu0 %v2516
      %2528 = vmatprep.subr.mxu0 0.0
      %2529 = vmatpush1.msra.mxu0 %v2515
      %2530 = vmatprep.subr.mxu0 0.0
      %2531 = vmatpush1.msra.mxu0 %v2514
      %2532 = vmatprep.subr.mxu0 0.0
      %2533 = vmatpush1.msra.mxu0 %v2513
      %2534 = vmatprep.subr.mxu0 0.0
      %2535 = vmatpush1.msra.mxu0 %v2512
      %2536 = vmatprep.subr.mxu0 0.0
      %2537 = vmatpush1.msra.mxu0 %v2511
      %2538 = vmatprep.subr.mxu0 0.0
      %2539 = vmatpush1.msra.mxu0 %v2510
      %2540 = vmatprep.subr.mxu0 0.0
      %2541 = vmatpush1.msra.mxu0 %v2509
      %2542 = vmatprep.subr.mxu0 0.0
      %2543 = vmatpush1.msra.mxu0 %v2508
      %2544 = vmatprep.subr.mxu0 0.0
      %2545 = vmatpush1.msra.mxu0 %v2507
      %2546 = vmatprep.subr.mxu0 0.0
      %2547 = vmatpush1.msra.mxu0 %v2506
      %2548 = vmatprep.subr.mxu0 0.0
      %2549 = vmatpush1.msra.mxu0 %v2505
      %2550 = vmatprep.subr.mxu0 0.0
      %2551 = vmatpush1.msra.mxu0 %v2504
      %2552 = vmatprep.subr.mxu0 0.0
      %2553 = vmatpush2.msra.mxu0 0.0
      %2554 = vmatprep.subr.mxu0 0.0
      %2555 = vmatpush2.msra.mxu0 0.0
      %2556 = vmatprep.subr.mxu0 0.0
      %2557 = vmatpush2.msra.mxu0 0.0
      %2558 = vmatprep.subr.mxu0 0.0
      %2559 = vmatpush2.msra.mxu0 0.0
      %2560 = vmatprep.subr.mxu0 0.0
      %2561 = vmatpush2.msra.mxu0 0.0
      %2562 = vmatprep.subr.mxu0 0.0
      %2563 = vmatpush2.msra.mxu0 0.0
      %2564 = vmatprep.subr.mxu0 0.0
      %2565 = vmatpush2.msra.mxu0 0.0
      %2566 = vmatprep.subr.mxu0 0.0
      %2567 = vmatpush2.msra.mxu0 0.0
      %2568 = vmatprep.subr.mxu0 0.0
      %2569 = vmatpush2.msra.mxu0 0.0
      %2570 = vmatprep.subr.mxu0 0.0
      %2571 = vmatpush2.msra.mxu0 0.0
      %2572 = vmatprep.subr.mxu0 0.0
      %2573 = vmatpush2.msra.mxu0 0.0
      %2574 = vmatprep.subr.mxu0 0.0
      %2575 = vmatpush2.msra.mxu0 0.0
      %2576 = vmatprep.subr.mxu0 0.0
      %2577 = vmatpush2.msra.mxu0 0.0
      %2578 = vmatprep.subr.mxu0 0.0
      %2579 = vmatpush2.msra.mxu0 0.0
      %2580 = vmatprep.subr.mxu0 0.0
      %2581 = vmatpush2.msra.mxu0 0.0
      %2582 = vmatprep.subr.mxu0 0.0
      %2583 = vmatpush2.msra.mxu0 0.0
      %2584 = vmatprep.mubr.f32.mxu0 0.0
      %2585 = vmatmul.mubr.f32.gmra.mxu0 %v2471
      %v2586 = vpop.f32.mrf.mxu0
      %v2587 = vadd.f32 0.0, %v2586
      %v2588 = vpop.f32.mrf.mxu0
      %2589 = vmatprep.mubr.f32.mxu0 0.0
      %2590 = vmatmul.mubr.f32.gmra.mxu0 %v2472
      %v2591 = vpop.f32.mrf.mxu0
      %v2592 = vadd.f32 0.0, %v2591
      %v2593 = vpop.f32.mrf.mxu0
      %2594 = vmatprep.mubr.f32.mxu0 0.0
      %2595 = vmatmul.mubr.f32.gmra.mxu0 %v2473
      %v2596 = vpop.f32.mrf.mxu0
      %v2597 = vadd.f32 0.0, %v2596
      %v2598 = vpop.f32.mrf.mxu0
      %2599 = vmatprep.mubr.f32.mxu0 0.0
      %2600 = vmatmul.mubr.f32.gmra.mxu0 %v2474
      %v2601 = vpop.f32.mrf.mxu0
      %v2602 = vadd.f32 0.0, %v2601
      %v2603 = vpop.f32.mrf.mxu0
      %2604 = vmatprep.mubr.f32.mxu0 0.0
      %2605 = vmatmul.mubr.f32.gmra.mxu0 %v2475
      %v2606 = vpop.f32.mrf.mxu0
      %v2607 = vadd.f32 0.0, %v2606
      %v2608 = vpop.f32.mrf.mxu0
      %2609 = vmatprep.mubr.f32.mxu0 0.0
      %2610 = vmatmul.mubr.f32.gmra.mxu0 %v2476
      %v2611 = vpop.f32.mrf.mxu0
      %v2612 = vadd.f32 0.0, %v2611
      %v2613 = vpop.f32.mrf.mxu0
      %2614 = vmatprep.mubr.f32.mxu0 0.0
      %2615 = vmatmul.mubr.f32.gmra.mxu0 %v2477
      %v2616 = vpop.f32.mrf.mxu0
      %v2617 = vadd.f32 0.0, %v2616
      %v2618 = vpop.f32.mrf.mxu0
      %2619 = vmatprep.mubr.f32.mxu0 0.0
      %2620 = vmatmul.mubr.f32.gmra.mxu0 %v2478
      %v2621 = vpop.f32.mrf.mxu0
      %v2622 = vadd.f32 0.0, %v2621
      %v2623 = vpop.f32.mrf.mxu0
      %2624 = vmatprep.mubr.f32.mxu0 0.0
      %2625 = vmatmul.mubr.f32.gmra.mxu0 %v2479
      %v2626 = vpop.f32.mrf.mxu0
      %v2627 = vadd.f32 0.0, %v2626
      %v2628 = vpop.f32.mrf.mxu0
      %2629 = vmatprep.mubr.f32.mxu0 0.0
      %2630 = vmatmul.mubr.f32.gmra.mxu0 %v2480
      %v2631 = vpop.f32.mrf.mxu0
      %v2632 = vadd.f32 0.0, %v2631
      %v2633 = vpop.f32.mrf.mxu0
      %2634 = vmatprep.mubr.f32.mxu0 0.0
      %2635 = vmatmul.mubr.f32.gmra.mxu0 %v2481
      %v2636 = vpop.f32.mrf.mxu0
      %v2637 = vadd.f32 0.0, %v2636
      %v2638 = vpop.f32.mrf.mxu0
      %2639 = vmatprep.mubr.f32.mxu0 0.0
      %2640 = vmatmul.mubr.f32.gmra.mxu0 %v2482
      %v2641 = vpop.f32.mrf.mxu0
      %v2642 = vadd.f32 0.0, %v2641
      %v2643 = vpop.f32.mrf.mxu0
      %2644 = vmatprep.mubr.f32.mxu0 0.0
      %2645 = vmatmul.mubr.f32.gmra.mxu0 %v2483
      %v2646 = vpop.f32.mrf.mxu0
      %v2647 = vadd.f32 0.0, %v2646
      %v2648 = vpop.f32.mrf.mxu0
      %2649 = vmatprep.mubr.f32.mxu0 0.0
      %2650 = vmatmul.mubr.f32.gmra.mxu0 %v2484
      %v2651 = vpop.f32.mrf.mxu0
      %v2652 = vadd.f32 0.0, %v2651
      %v2653 = vpop.f32.mrf.mxu0
      %2654 = vmatprep.mubr.f32.mxu0 0.0
      %2655 = vmatmul.mubr.f32.gmra.mxu0 %v2485
      %v2656 = vpop.f32.mrf.mxu0
      %v2657 = vadd.f32 0.0, %v2656
      %v2658 = vpop.f32.mrf.mxu0
      %2659 = vmatprep.mubr.f32.mxu0 0.0
      %2660 = vmatmul.mubr.f32.gmra.mxu0 %v2486
      %v2661 = vpop.f32.mrf.mxu0
      %v2662 = vadd.f32 0.0, %v2661
      %v2663 = vpop.f32.mrf.mxu0
      %2664 = vmatprep.mubr.f32.mxu0 0.0
      %2665 = vmatmul.mubr.f32.gmra.mxu0 %v2487
      %v2666 = vpop.f32.mrf.mxu0
      %v2667 = vadd.f32 0.0, %v2666
      %v2668 = vpop.f32.mrf.mxu0
      %2669 = vmatprep.mubr.f32.mxu0 0.0
      %2670 = vmatmul.mubr.f32.gmra.mxu0 %v2488
      %v2671 = vpop.f32.mrf.mxu0
      %v2672 = vadd.f32 0.0, %v2671
      %v2673 = vpop.f32.mrf.mxu0
      %2674 = vmatprep.mubr.f32.mxu0 0.0
      %2675 = vmatmul.mubr.f32.gmra.mxu0 %v2489
      %v2676 = vpop.f32.mrf.mxu0
      %v2677 = vadd.f32 0.0, %v2676
      %v2678 = vpop.f32.mrf.mxu0
      %2679 = vmatprep.mubr.f32.mxu0 0.0
      %2680 = vmatmul.mubr.f32.gmra.mxu0 %v2490
      %v2681 = vpop.f32.mrf.mxu0
      %v2682 = vadd.f32 0.0, %v2681
      %v2683 = vpop.f32.mrf.mxu0
      %2684 = vmatprep.mubr.f32.mxu0 0.0
      %2685 = vmatmul.mubr.f32.gmra.mxu0 %v2491
      %v2686 = vpop.f32.mrf.mxu0
      %v2687 = vadd.f32 0.0, %v2686
      %v2688 = vpop.f32.mrf.mxu0
      %2689 = vmatprep.mubr.f32.mxu0 0.0
      %2690 = vmatmul.mubr.f32.gmra.mxu0 %v2492
      %v2691 = vpop.f32.mrf.mxu0
      %v2692 = vadd.f32 0.0, %v2691
      %v2693 = vpop.f32.mrf.mxu0
      %2694 = vmatprep.mubr.f32.mxu0 0.0
      %2695 = vmatmul.mubr.f32.gmra.mxu0 %v2493
      %v2696 = vpop.f32.mrf.mxu0
      %v2697 = vadd.f32 0.0, %v2696
      %v2698 = vpop.f32.mrf.mxu0
      %2699 = vmatprep.mubr.f32.mxu0 0.0
      %2700 = vmatmul.mubr.f32.gmra.mxu0 %v2494
      %v2701 = vpop.f32.mrf.mxu0
      %v2702 = vadd.f32 0.0, %v2701
      %v2703 = vpop.f32.mrf.mxu0
      %2704 = vmatprep.mubr.f32.mxu0 0.0
      %2705 = vmatmul.mubr.f32.gmra.mxu0 %v2495
      %v2706 = vpop.f32.mrf.mxu0
      %v2707 = vadd.f32 0.0, %v2706
      %v2708 = vpop.f32.mrf.mxu0
      %2709 = vmatprep.mubr.f32.mxu0 0.0
      %2710 = vmatmul.mubr.f32.gmra.mxu0 %v2496
      %v2711 = vpop.f32.mrf.mxu0
      %v2712 = vadd.f32 0.0, %v2711
      %v2713 = vpop.f32.mrf.mxu0
      %2714 = vmatprep.mubr.f32.mxu0 0.0
      %2715 = vmatmul.mubr.f32.gmra.mxu0 %v2497
      %v2716 = vpop.f32.mrf.mxu0
      %v2717 = vadd.f32 0.0, %v2716
      %v2718 = vpop.f32.mrf.mxu0
      %2719 = vmatprep.mubr.f32.mxu0 0.0
      %2720 = vmatmul.mubr.f32.gmra.mxu0 %v2498
      %v2721 = vpop.f32.mrf.mxu0
      %v2722 = vadd.f32 0.0, %v2721
      %v2723 = vpop.f32.mrf.mxu0
      %2724 = vmatprep.mubr.f32.mxu0 0.0
      %2725 = vmatmul.mubr.f32.gmra.mxu0 %v2499
      %v2726 = vpop.f32.mrf.mxu0
      %v2727 = vadd.f32 0.0, %v2726
      %v2728 = vpop.f32.mrf.mxu0
      %2729 = vmatprep.mubr.f32.mxu0 0.0
      %2730 = vmatmul.mubr.f32.gmra.mxu0 %v2500
      %v2731 = vpop.f32.mrf.mxu0
      %v2732 = vadd.f32 0.0, %v2731
      %v2733 = vpop.f32.mrf.mxu0
      %2734 = vmatprep.mubr.f32.mxu0 0.0
      %2735 = vmatmul.mubr.f32.gmra.mxu0 %v2501
      %v2736 = vpop.f32.mrf.mxu0
      %v2737 = vadd.f32 0.0, %v2736
      %v2738 = vpop.f32.mrf.mxu0
      %2739 = vmatprep.mubr.f32.mxu0 0.0
      %2740 = vmatmul.mubr.f32.gmra.mxu0 %v2502
      %v2741 = vpop.f32.mrf.mxu0
      %v2742 = vadd.f32 0.0, %v2741
      %v2743 = vpop.f32.mrf.mxu0
      %2744 = vdwg.mxu0
      %v2745 = vadd.f32 %v2437, %v2587
      %v2746 = vadd.f32 %v2438, %v2592
      %v2747 = vadd.f32 %v2439, %v2597
      %v2748 = vadd.f32 %v2440, %v2602
      %v2749 = vadd.f32 %v2441, %v2607
      %v2750 = vadd.f32 %v2442, %v2612
      %v2751 = vadd.f32 %v2443, %v2617
      %v2752 = vadd.f32 %v2444, %v2622
      %v2753 = vadd.f32 %v2445, %v2627
      %v2754 = vadd.f32 %v2446, %v2632
      %v2755 = vadd.f32 %v2447, %v2637
      %v2756 = vadd.f32 %v2448, %v2642
      %v2757 = vadd.f32 %v2449, %v2647
      %v2758 = vadd.f32 %v2450, %v2652
      %v2759 = vadd.f32 %v2451, %v2657
      %v2760 = vadd.f32 %v2452, %v2662
      %v2761 = vadd.f32 %v2453, %v2667
      %v2762 = vadd.f32 %v2454, %v2672
      %v2763 = vadd.f32 %v2455, %v2677
      %v2764 = vadd.f32 %v2456, %v2682
      %v2765 = vadd.f32 %v2457, %v2687
      %v2766 = vadd.f32 %v2458, %v2692
      %v2767 = vadd.f32 %v2459, %v2697
      %v2768 = vadd.f32 %v2460, %v2702
      %v2769 = vadd.f32 %v2461, %v2707
      %v2770 = vadd.f32 %v2462, %v2712
      %v2771 = vadd.f32 %v2463, %v2717
      %v2772 = vadd.f32 %v2464, %v2722
      %v2773 = vadd.f32 %v2465, %v2727
      %v2774 = vadd.f32 %v2466, %v2732
      %v2775 = vadd.f32 %v2467, %v2737
      %v2776 = vadd.f32 %v2468, %v2742
      %s2777 = scalar_lea.vmem %s3, 896
      %v2778 = vld [vmem:[%s2777] sm:$0xff]
      %v2779 = vld [vmem:[%s2777 + $0x8] sm:$0xff]
      %v2780 = vld [vmem:[%s2777 + $0x10] sm:$0xff]
      %v2781 = vld [vmem:[%s2777 + $0x18] sm:$0xff]
      %v2782 = vld [vmem:[%s2777 + $0x20] sm:$0xff]
      %v2783 = vld [vmem:[%s2777 + $0x28] sm:$0xff]
      %v2784 = vld [vmem:[%s2777 + $0x30] sm:$0xff]
      %v2785 = vld [vmem:[%s2777 + $0x38] sm:$0xff]
      %v2786 = vld [vmem:[%s2777 + $0x40] sm:$0xff]
      %v2787 = vld [vmem:[%s2777 + $0x48] sm:$0xff]
      %v2788 = vld [vmem:[%s2777 + $0x50] sm:$0xff]
      %v2789 = vld [vmem:[%s2777 + $0x58] sm:$0xff]
      %v2790 = vld [vmem:[%s2777 + $0x60] sm:$0xff]
      %v2791 = vld [vmem:[%s2777 + $0x68] sm:$0xff]
      %v2792 = vld [vmem:[%s2777 + $0x70] sm:$0xff]
      %v2793 = vld [vmem:[%s2777 + $0x78] sm:$0xff]
      %2794 = vmatprep.subr.mxu0 0.0
      %2795 = vmatpush1.msra.mxu0 %v2793
      %2796 = vmatprep.subr.mxu0 0.0
      %2797 = vmatpush1.msra.mxu0 %v2792
      %2798 = vmatprep.subr.mxu0 0.0
      %2799 = vmatpush1.msra.mxu0 %v2791
      %2800 = vmatprep.subr.mxu0 0.0
      %2801 = vmatpush1.msra.mxu0 %v2790
      %2802 = vmatprep.subr.mxu0 0.0
      %2803 = vmatpush1.msra.mxu0 %v2789
      %2804 = vmatprep.subr.mxu0 0.0
      %2805 = vmatpush1.msra.mxu0 %v2788
      %2806 = vmatprep.subr.mxu0 0.0
      %2807 = vmatpush1.msra.mxu0 %v2787
      %2808 = vmatprep.subr.mxu0 0.0
      %2809 = vmatpush1.msra.mxu0 %v2786
      %2810 = vmatprep.subr.mxu0 0.0
      %2811 = vmatpush1.msra.mxu0 %v2785
      %2812 = vmatprep.subr.mxu0 0.0
      %2813 = vmatpush1.msra.mxu0 %v2784
      %2814 = vmatprep.subr.mxu0 0.0
      %2815 = vmatpush1.msra.mxu0 %v2783
      %2816 = vmatprep.subr.mxu0 0.0
      %2817 = vmatpush1.msra.mxu0 %v2782
      %2818 = vmatprep.subr.mxu0 0.0
      %2819 = vmatpush1.msra.mxu0 %v2781
      %2820 = vmatprep.subr.mxu0 0.0
      %2821 = vmatpush1.msra.mxu0 %v2780
      %2822 = vmatprep.subr.mxu0 0.0
      %2823 = vmatpush1.msra.mxu0 %v2779
      %2824 = vmatprep.subr.mxu0 0.0
      %2825 = vmatpush1.msra.mxu0 %v2778
      %2826 = vmatprep.subr.mxu0 0.0
      %2827 = vmatpush2.msra.mxu0 0.0
      %2828 = vmatprep.subr.mxu0 0.0
      %2829 = vmatpush2.msra.mxu0 0.0
      %2830 = vmatprep.subr.mxu0 0.0
      %2831 = vmatpush2.msra.mxu0 0.0
      %2832 = vmatprep.subr.mxu0 0.0
      %2833 = vmatpush2.msra.mxu0 0.0
      %2834 = vmatprep.subr.mxu0 0.0
      %2835 = vmatpush2.msra.mxu0 0.0
      %2836 = vmatprep.subr.mxu0 0.0
      %2837 = vmatpush2.msra.mxu0 0.0
      %2838 = vmatprep.subr.mxu0 0.0
      %2839 = vmatpush2.msra.mxu0 0.0
      %2840 = vmatprep.subr.mxu0 0.0
      %2841 = vmatpush2.msra.mxu0 0.0
      %2842 = vmatprep.subr.mxu0 0.0
      %2843 = vmatpush2.msra.mxu0 0.0
      %2844 = vmatprep.subr.mxu0 0.0
      %2845 = vmatpush2.msra.mxu0 0.0
      %2846 = vmatprep.subr.mxu0 0.0
      %2847 = vmatpush2.msra.mxu0 0.0
      %2848 = vmatprep.subr.mxu0 0.0
      %2849 = vmatpush2.msra.mxu0 0.0
      %2850 = vmatprep.subr.mxu0 0.0
      %2851 = vmatpush2.msra.mxu0 0.0
      %2852 = vmatprep.subr.mxu0 0.0
      %2853 = vmatpush2.msra.mxu0 0.0
      %2854 = vmatprep.subr.mxu0 0.0
      %2855 = vmatpush2.msra.mxu0 0.0
      %2856 = vmatprep.subr.mxu0 0.0
      %2857 = vmatpush2.msra.mxu0 0.0
      %2858 = vmatprep.mubr.f32.mxu0 0.0
      %2859 = vmatmul.mubr.f32.gmra.mxu0 %v344
      %v2860 = vpop.f32.mrf.mxu0
      %v2861 = vadd.f32 0.0, %v2860
      %v2862 = vpop.f32.mrf.mxu0
      %2863 = vmatprep.mubr.f32.mxu0 0.0
      %2864 = vmatmul.mubr.f32.gmra.mxu0 %v345
      %v2865 = vpop.f32.mrf.mxu0
      %v2866 = vadd.f32 0.0, %v2865
      %v2867 = vpop.f32.mrf.mxu0
      %2868 = vmatprep.mubr.f32.mxu0 0.0
      %2869 = vmatmul.mubr.f32.gmra.mxu0 %v346
      %v2870 = vpop.f32.mrf.mxu0
      %v2871 = vadd.f32 0.0, %v2870
      %v2872 = vpop.f32.mrf.mxu0
      %2873 = vmatprep.mubr.f32.mxu0 0.0
      %2874 = vmatmul.mubr.f32.gmra.mxu0 %v347
      %v2875 = vpop.f32.mrf.mxu0
      %v2876 = vadd.f32 0.0, %v2875
      %v2877 = vpop.f32.mrf.mxu0
      %2878 = vmatprep.mubr.f32.mxu0 0.0
      %2879 = vmatmul.mubr.f32.gmra.mxu0 %v348
      %v2880 = vpop.f32.mrf.mxu0
      %v2881 = vadd.f32 0.0, %v2880
      %v2882 = vpop.f32.mrf.mxu0
      %2883 = vmatprep.mubr.f32.mxu0 0.0
      %2884 = vmatmul.mubr.f32.gmra.mxu0 %v349
      %v2885 = vpop.f32.mrf.mxu0
      %v2886 = vadd.f32 0.0, %v2885
      %v2887 = vpop.f32.mrf.mxu0
      %2888 = vmatprep.mubr.f32.mxu0 0.0
      %2889 = vmatmul.mubr.f32.gmra.mxu0 %v350
      %v2890 = vpop.f32.mrf.mxu0
      %v2891 = vadd.f32 0.0, %v2890
      %v2892 = vpop.f32.mrf.mxu0
      %2893 = vmatprep.mubr.f32.mxu0 0.0
      %2894 = vmatmul.mubr.f32.gmra.mxu0 %v351
      %v2895 = vpop.f32.mrf.mxu0
      %v2896 = vadd.f32 0.0, %v2895
      %v2897 = vpop.f32.mrf.mxu0
      %2898 = vmatprep.mubr.f32.mxu0 0.0
      %2899 = vmatmul.mubr.f32.gmra.mxu0 %v352
      %v2900 = vpop.f32.mrf.mxu0
      %v2901 = vadd.f32 0.0, %v2900
      %v2902 = vpop.f32.mrf.mxu0
      %2903 = vmatprep.mubr.f32.mxu0 0.0
      %2904 = vmatmul.mubr.f32.gmra.mxu0 %v353
      %v2905 = vpop.f32.mrf.mxu0
      %v2906 = vadd.f32 0.0, %v2905
      %v2907 = vpop.f32.mrf.mxu0
      %2908 = vmatprep.mubr.f32.mxu0 0.0
      %2909 = vmatmul.mubr.f32.gmra.mxu0 %v354
      %v2910 = vpop.f32.mrf.mxu0
      %v2911 = vadd.f32 0.0, %v2910
      %v2912 = vpop.f32.mrf.mxu0
      %2913 = vmatprep.mubr.f32.mxu0 0.0
      %2914 = vmatmul.mubr.f32.gmra.mxu0 %v355
      %v2915 = vpop.f32.mrf.mxu0
      %v2916 = vadd.f32 0.0, %v2915
      %v2917 = vpop.f32.mrf.mxu0
      %2918 = vmatprep.mubr.f32.mxu0 0.0
      %2919 = vmatmul.mubr.f32.gmra.mxu0 %v356
      %v2920 = vpop.f32.mrf.mxu0
      %v2921 = vadd.f32 0.0, %v2920
      %v2922 = vpop.f32.mrf.mxu0
      %2923 = vmatprep.mubr.f32.mxu0 0.0
      %2924 = vmatmul.mubr.f32.gmra.mxu0 %v357
      %v2925 = vpop.f32.mrf.mxu0
      %v2926 = vadd.f32 0.0, %v2925
      %v2927 = vpop.f32.mrf.mxu0
      %2928 = vmatprep.mubr.f32.mxu0 0.0
      %2929 = vmatmul.mubr.f32.gmra.mxu0 %v358
      %v2930 = vpop.f32.mrf.mxu0
      %v2931 = vadd.f32 0.0, %v2930
      %v2932 = vpop.f32.mrf.mxu0
      %2933 = vmatprep.mubr.f32.mxu0 0.0
      %2934 = vmatmul.mubr.f32.gmra.mxu0 %v359
      %v2935 = vpop.f32.mrf.mxu0
      %v2936 = vadd.f32 0.0, %v2935
      %v2937 = vpop.f32.mrf.mxu0
      %2938 = vmatprep.mubr.f32.mxu0 0.0
      %2939 = vmatmul.mubr.f32.gmra.mxu0 %v360
      %v2940 = vpop.f32.mrf.mxu0
      %v2941 = vadd.f32 0.0, %v2940
      %v2942 = vpop.f32.mrf.mxu0
      %2943 = vmatprep.mubr.f32.mxu0 0.0
      %2944 = vmatmul.mubr.f32.gmra.mxu0 %v361
      %v2945 = vpop.f32.mrf.mxu0
      %v2946 = vadd.f32 0.0, %v2945
      %v2947 = vpop.f32.mrf.mxu0
      %2948 = vmatprep.mubr.f32.mxu0 0.0
      %2949 = vmatmul.mubr.f32.gmra.mxu0 %v362
      %v2950 = vpop.f32.mrf.mxu0
      %v2951 = vadd.f32 0.0, %v2950
      %v2952 = vpop.f32.mrf.mxu0
      %2953 = vmatprep.mubr.f32.mxu0 0.0
      %2954 = vmatmul.mubr.f32.gmra.mxu0 %v363
      %v2955 = vpop.f32.mrf.mxu0
      %v2956 = vadd.f32 0.0, %v2955
      %v2957 = vpop.f32.mrf.mxu0
      %2958 = vmatprep.mubr.f32.mxu0 0.0
      %2959 = vmatmul.mubr.f32.gmra.mxu0 %v364
      %v2960 = vpop.f32.mrf.mxu0
      %v2961 = vadd.f32 0.0, %v2960
      %v2962 = vpop.f32.mrf.mxu0
      %2963 = vmatprep.mubr.f32.mxu0 0.0
      %2964 = vmatmul.mubr.f32.gmra.mxu0 %v365
      %v2965 = vpop.f32.mrf.mxu0
      %v2966 = vadd.f32 0.0, %v2965
      %v2967 = vpop.f32.mrf.mxu0
      %2968 = vmatprep.mubr.f32.mxu0 0.0
      %2969 = vmatmul.mubr.f32.gmra.mxu0 %v366
      %v2970 = vpop.f32.mrf.mxu0
      %v2971 = vadd.f32 0.0, %v2970
      %v2972 = vpop.f32.mrf.mxu0
      %2973 = vmatprep.mubr.f32.mxu0 0.0
      %2974 = vmatmul.mubr.f32.gmra.mxu0 %v367
      %v2975 = vpop.f32.mrf.mxu0
      %v2976 = vadd.f32 0.0, %v2975
      %v2977 = vpop.f32.mrf.mxu0
      %2978 = vmatprep.mubr.f32.mxu0 0.0
      %2979 = vmatmul.mubr.f32.gmra.mxu0 %v368
      %v2980 = vpop.f32.mrf.mxu0
      %v2981 = vadd.f32 0.0, %v2980
      %v2982 = vpop.f32.mrf.mxu0
      %2983 = vmatprep.mubr.f32.mxu0 0.0
      %2984 = vmatmul.mubr.f32.gmra.mxu0 %v369
      %v2985 = vpop.f32.mrf.mxu0
      %v2986 = vadd.f32 0.0, %v2985
      %v2987 = vpop.f32.mrf.mxu0
      %2988 = vmatprep.mubr.f32.mxu0 0.0
      %2989 = vmatmul.mubr.f32.gmra.mxu0 %v370
      %v2990 = vpop.f32.mrf.mxu0
      %v2991 = vadd.f32 0.0, %v2990
      %v2992 = vpop.f32.mrf.mxu0
      %2993 = vmatprep.mubr.f32.mxu0 0.0
      %2994 = vmatmul.mubr.f32.gmra.mxu0 %v371
      %v2995 = vpop.f32.mrf.mxu0
      %v2996 = vadd.f32 0.0, %v2995
      %v2997 = vpop.f32.mrf.mxu0
      %2998 = vmatprep.mubr.f32.mxu0 0.0
      %2999 = vmatmul.mubr.f32.gmra.mxu0 %v372
      %v3000 = vpop.f32.mrf.mxu0
      %v3001 = vadd.f32 0.0, %v3000
      %v3002 = vpop.f32.mrf.mxu0
      %3003 = vmatprep.mubr.f32.mxu0 0.0
      %3004 = vmatmul.mubr.f32.gmra.mxu0 %v373
      %v3005 = vpop.f32.mrf.mxu0
      %v3006 = vadd.f32 0.0, %v3005
      %v3007 = vpop.f32.mrf.mxu0
      %3008 = vmatprep.mubr.f32.mxu0 0.0
      %3009 = vmatmul.mubr.f32.gmra.mxu0 0.0
      %v3010 = vpop.f32.mrf.mxu0
      %v3011 = vadd.f32 0.0, %v3010
      %v3012 = vpop.f32.mrf.mxu0
      %3013 = vmatprep.mubr.f32.mxu0 0.0
      %3014 = vmatmul.mubr.f32.gmra.mxu0 0.0
      %v3015 = vpop.f32.mrf.mxu0
      %v3016 = vadd.f32 0.0, %v3015
      %v3017 = vpop.f32.mrf.mxu0
      %3018 = vdwg.mxu0
      %v3019 = vadd.f32 %v2745, %v2861
      %v3020 = vadd.f32 %v2746, %v2866
      %v3021 = vadd.f32 %v2747, %v2871
      %v3022 = vadd.f32 %v2748, %v2876
      %v3023 = vadd.f32 %v2749, %v2881
      %v3024 = vadd.f32 %v2750, %v2886
      %v3025 = vadd.f32 %v2751, %v2891
      %v3026 = vadd.f32 %v2752, %v2896
      %v3027 = vadd.f32 %v2753, %v2901
      %v3028 = vadd.f32 %v2754, %v2906
      %v3029 = vadd.f32 %v2755, %v2911
      %v3030 = vadd.f32 %v2756, %v2916
      %v3031 = vadd.f32 %v2757, %v2921
      %v3032 = vadd.f32 %v2758, %v2926
      %v3033 = vadd.f32 %v2759, %v2931
      %v3034 = vadd.f32 %v2760, %v2936
      %v3035 = vadd.f32 %v2761, %v2941
      %v3036 = vadd.f32 %v2762, %v2946
      %v3037 = vadd.f32 %v2763, %v2951
      %v3038 = vadd.f32 %v2764, %v2956
      %v3039 = vadd.f32 %v2765, %v2961
      %v3040 = vadd.f32 %v2766, %v2966
      %v3041 = vadd.f32 %v2767, %v2971
      %v3042 = vadd.f32 %v2768, %v2976
      %v3043 = vadd.f32 %v2769, %v2981
      %v3044 = vadd.f32 %v2770, %v2986
      %v3045 = vadd.f32 %v2771, %v2991
      %v3046 = vadd.f32 %v2772, %v2996
      %v3047 = vadd.f32 %v2773, %v3001
      %v3048 = vadd.f32 %v2774, %v3006
      %v3049 = vadd.f32 %v2775, %v3011
      %v3050 = vadd.f32 %v2776, %v3016
      %v3051 = vmul.f32 %v1178, %v441
      %v3052 = vmul.f32 %v1180, %v443
      %v3053 = vmul.f32 %v1182, %v445
      %v3054 = vmul.f32 %v1184, %v447
      %v3055 = vmul.f32 %v1186, %v449
      %v3056 = vmul.f32 %v1188, %v451
      %v3057 = vmul.f32 %v1190, %v453
      %v3058 = vmul.f32 %v1192, %v455
      %v3059 = vmul.f32 %v1194, %v457
      %v3060 = vmul.f32 %v1196, %v459
      %v3061 = vmul.f32 %v1198, %v461
      %v3062 = vmul.f32 %v1200, %v463
      %v3063 = vmul.f32 %v1202, %v465
      %v3064 = vmul.f32 %v1204, %v467
      %v3065 = vmul.f32 %v1206, %v469
      %v3066 = vmul.f32 %v1208, %v471
      %v3067 = vmul.f32 %v1210, %v473
      %v3068 = vmul.f32 %v1212, %v475
      %v3069 = vmul.f32 %v1214, %v477
      %v3070 = vmul.f32 %v1216, %v479
      %v3071 = vmul.f32 %v1218, %v481
      %v3072 = vmul.f32 %v1220, %v483
      %v3073 = vmul.f32 %v1222, %v485
      %v3074 = vmul.f32 %v1224, %v487
      %v3075 = vmul.f32 %v1226, %v489
      %v3076 = vmul.f32 %v1228, %v491
      %v3077 = vmul.f32 %v1230, %v493
      %v3078 = vmul.f32 %v1232, %v495
      %v3079 = vmul.f32 %v2159, %v497
      %v3080 = vmul.f32 %v2162, %v499
      %v3081 = vmul.f32 %v501, 0.0
      %v3082 = vmul.f32 %v534, 0.0
      %s3083 = scalar_lea.vmem %s3, 1024
      %v3084 = vld [vmem:[%s3083] sm:$0xff]
      %v3085 = vld [vmem:[%s3083 + $0x8] sm:$0xff]
      %v3086 = vld [vmem:[%s3083 + $0x10] sm:$0xff]
      %v3087 = vld [vmem:[%s3083 + $0x18] sm:$0xff]
      %v3088 = vld [vmem:[%s3083 + $0x20] sm:$0xff]
      %v3089 = vld [vmem:[%s3083 + $0x28] sm:$0xff]
      %v3090 = vld [vmem:[%s3083 + $0x30] sm:$0xff]
      %v3091 = vld [vmem:[%s3083 + $0x38] sm:$0xff]
      %v3092 = vld [vmem:[%s3083 + $0x40] sm:$0xff]
      %v3093 = vld [vmem:[%s3083 + $0x48] sm:$0xff]
      %v3094 = vld [vmem:[%s3083 + $0x50] sm:$0xff]
      %v3095 = vld [vmem:[%s3083 + $0x58] sm:$0xff]
      %v3096 = vld [vmem:[%s3083 + $0x60] sm:$0xff]
      %v3097 = vld [vmem:[%s3083 + $0x68] sm:$0xff]
      %v3098 = vld [vmem:[%s3083 + $0x70] sm:$0xff]
      %v3099 = vld [vmem:[%s3083 + $0x78] sm:$0xff]
      %3100 = vmatprep.subr.mxu0 0.0
      %3101 = vmatpush1.msra.mxu0 %v3099
      %3102 = vmatprep.subr.mxu0 0.0
      %3103 = vmatpush1.msra.mxu0 %v3098
      %3104 = vmatprep.subr.mxu0 0.0
      %3105 = vmatpush1.msra.mxu0 %v3097
      %3106 = vmatprep.subr.mxu0 0.0
      %3107 = vmatpush1.msra.mxu0 %v3096
      %3108 = vmatprep.subr.mxu0 0.0
      %3109 = vmatpush1.msra.mxu0 %v3095
      %3110 = vmatprep.subr.mxu0 0.0
      %3111 = vmatpush1.msra.mxu0 %v3094
      %3112 = vmatprep.subr.mxu0 0.0
      %3113 = vmatpush1.msra.mxu0 %v3093
      %3114 = vmatprep.subr.mxu0 0.0
      %3115 = vmatpush1.msra.mxu0 %v3092
      %3116 = vmatprep.subr.mxu0 0.0
      %3117 = vmatpush1.msra.mxu0 %v3091
      %3118 = vmatprep.subr.mxu0 0.0
      %3119 = vmatpush1.msra.mxu0 %v3090
      %3120 = vmatprep.subr.mxu0 0.0
      %3121 = vmatpush1.msra.mxu0 %v3089
      %3122 = vmatprep.subr.mxu0 0.0
      %3123 = vmatpush1.msra.mxu0 %v3088
      %3124 = vmatprep.subr.mxu0 0.0
      %3125 = vmatpush1.msra.mxu0 %v3087
      %3126 = vmatprep.subr.mxu0 0.0
      %3127 = vmatpush1.msra.mxu0 %v3086
      %3128 = vmatprep.subr.mxu0 0.0
      %3129 = vmatpush1.msra.mxu0 %v3085
      %3130 = vmatprep.subr.mxu0 0.0
      %3131 = vmatpush1.msra.mxu0 %v3084
      %3132 = vmatprep.subr.mxu0 0.0
      %3133 = vmatpush2.msra.mxu0 0.0
      %3134 = vmatprep.subr.mxu0 0.0
      %3135 = vmatpush2.msra.mxu0 0.0
      %3136 = vmatprep.subr.mxu0 0.0
      %3137 = vmatpush2.msra.mxu0 0.0
      %3138 = vmatprep.subr.mxu0 0.0
      %3139 = vmatpush2.msra.mxu0 0.0
      %3140 = vmatprep.subr.mxu0 0.0
      %3141 = vmatpush2.msra.mxu0 0.0
      %3142 = vmatprep.subr.mxu0 0.0
      %3143 = vmatpush2.msra.mxu0 0.0
      %3144 = vmatprep.subr.mxu0 0.0
      %3145 = vmatpush2.msra.mxu0 0.0
      %3146 = vmatprep.subr.mxu0 0.0
      %3147 = vmatpush2.msra.mxu0 0.0
      %3148 = vmatprep.subr.mxu0 0.0
      %3149 = vmatpush2.msra.mxu0 0.0
      %3150 = vmatprep.subr.mxu0 0.0
      %3151 = vmatpush2.msra.mxu0 0.0
      %3152 = vmatprep.subr.mxu0 0.0
      %3153 = vmatpush2.msra.mxu0 0.0
      %3154 = vmatprep.subr.mxu0 0.0
      %3155 = vmatpush2.msra.mxu0 0.0
      %3156 = vmatprep.subr.mxu0 0.0
      %3157 = vmatpush2.msra.mxu0 0.0
      %3158 = vmatprep.subr.mxu0 0.0
      %3159 = vmatpush2.msra.mxu0 0.0
      %3160 = vmatprep.subr.mxu0 0.0
      %3161 = vmatpush2.msra.mxu0 0.0
      %3162 = vmatprep.subr.mxu0 0.0
      %3163 = vmatpush2.msra.mxu0 0.0
      %3164 = vmatprep.mubr.f32.mxu0 0.0
      %3165 = vmatmul.mubr.f32.gmra.mxu0 %v3051
      %v3166 = vpop.f32.mrf.mxu0
      %v3167 = vadd.f32 0.0, %v3166
      %v3168 = vpop.f32.mrf.mxu0
      %3169 = vmatprep.mubr.f32.mxu0 0.0
      %3170 = vmatmul.mubr.f32.gmra.mxu0 %v3052
      %v3171 = vpop.f32.mrf.mxu0
      %v3172 = vadd.f32 0.0, %v3171
      %v3173 = vpop.f32.mrf.mxu0
      %3174 = vmatprep.mubr.f32.mxu0 0.0
      %3175 = vmatmul.mubr.f32.gmra.mxu0 %v3053
      %v3176 = vpop.f32.mrf.mxu0
      %v3177 = vadd.f32 0.0, %v3176
      %v3178 = vpop.f32.mrf.mxu0
      %3179 = vmatprep.mubr.f32.mxu0 0.0
      %3180 = vmatmul.mubr.f32.gmra.mxu0 %v3054
      %v3181 = vpop.f32.mrf.mxu0
      %v3182 = vadd.f32 0.0, %v3181
      %v3183 = vpop.f32.mrf.mxu0
      %3184 = vmatprep.mubr.f32.mxu0 0.0
      %3185 = vmatmul.mubr.f32.gmra.mxu0 %v3055
      %v3186 = vpop.f32.mrf.mxu0
      %v3187 = vadd.f32 0.0, %v3186
      %v3188 = vpop.f32.mrf.mxu0
      %3189 = vmatprep.mubr.f32.mxu0 0.0
      %3190 = vmatmul.mubr.f32.gmra.mxu0 %v3056
      %v3191 = vpop.f32.mrf.mxu0
      %v3192 = vadd.f32 0.0, %v3191
      %v3193 = vpop.f32.mrf.mxu0
      %3194 = vmatprep.mubr.f32.mxu0 0.0
      %3195 = vmatmul.mubr.f32.gmra.mxu0 %v3057
      %v3196 = vpop.f32.mrf.mxu0
      %v3197 = vadd.f32 0.0, %v3196
      %v3198 = vpop.f32.mrf.mxu0
      %3199 = vmatprep.mubr.f32.mxu0 0.0
      %3200 = vmatmul.mubr.f32.gmra.mxu0 %v3058
      %v3201 = vpop.f32.mrf.mxu0
      %v3202 = vadd.f32 0.0, %v3201
      %v3203 = vpop.f32.mrf.mxu0
      %3204 = vmatprep.mubr.f32.mxu0 0.0
      %3205 = vmatmul.mubr.f32.gmra.mxu0 %v3059
      %v3206 = vpop.f32.mrf.mxu0
      %v3207 = vadd.f32 0.0, %v3206
      %v3208 = vpop.f32.mrf.mxu0
      %3209 = vmatprep.mubr.f32.mxu0 0.0
      %3210 = vmatmul.mubr.f32.gmra.mxu0 %v3060
      %v3211 = vpop.f32.mrf.mxu0
      %v3212 = vadd.f32 0.0, %v3211
      %v3213 = vpop.f32.mrf.mxu0
      %3214 = vmatprep.mubr.f32.mxu0 0.0
      %3215 = vmatmul.mubr.f32.gmra.mxu0 %v3061
      %v3216 = vpop.f32.mrf.mxu0
      %v3217 = vadd.f32 0.0, %v3216
      %v3218 = vpop.f32.mrf.mxu0
      %3219 = vmatprep.mubr.f32.mxu0 0.0
      %3220 = vmatmul.mubr.f32.gmra.mxu0 %v3062
      %v3221 = vpop.f32.mrf.mxu0
      %v3222 = vadd.f32 0.0, %v3221
      %v3223 = vpop.f32.mrf.mxu0
      %3224 = vmatprep.mubr.f32.mxu0 0.0
      %3225 = vmatmul.mubr.f32.gmra.mxu0 %v3063
      %v3226 = vpop.f32.mrf.mxu0
      %v3227 = vadd.f32 0.0, %v3226
      %v3228 = vpop.f32.mrf.mxu0
      %3229 = vmatprep.mubr.f32.mxu0 0.0
      %3230 = vmatmul.mubr.f32.gmra.mxu0 %v3064
      %v3231 = vpop.f32.mrf.mxu0
      %v3232 = vadd.f32 0.0, %v3231
      %v3233 = vpop.f32.mrf.mxu0
      %3234 = vmatprep.mubr.f32.mxu0 0.0
      %3235 = vmatmul.mubr.f32.gmra.mxu0 %v3065
      %v3236 = vpop.f32.mrf.mxu0
      %v3237 = vadd.f32 0.0, %v3236
      %v3238 = vpop.f32.mrf.mxu0
      %3239 = vmatprep.mubr.f32.mxu0 0.0
      %3240 = vmatmul.mubr.f32.gmra.mxu0 %v3066
      %v3241 = vpop.f32.mrf.mxu0
      %v3242 = vadd.f32 0.0, %v3241
      %v3243 = vpop.f32.mrf.mxu0
      %3244 = vmatprep.mubr.f32.mxu0 0.0
      %3245 = vmatmul.mubr.f32.gmra.mxu0 %v3067
      %v3246 = vpop.f32.mrf.mxu0
      %v3247 = vadd.f32 0.0, %v3246
      %v3248 = vpop.f32.mrf.mxu0
      %3249 = vmatprep.mubr.f32.mxu0 0.0
      %3250 = vmatmul.mubr.f32.gmra.mxu0 %v3068
      %v3251 = vpop.f32.mrf.mxu0
      %v3252 = vadd.f32 0.0, %v3251
      %v3253 = vpop.f32.mrf.mxu0
      %3254 = vmatprep.mubr.f32.mxu0 0.0
      %3255 = vmatmul.mubr.f32.gmra.mxu0 %v3069
      %v3256 = vpop.f32.mrf.mxu0
      %v3257 = vadd.f32 0.0, %v3256
      %v3258 = vpop.f32.mrf.mxu0
      %3259 = vmatprep.mubr.f32.mxu0 0.0
      %3260 = vmatmul.mubr.f32.gmra.mxu0 %v3070
      %v3261 = vpop.f32.mrf.mxu0
      %v3262 = vadd.f32 0.0, %v3261
      %v3263 = vpop.f32.mrf.mxu0
      %3264 = vmatprep.mubr.f32.mxu0 0.0
      %3265 = vmatmul.mubr.f32.gmra.mxu0 %v3071
      %v3266 = vpop.f32.mrf.mxu0
      %v3267 = vadd.f32 0.0, %v3266
      %v3268 = vpop.f32.mrf.mxu0
      %3269 = vmatprep.mubr.f32.mxu0 0.0
      %3270 = vmatmul.mubr.f32.gmra.mxu0 %v3072
      %v3271 = vpop.f32.mrf.mxu0
      %v3272 = vadd.f32 0.0, %v3271
      %v3273 = vpop.f32.mrf.mxu0
      %3274 = vmatprep.mubr.f32.mxu0 0.0
      %3275 = vmatmul.mubr.f32.gmra.mxu0 %v3073
      %v3276 = vpop.f32.mrf.mxu0
      %v3277 = vadd.f32 0.0, %v3276
      %v3278 = vpop.f32.mrf.mxu0
      %3279 = vmatprep.mubr.f32.mxu0 0.0
      %3280 = vmatmul.mubr.f32.gmra.mxu0 %v3074
      %v3281 = vpop.f32.mrf.mxu0
      %v3282 = vadd.f32 0.0, %v3281
      %v3283 = vpop.f32.mrf.mxu0
      %3284 = vmatprep.mubr.f32.mxu0 0.0
      %3285 = vmatmul.mubr.f32.gmra.mxu0 %v3075
      %v3286 = vpop.f32.mrf.mxu0
      %v3287 = vadd.f32 0.0, %v3286
      %v3288 = vpop.f32.mrf.mxu0
      %3289 = vmatprep.mubr.f32.mxu0 0.0
      %3290 = vmatmul.mubr.f32.gmra.mxu0 %v3076
      %v3291 = vpop.f32.mrf.mxu0
      %v3292 = vadd.f32 0.0, %v3291
      %v3293 = vpop.f32.mrf.mxu0
      %3294 = vmatprep.mubr.f32.mxu0 0.0
      %3295 = vmatmul.mubr.f32.gmra.mxu0 %v3077
      %v3296 = vpop.f32.mrf.mxu0
      %v3297 = vadd.f32 0.0, %v3296
      %v3298 = vpop.f32.mrf.mxu0
      %3299 = vmatprep.mubr.f32.mxu0 0.0
      %3300 = vmatmul.mubr.f32.gmra.mxu0 %v3078
      %v3301 = vpop.f32.mrf.mxu0
      %v3302 = vadd.f32 0.0, %v3301
      %v3303 = vpop.f32.mrf.mxu0
      %3304 = vmatprep.mubr.f32.mxu0 0.0
      %3305 = vmatmul.mubr.f32.gmra.mxu0 %v3079
      %v3306 = vpop.f32.mrf.mxu0
      %v3307 = vadd.f32 0.0, %v3306
      %v3308 = vpop.f32.mrf.mxu0
      %3309 = vmatprep.mubr.f32.mxu0 0.0
      %3310 = vmatmul.mubr.f32.gmra.mxu0 %v3080
      %v3311 = vpop.f32.mrf.mxu0
      %v3312 = vadd.f32 0.0, %v3311
      %v3313 = vpop.f32.mrf.mxu0
      %3314 = vmatprep.mubr.f32.mxu0 0.0
      %3315 = vmatmul.mubr.f32.gmra.mxu0 %v3081
      %v3316 = vpop.f32.mrf.mxu0
      %v3317 = vadd.f32 0.0, %v3316
      %v3318 = vpop.f32.mrf.mxu0
      %3319 = vmatprep.mubr.f32.mxu0 0.0
      %3320 = vmatmul.mubr.f32.gmra.mxu0 %v3082
      %v3321 = vpop.f32.mrf.mxu0
      %v3322 = vadd.f32 0.0, %v3321
      %v3323 = vpop.f32.mrf.mxu0
      %3324 = vdwg.mxu0
      %v3325 = vadd.f32 %v3019, %v3167
      %v3326 = vadd.f32 %v3020, %v3172
      %v3327 = vadd.f32 %v3021, %v3177
      %v3328 = vadd.f32 %v3022, %v3182
      %v3329 = vadd.f32 %v3023, %v3187
      %v3330 = vadd.f32 %v3024, %v3192
      %v3331 = vadd.f32 %v3025, %v3197
      %v3332 = vadd.f32 %v3026, %v3202
      %v3333 = vadd.f32 %v3027, %v3207
      %v3334 = vadd.f32 %v3028, %v3212
      %v3335 = vadd.f32 %v3029, %v3217
      %v3336 = vadd.f32 %v3030, %v3222
      %v3337 = vadd.f32 %v3031, %v3227
      %v3338 = vadd.f32 %v3032, %v3232
      %v3339 = vadd.f32 %v3033, %v3237
      %v3340 = vadd.f32 %v3034, %v3242
      %v3341 = vadd.f32 %v3035, %v3247
      %v3342 = vadd.f32 %v3036, %v3252
      %v3343 = vadd.f32 %v3037, %v3257
      %v3344 = vadd.f32 %v3038, %v3262
      %v3345 = vadd.f32 %v3039, %v3267
      %v3346 = vadd.f32 %v3040, %v3272
      %v3347 = vadd.f32 %v3041, %v3277
      %v3348 = vadd.f32 %v3042, %v3282
      %v3349 = vadd.f32 %v3043, %v3287
      %v3350 = vadd.f32 %v3044, %v3292
      %v3351 = vadd.f32 %v3045, %v3297
      %v3352 = vadd.f32 %v3046, %v3302
      %v3353 = vadd.f32 %v3047, %v3307
      %v3354 = vadd.f32 %v3048, %v3312
      %v3355 = vadd.f32 %v3049, %v3317
      %v3356 = vadd.f32 %v3050, %v3322
      %3357 = vst [vmem:[%s231] sm:$0xff] %v3325
      %3358 = vst [vmem:[%s231 + $0x8] sm:$0xff] %v3326
      %3359 = vst [vmem:[%s231 + $0x10] sm:$0xff] %v3327
      %3360 = vst [vmem:[%s231 + $0x18] sm:$0xff] %v3328
      %3361 = vst [vmem:[%s231 + $0x20] sm:$0xff] %v3329
      %3362 = vst [vmem:[%s231 + $0x28] sm:$0xff] %v3330
      %3363 = vst [vmem:[%s231 + $0x30] sm:$0xff] %v3331
      %3364 = vst [vmem:[%s231 + $0x38] sm:$0xff] %v3332
      %3365 = vst [vmem:[%s231 + $0x40] sm:$0xff] %v3333
      %3366 = vst [vmem:[%s231 + $0x48] sm:$0xff] %v3334
      %3367 = vst [vmem:[%s231 + $0x50] sm:$0xff] %v3335
      %3368 = vst [vmem:[%s231 + $0x58] sm:$0xff] %v3336
      %3369 = vst [vmem:[%s231 + $0x60] sm:$0xff] %v3337
      %3370 = vst [vmem:[%s231 + $0x68] sm:$0xff] %v3338
      %3371 = vst [vmem:[%s231 + $0x70] sm:$0xff] %v3339
      %3372 = vst [vmem:[%s231 + $0x78] sm:$0xff] %v3340
      %3373 = vst [vmem:[%s231 + $0x80] sm:$0xff] %v3341
      %3374 = vst [vmem:[%s231 + $0x88] sm:$0xff] %v3342
      %3375 = vst [vmem:[%s231 + $0x90] sm:$0xff] %v3343
      %3376 = vst [vmem:[%s231 + $0x98] sm:$0xff] %v3344
      %3377 = vst [vmem:[%s231 + $0xa0] sm:$0xff] %v3345
      %3378 = vst [vmem:[%s231 + $0xa8] sm:$0xff] %v3346
      %3379 = vst [vmem:[%s231 + $0xb0] sm:$0xff] %v3347
      %3380 = vst [vmem:[%s231 + $0xb8] sm:$0xff] %v3348
      %3381 = vst [vmem:[%s231 + $0xc0] sm:$0xff] %v3349
      %3382 = vst [vmem:[%s231 + $0xc8] sm:$0xff] %v3350
      %3383 = vst [vmem:[%s231 + $0xd0] sm:$0xff] %v3351
      %3384 = vst [vmem:[%s231 + $0xd8] sm:$0xff] %v3352
      %3385 = vst [vmem:[%s231 + $0xe0] sm:$0xff] %v3353
      %3386 = vst [vmem:[%s231 + $0xe8] sm:$0xff] %v3354
      %3387 = vst [vmem:[%s231 + $0xf0] sm:$0xff] %v3355
      %3388 = vst [vmem:[%s231 + $0xf8] sm:$0xff] %v3356
      %v3389 = vadd.f32 %v3325, %v3326
      %v3390 = vadd.f32 %v3389, %v3327
      %v3391 = vadd.f32 %v3390, %v3328
      %v3392 = vadd.f32 %v3391, %v3329
      %v3393 = vadd.f32 %v3392, %v3330
      %v3394 = vadd.f32 %v3393, %v3331
      %v3395 = vadd.f32 %v3394, %v3332
      %v3396 = vadd.f32 %v3395, %v3333
      %v3397 = vadd.f32 %v3396, %v3334
      %v3398 = vadd.f32 %v3397, %v3335
      %v3399 = vadd.f32 %v3398, %v3336
      %v3400 = vadd.f32 %v3399, %v3337
      %v3401 = vadd.f32 %v3400, %v3338
      %v3402 = vadd.f32 %v3401, %v3339
      %v3403 = vadd.f32 %v3402, %v3340
      %v3404 = vadd.f32 %v3403, %v3341
      %v3405 = vadd.f32 %v3404, %v3342
      %v3406 = vadd.f32 %v3405, %v3343
      %v3407 = vadd.f32 %v3406, %v3344
      %v3408 = vadd.f32 %v3407, %v3345
      %v3409 = vadd.f32 %v3408, %v3346
      %v3410 = vadd.f32 %v3409, %v3347
      %v3411 = vadd.f32 %v3410, %v3348
      %v3412 = vadd.f32 %v3411, %v3349
      %v3413 = vadd.f32 %v3412, %v3350
      %v3414 = vadd.f32 %v3413, %v3351
      %v3415 = vadd.f32 %v3414, %v3352
      %v3416 = vadd.f32 %v3415, %v3353
      %v3417 = vadd.f32 %v3416, %v3354
      %v3418 = vadd.f32 %v3417, %v3355
      %v3419 = vadd.f32 %v3418, %v3356
      %v3420 = vrot.slane %v3419, 4
      %v3421 = vadd.f32 %v3419, %v3420
      %v3422 = vrot.slane %v3421, 2
      %v3423 = vadd.f32 %v3421, %v3422
      %v3424 = vrot.slane %v3423, 1
      %v3425 = vadd.f32 %v3423, %v3424
      %v3426 = vmul.f32 %v3425, 0.00390625
      %v3427 = vsub.f32 %v3325, %v3426
      %v3428 = vsub.f32 %v3326, %v3426
      %v3429 = vsub.f32 %v3327, %v3426
      %v3430 = vsub.f32 %v3328, %v3426
      %v3431 = vsub.f32 %v3329, %v3426
      %v3432 = vsub.f32 %v3330, %v3426
      %v3433 = vsub.f32 %v3331, %v3426
      %v3434 = vsub.f32 %v3332, %v3426
      %v3435 = vsub.f32 %v3333, %v3426
      %v3436 = vsub.f32 %v3334, %v3426
      %v3437 = vsub.f32 %v3335, %v3426
      %v3438 = vsub.f32 %v3336, %v3426
      %v3439 = vsub.f32 %v3337, %v3426
      %v3440 = vsub.f32 %v3338, %v3426
      %v3441 = vsub.f32 %v3339, %v3426
      %v3442 = vsub.f32 %v3340, %v3426
      %v3443 = vsub.f32 %v3341, %v3426
      %v3444 = vsub.f32 %v3342, %v3426
      %v3445 = vsub.f32 %v3343, %v3426
      %v3446 = vsub.f32 %v3344, %v3426
      %v3447 = vsub.f32 %v3345, %v3426
      %v3448 = vsub.f32 %v3346, %v3426
      %v3449 = vsub.f32 %v3347, %v3426
      %v3450 = vsub.f32 %v3348, %v3426
      %v3451 = vsub.f32 %v3349, %v3426
      %v3452 = vsub.f32 %v3350, %v3426
      %v3453 = vsub.f32 %v3351, %v3426
      %v3454 = vsub.f32 %v3352, %v3426
      %v3455 = vsub.f32 %v3353, %v3426
      %v3456 = vsub.f32 %v3354, %v3426
      %v3457 = vsub.f32 %v3355, %v3426
      %v3458 = vsub.f32 %v3356, %v3426
      %v3459 = vmul.f32 %v3427, %v3427
      %v3460 = vmul.f32 %v3428, %v3428
      %v3461 = vmul.f32 %v3429, %v3429
      %v3462 = vmul.f32 %v3430, %v3430
      %v3463 = vmul.f32 %v3431, %v3431
      %v3464 = vmul.f32 %v3432, %v3432
      %v3465 = vmul.f32 %v3433, %v3433
      %v3466 = vmul.f32 %v3434, %v3434
      %v3467 = vmul.f32 %v3435, %v3435
      %v3468 = vmul.f32 %v3436, %v3436
      %v3469 = vmul.f32 %v3437, %v3437
      %v3470 = vmul.f32 %v3438, %v3438
      %v3471 = vmul.f32 %v3439, %v3439
      %v3472 = vmul.f32 %v3440, %v3440
      %v3473 = vmul.f32 %v3441, %v3441
      %v3474 = vmul.f32 %v3442, %v3442
      %v3475 = vmul.f32 %v3443, %v3443
      %v3476 = vmul.f32 %v3444, %v3444
      %v3477 = vmul.f32 %v3445, %v3445
      %v3478 = vmul.f32 %v3446, %v3446
      %v3479 = vmul.f32 %v3447, %v3447
      %v3480 = vmul.f32 %v3448, %v3448
      %v3481 = vmul.f32 %v3449, %v3449
      %v3482 = vmul.f32 %v3450, %v3450
      %v3483 = vmul.f32 %v3451, %v3451
      %v3484 = vmul.f32 %v3452, %v3452
      %v3485 = vmul.f32 %v3453, %v3453
      %v3486 = vmul.f32 %v3454, %v3454
      %v3487 = vmul.f32 %v3455, %v3455
      %v3488 = vmul.f32 %v3456, %v3456
      %v3489 = vmul.f32 %v3457, %v3457
      %v3490 = vmul.f32 %v3458, %v3458
      %v3491 = vadd.f32 %v3459, %v3460
      %v3492 = vadd.f32 %v3491, %v3461
      %v3493 = vadd.f32 %v3492, %v3462
      %v3494 = vadd.f32 %v3493, %v3463
      %v3495 = vadd.f32 %v3494, %v3464
      %v3496 = vadd.f32 %v3495, %v3465
      %v3497 = vadd.f32 %v3496, %v3466
      %v3498 = vadd.f32 %v3497, %v3467
      %v3499 = vadd.f32 %v3498, %v3468
      %v3500 = vadd.f32 %v3499, %v3469
      %v3501 = vadd.f32 %v3500, %v3470
      %v3502 = vadd.f32 %v3501, %v3471
      %v3503 = vadd.f32 %v3502, %v3472
      %v3504 = vadd.f32 %v3503, %v3473
      %v3505 = vadd.f32 %v3504, %v3474
      %v3506 = vadd.f32 %v3505, %v3475
      %v3507 = vadd.f32 %v3506, %v3476
      %v3508 = vadd.f32 %v3507, %v3477
      %v3509 = vadd.f32 %v3508, %v3478
      %v3510 = vadd.f32 %v3509, %v3479
      %v3511 = vadd.f32 %v3510, %v3480
      %v3512 = vadd.f32 %v3511, %v3481
      %v3513 = vadd.f32 %v3512, %v3482
      %v3514 = vadd.f32 %v3513, %v3483
      %v3515 = vadd.f32 %v3514, %v3484
      %v3516 = vadd.f32 %v3515, %v3485
      %v3517 = vadd.f32 %v3516, %v3486
      %v3518 = vadd.f32 %v3517, %v3487
      %v3519 = vadd.f32 %v3518, %v3488
      %v3520 = vadd.f32 %v3519, %v3489
      %v3521 = vadd.f32 %v3520, %v3490
      %v3522 = vrot.slane %v3521, 4
      %v3523 = vadd.f32 %v3521, %v3522
      %v3524 = vrot.slane %v3523, 2
      %v3525 = vadd.f32 %v3523, %v3524
      %v3526 = vrot.slane %v3525, 1
      %v3527 = vadd.f32 %v3525, %v3526
      %v3528 = vsel %vm565, %v3425, %v3527
      %vm3529 = vcmask 1041408
      %v3530 = vsel %vm3529, %v3528, 0.0
      %3531 = vst [vmem:[%s235] sm:$0xff] %v3530
      %p3532 = scmp.lt.s32.totalorder %s17, 1
      %s3533 = scalar_select %p3532, %s17, 1
      %s3534 = smul.addr %s3533, 32
      %s3535 = smul.addr %s3534, 8
      %s3536 = scalar_lea.vmem %s4, %s3535
      %p3537 = scmp.lt.s32.totalorder %s17, 1
      %s3538 = scalar_select %p3537, %s17, 1
      %s3539 = smul.addr %s3538, 8
      %s3540 = scalar_lea.vmem %s5, %s3539
      // Predicated region
      $region37: #{basic_block_forward.4} parent=35 // pred_check
        %p3541 = pneg %p124
      $region38: #{basic_block_forward.4} parent=35 // pred_check_branch
        %3543 = sbr.rel (%p3541) target = $region40
      $region39: #{basic_block_forward.4} parent=35 // pred_region
        _
      $region40: #{basic_block_forward.4} parent=35 // pred_fallthru
        _
      // Predicated region
      $region41: #{basic_block_forward.4} parent=35 // pred_check
        %p3544 = pneg %p150
      $region42: #{basic_block_forward.4} parent=35 // pred_check_branch
        %3546 = sbr.rel (%p3544) target = $region44
      $region43: #{basic_block_forward.4} parent=35 // pred_region
        _
      $region44: #{basic_block_forward.4} parent=35 // pred_fallthru
        _
    $region36: #{basic_block_forward.4} parent=5 // pred_fallthru
      _
    %p3547 = scmp.le.s32.totalorder 2, %s12
    // Predicated region
    $region45: #{basic_block_forward.4} parent=5 // pred_check
      %p3548 = pneg %p3547
    $region46: #{basic_block_forward.4} parent=5 // pred_check_branch
      %3550 = sbr.rel (%p3548) target = $region48
    $region47: #{basic_block_forward.4} parent=5 // pred_region
      %s3551 = ssub.s32 %s12, 2
      // Predicated region
      $region49: #{basic_block_forward.4} parent=47 // pred_check
        %p3552 = pneg %p130
      $region50: #{basic_block_forward.4} parent=47 // pred_check_branch
        %3554 = sbr.rel (%p3552) target = $region52
      $region51: #{basic_block_forward.4} parent=47 // pred_region
        %p3555 = scmp.lt.s32.totalorder %s18, 1
        %s3556 = scalar_select %p3555, %s18, 1
        %s3557 = smul.addr %s3556, 32
        %s3558 = smul.addr %s3557, 8
        %s3559 = scalar_lea.vmem %s4, %s3558
      $region52: #{basic_block_forward.4} parent=47 // pred_fallthru
        _
      // Predicated region
      $region53: #{basic_block_forward.4} parent=47 // pred_check
        %p3560 = pneg %p156
      $region54: #{basic_block_forward.4} parent=47 // pred_check_branch
        %3562 = sbr.rel (%p3560) target = $region56
      $region55: #{basic_block_forward.4} parent=47 // pred_region
        %p3563 = scmp.lt.s32.totalorder %s18, 1
        %s3564 = scalar_select %p3563, %s18, 1
        %s3565 = smul.addr %s3564, 8
        %s3566 = scalar_lea.vmem %s5, %s3565
      $region56: #{basic_block_forward.4} parent=47 // pred_fallthru
        _
    $region48: #{basic_block_forward.4} parent=5 // pred_fallthru
      _
  $region6: #{basic_block_forward.4} parent=0 // loop_footer
    %s16 = sadd.s32 1, %s12
  $region7: #{basic_block_forward.4} parent=0 // loop_footer_branch
    %11 = sbr.rel target = $region3
  $region8: #{basic_block_forward.4} parent=0 // loop_exit
    _

</llo_original>
